<compile_context>
chip_gen: v7x
topology: tpu7x:2x2x1
jax: 0.10.0
libtpu: 0.0.40
codegen_flags: <defaults>
</compile_context>

<pallas_src>
import functools
import numpy as np
import jax
import jax.numpy as jnp
from jax.experimental import pallas as pl
from jax.experimental.pallas import tpu as pltpu

# ----------------------------- configuration --------------------------------
WIN, HOP = 64, 32                 # extractor framing (fbank approx)
N_MELS = 40
FRONTEND_OUT = 32                 # conv1d frontend out_channels
BB_HIDDEN = [32, 32, 64, 64]      # resnet1d hidden_channels (small synthetic)
BB_STRIDE = [1, 2, 2, 2]
BLOCK_NUM = 1
BE_HIDDEN = [48, 48, 48]          # TCN hidden (3 branches x 16)
BE_KERNELS = [3, 5, 7]
NUM_CLASSES = 16
SIDE_W = 64                       # lane width of packed bias / PReLU-alpha rows

ROWS_PER_BLOCK = 128              # rows (= utterances*frames) per grid step (fills MXU M)


# ---------------------------------------------------------------------------
# Offline packing: fold BN into weights, build tap-concatenated weight slabs at
# their REAL sizes, assign bias/alpha side rows, and collect the (few) distinct
# edge masks needed by the rolled taps.
# ---------------------------------------------------------------------------
def build_model(key, T0, B):
    keys = iter(jax.random.split(key, 128))

    def nrm(shape, s=0.1):
        return np.asarray(s * jax.random.normal(next(keys), shape, jnp.float32))

    weights, side_rows, mask_cols = [], [], {}

    def add_w(m):
        weights.append(np.asarray(m, np.float32))
        return len(weights) - 1

    def add_s(v):
        v = np.asarray(v, np.float32).reshape(-1)
        row = np.zeros((SIDE_W,), np.float32)
        row[:v.size] = v
        side_rows.append(row)
        return len(side_rows) - 1

    def add_mask(lo, hi):
        if (lo, hi) == (0, T0):
            return None                       # full-range tap -> no mask needed
        if (lo, hi) not in mask_cols:
            mask_cols[(lo, hi)] = len(mask_cols)
        return mask_cols[(lo, hi)]

    def make_conv(w_taps, bias, k, pad, dil, t_in):
        """1-D conv (kernel k, 'same' pad, input dilation dil = cumulative stride,
        logical input length t_in) -> one tap-concatenated weight slab + masks."""
        w_taps = np.asarray(w_taps, np.float32)
        v_in = t_in * dil                     # valid physical extent of the input
        taps, w_blocks = [], []
        for i in range(k):
            o = (i - pad) * dil               # physical (frame-grid) tap offset
            lo, hi = max(0, -o), min(T0, v_in - o)
            if lo >= hi:                      # statically dead tap: prune
                continue
            taps.append((o, add_mask(lo, hi)))
            w_blocks.append(w_taps[i])
        wcat = np.concatenate(w_blocks, axis=0)            # (n_kept*cin, cout)
        return dict(w=add_w(wcat), b=add_s(bias), taps=taps)

    def folded(k, cin, cout):                 # conv weight with BN scale folded in
        return nrm((k, cin, cout)) * (1.0 + nrm((cout,)))

    plan = {}

    # extractor ('fbank' approx): framed mel projection; log-power applied in kernel
    plan['mel_w'] = add_w(np.abs(nrm((WIN, N_MELS), 0.3)))

    # frontend: k=1 conv1d + folded BN + ReLU
    plan['frontend'] = make_conv(folded(1, N_MELS, FRONTEND_OUT),
                                 nrm((FRONTEND_OUT,)), k=1, pad=0, dil=1, t_in=T0)

    # backbone: resnet1d basic blocks (dilated row layout absorbs the strides)
    plan['backbone'] = []
    t, d, cin = T0, 1, FRONTEND_OUT
    for cout, st in zip(BB_HIDDEN, BB_STRIDE):
        for bi in range(BLOCK_NUM):
            s = st if bi == 0 else 1
            t_out = (t + 2 * 1 - 3) // s + 1             # k=3, pad=1 output length
            blk = dict(
                conv1=make_conv(folded(3, cin, cout), nrm((cout,)), 3, 1, d, t),
                a1=add_s(np.full((cout,), 0.25, np.float32)),
                conv2=make_conv(folded(3, cout, cout), nrm((cout,)), 3, 1, d * s, t_out),
                a2=add_s(np.full((cout,), 0.25, np.float32)),
                down=None)
            if s != 1 or cin != cout:
                # k=1 strided shortcut: identity in the dilated row layout (plain matmul)
                blk['down'] = make_conv(folded(1, cin, cout), nrm((cout,)), 1, 0, d, t)
            plan['backbone'].append(blk)
            t, d, cin = t_out, d * s, cout

    # backend: multibranch TCN layers; k=3/5/7 branches merged into one tap-concat conv
    plan['backend'] = []
    K = max(BE_KERNELS)
    for hid in BE_HIDDEN:
        bo = hid // len(BE_KERNELS)
        w_taps = np.zeros((K, cin, hid), np.float32)
        bias = np.zeros((hid,), np.float32)
        for j, ks in enumerate(BE_KERNELS):
            off = (K - ks) // 2                           # center smaller kernels
            w_taps[off:off + ks, :, j * bo:(j + 1) * bo] = folded(ks, cin, bo)
            bias[j * bo:(j + 1) * bo] = nrm((bo,))
        lyr = dict(conv=make_conv(w_taps, bias, K, (K - 1) // 2, d, t),
                   a=add_s(np.full((hid,), 0.25, np.float32)),
                   res=(cin == hid),
                   a_res=add_s(np.full((hid,), 0.25, np.float32)) if cin == hid else None)
        plan['backend'].append(lyr)
        cin = hid

    # mean consensus (1/T folded into the pool matrix) + FC
    plan['fc_w'] = add_w(nrm((cin, NUM_CLASSES)))
    plan['fc_b'] = add_s(nrm((NUM_CLASSES,)))
    plan['t0'] = T0

    # ----- dense side / mask / pool arrays -----
    n_side = ((len(side_rows) + 7) // 8) * 8
    sides = np.zeros((n_side, SIDE_W), np.float32)
    sides[:len(side_rows)] = np.stack(side_rows)

    n_mask = max(1, len(mask_cols))

    def build_masks(rows):
        m = np.zeros((rows, n_mask), np.float32)
        tloc = np.arange(rows) % T0
        for (lo, hi), j in mask_cols.items():
            m[:, j] = ((tloc >= lo) & (tloc < hi)).astype(np.float32)
        return m

    def build_pool(n_batch, rows):            # mean over valid rows (1/T folded in)
        p = np.zeros((n_batch, rows), np.float32)
        for b in range(n_batch):
            for tt in range(t):
                p[b, b * T0 + tt * d] = 1.0 / t
        return p

    b_per_block = ROWS_PER_BLOCK // T0
    model = dict(
        weights=[jnp.asarray(w, jnp.bfloat16) for w in weights],
        sides=jnp.asarray(sides, jnp.float32),
        masks=jnp.asarray(build_masks(ROWS_PER_BLOCK), jnp.float32),
        pool=jnp.asarray(build_pool(b_per_block, ROWS_PER_BLOCK), jnp.float32),
        masks_full=jnp.asarray(build_masks(B * T0), jnp.float32),
        pool_full=jnp.asarray(build_pool(B, B * T0), jnp.float32),
    )
    return plan, model


# ---------------------------------------------------------------------------
# Shared network body: used by the Pallas kernel (pltpu.roll, weight Refs) and by
# the pure-JAX reference (jnp.roll, weight arrays).  `roll(v, s)` must follow
# np.roll semantics (shift toward higher row indices).
# ---------------------------------------------------------------------------
def _forward_body(frames, masks, sides, pool, weights, *, plan, roll):
    rows = frames.shape[0]

    def srow(idx, width):                                    # (1, width) bias/alpha row
        return sides[idx:idx + 1, :width]

    def conv(x, op):
        w = weights[op['w']][...]                            # real-size bf16 W_cat slab
        cols = []
        for o, mcol in op['taps']:
            tc = x if o == 0 else roll(x, (-o) % rows)       # sublane shift (XLU), f32
            if mcol is not None:
                tc = tc * masks[:, mcol:mcol + 1]            # batch/edge mask (VPU)
            cols.append(tc)
        xc = cols[0] if len(cols) == 1 else jnp.concatenate(cols, axis=-1)
        y = jnp.dot(xc.astype(jnp.bfloat16), w,              # ONE MXU matmul per conv
                    preferred_element_type=jnp.float32)
        return y + srow(op['b'], w.shape[-1])

    def prelu(y, aidx):
        a = srow(aidx, y.shape[-1])
        return jnp.where(y > 0.0, y, a * y)

    # extractor ('fbank' approx): mel projection + log power
    y = jnp.dot(frames.astype(jnp.bfloat16), weights[plan['mel_w']][...],
                preferred_element_type=jnp.float32)
    x = jnp.log(y * y + 1e-6)

    # frontend: 1x1 conv (BN folded) + ReLU
    x = jnp.maximum(conv(x, plan['frontend']), 0.0)

    # backbone: resnet1d basic blocks (residual add + PReLU fused)
    for blk in plan['backbone']:
        y = prelu(conv(x, blk['conv1']), blk['a1'])
        y = conv(y, blk['conv2'])                            # conv + folded BN affine
        sc = conv(x, blk['down']) if blk['down'] is not None else x
        x = prelu(y + sc, blk['a2'])

    # backend: merged-branch TCN layers (residual fused)
    for lyr in plan['backend']:
        y = prelu(conv(x, lyr['conv']), lyr['a'])
        if lyr['res']:
            y = prelu(y + x, lyr['a_res'])
        x = y

    # mean consensus (1/T folded into pool) + FC
    pooled = jnp.dot(pool.astype(jnp.bfloat16), x.astype(jnp.bfloat16),
                     preferred_element_type=jnp.float32)
    logits = jnp.dot(pooled.astype(jnp.bfloat16), weights[plan['fc_w']][...],
                     preferred_element_type=jnp.float32)
    return logits + srow(plan['fc_b'], NUM_CLASSES)


# ---------------------------------------------------------------------------
# The single fused Pallas kernel (one row-block of utterances per grid step)
# ---------------------------------------------------------------------------
def _fused_kernel(*refs, plan, n_weights):
    frames_ref, masks_ref, sides_ref, pool_ref = refs[0], refs[1], refs[2], refs[3]
    w_refs = refs[4:4 + n_weights]
    out_ref = refs[4 + n_weights]
    logits = _forward_body(
        frames_ref[...], masks_ref[...], sides_ref[...], pool_ref[...], w_refs,
        plan=plan, roll=lambda v, s: pltpu.roll(v, s, axis=0))
    out_ref[...] = logits


# ---------------------------------------------------------------------------
# AudioClassifier.forward
# ---------------------------------------------------------------------------
def forward(plan, model, wave, length):
    wave = wave.astype(jnp.float32)                     # skip_convert = False
    B, L = wave.shape
    T0 = plan['t0']
    assert (L - WIN) // HOP + 1 == T0
    rows = B * T0
    assert ROWS_PER_BLOCK % T0 == 0 and rows % ROWS_PER_BLOCK == 0
    n_blocks = rows // ROWS_PER_BLOCK
    b_per_block = ROWS_PER_BLOCK // T0

    # one-time input prep: frame the waveform; everything else is one pallas_call
    idx = jnp.arange(T0)[:, None] * HOP + jnp.arange(WIN)[None, :]
    frames = wave[:, idx].reshape(rows, WIN)

    weights = model['weights']
    n_w = len(weights)
    kern = functools.partial(_fused_kernel, plan=plan, n_weights=n_w)

    in_specs = [
        pl.BlockSpec((ROWS_PER_BLOCK, WIN), lambda i: (i, 0)),        # frames (row-tiled)
        pl.BlockSpec(model['masks'].shape, lambda i: (0, 0)),         # edge masks
        pl.BlockSpec(model['sides'].shape, lambda i: (0, 0)),         # biases / alphas
        pl.BlockSpec(model['pool'].shape, lambda i: (0, 0)),          # consensus matrix
    ] + [pl.BlockSpec(w.shape, lambda i: (0, 0)) for w in weights]    # real-size weights

    logits = pl.pallas_call(
        kern,
        out_shape=jax.ShapeDtypeStruct((B, NUM_CLASSES), jnp.float32),
        grid=(n_blocks,),
        in_specs=in_specs,
        out_specs=pl.BlockSpec((b_per_block, NUM_CLASSES), lambda i: (i, 0)),
        compiler_params=pltpu.CompilerParams(
            dimension_semantics=("parallel",),          # v7x: row-blocks across both TCs
            vmem_limit_bytes=32 * 1024 * 1024,
        ),
    )(frames, model['masks'], model['sides'], model['pool'], *weights)

    # length bookkeeping (scalar math mirroring the module)
    length = (length - WIN) // HOP + 1                  # extractor framing
    length = length // 1                                # frontend length_retract (=stride=1)
    for st in BB_STRIDE:
        if st != 1:
            length = (length + 2 * 1 - 3) // st + 1     # k=3 pad=1 strided backbone conv
    return logits, length


if __name__ == "__main__":
    key = jax.random.PRNGKey(0)
    mkey, wkey = jax.random.split(key)

    B, L = 16, 544                                      # -> T0 = 16 frames, 256 rows = 2 blocks
    T0 = (L - WIN) // HOP + 1

    plan, model = build_model(mkey, T0, B)
    wave = jax.random.normal(wkey, (B, L), jnp.float32)
    length = jnp.full((B,), L, jnp.int32).at[1].set(480)

    fwd = jax.jit(functools.partial(forward, plan))
    logits, out_len = fwd(model, wave, length)
    jax.block_until_ready((logits, out_len))

    # pure-JAX reference of the SAME packed computation (jnp.roll instead of pltpu.roll)
    idx = jnp.arange(T0)[:, None] * HOP + jnp.arange(WIN)[None, :]
    frames_full = wave.astype(jnp.float32)[:, idx].reshape(B * T0, WIN)
    ref_fn = jax.jit(lambda fr: _forward_body(
        fr, model['masks_full'], model['sides'], model['pool_full'], model['weights'],
        plan=plan, roll=lambda v, s: jnp.roll(v, s, axis=0)))
    ref_logits = np.asarray(ref_fn(frames_full))

    logits_np = np.asarray(logits)
    assert logits.shape == (B, NUM_CLASSES)
    assert out_len.shape == (B,)
    assert bool(jnp.all(jnp.isfinite(logits)))
    max_diff = float(np.max(np.abs(logits_np - ref_logits)))
    assert np.allclose(logits_np, ref_logits, atol=5e-2, rtol=5e-2), max_diff
    print("KERNEL_OK")
</pallas_src>

<mosaic_0001>
module attributes {stable_mosaic.version = 11 : i64} {
  func.func @_fused_kernel(%arg0: i32, %arg1: memref<128x64xf32, #tpu.memory_space<vmem>>, %arg2: memref<128x8xf32, #tpu.memory_space<vmem>>, %arg3: memref<32x64xf32, #tpu.memory_space<vmem>>, %arg4: memref<8x128xf32, #tpu.memory_space<vmem>>, %arg5: memref<64x40xbf16, #tpu.memory_space<vmem>>, %arg6: memref<40x32xbf16, #tpu.memory_space<vmem>>, %arg7: memref<96x32xbf16, #tpu.memory_space<vmem>>, %arg8: memref<96x32xbf16, #tpu.memory_space<vmem>>, %arg9: memref<96x32xbf16, #tpu.memory_space<vmem>>, %arg10: memref<96x32xbf16, #tpu.memory_space<vmem>>, %arg11: memref<32x32xbf16, #tpu.memory_space<vmem>>, %arg12: memref<96x64xbf16, #tpu.memory_space<vmem>>, %arg13: memref<192x64xbf16, #tpu.memory_space<vmem>>, %arg14: memref<32x64xbf16, #tpu.memory_space<vmem>>, %arg15: memref<192x64xbf16, #tpu.memory_space<vmem>>, %arg16: memref<192x64xbf16, #tpu.memory_space<vmem>>, %arg17: memref<64x64xbf16, #tpu.memory_space<vmem>>, %arg18: memref<192x48xbf16, #tpu.memory_space<vmem>>, %arg19: memref<144x48xbf16, #tpu.memory_space<vmem>>, %arg20: memref<144x48xbf16, #tpu.memory_space<vmem>>, %arg21: memref<48x16xbf16, #tpu.memory_space<vmem>>, %arg22: memref<8x16xf32, #tpu.memory_space<vmem>>) attributes {dimension_semantics = [#tpu.dimension_semantics<parallel>], iteration_bounds = array<i64: 2>, scalar_prefetch = 0 : i64, scratch_operands = 0 : i64, tpu.core_type = #tpu.core_type<tc>, window_params = [{transform_indices = @transform_0, window_bounds = array<i64: 128, 64>}, {pipeline_mode = #tpu.pipeline_mode<synchronous>, transform_indices = @transform_1, window_bounds = array<i64: 128, 8>}, {pipeline_mode = #tpu.pipeline_mode<synchronous>, transform_indices = @transform_2, window_bounds = array<i64: 32, 64>}, {pipeline_mode = #tpu.pipeline_mode<synchronous>, transform_indices = @transform_3, window_bounds = array<i64: 8, 128>}, {pipeline_mode = #tpu.pipeline_mode<synchronous>, transform_indices = @transform_4, window_bounds = array<i64: 64, 40>}, {pipeline_mode = #tpu.pipeline_mode<synchronous>, transform_indices = @transform_5, window_bounds = array<i64: 40, 32>}, {pipeline_mode = #tpu.pipeline_mode<synchronous>, transform_indices = @transform_6, window_bounds = array<i64: 96, 32>}, {pipeline_mode = #tpu.pipeline_mode<synchronous>, transform_indices = @transform_7, window_bounds = array<i64: 96, 32>}, {pipeline_mode = #tpu.pipeline_mode<synchronous>, transform_indices = @transform_8, window_bounds = array<i64: 96, 32>}, {pipeline_mode = #tpu.pipeline_mode<synchronous>, transform_indices = @transform_9, window_bounds = array<i64: 96, 32>}, {pipeline_mode = #tpu.pipeline_mode<synchronous>, transform_indices = @transform_10, window_bounds = array<i64: 32, 32>}, {pipeline_mode = #tpu.pipeline_mode<synchronous>, transform_indices = @transform_11, window_bounds = array<i64: 96, 64>}, {pipeline_mode = #tpu.pipeline_mode<synchronous>, transform_indices = @transform_12, window_bounds = array<i64: 192, 64>}, {pipeline_mode = #tpu.pipeline_mode<synchronous>, transform_indices = @transform_13, window_bounds = array<i64: 32, 64>}, {pipeline_mode = #tpu.pipeline_mode<synchronous>, transform_indices = @transform_14, window_bounds = array<i64: 192, 64>}, {pipeline_mode = #tpu.pipeline_mode<synchronous>, transform_indices = @transform_15, window_bounds = array<i64: 192, 64>}, {pipeline_mode = #tpu.pipeline_mode<synchronous>, transform_indices = @transform_16, window_bounds = array<i64: 64, 64>}, {pipeline_mode = #tpu.pipeline_mode<synchronous>, transform_indices = @transform_17, window_bounds = array<i64: 192, 48>}, {pipeline_mode = #tpu.pipeline_mode<synchronous>, transform_indices = @transform_18, window_bounds = array<i64: 144, 48>}, {pipeline_mode = #tpu.pipeline_mode<synchronous>, transform_indices = @transform_19, window_bounds = array<i64: 144, 48>}, {pipeline_mode = #tpu.pipeline_mode<synchronous>, transform_indices = @transform_20, window_bounds = array<i64: 48, 16>}, {transform_indices = @transform_21, window_bounds = array<i64: 8, 16>}]} {
    %c0 = arith.constant 0 : index
    %c0_0 = arith.constant 0 : index
    %0 = vector.load %arg1[%c0, %c0_0] : memref<128x64xf32, #tpu.memory_space<vmem>>, vector<128x64xf32>
    %c0_1 = arith.constant 0 : index
    %c0_2 = arith.constant 0 : index
    %1 = vector.load %arg2[%c0_1, %c0_2] : memref<128x8xf32, #tpu.memory_space<vmem>>, vector<128x8xf32>
    %c0_3 = arith.constant 0 : index
    %c0_4 = arith.constant 0 : index
    %2 = vector.load %arg3[%c0_3, %c0_4] : memref<32x64xf32, #tpu.memory_space<vmem>>, vector<32x64xf32>
    %c0_5 = arith.constant 0 : index
    %c0_6 = arith.constant 0 : index
    %3 = vector.load %arg4[%c0_5, %c0_6] : memref<8x128xf32, #tpu.memory_space<vmem>>, vector<8x128xf32>
    %4 = arith.truncf %0 : vector<128x64xf32> to vector<128x64xbf16>
    %c0_7 = arith.constant 0 : index
    %c0_8 = arith.constant 0 : index
    %5 = vector.load %arg5[%c0_7, %c0_8] : memref<64x40xbf16, #tpu.memory_space<vmem>>, vector<64x40xbf16>
    %cst = arith.constant dense<0.000000e+00> : vector<128x40xf32>
    %6 = tpu.matmul %4, %5, %cst {dimension_numbers = #tpu.dot_dimension_numbers<[1], [0], [0], [1], [0, 0, 1, 1], [], []>} : vector<128x64xbf16>, vector<64x40xbf16>, vector<128x40xf32> -> vector<128x40xf32>
    %7 = arith.mulf %6, %6 : vector<128x40xf32>
    %cst_9 = arith.constant 9.99999997E-7 : f32
    %8 = vector.broadcast %cst_9 : f32 to vector<128x40xf32>
    %9 = arith.addf %7, %8 : vector<128x40xf32>
    %10 = math.log %9 : vector<128x40xf32>
    %c0_10 = arith.constant 0 : index
    %c0_11 = arith.constant 0 : index
    %11 = vector.load %arg6[%c0_10, %c0_11] : memref<40x32xbf16, #tpu.memory_space<vmem>>, vector<40x32xbf16>
    %12 = arith.truncf %10 : vector<128x40xf32> to vector<128x40xbf16>
    %cst_12 = arith.constant dense<0.000000e+00> : vector<128x32xf32>
    %13 = tpu.matmul %12, %11, %cst_12 {dimension_numbers = #tpu.dot_dimension_numbers<[1], [0], [0], [1], [0, 0, 1, 1], [], []>} : vector<128x40xbf16>, vector<40x32xbf16>, vector<128x32xf32> -> vector<128x32xf32>
    %14 = vector.extract_strided_slice %2 {offsets = [0, 0], sizes = [1, 32], strides = [1, 1]} : vector<32x64xf32> to vector<1x32xf32>
    %15 = vector.broadcast %14 : vector<1x32xf32> to vector<128x32xf32>
    %16 = arith.addf %13, %15 : vector<128x32xf32>
    %cst_13 = arith.constant 0.000000e+00 : f32
    %17 = vector.broadcast %cst_13 : f32 to vector<128x32xf32>
    %18 = arith.maximumf %16, %17 : vector<128x32xf32>
    %c0_14 = arith.constant 0 : index
    %c0_15 = arith.constant 0 : index
    %19 = vector.load %arg7[%c0_14, %c0_15] : memref<96x32xbf16, #tpu.memory_space<vmem>>, vector<96x32xbf16>
    %c1_i32 = arith.constant 1 : i32
    %20 = tpu.dynamic_rotate %18 by %c1_i32 dim 0 : vector<128x32xf32>, i32 -> vector<128x32xf32>
    %21 = vector.extract_strided_slice %1 {offsets = [0, 0], sizes = [128, 1], strides = [1, 1]} : vector<128x8xf32> to vector<128x1xf32>
    %22 = vector.broadcast %21 : vector<128x1xf32> to vector<128x32xf32>
    %23 = arith.mulf %20, %22 : vector<128x32xf32>
    %c127_i32 = arith.constant 127 : i32
    %24 = tpu.dynamic_rotate %18 by %c127_i32 dim 0 : vector<128x32xf32>, i32 -> vector<128x32xf32>
    %25 = vector.extract_strided_slice %1 {offsets = [0, 1], sizes = [128, 1], strides = [1, 1]} : vector<128x8xf32> to vector<128x1xf32>
    %26 = vector.broadcast %25 : vector<128x1xf32> to vector<128x32xf32>
    %27 = arith.mulf %24, %26 : vector<128x32xf32>
    %28 = tpu.concatenate %23, %18, %27 in 1 : vector<128x32xf32>, vector<128x32xf32>, vector<128x32xf32> -> vector<128x96xf32>
    %29 = arith.truncf %28 : vector<128x96xf32> to vector<128x96xbf16>
    %cst_16 = arith.constant dense<0.000000e+00> : vector<128x32xf32>
    %30 = tpu.matmul %29, %19, %cst_16 {dimension_numbers = #tpu.dot_dimension_numbers<[1], [0], [0], [1], [0, 0, 1, 1], [], []>} : vector<128x96xbf16>, vector<96x32xbf16>, vector<128x32xf32> -> vector<128x32xf32>
    %31 = vector.extract_strided_slice %2 {offsets = [1, 0], sizes = [1, 32], strides = [1, 1]} : vector<32x64xf32> to vector<1x32xf32>
    %32 = vector.broadcast %31 : vector<1x32xf32> to vector<128x32xf32>
    %33 = arith.addf %30, %32 : vector<128x32xf32>
    %34 = vector.extract_strided_slice %2 {offsets = [2, 0], sizes = [1, 32], strides = [1, 1]} : vector<32x64xf32> to vector<1x32xf32>
    %cst_17 = arith.constant 0.000000e+00 : f32
    %35 = vector.broadcast %cst_17 : f32 to vector<128x32xf32>
    %36 = arith.cmpf ogt, %33, %35 : vector<128x32xf32>
    %37 = vector.broadcast %34 : vector<1x32xf32> to vector<128x32xf32>
    %38 = arith.mulf %37, %33 : vector<128x32xf32>
    %39 = arith.select %36, %33, %38 : vector<128x32xi1>, vector<128x32xf32>
    %c0_18 = arith.constant 0 : index
    %c0_19 = arith.constant 0 : index
    %40 = vector.load %arg8[%c0_18, %c0_19] : memref<96x32xbf16, #tpu.memory_space<vmem>>, vector<96x32xbf16>
    %c1_i32_20 = arith.constant 1 : i32
    %41 = tpu.dynamic_rotate %39 by %c1_i32_20 dim 0 : vector<128x32xf32>, i32 -> vector<128x32xf32>
    %42 = vector.extract_strided_slice %1 {offsets = [0, 0], sizes = [128, 1], strides = [1, 1]} : vector<128x8xf32> to vector<128x1xf32>
    %43 = vector.broadcast %42 : vector<128x1xf32> to vector<128x32xf32>
    %44 = arith.mulf %41, %43 : vector<128x32xf32>
    %c127_i32_21 = arith.constant 127 : i32
    %45 = tpu.dynamic_rotate %39 by %c127_i32_21 dim 0 : vector<128x32xf32>, i32 -> vector<128x32xf32>
    %46 = vector.extract_strided_slice %1 {offsets = [0, 1], sizes = [128, 1], strides = [1, 1]} : vector<128x8xf32> to vector<128x1xf32>
    %47 = vector.broadcast %46 : vector<128x1xf32> to vector<128x32xf32>
    %48 = arith.mulf %45, %47 : vector<128x32xf32>
    %49 = tpu.concatenate %44, %39, %48 in 1 : vector<128x32xf32>, vector<128x32xf32>, vector<128x32xf32> -> vector<128x96xf32>
    %50 = arith.truncf %49 : vector<128x96xf32> to vector<128x96xbf16>
    %cst_22 = arith.constant dense<0.000000e+00> : vector<128x32xf32>
    %51 = tpu.matmul %50, %40, %cst_22 {dimension_numbers = #tpu.dot_dimension_numbers<[1], [0], [0], [1], [0, 0, 1, 1], [], []>} : vector<128x96xbf16>, vector<96x32xbf16>, vector<128x32xf32> -> vector<128x32xf32>
    %52 = vector.extract_strided_slice %2 {offsets = [3, 0], sizes = [1, 32], strides = [1, 1]} : vector<32x64xf32> to vector<1x32xf32>
    %53 = vector.broadcast %52 : vector<1x32xf32> to vector<128x32xf32>
    %54 = arith.addf %51, %53 : vector<128x32xf32>
    %55 = arith.addf %54, %18 : vector<128x32xf32>
    %56 = vector.extract_strided_slice %2 {offsets = [4, 0], sizes = [1, 32], strides = [1, 1]} : vector<32x64xf32> to vector<1x32xf32>
    %cst_23 = arith.constant 0.000000e+00 : f32
    %57 = vector.broadcast %cst_23 : f32 to vector<128x32xf32>
    %58 = arith.cmpf ogt, %55, %57 : vector<128x32xf32>
    %59 = vector.broadcast %56 : vector<1x32xf32> to vector<128x32xf32>
    %60 = arith.mulf %59, %55 : vector<128x32xf32>
    %61 = arith.select %58, %55, %60 : vector<128x32xi1>, vector<128x32xf32>
    %c0_24 = arith.constant 0 : index
    %c0_25 = arith.constant 0 : index
    %62 = vector.load %arg9[%c0_24, %c0_25] : memref<96x32xbf16, #tpu.memory_space<vmem>>, vector<96x32xbf16>
    %c1_i32_26 = arith.constant 1 : i32
    %63 = tpu.dynamic_rotate %61 by %c1_i32_26 dim 0 : vector<128x32xf32>, i32 -> vector<128x32xf32>
    %64 = vector.extract_strided_slice %1 {offsets = [0, 0], sizes = [128, 1], strides = [1, 1]} : vector<128x8xf32> to vector<128x1xf32>
    %65 = vector.broadcast %64 : vector<128x1xf32> to vector<128x32xf32>
    %66 = arith.mulf %63, %65 : vector<128x32xf32>
    %c127_i32_27 = arith.constant 127 : i32
    %67 = tpu.dynamic_rotate %61 by %c127_i32_27 dim 0 : vector<128x32xf32>, i32 -> vector<128x32xf32>
    %68 = vector.extract_strided_slice %1 {offsets = [0, 1], sizes = [128, 1], strides = [1, 1]} : vector<128x8xf32> to vector<128x1xf32>
    %69 = vector.broadcast %68 : vector<128x1xf32> to vector<128x32xf32>
    %70 = arith.mulf %67, %69 : vector<128x32xf32>
    %71 = tpu.concatenate %66, %61, %70 in 1 : vector<128x32xf32>, vector<128x32xf32>, vector<128x32xf32> -> vector<128x96xf32>
    %72 = arith.truncf %71 : vector<128x96xf32> to vector<128x96xbf16>
    %cst_28 = arith.constant dense<0.000000e+00> : vector<128x32xf32>
    %73 = tpu.matmul %72, %62, %cst_28 {dimension_numbers = #tpu.dot_dimension_numbers<[1], [0], [0], [1], [0, 0, 1, 1], [], []>} : vector<128x96xbf16>, vector<96x32xbf16>, vector<128x32xf32> -> vector<128x32xf32>
    %74 = vector.extract_strided_slice %2 {offsets = [5, 0], sizes = [1, 32], strides = [1, 1]} : vector<32x64xf32> to vector<1x32xf32>
    %75 = vector.broadcast %74 : vector<1x32xf32> to vector<128x32xf32>
    %76 = arith.addf %73, %75 : vector<128x32xf32>
    %77 = vector.extract_strided_slice %2 {offsets = [6, 0], sizes = [1, 32], strides = [1, 1]} : vector<32x64xf32> to vector<1x32xf32>
    %cst_29 = arith.constant 0.000000e+00 : f32
    %78 = vector.broadcast %cst_29 : f32 to vector<128x32xf32>
    %79 = arith.cmpf ogt, %76, %78 : vector<128x32xf32>
    %80 = vector.broadcast %77 : vector<1x32xf32> to vector<128x32xf32>
    %81 = arith.mulf %80, %76 : vector<128x32xf32>
    %82 = arith.select %79, %76, %81 : vector<128x32xi1>, vector<128x32xf32>
    %c0_30 = arith.constant 0 : index
    %c0_31 = arith.constant 0 : index
    %83 = vector.load %arg10[%c0_30, %c0_31] : memref<96x32xbf16, #tpu.memory_space<vmem>>, vector<96x32xbf16>
    %c2_i32 = arith.constant 2 : i32
    %84 = tpu.dynamic_rotate %82 by %c2_i32 dim 0 : vector<128x32xf32>, i32 -> vector<128x32xf32>
    %85 = vector.extract_strided_slice %1 {offsets = [0, 2], sizes = [128, 1], strides = [1, 1]} : vector<128x8xf32> to vector<128x1xf32>
    %86 = vector.broadcast %85 : vector<128x1xf32> to vector<128x32xf32>
    %87 = arith.mulf %84, %86 : vector<128x32xf32>
    %c126_i32 = arith.constant 126 : i32
    %88 = tpu.dynamic_rotate %82 by %c126_i32 dim 0 : vector<128x32xf32>, i32 -> vector<128x32xf32>
    %89 = vector.extract_strided_slice %1 {offsets = [0, 3], sizes = [128, 1], strides = [1, 1]} : vector<128x8xf32> to vector<128x1xf32>
    %90 = vector.broadcast %89 : vector<128x1xf32> to vector<128x32xf32>
    %91 = arith.mulf %88, %90 : vector<128x32xf32>
    %92 = tpu.concatenate %87, %82, %91 in 1 : vector<128x32xf32>, vector<128x32xf32>, vector<128x32xf32> -> vector<128x96xf32>
    %93 = arith.truncf %92 : vector<128x96xf32> to vector<128x96xbf16>
    %cst_32 = arith.constant dense<0.000000e+00> : vector<128x32xf32>
    %94 = tpu.matmul %93, %83, %cst_32 {dimension_numbers = #tpu.dot_dimension_numbers<[1], [0], [0], [1], [0, 0, 1, 1], [], []>} : vector<128x96xbf16>, vector<96x32xbf16>, vector<128x32xf32> -> vector<128x32xf32>
    %95 = vector.extract_strided_slice %2 {offsets = [7, 0], sizes = [1, 32], strides = [1, 1]} : vector<32x64xf32> to vector<1x32xf32>
    %96 = vector.broadcast %95 : vector<1x32xf32> to vector<128x32xf32>
    %97 = arith.addf %94, %96 : vector<128x32xf32>
    %c0_33 = arith.constant 0 : index
    %c0_34 = arith.constant 0 : index
    %98 = vector.load %arg11[%c0_33, %c0_34] : memref<32x32xbf16, #tpu.memory_space<vmem>>, vector<32x32xbf16>
    %99 = arith.truncf %61 : vector<128x32xf32> to vector<128x32xbf16>
    %cst_35 = arith.constant dense<0.000000e+00> : vector<128x32xf32>
    %100 = tpu.matmul %99, %98, %cst_35 {dimension_numbers = #tpu.dot_dimension_numbers<[1], [0], [0], [1], [0, 0, 1, 1], [], []>} : vector<128x32xbf16>, vector<32x32xbf16>, vector<128x32xf32> -> vector<128x32xf32>
    %101 = vector.extract_strided_slice %2 {offsets = [9, 0], sizes = [1, 32], strides = [1, 1]} : vector<32x64xf32> to vector<1x32xf32>
    %102 = vector.broadcast %101 : vector<1x32xf32> to vector<128x32xf32>
    %103 = arith.addf %100, %102 : vector<128x32xf32>
    %104 = arith.addf %97, %103 : vector<128x32xf32>
    %105 = vector.extract_strided_slice %2 {offsets = [8, 0], sizes = [1, 32], strides = [1, 1]} : vector<32x64xf32> to vector<1x32xf32>
    %cst_36 = arith.constant 0.000000e+00 : f32
    %106 = vector.broadcast %cst_36 : f32 to vector<128x32xf32>
    %107 = arith.cmpf ogt, %104, %106 : vector<128x32xf32>
    %108 = vector.broadcast %105 : vector<1x32xf32> to vector<128x32xf32>
    %109 = arith.mulf %108, %104 : vector<128x32xf32>
    %110 = arith.select %107, %104, %109 : vector<128x32xi1>, vector<128x32xf32>
    %c0_37 = arith.constant 0 : index
    %c0_38 = arith.constant 0 : index
    %111 = vector.load %arg12[%c0_37, %c0_38] : memref<96x64xbf16, #tpu.memory_space<vmem>>, vector<96x64xbf16>
    %c2_i32_39 = arith.constant 2 : i32
    %112 = tpu.dynamic_rotate %110 by %c2_i32_39 dim 0 : vector<128x32xf32>, i32 -> vector<128x32xf32>
    %113 = vector.extract_strided_slice %1 {offsets = [0, 2], sizes = [128, 1], strides = [1, 1]} : vector<128x8xf32> to vector<128x1xf32>
    %114 = vector.broadcast %113 : vector<128x1xf32> to vector<128x32xf32>
    %115 = arith.mulf %112, %114 : vector<128x32xf32>
    %c126_i32_40 = arith.constant 126 : i32
    %116 = tpu.dynamic_rotate %110 by %c126_i32_40 dim 0 : vector<128x32xf32>, i32 -> vector<128x32xf32>
    %117 = vector.extract_strided_slice %1 {offsets = [0, 3], sizes = [128, 1], strides = [1, 1]} : vector<128x8xf32> to vector<128x1xf32>
    %118 = vector.broadcast %117 : vector<128x1xf32> to vector<128x32xf32>
    %119 = arith.mulf %116, %118 : vector<128x32xf32>
    %120 = tpu.concatenate %115, %110, %119 in 1 : vector<128x32xf32>, vector<128x32xf32>, vector<128x32xf32> -> vector<128x96xf32>
    %121 = arith.truncf %120 : vector<128x96xf32> to vector<128x96xbf16>
    %cst_41 = arith.constant dense<0.000000e+00> : vector<128x64xf32>
    %122 = tpu.matmul %121, %111, %cst_41 {dimension_numbers = #tpu.dot_dimension_numbers<[1], [0], [0], [1], [0, 0, 1, 1], [], []>} : vector<128x96xbf16>, vector<96x64xbf16>, vector<128x64xf32> -> vector<128x64xf32>
    %123 = vector.extract_strided_slice %2 {offsets = [10, 0], sizes = [1, 64], strides = [1, 1]} : vector<32x64xf32> to vector<1x64xf32>
    %124 = vector.broadcast %123 : vector<1x64xf32> to vector<128x64xf32>
    %125 = arith.addf %122, %124 : vector<128x64xf32>
    %126 = vector.extract_strided_slice %2 {offsets = [11, 0], sizes = [1, 64], strides = [1, 1]} : vector<32x64xf32> to vector<1x64xf32>
    %cst_42 = arith.constant 0.000000e+00 : f32
    %127 = vector.broadcast %cst_42 : f32 to vector<128x64xf32>
    %128 = arith.cmpf ogt, %125, %127 : vector<128x64xf32>
    %129 = vector.broadcast %126 : vector<1x64xf32> to vector<128x64xf32>
    %130 = arith.mulf %129, %125 : vector<128x64xf32>
    %131 = arith.select %128, %125, %130 : vector<128x64xi1>, vector<128x64xf32>
    %c0_43 = arith.constant 0 : index
    %c0_44 = arith.constant 0 : index
    %132 = vector.load %arg13[%c0_43, %c0_44] : memref<192x64xbf16, #tpu.memory_space<vmem>>, vector<192x64xbf16>
    %c4_i32 = arith.constant 4 : i32
    %133 = tpu.dynamic_rotate %131 by %c4_i32 dim 0 : vector<128x64xf32>, i32 -> vector<128x64xf32>
    %134 = vector.extract_strided_slice %1 {offsets = [0, 4], sizes = [128, 1], strides = [1, 1]} : vector<128x8xf32> to vector<128x1xf32>
    %135 = vector.broadcast %134 : vector<128x1xf32> to vector<128x64xf32>
    %136 = arith.mulf %133, %135 : vector<128x64xf32>
    %c124_i32 = arith.constant 124 : i32
    %137 = tpu.dynamic_rotate %131 by %c124_i32 dim 0 : vector<128x64xf32>, i32 -> vector<128x64xf32>
    %138 = vector.extract_strided_slice %1 {offsets = [0, 5], sizes = [128, 1], strides = [1, 1]} : vector<128x8xf32> to vector<128x1xf32>
    %139 = vector.broadcast %138 : vector<128x1xf32> to vector<128x64xf32>
    %140 = arith.mulf %137, %139 : vector<128x64xf32>
    %141 = tpu.concatenate %136, %131, %140 in 1 : vector<128x64xf32>, vector<128x64xf32>, vector<128x64xf32> -> vector<128x192xf32>
    %142 = arith.truncf %141 : vector<128x192xf32> to vector<128x192xbf16>
    %cst_45 = arith.constant dense<0.000000e+00> : vector<128x64xf32>
    %143 = tpu.matmul %142, %132, %cst_45 {dimension_numbers = #tpu.dot_dimension_numbers<[1], [0], [0], [1], [0, 0, 1, 1], [], []>} : vector<128x192xbf16>, vector<192x64xbf16>, vector<128x64xf32> -> vector<128x64xf32>
    %144 = vector.extract_strided_slice %2 {offsets = [12, 0], sizes = [1, 64], strides = [1, 1]} : vector<32x64xf32> to vector<1x64xf32>
    %145 = vector.broadcast %144 : vector<1x64xf32> to vector<128x64xf32>
    %146 = arith.addf %143, %145 : vector<128x64xf32>
    %c0_46 = arith.constant 0 : index
    %c0_47 = arith.constant 0 : index
    %147 = vector.load %arg14[%c0_46, %c0_47] : memref<32x64xbf16, #tpu.memory_space<vmem>>, vector<32x64xbf16>
    %148 = arith.truncf %110 : vector<128x32xf32> to vector<128x32xbf16>
    %cst_48 = arith.constant dense<0.000000e+00> : vector<128x64xf32>
    %149 = tpu.matmul %148, %147, %cst_48 {dimension_numbers = #tpu.dot_dimension_numbers<[1], [0], [0], [1], [0, 0, 1, 1], [], []>} : vector<128x32xbf16>, vector<32x64xbf16>, vector<128x64xf32> -> vector<128x64xf32>
    %150 = vector.extract_strided_slice %2 {offsets = [14, 0], sizes = [1, 64], strides = [1, 1]} : vector<32x64xf32> to vector<1x64xf32>
    %151 = vector.broadcast %150 : vector<1x64xf32> to vector<128x64xf32>
    %152 = arith.addf %149, %151 : vector<128x64xf32>
    %153 = arith.addf %146, %152 : vector<128x64xf32>
    %154 = vector.extract_strided_slice %2 {offsets = [13, 0], sizes = [1, 64], strides = [1, 1]} : vector<32x64xf32> to vector<1x64xf32>
    %cst_49 = arith.constant 0.000000e+00 : f32
    %155 = vector.broadcast %cst_49 : f32 to vector<128x64xf32>
    %156 = arith.cmpf ogt, %153, %155 : vector<128x64xf32>
    %157 = vector.broadcast %154 : vector<1x64xf32> to vector<128x64xf32>
    %158 = arith.mulf %157, %153 : vector<128x64xf32>
    %159 = arith.select %156, %153, %158 : vector<128x64xi1>, vector<128x64xf32>
    %c0_50 = arith.constant 0 : index
    %c0_51 = arith.constant 0 : index
    %160 = vector.load %arg15[%c0_50, %c0_51] : memref<192x64xbf16, #tpu.memory_space<vmem>>, vector<192x64xbf16>
    %c4_i32_52 = arith.constant 4 : i32
    %161 = tpu.dynamic_rotate %159 by %c4_i32_52 dim 0 : vector<128x64xf32>, i32 -> vector<128x64xf32>
    %162 = vector.extract_strided_slice %1 {offsets = [0, 4], sizes = [128, 1], strides = [1, 1]} : vector<128x8xf32> to vector<128x1xf32>
    %163 = vector.broadcast %162 : vector<128x1xf32> to vector<128x64xf32>
    %164 = arith.mulf %161, %163 : vector<128x64xf32>
    %c124_i32_53 = arith.constant 124 : i32
    %165 = tpu.dynamic_rotate %159 by %c124_i32_53 dim 0 : vector<128x64xf32>, i32 -> vector<128x64xf32>
    %166 = vector.extract_strided_slice %1 {offsets = [0, 5], sizes = [128, 1], strides = [1, 1]} : vector<128x8xf32> to vector<128x1xf32>
    %167 = vector.broadcast %166 : vector<128x1xf32> to vector<128x64xf32>
    %168 = arith.mulf %165, %167 : vector<128x64xf32>
    %169 = tpu.concatenate %164, %159, %168 in 1 : vector<128x64xf32>, vector<128x64xf32>, vector<128x64xf32> -> vector<128x192xf32>
    %170 = arith.truncf %169 : vector<128x192xf32> to vector<128x192xbf16>
    %cst_54 = arith.constant dense<0.000000e+00> : vector<128x64xf32>
    %171 = tpu.matmul %170, %160, %cst_54 {dimension_numbers = #tpu.dot_dimension_numbers<[1], [0], [0], [1], [0, 0, 1, 1], [], []>} : vector<128x192xbf16>, vector<192x64xbf16>, vector<128x64xf32> -> vector<128x64xf32>
    %172 = vector.extract_strided_slice %2 {offsets = [15, 0], sizes = [1, 64], strides = [1, 1]} : vector<32x64xf32> to vector<1x64xf32>
    %173 = vector.broadcast %172 : vector<1x64xf32> to vector<128x64xf32>
    %174 = arith.addf %171, %173 : vector<128x64xf32>
    %175 = vector.extract_strided_slice %2 {offsets = [16, 0], sizes = [1, 64], strides = [1, 1]} : vector<32x64xf32> to vector<1x64xf32>
    %cst_55 = arith.constant 0.000000e+00 : f32
    %176 = vector.broadcast %cst_55 : f32 to vector<128x64xf32>
    %177 = arith.cmpf ogt, %174, %176 : vector<128x64xf32>
    %178 = vector.broadcast %175 : vector<1x64xf32> to vector<128x64xf32>
    %179 = arith.mulf %178, %174 : vector<128x64xf32>
    %180 = arith.select %177, %174, %179 : vector<128x64xi1>, vector<128x64xf32>
    %c0_56 = arith.constant 0 : index
    %c0_57 = arith.constant 0 : index
    %181 = vector.load %arg16[%c0_56, %c0_57] : memref<192x64xbf16, #tpu.memory_space<vmem>>, vector<192x64xbf16>
    %c8_i32 = arith.constant 8 : i32
    %182 = tpu.dynamic_rotate %180 by %c8_i32 dim 0 : vector<128x64xf32>, i32 -> vector<128x64xf32>
    %183 = vector.extract_strided_slice %1 {offsets = [0, 6], sizes = [128, 1], strides = [1, 1]} : vector<128x8xf32> to vector<128x1xf32>
    %184 = vector.broadcast %183 : vector<128x1xf32> to vector<128x64xf32>
    %185 = arith.mulf %182, %184 : vector<128x64xf32>
    %c120_i32 = arith.constant 120 : i32
    %186 = tpu.dynamic_rotate %180 by %c120_i32 dim 0 : vector<128x64xf32>, i32 -> vector<128x64xf32>
    %187 = vector.extract_strided_slice %1 {offsets = [0, 7], sizes = [128, 1], strides = [1, 1]} : vector<128x8xf32> to vector<128x1xf32>
    %188 = vector.broadcast %187 : vector<128x1xf32> to vector<128x64xf32>
    %189 = arith.mulf %186, %188 : vector<128x64xf32>
    %190 = tpu.concatenate %185, %180, %189 in 1 : vector<128x64xf32>, vector<128x64xf32>, vector<128x64xf32> -> vector<128x192xf32>
    %191 = arith.truncf %190 : vector<128x192xf32> to vector<128x192xbf16>
    %cst_58 = arith.constant dense<0.000000e+00> : vector<128x64xf32>
    %192 = tpu.matmul %191, %181, %cst_58 {dimension_numbers = #tpu.dot_dimension_numbers<[1], [0], [0], [1], [0, 0, 1, 1], [], []>} : vector<128x192xbf16>, vector<192x64xbf16>, vector<128x64xf32> -> vector<128x64xf32>
    %193 = vector.extract_strided_slice %2 {offsets = [17, 0], sizes = [1, 64], strides = [1, 1]} : vector<32x64xf32> to vector<1x64xf32>
    %194 = vector.broadcast %193 : vector<1x64xf32> to vector<128x64xf32>
    %195 = arith.addf %192, %194 : vector<128x64xf32>
    %c0_59 = arith.constant 0 : index
    %c0_60 = arith.constant 0 : index
    %196 = vector.load %arg17[%c0_59, %c0_60] : memref<64x64xbf16, #tpu.memory_space<vmem>>, vector<64x64xbf16>
    %197 = arith.truncf %159 : vector<128x64xf32> to vector<128x64xbf16>
    %cst_61 = arith.constant dense<0.000000e+00> : vector<128x64xf32>
    %198 = tpu.matmul %197, %196, %cst_61 {dimension_numbers = #tpu.dot_dimension_numbers<[1], [0], [0], [1], [0, 0, 1, 1], [], []>} : vector<128x64xbf16>, vector<64x64xbf16>, vector<128x64xf32> -> vector<128x64xf32>
    %199 = vector.extract_strided_slice %2 {offsets = [19, 0], sizes = [1, 64], strides = [1, 1]} : vector<32x64xf32> to vector<1x64xf32>
    %200 = vector.broadcast %199 : vector<1x64xf32> to vector<128x64xf32>
    %201 = arith.addf %198, %200 : vector<128x64xf32>
    %202 = arith.addf %195, %201 : vector<128x64xf32>
    %203 = vector.extract_strided_slice %2 {offsets = [18, 0], sizes = [1, 64], strides = [1, 1]} : vector<32x64xf32> to vector<1x64xf32>
    %cst_62 = arith.constant 0.000000e+00 : f32
    %204 = vector.broadcast %cst_62 : f32 to vector<128x64xf32>
    %205 = arith.cmpf ogt, %202, %204 : vector<128x64xf32>
    %206 = vector.broadcast %203 : vector<1x64xf32> to vector<128x64xf32>
    %207 = arith.mulf %206, %202 : vector<128x64xf32>
    %208 = arith.select %205, %202, %207 : vector<128x64xi1>, vector<128x64xf32>
    %c0_63 = arith.constant 0 : index
    %c0_64 = arith.constant 0 : index
    %209 = vector.load %arg18[%c0_63, %c0_64] : memref<192x48xbf16, #tpu.memory_space<vmem>>, vector<192x48xbf16>
    %c8_i32_65 = arith.constant 8 : i32
    %210 = tpu.dynamic_rotate %208 by %c8_i32_65 dim 0 : vector<128x64xf32>, i32 -> vector<128x64xf32>
    %211 = vector.extract_strided_slice %1 {offsets = [0, 6], sizes = [128, 1], strides = [1, 1]} : vector<128x8xf32> to vector<128x1xf32>
    %212 = vector.broadcast %211 : vector<128x1xf32> to vector<128x64xf32>
    %213 = arith.mulf %210, %212 : vector<128x64xf32>
    %c120_i32_66 = arith.constant 120 : i32
    %214 = tpu.dynamic_rotate %208 by %c120_i32_66 dim 0 : vector<128x64xf32>, i32 -> vector<128x64xf32>
    %215 = vector.extract_strided_slice %1 {offsets = [0, 7], sizes = [128, 1], strides = [1, 1]} : vector<128x8xf32> to vector<128x1xf32>
    %216 = vector.broadcast %215 : vector<128x1xf32> to vector<128x64xf32>
    %217 = arith.mulf %214, %216 : vector<128x64xf32>
    %218 = tpu.concatenate %213, %208, %217 in 1 : vector<128x64xf32>, vector<128x64xf32>, vector<128x64xf32> -> vector<128x192xf32>
    %219 = arith.truncf %218 : vector<128x192xf32> to vector<128x192xbf16>
    %cst_67 = arith.constant dense<0.000000e+00> : vector<128x48xf32>
    %220 = tpu.matmul %219, %209, %cst_67 {dimension_numbers = #tpu.dot_dimension_numbers<[1], [0], [0], [1], [0, 0, 1, 1], [], []>} : vector<128x192xbf16>, vector<192x48xbf16>, vector<128x48xf32> -> vector<128x48xf32>
    %221 = vector.extract_strided_slice %2 {offsets = [20, 0], sizes = [1, 48], strides = [1, 1]} : vector<32x64xf32> to vector<1x48xf32>
    %222 = vector.broadcast %221 : vector<1x48xf32> to vector<128x48xf32>
    %223 = arith.addf %220, %222 : vector<128x48xf32>
    %224 = vector.extract_strided_slice %2 {offsets = [21, 0], sizes = [1, 48], strides = [1, 1]} : vector<32x64xf32> to vector<1x48xf32>
    %cst_68 = arith.constant 0.000000e+00 : f32
    %225 = vector.broadcast %cst_68 : f32 to vector<128x48xf32>
    %226 = arith.cmpf ogt, %223, %225 : vector<128x48xf32>
    %227 = vector.broadcast %224 : vector<1x48xf32> to vector<128x48xf32>
    %228 = arith.mulf %227, %223 : vector<128x48xf32>
    %229 = arith.select %226, %223, %228 : vector<128x48xi1>, vector<128x48xf32>
    %c0_69 = arith.constant 0 : index
    %c0_70 = arith.constant 0 : index
    %230 = vector.load %arg19[%c0_69, %c0_70] : memref<144x48xbf16, #tpu.memory_space<vmem>>, vector<144x48xbf16>
    %c8_i32_71 = arith.constant 8 : i32
    %231 = tpu.dynamic_rotate %229 by %c8_i32_71 dim 0 : vector<128x48xf32>, i32 -> vector<128x48xf32>
    %232 = vector.extract_strided_slice %1 {offsets = [0, 6], sizes = [128, 1], strides = [1, 1]} : vector<128x8xf32> to vector<128x1xf32>
    %233 = vector.broadcast %232 : vector<128x1xf32> to vector<128x48xf32>
    %234 = arith.mulf %231, %233 : vector<128x48xf32>
    %c120_i32_72 = arith.constant 120 : i32
    %235 = tpu.dynamic_rotate %229 by %c120_i32_72 dim 0 : vector<128x48xf32>, i32 -> vector<128x48xf32>
    %236 = vector.extract_strided_slice %1 {offsets = [0, 7], sizes = [128, 1], strides = [1, 1]} : vector<128x8xf32> to vector<128x1xf32>
    %237 = vector.broadcast %236 : vector<128x1xf32> to vector<128x48xf32>
    %238 = arith.mulf %235, %237 : vector<128x48xf32>
    %239 = tpu.concatenate %234, %229, %238 in 1 : vector<128x48xf32>, vector<128x48xf32>, vector<128x48xf32> -> vector<128x144xf32>
    %240 = arith.truncf %239 : vector<128x144xf32> to vector<128x144xbf16>
    %cst_73 = arith.constant dense<0.000000e+00> : vector<128x48xf32>
    %241 = tpu.matmul %240, %230, %cst_73 {dimension_numbers = #tpu.dot_dimension_numbers<[1], [0], [0], [1], [0, 0, 1, 1], [], []>} : vector<128x144xbf16>, vector<144x48xbf16>, vector<128x48xf32> -> vector<128x48xf32>
    %242 = vector.extract_strided_slice %2 {offsets = [22, 0], sizes = [1, 48], strides = [1, 1]} : vector<32x64xf32> to vector<1x48xf32>
    %243 = vector.broadcast %242 : vector<1x48xf32> to vector<128x48xf32>
    %244 = arith.addf %241, %243 : vector<128x48xf32>
    %245 = vector.extract_strided_slice %2 {offsets = [23, 0], sizes = [1, 48], strides = [1, 1]} : vector<32x64xf32> to vector<1x48xf32>
    %cst_74 = arith.constant 0.000000e+00 : f32
    %246 = vector.broadcast %cst_74 : f32 to vector<128x48xf32>
    %247 = arith.cmpf ogt, %244, %246 : vector<128x48xf32>
    %248 = vector.broadcast %245 : vector<1x48xf32> to vector<128x48xf32>
    %249 = arith.mulf %248, %244 : vector<128x48xf32>
    %250 = arith.select %247, %244, %249 : vector<128x48xi1>, vector<128x48xf32>
    %251 = arith.addf %250, %229 : vector<128x48xf32>
    %252 = vector.extract_strided_slice %2 {offsets = [24, 0], sizes = [1, 48], strides = [1, 1]} : vector<32x64xf32> to vector<1x48xf32>
    %cst_75 = arith.constant 0.000000e+00 : f32
    %253 = vector.broadcast %cst_75 : f32 to vector<128x48xf32>
    %254 = arith.cmpf ogt, %251, %253 : vector<128x48xf32>
    %255 = vector.broadcast %252 : vector<1x48xf32> to vector<128x48xf32>
    %256 = arith.mulf %255, %251 : vector<128x48xf32>
    %257 = arith.select %254, %251, %256 : vector<128x48xi1>, vector<128x48xf32>
    %c0_76 = arith.constant 0 : index
    %c0_77 = arith.constant 0 : index
    %258 = vector.load %arg20[%c0_76, %c0_77] : memref<144x48xbf16, #tpu.memory_space<vmem>>, vector<144x48xbf16>
    %c8_i32_78 = arith.constant 8 : i32
    %259 = tpu.dynamic_rotate %257 by %c8_i32_78 dim 0 : vector<128x48xf32>, i32 -> vector<128x48xf32>
    %260 = vector.extract_strided_slice %1 {offsets = [0, 6], sizes = [128, 1], strides = [1, 1]} : vector<128x8xf32> to vector<128x1xf32>
    %261 = vector.broadcast %260 : vector<128x1xf32> to vector<128x48xf32>
    %262 = arith.mulf %259, %261 : vector<128x48xf32>
    %c120_i32_79 = arith.constant 120 : i32
    %263 = tpu.dynamic_rotate %257 by %c120_i32_79 dim 0 : vector<128x48xf32>, i32 -> vector<128x48xf32>
    %264 = vector.extract_strided_slice %1 {offsets = [0, 7], sizes = [128, 1], strides = [1, 1]} : vector<128x8xf32> to vector<128x1xf32>
    %265 = vector.broadcast %264 : vector<128x1xf32> to vector<128x48xf32>
    %266 = arith.mulf %263, %265 : vector<128x48xf32>
    %267 = tpu.concatenate %262, %257, %266 in 1 : vector<128x48xf32>, vector<128x48xf32>, vector<128x48xf32> -> vector<128x144xf32>
    %268 = arith.truncf %267 : vector<128x144xf32> to vector<128x144xbf16>
    %cst_80 = arith.constant dense<0.000000e+00> : vector<128x48xf32>
    %269 = tpu.matmul %268, %258, %cst_80 {dimension_numbers = #tpu.dot_dimension_numbers<[1], [0], [0], [1], [0, 0, 1, 1], [], []>} : vector<128x144xbf16>, vector<144x48xbf16>, vector<128x48xf32> -> vector<128x48xf32>
    %270 = vector.extract_strided_slice %2 {offsets = [25, 0], sizes = [1, 48], strides = [1, 1]} : vector<32x64xf32> to vector<1x48xf32>
    %271 = vector.broadcast %270 : vector<1x48xf32> to vector<128x48xf32>
    %272 = arith.addf %269, %271 : vector<128x48xf32>
    %273 = vector.extract_strided_slice %2 {offsets = [26, 0], sizes = [1, 48], strides = [1, 1]} : vector<32x64xf32> to vector<1x48xf32>
    %cst_81 = arith.constant 0.000000e+00 : f32
    %274 = vector.broadcast %cst_81 : f32 to vector<128x48xf32>
    %275 = arith.cmpf ogt, %272, %274 : vector<128x48xf32>
    %276 = vector.broadcast %273 : vector<1x48xf32> to vector<128x48xf32>
    %277 = arith.mulf %276, %272 : vector<128x48xf32>
    %278 = arith.select %275, %272, %277 : vector<128x48xi1>, vector<128x48xf32>
    %279 = arith.addf %278, %257 : vector<128x48xf32>
    %280 = vector.extract_strided_slice %2 {offsets = [27, 0], sizes = [1, 48], strides = [1, 1]} : vector<32x64xf32> to vector<1x48xf32>
    %cst_82 = arith.constant 0.000000e+00 : f32
    %281 = vector.broadcast %cst_82 : f32 to vector<128x48xf32>
    %282 = arith.cmpf ogt, %279, %281 : vector<128x48xf32>
    %283 = vector.broadcast %280 : vector<1x48xf32> to vector<128x48xf32>
    %284 = arith.mulf %283, %279 : vector<128x48xf32>
    %285 = arith.select %282, %279, %284 : vector<128x48xi1>, vector<128x48xf32>
    %286 = arith.truncf %3 : vector<8x128xf32> to vector<8x128xbf16>
    %287 = arith.truncf %285 : vector<128x48xf32> to vector<128x48xbf16>
    %cst_83 = arith.constant dense<0.000000e+00> : vector<8x48xf32>
    %288 = tpu.matmul %286, %287, %cst_83 {dimension_numbers = #tpu.dot_dimension_numbers<[1], [0], [0], [1], [0, 0, 1, 1], [], []>} : vector<8x128xbf16>, vector<128x48xbf16>, vector<8x48xf32> -> vector<8x48xf32>
    %289 = arith.truncf %288 : vector<8x48xf32> to vector<8x48xbf16>
    %c0_84 = arith.constant 0 : index
    %c0_85 = arith.constant 0 : index
    %290 = vector.load %arg21[%c0_84, %c0_85] : memref<48x16xbf16, #tpu.memory_space<vmem>>, vector<48x16xbf16>
    %cst_86 = arith.constant dense<0.000000e+00> : vector<8x16xf32>
    %291 = tpu.matmul %289, %290, %cst_86 {dimension_numbers = #tpu.dot_dimension_numbers<[1], [0], [0], [1], [0, 0, 1, 1], [], []>} : vector<8x48xbf16>, vector<48x16xbf16>, vector<8x16xf32> -> vector<8x16xf32>
    %292 = vector.extract_strided_slice %2 {offsets = [28, 0], sizes = [1, 16], strides = [1, 1]} : vector<32x64xf32> to vector<1x16xf32>
    %293 = vector.broadcast %292 : vector<1x16xf32> to vector<8x16xf32>
    %294 = arith.addf %291, %293 : vector<8x16xf32>
    %c0_87 = arith.constant 0 : index
    %c0_88 = arith.constant 0 : index
    %295 = vector.load %arg22[%c0_87, %c0_88] : memref<8x16xf32, #tpu.memory_space<vmem>>, vector<8x16xf32>
    tpu.vector_store %arg22[%c0_87, %c0_88], %294 {strides = array<i32>} : memref<8x16xf32, #tpu.memory_space<vmem>>, vector<8x16xf32>,
    return
  }
  func.func @transform_0(%arg0: i32) -> (i32, i32) {
    %c0_i32 = arith.constant 0 : i32
    %c0_i32_0 = arith.constant 0 : i32
    return %arg0, %c0_i32 : i32, i32
  }
  func.func @transform_1(%arg0: i32) -> (i32, i32) {
    %c0_i32 = arith.constant 0 : i32
    %c0_i32_0 = arith.constant 0 : i32
    %c0_i32_1 = arith.constant 0 : i32
    return %c0_i32, %c0_i32_0 : i32, i32
  }
  func.func @transform_2(%arg0: i32) -> (i32, i32) {
    %c0_i32 = arith.constant 0 : i32
    %c0_i32_0 = arith.constant 0 : i32
    %c0_i32_1 = arith.constant 0 : i32
    return %c0_i32, %c0_i32_0 : i32, i32
  }
  func.func @transform_3(%arg0: i32) -> (i32, i32) {
    %c0_i32 = arith.constant 0 : i32
    %c0_i32_0 = arith.constant 0 : i32
    %c0_i32_1 = arith.constant 0 : i32
    return %c0_i32, %c0_i32_0 : i32, i32
  }
  func.func @transform_4(%arg0: i32) -> (i32, i32) {
    %c0_i32 = arith.constant 0 : i32
    %c0_i32_0 = arith.constant 0 : i32
    %c0_i32_1 = arith.constant 0 : i32
    return %c0_i32, %c0_i32_0 : i32, i32
  }
  func.func @transform_5(%arg0: i32) -> (i32, i32) {
    %c0_i32 = arith.constant 0 : i32
    %c0_i32_0 = arith.constant 0 : i32
    %c0_i32_1 = arith.constant 0 : i32
    return %c0_i32, %c0_i32_0 : i32, i32
  }
  func.func @transform_6(%arg0: i32) -> (i32, i32) {
    %c0_i32 = arith.constant 0 : i32
    %c0_i32_0 = arith.constant 0 : i32
    %c0_i32_1 = arith.constant 0 : i32
    return %c0_i32, %c0_i32_0 : i32, i32
  }
  func.func @transform_7(%arg0: i32) -> (i32, i32) {
    %c0_i32 = arith.constant 0 : i32
    %c0_i32_0 = arith.constant 0 : i32
    %c0_i32_1 = arith.constant 0 : i32
    return %c0_i32, %c0_i32_0 : i32, i32
  }
  func.func @transform_8(%arg0: i32) -> (i32, i32) {
    %c0_i32 = arith.constant 0 : i32
    %c0_i32_0 = arith.constant 0 : i32
    %c0_i32_1 = arith.constant 0 : i32
    return %c0_i32, %c0_i32_0 : i32, i32
  }
  func.func @transform_9(%arg0: i32) -> (i32, i32) {
    %c0_i32 = arith.constant 0 : i32
    %c0_i32_0 = arith.constant 0 : i32
    %c0_i32_1 = arith.constant 0 : i32
    return %c0_i32, %c0_i32_0 : i32, i32
  }
  func.func @transform_10(%arg0: i32) -> (i32, i32) {
    %c0_i32 = arith.constant 0 : i32
    %c0_i32_0 = arith.constant 0 : i32
    %c0_i32_1 = arith.constant 0 : i32
    return %c0_i32, %c0_i32_0 : i32, i32
  }
  func.func @transform_11(%arg0: i32) -> (i32, i32) {
    %c0_i32 = arith.constant 0 : i32
    %c0_i32_0 = arith.constant 0 : i32
    %c0_i32_1 = arith.constant 0 : i32
    return %c0_i32, %c0_i32_0 : i32, i32
  }
  func.func @transform_12(%arg0: i32) -> (i32, i32) {
    %c0_i32 = arith.constant 0 : i32
    %c0_i32_0 = arith.constant 0 : i32
    %c0_i32_1 = arith.constant 0 : i32
    return %c0_i32, %c0_i32_0 : i32, i32
  }
  func.func @transform_13(%arg0: i32) -> (i32, i32) {
    %c0_i32 = arith.constant 0 : i32
    %c0_i32_0 = arith.constant 0 : i32
    %c0_i32_1 = arith.constant 0 : i32
    return %c0_i32, %c0_i32_0 : i32, i32
  }
  func.func @transform_14(%arg0: i32) -> (i32, i32) {
    %c0_i32 = arith.constant 0 : i32
    %c0_i32_0 = arith.constant 0 : i32
    %c0_i32_1 = arith.constant 0 : i32
    return %c0_i32, %c0_i32_0 : i32, i32
  }
  func.func @transform_15(%arg0: i32) -> (i32, i32) {
    %c0_i32 = arith.constant 0 : i32
    %c0_i32_0 = arith.constant 0 : i32
    %c0_i32_1 = arith.constant 0 : i32
    return %c0_i32, %c0_i32_0 : i32, i32
  }
  func.func @transform_16(%arg0: i32) -> (i32, i32) {
    %c0_i32 = arith.constant 0 : i32
    %c0_i32_0 = arith.constant 0 : i32
    %c0_i32_1 = arith.constant 0 : i32
    return %c0_i32, %c0_i32_0 : i32, i32
  }
  func.func @transform_17(%arg0: i32) -> (i32, i32) {
    %c0_i32 = arith.constant 0 : i32
    %c0_i32_0 = arith.constant 0 : i32
    %c0_i32_1 = arith.constant 0 : i32
    return %c0_i32, %c0_i32_0 : i32, i32
  }
  func.func @transform_18(%arg0: i32) -> (i32, i32) {
    %c0_i32 = arith.constant 0 : i32
    %c0_i32_0 = arith.constant 0 : i32
    %c0_i32_1 = arith.constant 0 : i32
    return %c0_i32, %c0_i32_0 : i32, i32
  }
  func.func @transform_19(%arg0: i32) -> (i32, i32) {
    %c0_i32 = arith.constant 0 : i32
    %c0_i32_0 = arith.constant 0 : i32
    %c0_i32_1 = arith.constant 0 : i32
    return %c0_i32, %c0_i32_0 : i32, i32
  }
  func.func @transform_20(%arg0: i32) -> (i32, i32) {
    %c0_i32 = arith.constant 0 : i32
    %c0_i32_0 = arith.constant 0 : i32
    %c0_i32_1 = arith.constant 0 : i32
    return %c0_i32, %c0_i32_0 : i32, i32
  }
  func.func @transform_21(%arg0: i32) -> (i32, i32) {
    %c0_i32 = arith.constant 0 : i32
    %c0_i32_0 = arith.constant 0 : i32
    return %arg0, %c0_i32 : i32, i32
  }
}

</mosaic_0001>

<llo_original>
// kernel: forward.1
$region0: #{forward.1}
  #allocation0 [shape = 'u32[]', space=smem, size = 0x4, offset = 0x4, fixed_abs, tag = 'smem constant byte address 0x4 - core index']
  #allocation1 [shape = 'u32[144,128]{1,0:T(1,128)}', space=vmem, size = 0x12000, scoped, tag = 'internal scratch']
  %s0 = inlined_call_operand.vmem [shape: f32[256,64], index: 0, kind: input, shape index: {}]
  %s1 = inlined_call_operand.vmem [shape: f32[128,8], index: 1, kind: input, shape index: {}]
  %s2 = inlined_call_operand.vmem [shape: f32[32,64], index: 2, kind: input, shape index: {}]
  %s3 = inlined_call_operand.vmem [shape: f32[8,128], index: 3, kind: input, shape index: {}]
  %s4 = inlined_call_operand.vmem [shape: bf16[64,40], index: 4, kind: input, shape index: {}]
  %s5 = inlined_call_operand.vmem [shape: bf16[40,32], index: 5, kind: input, shape index: {}]
  %s6 = inlined_call_operand.vmem [shape: bf16[96,32], index: 6, kind: input, shape index: {}]
  %s7 = inlined_call_operand.vmem [shape: bf16[96,32], index: 7, kind: input, shape index: {}]
  %s8 = inlined_call_operand.vmem [shape: bf16[96,32], index: 8, kind: input, shape index: {}]
  %s9 = inlined_call_operand.vmem [shape: bf16[96,32], index: 9, kind: input, shape index: {}]
  %s10 = inlined_call_operand.vmem [shape: bf16[32,32], index: 10, kind: input, shape index: {}]
  %s11 = inlined_call_operand.vmem [shape: bf16[96,64], index: 11, kind: input, shape index: {}]
  %s12 = inlined_call_operand.vmem [shape: bf16[192,64], index: 12, kind: input, shape index: {}]
  %s13 = inlined_call_operand.vmem [shape: bf16[32,64], index: 13, kind: input, shape index: {}]
  %s14 = inlined_call_operand.vmem [shape: bf16[192,64], index: 14, kind: input, shape index: {}]
  %s15 = inlined_call_operand.vmem [shape: bf16[192,64], index: 15, kind: input, shape index: {}]
  %s16 = inlined_call_operand.vmem [shape: bf16[64,64], index: 16, kind: input, shape index: {}]
  %s17 = inlined_call_operand.vmem [shape: bf16[192,48], index: 17, kind: input, shape index: {}]
  %s18 = inlined_call_operand.vmem [shape: bf16[144,48], index: 18, kind: input, shape index: {}]
  %s19 = inlined_call_operand.vmem [shape: bf16[144,48], index: 19, kind: input, shape index: {}]
  %s20 = inlined_call_operand.vmem [shape: bf16[48,16], index: 20, kind: input, shape index: {}]
  %s21 = inlined_call_operand.hbm [shape: f32[16,16], index: 21, kind: output, shape index: {}]
  %s22 = sld [smem:[#allocation0]]
  $region117: #{forward.1} parent=0
    _
  %s24 = ssub.s32 1, %s22
  %s25 = scalar_select 0, %s24, %s22
  $region1: #{forward.1} parent=0
    #allocation2 [shape = 'u8[8192]{0}', space=vmem, size = 0x2000, scoped, tag = 'output window, operand 0']
    #allocation3 [shape = 's32[2]{0}', space=sflag, size = 0x8, scoped, tag = 'scoped memory for forward.1']
    %26 = vsyncpa [#allocation3], 0
    %s27 = scalar_lea.sflag [#allocation3], 1
    %28 = vsyncpa %s27, 0
    loop: start=0, step=1, limit=4
    $region2: #{forward.1} parent=1 // loop_pre_header
      _
    $region3: #{forward.1} parent=1 // loop_header
      %s30 = sphi 0, %s34
      %p31 = scmp.ge.s32.totalorder %s30, 4
      %s40 = sphi 0, %s42
      %s43 = sphi 0, %s40
      %s44 = sphi 0, %s43
      %s60 = sphi 0, %s44
      %s64 = sphi 0, %s64
      %s66 = sphi 0, %s64
      %s67 = sphi 0, %s66
      %s81 = sphi 0, %s67
      %s85 = sphi 0, %s85
      %s87 = sphi 0, %s85
      %s88 = sphi 0, %s87
      %s102 = sphi 0, %s88
      %s106 = sphi 0, %s106
      %s108 = sphi 0, %s106
      %s109 = sphi 0, %s108
      %s123 = sphi 0, %s109
      %s127 = sphi 0, %s127
      %s129 = sphi 0, %s127
      %s130 = sphi 0, %s129
      %s144 = sphi 0, %s130
      %s148 = sphi 0, %s148
      %s150 = sphi 0, %s148
      %s151 = sphi 0, %s150
      %s165 = sphi 0, %s151
      %s169 = sphi 0, %s169
      %s171 = sphi 0, %s169
      %s172 = sphi 0, %s171
      %s186 = sphi 0, %s172
      %s190 = sphi 0, %s190
      %s192 = sphi 0, %s190
      %s193 = sphi 0, %s192
      %s207 = sphi 0, %s193
      %s211 = sphi 0, %s211
      %s213 = sphi 0, %s211
      %s214 = sphi 0, %s213
      %s228 = sphi 0, %s214
      %s232 = sphi 0, %s232
      %s234 = sphi 0, %s232
      %s235 = sphi 0, %s234
      %s249 = sphi 0, %s235
      %s253 = sphi 0, %s253
      %s255 = sphi 0, %s253
      %s256 = sphi 0, %s255
      %s270 = sphi 0, %s256
      %s274 = sphi 0, %s274
      %s276 = sphi 0, %s274
      %s277 = sphi 0, %s276
      %s291 = sphi 0, %s277
      %s295 = sphi 0, %s295
      %s297 = sphi 0, %s295
      %s298 = sphi 0, %s297
      %s312 = sphi 0, %s298
      %s316 = sphi 0, %s316
      %s318 = sphi 0, %s316
      %s319 = sphi 0, %s318
      %s333 = sphi 0, %s319
      %s337 = sphi 0, %s337
      %s339 = sphi 0, %s337
      %s340 = sphi 0, %s339
      %s354 = sphi 0, %s340
      %s358 = sphi 0, %s358
      %s360 = sphi 0, %s358
      %s361 = sphi 0, %s360
      %s375 = sphi 0, %s361
      %s379 = sphi 0, %s379
      %s381 = sphi 0, %s379
      %s382 = sphi 0, %s381
      %s396 = sphi 0, %s382
      %s400 = sphi 0, %s400
      %s402 = sphi 0, %s400
      %s403 = sphi 0, %s402
      %s417 = sphi 0, %s403
      %s421 = sphi 0, %s421
      %s423 = sphi 0, %s421
      %s424 = sphi 0, %s423
      %s438 = sphi 0, %s424
      %s442 = sphi 0, %s442
      %s444 = sphi 0, %s442
      %s445 = sphi 0, %s444
      %s459 = sphi 0, %s445
      %s463 = sphi 0, %s463
      %s465 = sphi 0, %s463
      %s466 = sphi 0, %s465
      %s480 = sphi 0, %s466
      %s486 = sphi 0, %s488
      %s489 = sphi 0, %s486
      %s490 = sphi 0, %s489
      %s506 = sphi 0, %s490
    $region4: #{forward.1} parent=1 // loop_header_branch
      %33 = sbr.rel (%p31) target = $region8
    $region5: #{forward.1} parent=1 // loop_body
      %s35 = ssub.s32 %s30, 1
      %s36 = ssub.s32 %s30, 2
      %s37 = sadd.s32 %s30, 1
      %s38 = ssub.s32 %s30, %s37
      %p39 = scmp.eq.s32.totalorder %s38, 0
      %s41 = sadd.s32 %s40, 1
      %s42 = scalar_select %p39, %s40, %s41
      %p45 = pneg %p39
      %p46 = scmp.eq.s32.totalorder %s30, 1
      %p47 = por %p45, %p46
      %p48 = scmp.ne.s32.totalorder %s40, %s43
      %p49 = scmp.eq.s32.totalorder %s30, 0
      %p50 = por %p48, %p49
      %p51 = scmp.ne.s32.totalorder %s40, %s43
      %p52 = scmp.eq.s32.totalorder %s35, 1
      %p53 = por %p51, %p52
      %p54 = scmp.ne.s32.totalorder %s43, %s44
      %p55 = scmp.eq.s32.totalorder %s35, 0
      %p56 = por %p54, %p55
      %p57 = scmp.ne.s32.totalorder %s43, %s44
      %p58 = scmp.eq.s32.totalorder %s36, 1
      %p59 = por %p57, %p58
      %p61 = scmp.ne.s32.totalorder %s44, %s60
      %p62 = scmp.eq.s32.totalorder %s36, 0
      %p63 = por %p61, %p62
      %s65 = sadd.s32 %s64, 1
      %p68 = scmp.eq.s32.totalorder %s30, 1
      %p69 = scmp.ne.s32.totalorder %s64, %s66
      %p70 = scmp.eq.s32.totalorder %s30, 0
      %p71 = por %p69, %p70
      %p72 = scmp.ne.s32.totalorder %s64, %s66
      %p73 = scmp.eq.s32.totalorder %s35, 1
      %p74 = por %p72, %p73
      %p75 = scmp.ne.s32.totalorder %s66, %s67
      %p76 = scmp.eq.s32.totalorder %s35, 0
      %p77 = por %p75, %p76
      %p78 = scmp.ne.s32.totalorder %s66, %s67
      %p79 = scmp.eq.s32.totalorder %s36, 1
      %p80 = por %p78, %p79
      %p82 = scmp.ne.s32.totalorder %s67, %s81
      %p83 = scmp.eq.s32.totalorder %s36, 0
      %p84 = por %p82, %p83
      %s86 = sadd.s32 %s85, 1
      %p89 = scmp.eq.s32.totalorder %s30, 1
      %p90 = scmp.ne.s32.totalorder %s85, %s87
      %p91 = scmp.eq.s32.totalorder %s30, 0
      %p92 = por %p90, %p91
      %p93 = scmp.ne.s32.totalorder %s85, %s87
      %p94 = scmp.eq.s32.totalorder %s35, 1
      %p95 = por %p93, %p94
      %p96 = scmp.ne.s32.totalorder %s87, %s88
      %p97 = scmp.eq.s32.totalorder %s35, 0
      %p98 = por %p96, %p97
      %p99 = scmp.ne.s32.totalorder %s87, %s88
      %p100 = scmp.eq.s32.totalorder %s36, 1
      %p101 = por %p99, %p100
      %p103 = scmp.ne.s32.totalorder %s88, %s102
      %p104 = scmp.eq.s32.totalorder %s36, 0
      %p105 = por %p103, %p104
      %s107 = sadd.s32 %s106, 1
      %p110 = scmp.eq.s32.totalorder %s30, 1
      %p111 = scmp.ne.s32.totalorder %s106, %s108
      %p112 = scmp.eq.s32.totalorder %s30, 0
      %p113 = por %p111, %p112
      %p114 = scmp.ne.s32.totalorder %s106, %s108
      %p115 = scmp.eq.s32.totalorder %s35, 1
      %p116 = por %p114, %p115
      %p117 = scmp.ne.s32.totalorder %s108, %s109
      %p118 = scmp.eq.s32.totalorder %s35, 0
      %p119 = por %p117, %p118
      %p120 = scmp.ne.s32.totalorder %s108, %s109
      %p121 = scmp.eq.s32.totalorder %s36, 1
      %p122 = por %p120, %p121
      %p124 = scmp.ne.s32.totalorder %s109, %s123
      %p125 = scmp.eq.s32.totalorder %s36, 0
      %p126 = por %p124, %p125
      %s128 = sadd.s32 %s127, 1
      %p131 = scmp.eq.s32.totalorder %s30, 1
      %p132 = scmp.ne.s32.totalorder %s127, %s129
      %p133 = scmp.eq.s32.totalorder %s30, 0
      %p134 = por %p132, %p133
      %p135 = scmp.ne.s32.totalorder %s127, %s129
      %p136 = scmp.eq.s32.totalorder %s35, 1
      %p137 = por %p135, %p136
      %p138 = scmp.ne.s32.totalorder %s129, %s130
      %p139 = scmp.eq.s32.totalorder %s35, 0
      %p140 = por %p138, %p139
      %p141 = scmp.ne.s32.totalorder %s129, %s130
      %p142 = scmp.eq.s32.totalorder %s36, 1
      %p143 = por %p141, %p142
      %p145 = scmp.ne.s32.totalorder %s130, %s144
      %p146 = scmp.eq.s32.totalorder %s36, 0
      %p147 = por %p145, %p146
      %s149 = sadd.s32 %s148, 1
      %p152 = scmp.eq.s32.totalorder %s30, 1
      %p153 = scmp.ne.s32.totalorder %s148, %s150
      %p154 = scmp.eq.s32.totalorder %s30, 0
      %p155 = por %p153, %p154
      %p156 = scmp.ne.s32.totalorder %s148, %s150
      %p157 = scmp.eq.s32.totalorder %s35, 1
      %p158 = por %p156, %p157
      %p159 = scmp.ne.s32.totalorder %s150, %s151
      %p160 = scmp.eq.s32.totalorder %s35, 0
      %p161 = por %p159, %p160
      %p162 = scmp.ne.s32.totalorder %s150, %s151
      %p163 = scmp.eq.s32.totalorder %s36, 1
      %p164 = por %p162, %p163
      %p166 = scmp.ne.s32.totalorder %s151, %s165
      %p167 = scmp.eq.s32.totalorder %s36, 0
      %p168 = por %p166, %p167
      %s170 = sadd.s32 %s169, 1
      %p173 = scmp.eq.s32.totalorder %s30, 1
      %p174 = scmp.ne.s32.totalorder %s169, %s171
      %p175 = scmp.eq.s32.totalorder %s30, 0
      %p176 = por %p174, %p175
      %p177 = scmp.ne.s32.totalorder %s169, %s171
      %p178 = scmp.eq.s32.totalorder %s35, 1
      %p179 = por %p177, %p178
      %p180 = scmp.ne.s32.totalorder %s171, %s172
      %p181 = scmp.eq.s32.totalorder %s35, 0
      %p182 = por %p180, %p181
      %p183 = scmp.ne.s32.totalorder %s171, %s172
      %p184 = scmp.eq.s32.totalorder %s36, 1
      %p185 = por %p183, %p184
      %p187 = scmp.ne.s32.totalorder %s172, %s186
      %p188 = scmp.eq.s32.totalorder %s36, 0
      %p189 = por %p187, %p188
      %s191 = sadd.s32 %s190, 1
      %p194 = scmp.eq.s32.totalorder %s30, 1
      %p195 = scmp.ne.s32.totalorder %s190, %s192
      %p196 = scmp.eq.s32.totalorder %s30, 0
      %p197 = por %p195, %p196
      %p198 = scmp.ne.s32.totalorder %s190, %s192
      %p199 = scmp.eq.s32.totalorder %s35, 1
      %p200 = por %p198, %p199
      %p201 = scmp.ne.s32.totalorder %s192, %s193
      %p202 = scmp.eq.s32.totalorder %s35, 0
      %p203 = por %p201, %p202
      %p204 = scmp.ne.s32.totalorder %s192, %s193
      %p205 = scmp.eq.s32.totalorder %s36, 1
      %p206 = por %p204, %p205
      %p208 = scmp.ne.s32.totalorder %s193, %s207
      %p209 = scmp.eq.s32.totalorder %s36, 0
      %p210 = por %p208, %p209
      %s212 = sadd.s32 %s211, 1
      %p215 = scmp.eq.s32.totalorder %s30, 1
      %p216 = scmp.ne.s32.totalorder %s211, %s213
      %p217 = scmp.eq.s32.totalorder %s30, 0
      %p218 = por %p216, %p217
      %p219 = scmp.ne.s32.totalorder %s211, %s213
      %p220 = scmp.eq.s32.totalorder %s35, 1
      %p221 = por %p219, %p220
      %p222 = scmp.ne.s32.totalorder %s213, %s214
      %p223 = scmp.eq.s32.totalorder %s35, 0
      %p224 = por %p222, %p223
      %p225 = scmp.ne.s32.totalorder %s213, %s214
      %p226 = scmp.eq.s32.totalorder %s36, 1
      %p227 = por %p225, %p226
      %p229 = scmp.ne.s32.totalorder %s214, %s228
      %p230 = scmp.eq.s32.totalorder %s36, 0
      %p231 = por %p229, %p230
      %s233 = sadd.s32 %s232, 1
      %p236 = scmp.eq.s32.totalorder %s30, 1
      %p237 = scmp.ne.s32.totalorder %s232, %s234
      %p238 = scmp.eq.s32.totalorder %s30, 0
      %p239 = por %p237, %p238
      %p240 = scmp.ne.s32.totalorder %s232, %s234
      %p241 = scmp.eq.s32.totalorder %s35, 1
      %p242 = por %p240, %p241
      %p243 = scmp.ne.s32.totalorder %s234, %s235
      %p244 = scmp.eq.s32.totalorder %s35, 0
      %p245 = por %p243, %p244
      %p246 = scmp.ne.s32.totalorder %s234, %s235
      %p247 = scmp.eq.s32.totalorder %s36, 1
      %p248 = por %p246, %p247
      %p250 = scmp.ne.s32.totalorder %s235, %s249
      %p251 = scmp.eq.s32.totalorder %s36, 0
      %p252 = por %p250, %p251
      %s254 = sadd.s32 %s253, 1
      %p257 = scmp.eq.s32.totalorder %s30, 1
      %p258 = scmp.ne.s32.totalorder %s253, %s255
      %p259 = scmp.eq.s32.totalorder %s30, 0
      %p260 = por %p258, %p259
      %p261 = scmp.ne.s32.totalorder %s253, %s255
      %p262 = scmp.eq.s32.totalorder %s35, 1
      %p263 = por %p261, %p262
      %p264 = scmp.ne.s32.totalorder %s255, %s256
      %p265 = scmp.eq.s32.totalorder %s35, 0
      %p266 = por %p264, %p265
      %p267 = scmp.ne.s32.totalorder %s255, %s256
      %p268 = scmp.eq.s32.totalorder %s36, 1
      %p269 = por %p267, %p268
      %p271 = scmp.ne.s32.totalorder %s256, %s270
      %p272 = scmp.eq.s32.totalorder %s36, 0
      %p273 = por %p271, %p272
      %s275 = sadd.s32 %s274, 1
      %p278 = scmp.eq.s32.totalorder %s30, 1
      %p279 = scmp.ne.s32.totalorder %s274, %s276
      %p280 = scmp.eq.s32.totalorder %s30, 0
      %p281 = por %p279, %p280
      %p282 = scmp.ne.s32.totalorder %s274, %s276
      %p283 = scmp.eq.s32.totalorder %s35, 1
      %p284 = por %p282, %p283
      %p285 = scmp.ne.s32.totalorder %s276, %s277
      %p286 = scmp.eq.s32.totalorder %s35, 0
      %p287 = por %p285, %p286
      %p288 = scmp.ne.s32.totalorder %s276, %s277
      %p289 = scmp.eq.s32.totalorder %s36, 1
      %p290 = por %p288, %p289
      %p292 = scmp.ne.s32.totalorder %s277, %s291
      %p293 = scmp.eq.s32.totalorder %s36, 0
      %p294 = por %p292, %p293
      %s296 = sadd.s32 %s295, 1
      %p299 = scmp.eq.s32.totalorder %s30, 1
      %p300 = scmp.ne.s32.totalorder %s295, %s297
      %p301 = scmp.eq.s32.totalorder %s30, 0
      %p302 = por %p300, %p301
      %p303 = scmp.ne.s32.totalorder %s295, %s297
      %p304 = scmp.eq.s32.totalorder %s35, 1
      %p305 = por %p303, %p304
      %p306 = scmp.ne.s32.totalorder %s297, %s298
      %p307 = scmp.eq.s32.totalorder %s35, 0
      %p308 = por %p306, %p307
      %p309 = scmp.ne.s32.totalorder %s297, %s298
      %p310 = scmp.eq.s32.totalorder %s36, 1
      %p311 = por %p309, %p310
      %p313 = scmp.ne.s32.totalorder %s298, %s312
      %p314 = scmp.eq.s32.totalorder %s36, 0
      %p315 = por %p313, %p314
      %s317 = sadd.s32 %s316, 1
      %p320 = scmp.eq.s32.totalorder %s30, 1
      %p321 = scmp.ne.s32.totalorder %s316, %s318
      %p322 = scmp.eq.s32.totalorder %s30, 0
      %p323 = por %p321, %p322
      %p324 = scmp.ne.s32.totalorder %s316, %s318
      %p325 = scmp.eq.s32.totalorder %s35, 1
      %p326 = por %p324, %p325
      %p327 = scmp.ne.s32.totalorder %s318, %s319
      %p328 = scmp.eq.s32.totalorder %s35, 0
      %p329 = por %p327, %p328
      %p330 = scmp.ne.s32.totalorder %s318, %s319
      %p331 = scmp.eq.s32.totalorder %s36, 1
      %p332 = por %p330, %p331
      %p334 = scmp.ne.s32.totalorder %s319, %s333
      %p335 = scmp.eq.s32.totalorder %s36, 0
      %p336 = por %p334, %p335
      %s338 = sadd.s32 %s337, 1
      %p341 = scmp.eq.s32.totalorder %s30, 1
      %p342 = scmp.ne.s32.totalorder %s337, %s339
      %p343 = scmp.eq.s32.totalorder %s30, 0
      %p344 = por %p342, %p343
      %p345 = scmp.ne.s32.totalorder %s337, %s339
      %p346 = scmp.eq.s32.totalorder %s35, 1
      %p347 = por %p345, %p346
      %p348 = scmp.ne.s32.totalorder %s339, %s340
      %p349 = scmp.eq.s32.totalorder %s35, 0
      %p350 = por %p348, %p349
      %p351 = scmp.ne.s32.totalorder %s339, %s340
      %p352 = scmp.eq.s32.totalorder %s36, 1
      %p353 = por %p351, %p352
      %p355 = scmp.ne.s32.totalorder %s340, %s354
      %p356 = scmp.eq.s32.totalorder %s36, 0
      %p357 = por %p355, %p356
      %s359 = sadd.s32 %s358, 1
      %p362 = scmp.eq.s32.totalorder %s30, 1
      %p363 = scmp.ne.s32.totalorder %s358, %s360
      %p364 = scmp.eq.s32.totalorder %s30, 0
      %p365 = por %p363, %p364
      %p366 = scmp.ne.s32.totalorder %s358, %s360
      %p367 = scmp.eq.s32.totalorder %s35, 1
      %p368 = por %p366, %p367
      %p369 = scmp.ne.s32.totalorder %s360, %s361
      %p370 = scmp.eq.s32.totalorder %s35, 0
      %p371 = por %p369, %p370
      %p372 = scmp.ne.s32.totalorder %s360, %s361
      %p373 = scmp.eq.s32.totalorder %s36, 1
      %p374 = por %p372, %p373
      %p376 = scmp.ne.s32.totalorder %s361, %s375
      %p377 = scmp.eq.s32.totalorder %s36, 0
      %p378 = por %p376, %p377
      %s380 = sadd.s32 %s379, 1
      %p383 = scmp.eq.s32.totalorder %s30, 1
      %p384 = scmp.ne.s32.totalorder %s379, %s381
      %p385 = scmp.eq.s32.totalorder %s30, 0
      %p386 = por %p384, %p385
      %p387 = scmp.ne.s32.totalorder %s379, %s381
      %p388 = scmp.eq.s32.totalorder %s35, 1
      %p389 = por %p387, %p388
      %p390 = scmp.ne.s32.totalorder %s381, %s382
      %p391 = scmp.eq.s32.totalorder %s35, 0
      %p392 = por %p390, %p391
      %p393 = scmp.ne.s32.totalorder %s381, %s382
      %p394 = scmp.eq.s32.totalorder %s36, 1
      %p395 = por %p393, %p394
      %p397 = scmp.ne.s32.totalorder %s382, %s396
      %p398 = scmp.eq.s32.totalorder %s36, 0
      %p399 = por %p397, %p398
      %s401 = sadd.s32 %s400, 1
      %p404 = scmp.eq.s32.totalorder %s30, 1
      %p405 = scmp.ne.s32.totalorder %s400, %s402
      %p406 = scmp.eq.s32.totalorder %s30, 0
      %p407 = por %p405, %p406
      %p408 = scmp.ne.s32.totalorder %s400, %s402
      %p409 = scmp.eq.s32.totalorder %s35, 1
      %p410 = por %p408, %p409
      %p411 = scmp.ne.s32.totalorder %s402, %s403
      %p412 = scmp.eq.s32.totalorder %s35, 0
      %p413 = por %p411, %p412
      %p414 = scmp.ne.s32.totalorder %s402, %s403
      %p415 = scmp.eq.s32.totalorder %s36, 1
      %p416 = por %p414, %p415
      %p418 = scmp.ne.s32.totalorder %s403, %s417
      %p419 = scmp.eq.s32.totalorder %s36, 0
      %p420 = por %p418, %p419
      %s422 = sadd.s32 %s421, 1
      %p425 = scmp.eq.s32.totalorder %s30, 1
      %p426 = scmp.ne.s32.totalorder %s421, %s423
      %p427 = scmp.eq.s32.totalorder %s30, 0
      %p428 = por %p426, %p427
      %p429 = scmp.ne.s32.totalorder %s421, %s423
      %p430 = scmp.eq.s32.totalorder %s35, 1
      %p431 = por %p429, %p430
      %p432 = scmp.ne.s32.totalorder %s423, %s424
      %p433 = scmp.eq.s32.totalorder %s35, 0
      %p434 = por %p432, %p433
      %p435 = scmp.ne.s32.totalorder %s423, %s424
      %p436 = scmp.eq.s32.totalorder %s36, 1
      %p437 = por %p435, %p436
      %p439 = scmp.ne.s32.totalorder %s424, %s438
      %p440 = scmp.eq.s32.totalorder %s36, 0
      %p441 = por %p439, %p440
      %s443 = sadd.s32 %s442, 1
      %p446 = scmp.eq.s32.totalorder %s30, 1
      %p447 = scmp.ne.s32.totalorder %s442, %s444
      %p448 = scmp.eq.s32.totalorder %s30, 0
      %p449 = por %p447, %p448
      %p450 = scmp.ne.s32.totalorder %s442, %s444
      %p451 = scmp.eq.s32.totalorder %s35, 1
      %p452 = por %p450, %p451
      %p453 = scmp.ne.s32.totalorder %s444, %s445
      %p454 = scmp.eq.s32.totalorder %s35, 0
      %p455 = por %p453, %p454
      %p456 = scmp.ne.s32.totalorder %s444, %s445
      %p457 = scmp.eq.s32.totalorder %s36, 1
      %p458 = por %p456, %p457
      %p460 = scmp.ne.s32.totalorder %s445, %s459
      %p461 = scmp.eq.s32.totalorder %s36, 0
      %p462 = por %p460, %p461
      %s464 = sadd.s32 %s463, 1
      %p467 = scmp.eq.s32.totalorder %s30, 1
      %p468 = scmp.ne.s32.totalorder %s463, %s465
      %p469 = scmp.eq.s32.totalorder %s30, 0
      %p470 = por %p468, %p469
      %p471 = scmp.ne.s32.totalorder %s463, %s465
      %p472 = scmp.eq.s32.totalorder %s35, 1
      %p473 = por %p471, %p472
      %p474 = scmp.ne.s32.totalorder %s465, %s466
      %p475 = scmp.eq.s32.totalorder %s35, 0
      %p476 = por %p474, %p475
      %p477 = scmp.ne.s32.totalorder %s465, %s466
      %p478 = scmp.eq.s32.totalorder %s36, 1
      %p479 = por %p477, %p478
      %p481 = scmp.ne.s32.totalorder %s466, %s480
      %p482 = scmp.eq.s32.totalorder %s36, 0
      %p483 = por %p481, %p482
      %s484 = ssub.s32 %s30, %s37
      %p485 = scmp.eq.s32.totalorder %s484, 0
      %s487 = sadd.s32 %s486, 1
      %s488 = scalar_select %p485, %s486, %s487
      %p491 = pneg %p485
      %p492 = scmp.eq.s32.totalorder %s30, 1
      %p493 = por %p491, %p492
      %p494 = scmp.ne.s32.totalorder %s486, %s489
      %p495 = scmp.eq.s32.totalorder %s30, 0
      %p496 = por %p494, %p495
      %p497 = scmp.ne.s32.totalorder %s486, %s489
      %p498 = scmp.eq.s32.totalorder %s35, 1
      %p499 = por %p497, %p498
      %p500 = scmp.ne.s32.totalorder %s489, %s490
      %p501 = scmp.eq.s32.totalorder %s35, 0
      %p502 = por %p500, %p501
      %p503 = scmp.ne.s32.totalorder %s489, %s490
      %p504 = scmp.eq.s32.totalorder %s36, 1
      %p505 = por %p503, %p504
      %p507 = scmp.ne.s32.totalorder %s490, %s506
      %p508 = scmp.eq.s32.totalorder %s36, 0
      %p509 = por %p507, %p508
      %p510 = scmp.le.s32.totalorder 1, %s30
      %p511 = scmp.lt.s32.totalorder %s30, 3
      %p512 = pnand %p510, %p511
      %p513 = pneg %p512
      // Predicated region
      $region9: #{forward.1} parent=5 // pred_check
        _
      $region10: #{forward.1} parent=5 // pred_check_branch
        %515 = sbr.rel (%p512) target = $region12
      $region11: #{forward.1} parent=5 // pred_region
        %s516 = ssub.s32 %s30, 1
        // Predicated region
        $region13: #{forward.1} parent=11 // pred_check
          %p517 = pneg %p77
        $region14: #{forward.1} parent=11 // pred_check_branch
          %519 = sbr.rel (%p517) target = $region16
        $region15: #{forward.1} parent=11 // pred_region
          _
        $region16: #{forward.1} parent=11 // pred_fallthru
          _
        // Predicated region
        $region17: #{forward.1} parent=11 // pred_check
          %p520 = pneg %p98
        $region18: #{forward.1} parent=11 // pred_check_branch
          %522 = sbr.rel (%p520) target = $region20
        $region19: #{forward.1} parent=11 // pred_region
          _
        $region20: #{forward.1} parent=11 // pred_fallthru
          _
        // Predicated region
        $region21: #{forward.1} parent=11 // pred_check
          %p523 = pneg %p119
        $region22: #{forward.1} parent=11 // pred_check_branch
          %525 = sbr.rel (%p523) target = $region24
        $region23: #{forward.1} parent=11 // pred_region
          _
        $region24: #{forward.1} parent=11 // pred_fallthru
          _
        // Predicated region
        $region25: #{forward.1} parent=11 // pred_check
          %p526 = pneg %p140
        $region26: #{forward.1} parent=11 // pred_check_branch
          %528 = sbr.rel (%p526) target = $region28
        $region27: #{forward.1} parent=11 // pred_region
          _
        $region28: #{forward.1} parent=11 // pred_fallthru
          _
        // Predicated region
        $region29: #{forward.1} parent=11 // pred_check
          %p529 = pneg %p161
        $region30: #{forward.1} parent=11 // pred_check_branch
          %531 = sbr.rel (%p529) target = $region32
        $region31: #{forward.1} parent=11 // pred_region
          _
        $region32: #{forward.1} parent=11 // pred_fallthru
          _
        // Predicated region
        $region33: #{forward.1} parent=11 // pred_check
          %p532 = pneg %p182
        $region34: #{forward.1} parent=11 // pred_check_branch
          %534 = sbr.rel (%p532) target = $region36
        $region35: #{forward.1} parent=11 // pred_region
          _
        $region36: #{forward.1} parent=11 // pred_fallthru
          _
        // Predicated region
        $region37: #{forward.1} parent=11 // pred_check
          %p535 = pneg %p203
        $region38: #{forward.1} parent=11 // pred_check_branch
          %537 = sbr.rel (%p535) target = $region40
        $region39: #{forward.1} parent=11 // pred_region
          _
        $region40: #{forward.1} parent=11 // pred_fallthru
          _
        // Predicated region
        $region41: #{forward.1} parent=11 // pred_check
          %p538 = pneg %p224
        $region42: #{forward.1} parent=11 // pred_check_branch
          %540 = sbr.rel (%p538) target = $region44
        $region43: #{forward.1} parent=11 // pred_region
          _
        $region44: #{forward.1} parent=11 // pred_fallthru
          _
        // Predicated region
        $region45: #{forward.1} parent=11 // pred_check
          %p541 = pneg %p245
        $region46: #{forward.1} parent=11 // pred_check_branch
          %543 = sbr.rel (%p541) target = $region48
        $region47: #{forward.1} parent=11 // pred_region
          _
        $region48: #{forward.1} parent=11 // pred_fallthru
          _
        // Predicated region
        $region49: #{forward.1} parent=11 // pred_check
          %p544 = pneg %p266
        $region50: #{forward.1} parent=11 // pred_check_branch
          %546 = sbr.rel (%p544) target = $region52
        $region51: #{forward.1} parent=11 // pred_region
          _
        $region52: #{forward.1} parent=11 // pred_fallthru
          _
        // Predicated region
        $region53: #{forward.1} parent=11 // pred_check
          %p547 = pneg %p287
        $region54: #{forward.1} parent=11 // pred_check_branch
          %549 = sbr.rel (%p547) target = $region56
        $region55: #{forward.1} parent=11 // pred_region
          _
        $region56: #{forward.1} parent=11 // pred_fallthru
          _
        // Predicated region
        $region57: #{forward.1} parent=11 // pred_check
          %p550 = pneg %p308
        $region58: #{forward.1} parent=11 // pred_check_branch
          %552 = sbr.rel (%p550) target = $region60
        $region59: #{forward.1} parent=11 // pred_region
          _
        $region60: #{forward.1} parent=11 // pred_fallthru
          _
        // Predicated region
        $region61: #{forward.1} parent=11 // pred_check
          %p553 = pneg %p329
        $region62: #{forward.1} parent=11 // pred_check_branch
          %555 = sbr.rel (%p553) target = $region64
        $region63: #{forward.1} parent=11 // pred_region
          _
        $region64: #{forward.1} parent=11 // pred_fallthru
          _
        // Predicated region
        $region65: #{forward.1} parent=11 // pred_check
          %p556 = pneg %p350
        $region66: #{forward.1} parent=11 // pred_check_branch
          %558 = sbr.rel (%p556) target = $region68
        $region67: #{forward.1} parent=11 // pred_region
          _
        $region68: #{forward.1} parent=11 // pred_fallthru
          _
        // Predicated region
        $region69: #{forward.1} parent=11 // pred_check
          %p559 = pneg %p371
        $region70: #{forward.1} parent=11 // pred_check_branch
          %561 = sbr.rel (%p559) target = $region72
        $region71: #{forward.1} parent=11 // pred_region
          _
        $region72: #{forward.1} parent=11 // pred_fallthru
          _
        // Predicated region
        $region73: #{forward.1} parent=11 // pred_check
          %p562 = pneg %p392
        $region74: #{forward.1} parent=11 // pred_check_branch
          %564 = sbr.rel (%p562) target = $region76
        $region75: #{forward.1} parent=11 // pred_region
          _
        $region76: #{forward.1} parent=11 // pred_fallthru
          _
        // Predicated region
        $region77: #{forward.1} parent=11 // pred_check
          %p565 = pneg %p413
        $region78: #{forward.1} parent=11 // pred_check_branch
          %567 = sbr.rel (%p565) target = $region80
        $region79: #{forward.1} parent=11 // pred_region
          _
        $region80: #{forward.1} parent=11 // pred_fallthru
          _
        // Predicated region
        $region81: #{forward.1} parent=11 // pred_check
          %p568 = pneg %p434
        $region82: #{forward.1} parent=11 // pred_check_branch
          %570 = sbr.rel (%p568) target = $region84
        $region83: #{forward.1} parent=11 // pred_region
          _
        $region84: #{forward.1} parent=11 // pred_fallthru
          _
        // Predicated region
        $region85: #{forward.1} parent=11 // pred_check
          %p571 = pneg %p455
        $region86: #{forward.1} parent=11 // pred_check_branch
          %573 = sbr.rel (%p571) target = $region88
        $region87: #{forward.1} parent=11 // pred_region
          _
        $region88: #{forward.1} parent=11 // pred_fallthru
          _
        // Predicated region
        $region89: #{forward.1} parent=11 // pred_check
          %p574 = pneg %p476
        $region90: #{forward.1} parent=11 // pred_check_branch
          %576 = sbr.rel (%p574) target = $region92
        $region91: #{forward.1} parent=11 // pred_region
          _
        $region92: #{forward.1} parent=11 // pred_fallthru
          _
      $region12: #{forward.1} parent=5 // pred_fallthru
        _
      %p577 = scmp.lt.s32.totalorder %s30, 2
      // Predicated region
      $region93: #{forward.1} parent=5 // pred_check
        %p578 = pneg %p577
      $region94: #{forward.1} parent=5 // pred_check_branch
        %580 = sbr.rel (%p578) target = $region96
      $region95: #{forward.1} parent=5 // pred_region
        // Predicated region
        $region97: #{forward.1} parent=95 // pred_check
          %p581 = pneg %p50
        $region98: #{forward.1} parent=95 // pred_check_branch
          %583 = sbr.rel (%p581) target = $region100
        $region99: #{forward.1} parent=95 // pred_region
          %s584 = smul.u32 16, %s30
          %p585 = scmp.lt.s32.totalorder %s584, 31
          %s586 = scalar_select %p585, %s584, 31
          %s587 = smul.addr %s586, 8
          %s588 = scalar_lea.vmem %s0, %s587
          %s589 = smul.u32 16, %s30
        $region100: #{forward.1} parent=95 // pred_fallthru
          _
      $region96: #{forward.1} parent=5 // pred_fallthru
        _
      %p590 = scmp.le.s32.totalorder 1, %s30
      %p591 = scmp.lt.s32.totalorder %s30, 3
      %p592 = pnand %p590, %p591
      %p593 = pneg %p592
      // Predicated region
      $region101: #{forward.1} parent=5 // pred_check
        _
      $region102: #{forward.1} parent=5 // pred_check_branch
        %595 = sbr.rel (%p592) target = $region104
      $region103: #{forward.1} parent=5 // pred_region
        %s596 = ssub.s32 %s30, 1
        %s597 = smul.u32 16, %s35
        %p598 = scmp.lt.s32.totalorder %s597, 31
        %s599 = scalar_select %p598, %s597, 31
        %s600 = smul.addr %s599, 8
        %s601 = scalar_lea.vmem %s0, %s600
        %p602 = pneg %p56
        %p603 = pneg %p53
        %p604 = pneg %p77
        %p605 = pneg %p74
        %p606 = pneg %p98
        %p607 = pneg %p95
        %p608 = pneg %p119
        %p609 = pneg %p116
        %p610 = pneg %p140
        %p611 = pneg %p137
        %p612 = pneg %p161
        %p613 = pneg %p158
        %p614 = pneg %p182
        %p615 = pneg %p179
        %p616 = pneg %p203
        %p617 = pneg %p200
        %p618 = pneg %p224
        %p619 = pneg %p221
        %p620 = pneg %p245
        %p621 = pneg %p242
        %p622 = pneg %p266
        %p623 = pneg %p263
        %p624 = pneg %p287
        %p625 = pneg %p284
        %p626 = pneg %p308
        %p627 = pneg %p305
        %p628 = pneg %p329
        %p629 = pneg %p326
        %p630 = pneg %p350
        %p631 = pneg %p347
        %p632 = pneg %p371
        %p633 = pneg %p368
        %p634 = pneg %p392
        %p635 = pneg %p389
        %p636 = pneg %p413
        %p637 = pneg %p410
        %p638 = pneg %p434
        %p639 = pneg %p431
        %p640 = pneg %p455
        %p641 = pneg %p452
        %p642 = pneg %p476
        %p643 = pneg %p473
        %p644 = pneg %p502
        %p645 = pneg %p499
        %s646 = sand.u32 %s489, 1
        %s647 = scalar_lea.sflag [#allocation3], %s646
        %s648 = sand.u32 %s489, 1
        %s649 = smul.addr %s648, 8
        %s650 = scalar_lea.vmem [#allocation2], %s649
        %s651 = smul.u32 16, %s35
        %p652 = scmp.lt.s32.totalorder %s651, 31
        %s653 = scalar_select %p652, %s651, 31
        %s654 = smul.addr %s653, 8
        %s655 = scalar_lea.vmem %s0, %s654
        %s656 = smul.u32 16, %s35
        %v658 = vld [vmem:[%s655] sm:$0xff]
        %v659 = vld [vmem:[%s655 + $0x8] sm:$0xff]
        %v660 = vld [vmem:[%s655 + $0x10] sm:$0xff]
        %v661 = vld [vmem:[%s655 + $0x18] sm:$0xff]
        %v662 = vld [vmem:[%s655 + $0x20] sm:$0xff]
        %v663 = vld [vmem:[%s655 + $0x28] sm:$0xff]
        %v664 = vld [vmem:[%s655 + $0x30] sm:$0xff]
        %v665 = vld [vmem:[%s655 + $0x38] sm:$0xff]
        %v666 = vld [vmem:[%s655 + $0x40] sm:$0xff]
        %v667 = vld [vmem:[%s655 + $0x48] sm:$0xff]
        %v668 = vld [vmem:[%s655 + $0x50] sm:$0xff]
        %v669 = vld [vmem:[%s655 + $0x58] sm:$0xff]
        %v670 = vld [vmem:[%s655 + $0x60] sm:$0xff]
        %v671 = vld [vmem:[%s655 + $0x68] sm:$0xff]
        %v672 = vld [vmem:[%s655 + $0x70] sm:$0xff]
        %v673 = vld [vmem:[%s655 + $0x78] sm:$0xff]
        %v674 = vld [vmem:[%s1] sm:$0xff]
        %v675 = vld [vmem:[%s1 + $0x8] sm:$0xff]
        %v676 = vld [vmem:[%s1 + $0x10] sm:$0xff]
        %v677 = vld [vmem:[%s1 + $0x18] sm:$0xff]
        %v678 = vld [vmem:[%s1 + $0x20] sm:$0xff]
        %v679 = vld [vmem:[%s1 + $0x28] sm:$0xff]
        %v680 = vld [vmem:[%s1 + $0x30] sm:$0xff]
        %v681 = vld [vmem:[%s1 + $0x38] sm:$0xff]
        %v682 = vld [vmem:[%s1 + $0x40] sm:$0xff]
        %v683 = vld [vmem:[%s1 + $0x48] sm:$0xff]
        %v684 = vld [vmem:[%s1 + $0x50] sm:$0xff]
        %v685 = vld [vmem:[%s1 + $0x58] sm:$0xff]
        %v686 = vld [vmem:[%s1 + $0x60] sm:$0xff]
        %v687 = vld [vmem:[%s1 + $0x68] sm:$0xff]
        %v688 = vld [vmem:[%s1 + $0x70] sm:$0xff]
        %v689 = vld [vmem:[%s1 + $0x78] sm:$0xff]
        %v690 = vld [vmem:[%s2] sm:$0xff]
        %v691 = vld [vmem:[%s2 + $0x8] sm:$0xff]
        %v692 = vld [vmem:[%s2 + $0x10] sm:$0xff]
        %v693 = vld [vmem:[%s2 + $0x18] sm:$0xff]
        %v694 = vld [vmem:[%s3] sm:$0xff]
        %v695 = vpack.c.bf16 %v659, %v658
        %v696 = vpack.c.bf16 %v661, %v660
        %v697 = vpack.c.bf16 %v663, %v662
        %v698 = vpack.c.bf16 %v665, %v664
        %v699 = vpack.c.bf16 %v667, %v666
        %v700 = vpack.c.bf16 %v669, %v668
        %v701 = vpack.c.bf16 %v671, %v670
        %v702 = vpack.c.bf16 %v673, %v672
        %v703 = vld [vmem:[%s4] sm:$0xf]
        %v704 = vld [vmem:[%s4 + $0x4] sm:$0xf]
        %v705 = vld [vmem:[%s4 + $0x8] sm:$0xf]
        %v706 = vld [vmem:[%s4 + $0xc] sm:$0xf]
        %v707 = vld [vmem:[%s4 + $0x10] sm:$0xf]
        %v708 = vld [vmem:[%s4 + $0x14] sm:$0xf]
        %v709 = vld [vmem:[%s4 + $0x18] sm:$0xf]
        %v710 = vld [vmem:[%s4 + $0x1c] sm:$0xf]
        %v719 = vunpack.c.l.b16 %v703
        %v720 = vunpack.c.l.b16 %v704
        %v721 = vunpack.c.l.b16 %v705
        %v722 = vunpack.c.l.b16 %v706
        %v723 = vunpack.c.l.b16 %v707
        %v724 = vunpack.c.l.b16 %v708
        %v725 = vunpack.c.l.b16 %v709
        %v726 = vunpack.c.l.b16 %v710
        %v727 = vpack.c.b16 %v720, %v719
        %v728 = vpack.c.b16 %v722, %v721
        %v729 = vpack.c.b16 %v724, %v723
        %v730 = vpack.c.b16 %v726, %v725
        %vm735 = vcmask 523264
        %v737 = vsel %vm735, %v695, 0
        %v740 = vsel %vm735, %v696, 0
        %v743 = vsel %vm735, %v697, 0
        %v746 = vsel %vm735, %v698, 0
        %v749 = vsel %vm735, %v699, 0
        %v752 = vsel %vm735, %v700, 0
        %v755 = vsel %vm735, %v701, 0
        %v758 = vsel %vm735, %v702, 0
        %760 = vmatprep.subr.bf16.mxu0 0
        %761 = vmatpush1.bf16.msra.mxu0 %v727
        %762 = vmatprep.subr.bf16.mxu0 0
        %763 = vmatpush1.bf16.msra.mxu0 %v728
        %764 = vmatprep.subr.bf16.mxu0 0
        %765 = vmatpush1.bf16.msra.mxu0 %v729
        %766 = vmatprep.subr.bf16.mxu0 0
        %767 = vmatpush1.bf16.msra.mxu0 %v730
        %768 = vmatprep.subr.bf16.mxu0 0
        %769 = vmatpush1.bf16.msra.mxu0 0
        %770 = vmatprep.subr.bf16.mxu0 0
        %771 = vmatpush1.bf16.msra.mxu0 0
        %772 = vmatprep.subr.bf16.mxu0 0
        %773 = vmatpush1.bf16.msra.mxu0 0
        %774 = vmatprep.subr.bf16.mxu0 0
        %775 = vmatpush1.bf16.msra.mxu0 0
        %776 = vmatprep.subr.bf16.mxu0 0
        %777 = vmatpush1.bf16.msra.mxu0 0
        %778 = vmatprep.subr.bf16.mxu0 0
        %779 = vmatpush1.bf16.msra.mxu0 0
        %780 = vmatprep.subr.bf16.mxu0 0
        %781 = vmatpush1.bf16.msra.mxu0 0
        %782 = vmatprep.subr.bf16.mxu0 0
        %783 = vmatpush1.bf16.msra.mxu0 0
        %784 = vmatprep.subr.bf16.mxu0 0
        %785 = vmatpush1.bf16.msra.mxu0 0
        %786 = vmatprep.subr.bf16.mxu0 0
        %787 = vmatpush1.bf16.msra.mxu0 0
        %788 = vmatprep.subr.bf16.mxu0 0
        %789 = vmatpush1.bf16.msra.mxu0 0
        %790 = vmatprep.subr.bf16.mxu0 0
        %791 = vmatpush1.bf16.msra.mxu0 0
        %792 = vmatprep.mubr.bf16.mxu0 0
        %793 = vmatmul.mubr.bf16.gmra.mrb[0].mxu0 %v737
        %v794 = vpop.f32.mrb[0].mxu0
        %v795 = vadd.f32 0.0, %v794
        %v796 = vpop.f32.mrb[0].mxu0
        %v797 = vpop.f32.mrb[0].mxu0
        %v798 = vadd.f32 0.0, %v797
        %v799 = vpop.f32.mrb[0].mxu0
        %800 = vmatprep.mubr.bf16.mxu0 0
        %801 = vmatmul.mubr.bf16.gmra.mrb[0].mxu0 %v740
        %v802 = vpop.f32.mrb[0].mxu0
        %v803 = vadd.f32 0.0, %v802
        %v804 = vpop.f32.mrb[0].mxu0
        %v805 = vpop.f32.mrb[0].mxu0
        %v806 = vadd.f32 0.0, %v805
        %v807 = vpop.f32.mrb[0].mxu0
        %808 = vmatprep.mubr.bf16.mxu0 0
        %809 = vmatmul.mubr.bf16.gmra.mrb[0].mxu0 %v743
        %v810 = vpop.f32.mrb[0].mxu0
        %v811 = vadd.f32 0.0, %v810
        %v812 = vpop.f32.mrb[0].mxu0
        %v813 = vpop.f32.mrb[0].mxu0
        %v814 = vadd.f32 0.0, %v813
        %v815 = vpop.f32.mrb[0].mxu0
        %816 = vmatprep.mubr.bf16.mxu0 0
        %817 = vmatmul.mubr.bf16.gmra.mrb[0].mxu0 %v746
        %v818 = vpop.f32.mrb[0].mxu0
        %v819 = vadd.f32 0.0, %v818
        %v820 = vpop.f32.mrb[0].mxu0
        %v821 = vpop.f32.mrb[0].mxu0
        %v822 = vadd.f32 0.0, %v821
        %v823 = vpop.f32.mrb[0].mxu0
        %824 = vmatprep.mubr.bf16.mxu0 0
        %825 = vmatmul.mubr.bf16.gmra.mrb[0].mxu0 %v749
        %v826 = vpop.f32.mrb[0].mxu0
        %v827 = vadd.f32 0.0, %v826
        %v828 = vpop.f32.mrb[0].mxu0
        %v829 = vpop.f32.mrb[0].mxu0
        %v830 = vadd.f32 0.0, %v829
        %v831 = vpop.f32.mrb[0].mxu0
        %832 = vmatprep.mubr.bf16.mxu0 0
        %833 = vmatmul.mubr.bf16.gmra.mrb[0].mxu0 %v752
        %v834 = vpop.f32.mrb[0].mxu0
        %v835 = vadd.f32 0.0, %v834
        %v836 = vpop.f32.mrb[0].mxu0
        %v837 = vpop.f32.mrb[0].mxu0
        %v838 = vadd.f32 0.0, %v837
        %v839 = vpop.f32.mrb[0].mxu0
        %840 = vmatprep.mubr.bf16.mxu0 0
        %841 = vmatmul.mubr.bf16.gmra.mrb[0].mxu0 %v755
        %v842 = vpop.f32.mrb[0].mxu0
        %v843 = vadd.f32 0.0, %v842
        %v844 = vpop.f32.mrb[0].mxu0
        %v845 = vpop.f32.mrb[0].mxu0
        %v846 = vadd.f32 0.0, %v845
        %v847 = vpop.f32.mrb[0].mxu0
        %848 = vmatprep.mubr.bf16.mxu0 0
        %849 = vmatmul.mubr.bf16.gmra.mrb[0].mxu0 %v758
        %v850 = vpop.f32.mrb[0].mxu0
        %v851 = vadd.f32 0.0, %v850
        %v852 = vpop.f32.mrb[0].mxu0
        %v853 = vpop.f32.mrb[0].mxu0
        %v854 = vadd.f32 0.0, %v853
        %v855 = vpop.f32.mrb[0].mxu0
        %856 = vdwg.mxu0
        %v857 = vmul.f32 %v795, %v795
        %v858 = vmul.f32 %v798, %v798
        %v859 = vmul.f32 %v803, %v803
        %v860 = vmul.f32 %v806, %v806
        %v861 = vmul.f32 %v811, %v811
        %v862 = vmul.f32 %v814, %v814
        %v863 = vmul.f32 %v819, %v819
        %v864 = vmul.f32 %v822, %v822
        %v865 = vmul.f32 %v827, %v827
        %v866 = vmul.f32 %v830, %v830
        %v867 = vmul.f32 %v835, %v835
        %v868 = vmul.f32 %v838, %v838
        %v869 = vmul.f32 %v843, %v843
        %v870 = vmul.f32 %v846, %v846
        %v871 = vmul.f32 %v851, %v851
        %v872 = vmul.f32 %v854, %v854
        %v873 = vadd.f32 %v857, 1e-06
        %v874 = vadd.f32 %v858, 1e-06
        %v875 = vadd.f32 %v859, 1e-06
        %v876 = vadd.f32 %v860, 1e-06
        %v877 = vadd.f32 %v861, 1e-06
        %v878 = vadd.f32 %v862, 1e-06
        %v879 = vadd.f32 %v863, 1e-06
        %v880 = vadd.f32 %v864, 1e-06
        %v881 = vadd.f32 %v865, 1e-06
        %v882 = vadd.f32 %v866, 1e-06
        %v883 = vadd.f32 %v867, 1e-06
        %v884 = vadd.f32 %v868, 1e-06
        %v885 = vadd.f32 %v869, 1e-06
        %v886 = vadd.f32 %v870, 1e-06
        %v887 = vadd.f32 %v871, 1e-06
        %v888 = vadd.f32 %v872, 1e-06
        %v889 = vlog2.pop %v873
        %v890 = vmul.f32 %v889, 0.6931472
        %v891 = vlog2.pop %v874
        %v892 = vmul.f32 %v891, 0.6931472
        %v893 = vlog2.pop %v875
        %v894 = vmul.f32 %v893, 0.6931472
        %v895 = vlog2.pop %v876
        %v896 = vmul.f32 %v895, 0.6931472
        %v897 = vlog2.pop %v877
        %v898 = vmul.f32 %v897, 0.6931472
        %v899 = vlog2.pop %v878
        %v900 = vmul.f32 %v899, 0.6931472
        %v901 = vlog2.pop %v879
        %v902 = vmul.f32 %v901, 0.6931472
        %v903 = vlog2.pop %v880
        %v904 = vmul.f32 %v903, 0.6931472
        %v905 = vlog2.pop %v881
        %v906 = vmul.f32 %v905, 0.6931472
        %v907 = vlog2.pop %v882
        %v908 = vmul.f32 %v907, 0.6931472
        %v909 = vlog2.pop %v883
        %v910 = vmul.f32 %v909, 0.6931472
        %v911 = vlog2.pop %v884
        %v912 = vmul.f32 %v911, 0.6931472
        %v913 = vlog2.pop %v885
        %v914 = vmul.f32 %v913, 0.6931472
        %v915 = vlog2.pop %v886
        %v916 = vmul.f32 %v915, 0.6931472
        %v917 = vlog2.pop %v887
        %v918 = vmul.f32 %v917, 0.6931472
        %v919 = vlog2.pop %v888
        %v920 = vmul.f32 %v919, 0.6931472
        %v921 = vld [vmem:[%s5] sm:$0xf]
        %v922 = vld [vmem:[%s5 + $0x4] sm:$0xf]
        %v923 = vld [vmem:[%s5 + $0x8] sm:$0xf]
        %v924 = vld [vmem:[%s5 + $0xc] sm:$0xf]
        %v925 = vld [vmem:[%s5 + $0x10] sm:$0xf]
        %v926 = vpack.c.bf16 %v892, %v890
        %v927 = vpack.c.bf16 %v896, %v894
        %v928 = vpack.c.bf16 %v900, %v898
        %v929 = vpack.c.bf16 %v904, %v902
        %v930 = vpack.c.bf16 %v908, %v906
        %v931 = vpack.c.bf16 %v912, %v910
        %v932 = vpack.c.bf16 %v916, %v914
        %v933 = vpack.c.bf16 %v920, %v918
        %v934 = vlaneseq
        %v935 = vshrl.u32 %v934, 7
        %v936 = vsub.s32 0, %v935
        %v937 = vrot.slane %v690, %v936
        %v943 = vunpack.c.l.b16 %v921
        %v944 = vunpack.c.l.b16 %v922
        %v945 = vunpack.c.l.b16 %v923
        %v946 = vunpack.c.l.b16 %v924
        %v947 = vunpack.c.l.b16 %v925
        %v948 = vpack.c.b16 %v944, %v943
        %v949 = vpack.c.b16 %v946, %v945
        %v950 = vpack.c.b16 %v947, %v947
        %vm953 = vcmask 326656
        %v955 = vsel %vm953, %v926, 0
        %v958 = vsel %vm953, %v927, 0
        %v961 = vsel %vm953, %v928, 0
        %v964 = vsel %vm953, %v929, 0
        %v967 = vsel %vm953, %v930, 0
        %v970 = vsel %vm953, %v931, 0
        %v973 = vsel %vm953, %v932, 0
        %v976 = vsel %vm953, %v933, 0
        %vm978 = vcmask 1043456
        %v980 = vsel %vm978, %v950, 0
        %982 = vmatprep.subr.bf16.mxu0 0
        %983 = vmatpush1.bf16.msra.mxu0 %v948
        %984 = vmatprep.subr.bf16.mxu0 0
        %985 = vmatpush1.bf16.msra.mxu0 %v949
        %986 = vmatprep.subr.bf16.mxu0 0
        %987 = vmatpush1.bf16.msra.mxu0 %v980
        %988 = vmatprep.subr.bf16.mxu0 0
        %989 = vmatpush1.bf16.msra.mxu0 0
        %990 = vmatprep.subr.bf16.mxu0 0
        %991 = vmatpush1.bf16.msra.mxu0 0
        %992 = vmatprep.subr.bf16.mxu0 0
        %993 = vmatpush1.bf16.msra.mxu0 0
        %994 = vmatprep.subr.bf16.mxu0 0
        %995 = vmatpush1.bf16.msra.mxu0 0
        %996 = vmatprep.subr.bf16.mxu0 0
        %997 = vmatpush1.bf16.msra.mxu0 0
        %998 = vmatprep.subr.bf16.mxu0 0
        %999 = vmatpush1.bf16.msra.mxu0 0
        %1000 = vmatprep.subr.bf16.mxu0 0
        %1001 = vmatpush1.bf16.msra.mxu0 0
        %1002 = vmatprep.subr.bf16.mxu0 0
        %1003 = vmatpush1.bf16.msra.mxu0 0
        %1004 = vmatprep.subr.bf16.mxu0 0
        %1005 = vmatpush1.bf16.msra.mxu0 0
        %1006 = vmatprep.subr.bf16.mxu0 0
        %1007 = vmatpush1.bf16.msra.mxu0 0
        %1008 = vmatprep.subr.bf16.mxu0 0
        %1009 = vmatpush1.bf16.msra.mxu0 0
        %1010 = vmatprep.subr.bf16.mxu0 0
        %1011 = vmatpush1.bf16.msra.mxu0 0
        %1012 = vmatprep.subr.bf16.mxu0 0
        %1013 = vmatpush1.bf16.msra.mxu0 0
        %1014 = vmatprep.mubr.bf16.mxu0 0
        %1015 = vmatmul.mubr.bf16.gmra.mrb[0].mxu0 %v955
        %v1016 = vpop.f32.mrb[0].mxu0
        %v1017 = vadd.f32 %v937, %v1016
        %v1018 = vpop.f32.mrb[0].mxu0
        %v1019 = vpop.f32.mrb[0].mxu0
        %v1020 = vadd.f32 %v937, %v1019
        %v1021 = vpop.f32.mrb[0].mxu0
        %1022 = vmatprep.mubr.bf16.mxu0 0
        %1023 = vmatmul.mubr.bf16.gmra.mrb[0].mxu0 %v958
        %v1024 = vpop.f32.mrb[0].mxu0
        %v1025 = vadd.f32 %v937, %v1024
        %v1026 = vpop.f32.mrb[0].mxu0
        %v1027 = vpop.f32.mrb[0].mxu0
        %v1028 = vadd.f32 %v937, %v1027
        %v1029 = vpop.f32.mrb[0].mxu0
        %1030 = vmatprep.mubr.bf16.mxu0 0
        %1031 = vmatmul.mubr.bf16.gmra.mrb[0].mxu0 %v961
        %v1032 = vpop.f32.mrb[0].mxu0
        %v1033 = vadd.f32 %v937, %v1032
        %v1034 = vpop.f32.mrb[0].mxu0
        %v1035 = vpop.f32.mrb[0].mxu0
        %v1036 = vadd.f32 %v937, %v1035
        %v1037 = vpop.f32.mrb[0].mxu0
        %1038 = vmatprep.mubr.bf16.mxu0 0
        %1039 = vmatmul.mubr.bf16.gmra.mrb[0].mxu0 %v964
        %v1040 = vpop.f32.mrb[0].mxu0
        %v1041 = vadd.f32 %v937, %v1040
        %v1042 = vpop.f32.mrb[0].mxu0
        %v1043 = vpop.f32.mrb[0].mxu0
        %v1044 = vadd.f32 %v937, %v1043
        %v1045 = vpop.f32.mrb[0].mxu0
        %1046 = vmatprep.mubr.bf16.mxu0 0
        %1047 = vmatmul.mubr.bf16.gmra.mrb[0].mxu0 %v967
        %v1048 = vpop.f32.mrb[0].mxu0
        %v1049 = vadd.f32 %v937, %v1048
        %v1050 = vpop.f32.mrb[0].mxu0
        %v1051 = vpop.f32.mrb[0].mxu0
        %v1052 = vadd.f32 %v937, %v1051
        %v1053 = vpop.f32.mrb[0].mxu0
        %1054 = vmatprep.mubr.bf16.mxu0 0
        %1055 = vmatmul.mubr.bf16.gmra.mrb[0].mxu0 %v970
        %v1056 = vpop.f32.mrb[0].mxu0
        %v1057 = vadd.f32 %v937, %v1056
        %v1058 = vpop.f32.mrb[0].mxu0
        %v1059 = vpop.f32.mrb[0].mxu0
        %v1060 = vadd.f32 %v937, %v1059
        %v1061 = vpop.f32.mrb[0].mxu0
        %1062 = vmatprep.mubr.bf16.mxu0 0
        %1063 = vmatmul.mubr.bf16.gmra.mrb[0].mxu0 %v973
        %v1064 = vpop.f32.mrb[0].mxu0
        %v1065 = vadd.f32 %v937, %v1064
        %v1066 = vpop.f32.mrb[0].mxu0
        %v1067 = vpop.f32.mrb[0].mxu0
        %v1068 = vadd.f32 %v937, %v1067
        %v1069 = vpop.f32.mrb[0].mxu0
        %1070 = vmatprep.mubr.bf16.mxu0 0
        %1071 = vmatmul.mubr.bf16.gmra.mrb[0].mxu0 %v976
        %v1072 = vpop.f32.mrb[0].mxu0
        %v1073 = vadd.f32 %v937, %v1072
        %v1074 = vpop.f32.mrb[0].mxu0
        %v1075 = vpop.f32.mrb[0].mxu0
        %v1076 = vadd.f32 %v937, %v1075
        %v1077 = vpop.f32.mrb[0].mxu0
        %1078 = vdwg.mxu0
        %v1079 = vmax.f32 %v1017, 0.0
        %v1080 = vmax.f32 %v1020, 0.0
        %v1081 = vmax.f32 %v1025, 0.0
        %v1082 = vmax.f32 %v1028, 0.0
        %v1083 = vmax.f32 %v1033, 0.0
        %v1084 = vmax.f32 %v1036, 0.0
        %v1085 = vmax.f32 %v1041, 0.0
        %v1086 = vmax.f32 %v1044, 0.0
        %v1087 = vmax.f32 %v1049, 0.0
        %v1088 = vmax.f32 %v1052, 0.0
        %v1089 = vmax.f32 %v1057, 0.0
        %v1090 = vmax.f32 %v1060, 0.0
        %v1091 = vmax.f32 %v1065, 0.0
        %v1092 = vmax.f32 %v1068, 0.0
        %v1093 = vmax.f32 %v1073, 0.0
        %v1094 = vmax.f32 %v1076, 0.0
        %v1095 = vld [vmem:[%s6] sm:$0xf]
        %v1096 = vld [vmem:[%s6 + $0x4] sm:$0xf]
        %v1097 = vld [vmem:[%s6 + $0x8] sm:$0xf]
        %v1098 = vld [vmem:[%s6 + $0xc] sm:$0xf]
        %v1099 = vld [vmem:[%s6 + $0x10] sm:$0xf]
        %v1100 = vld [vmem:[%s6 + $0x14] sm:$0xf]
        %v1101 = vld [vmem:[%s6 + $0x18] sm:$0xf]
        %v1102 = vld [vmem:[%s6 + $0x1c] sm:$0xf]
        %v1103 = vld [vmem:[%s6 + $0x20] sm:$0xf]
        %v1104 = vld [vmem:[%s6 + $0x24] sm:$0xf]
        %v1105 = vld [vmem:[%s6 + $0x28] sm:$0xf]
        %v1106 = vld [vmem:[%s6 + $0x2c] sm:$0xf]
        %v1107 = vrot.slane %v1079, 7
        %v1108 = vrot.slane %v1080, 7
        %v1109 = vrot.slane %v1081, 7
        %v1110 = vrot.slane %v1082, 7
        %v1111 = vrot.slane %v1083, 7
        %v1112 = vrot.slane %v1084, 7
        %v1113 = vrot.slane %v1085, 7
        %v1114 = vrot.slane %v1086, 7
        %v1115 = vrot.slane %v1087, 7
        %v1116 = vrot.slane %v1088, 7
        %v1117 = vrot.slane %v1089, 7
        %v1118 = vrot.slane %v1090, 7
        %v1119 = vrot.slane %v1091, 7
        %v1120 = vrot.slane %v1092, 7
        %v1121 = vrot.slane %v1093, 7
        %v1122 = vrot.slane %v1094, 7
        %v1123 = vlaneseq
        %v1124 = vshrl.u32 %v1123, 7
        %vm1125 = vcmp.lt.s32.totalorder %v1124, 1
        %v1126 = vsel %vm1125, %v1121, %v1122
        %v1127 = vsel %vm1125, %v1120, %v1121
        %v1128 = vsel %vm1125, %v1119, %v1120
        %v1129 = vsel %vm1125, %v1118, %v1119
        %v1130 = vsel %vm1125, %v1117, %v1118
        %v1131 = vsel %vm1125, %v1116, %v1117
        %v1132 = vsel %vm1125, %v1115, %v1116
        %v1133 = vsel %vm1125, %v1114, %v1115
        %v1134 = vsel %vm1125, %v1113, %v1114
        %v1135 = vsel %vm1125, %v1112, %v1113
        %v1136 = vsel %vm1125, %v1111, %v1112
        %v1137 = vsel %vm1125, %v1110, %v1111
        %v1138 = vsel %vm1125, %v1109, %v1110
        %v1139 = vsel %vm1125, %v1108, %v1109
        %v1140 = vsel %vm1125, %v1107, %v1108
        %v1141 = vsel %vm1125, %v1122, %v1107
        %1143 = vset.pattern.permute.xlu0 0
        %1144 = vperm.xlu0 %1143, %v674
        %v1145 = vpop.permute.xlu0 %1144
        %1148 = vset.pattern.permute.xlu0 0
        %1149 = vperm.xlu0 %1148, %v675
        %v1150 = vpop.permute.xlu0 %1149
        %1153 = vset.pattern.permute.xlu0 0
        %1154 = vperm.xlu0 %1153, %v676
        %v1155 = vpop.permute.xlu0 %1154
        %1158 = vset.pattern.permute.xlu0 0
        %1159 = vperm.xlu0 %1158, %v677
        %v1160 = vpop.permute.xlu0 %1159
        %1163 = vset.pattern.permute.xlu0 0
        %1164 = vperm.xlu0 %1163, %v678
        %v1165 = vpop.permute.xlu0 %1164
        %1168 = vset.pattern.permute.xlu0 0
        %1169 = vperm.xlu0 %1168, %v679
        %v1170 = vpop.permute.xlu0 %1169
        %1173 = vset.pattern.permute.xlu0 0
        %1174 = vperm.xlu0 %1173, %v680
        %v1175 = vpop.permute.xlu0 %1174
        %1178 = vset.pattern.permute.xlu0 0
        %1179 = vperm.xlu0 %1178, %v681
        %v1180 = vpop.permute.xlu0 %1179
        %1183 = vset.pattern.permute.xlu0 0
        %1184 = vperm.xlu0 %1183, %v682
        %v1185 = vpop.permute.xlu0 %1184
        %1188 = vset.pattern.permute.xlu0 0
        %1189 = vperm.xlu0 %1188, %v683
        %v1190 = vpop.permute.xlu0 %1189
        %1193 = vset.pattern.permute.xlu0 0
        %1194 = vperm.xlu0 %1193, %v684
        %v1195 = vpop.permute.xlu0 %1194
        %1198 = vset.pattern.permute.xlu0 0
        %1199 = vperm.xlu0 %1198, %v685
        %v1200 = vpop.permute.xlu0 %1199
        %1203 = vset.pattern.permute.xlu0 0
        %1204 = vperm.xlu0 %1203, %v686
        %v1205 = vpop.permute.xlu0 %1204
        %1208 = vset.pattern.permute.xlu0 0
        %1209 = vperm.xlu0 %1208, %v687
        %v1210 = vpop.permute.xlu0 %1209
        %1213 = vset.pattern.permute.xlu0 0
        %1214 = vperm.xlu0 %1213, %v688
        %v1215 = vpop.permute.xlu0 %1214
        %1218 = vset.pattern.permute.xlu0 0
        %1219 = vperm.xlu0 %1218, %v689
        %v1220 = vpop.permute.xlu0 %1219
        %v1222 = vmul.f32 %v1141, %v1145
        %v1223 = vmul.f32 %v1140, %v1150
        %v1224 = vmul.f32 %v1139, %v1155
        %v1225 = vmul.f32 %v1138, %v1160
        %v1226 = vmul.f32 %v1137, %v1165
        %v1227 = vmul.f32 %v1136, %v1170
        %v1228 = vmul.f32 %v1135, %v1175
        %v1229 = vmul.f32 %v1134, %v1180
        %v1230 = vmul.f32 %v1133, %v1185
        %v1231 = vmul.f32 %v1132, %v1190
        %v1232 = vmul.f32 %v1131, %v1195
        %v1233 = vmul.f32 %v1130, %v1200
        %v1234 = vmul.f32 %v1129, %v1205
        %v1235 = vmul.f32 %v1128, %v1210
        %v1236 = vmul.f32 %v1127, %v1215
        %v1237 = vmul.f32 %v1126, %v1220
        %v1238 = vrot.slane %v1079, 1
        %v1239 = vrot.slane %v1080, 1
        %v1240 = vrot.slane %v1081, 1
        %v1241 = vrot.slane %v1082, 1
        %v1242 = vrot.slane %v1083, 1
        %v1243 = vrot.slane %v1084, 1
        %v1244 = vrot.slane %v1085, 1
        %v1245 = vrot.slane %v1086, 1
        %v1246 = vrot.slane %v1087, 1
        %v1247 = vrot.slane %v1088, 1
        %v1248 = vrot.slane %v1089, 1
        %v1249 = vrot.slane %v1090, 1
        %v1250 = vrot.slane %v1091, 1
        %v1251 = vrot.slane %v1092, 1
        %v1252 = vrot.slane %v1093, 1
        %v1253 = vrot.slane %v1094, 1
        %vm1254 = vcmp.lt.s32.totalorder %v1124, 7
        %v1255 = vsel %vm1254, %v1252, %v1253
        %v1256 = vsel %vm1254, %v1251, %v1252
        %v1257 = vsel %vm1254, %v1250, %v1251
        %v1258 = vsel %vm1254, %v1249, %v1250
        %v1259 = vsel %vm1254, %v1248, %v1249
        %v1260 = vsel %vm1254, %v1247, %v1248
        %v1261 = vsel %vm1254, %v1246, %v1247
        %v1262 = vsel %vm1254, %v1245, %v1246
        %v1263 = vsel %vm1254, %v1244, %v1245
        %v1264 = vsel %vm1254, %v1243, %v1244
        %v1265 = vsel %vm1254, %v1242, %v1243
        %v1266 = vsel %vm1254, %v1241, %v1242
        %v1267 = vsel %vm1254, %v1240, %v1241
        %v1268 = vsel %vm1254, %v1239, %v1240
        %v1269 = vsel %vm1254, %v1238, %v1239
        %v1270 = vsel %vm1254, %v1253, %v1238
        %1271 = vset.pattern.permute.xlu0 1
        %1272 = vperm.xlu0 %1271, %v674
        %v1273 = vpop.permute.xlu0 %1272
        %1275 = vset.pattern.permute.xlu0 1
        %1276 = vperm.xlu0 %1275, %v675
        %v1277 = vpop.permute.xlu0 %1276
        %1279 = vset.pattern.permute.xlu0 1
        %1280 = vperm.xlu0 %1279, %v676
        %v1281 = vpop.permute.xlu0 %1280
        %1283 = vset.pattern.permute.xlu0 1
        %1284 = vperm.xlu0 %1283, %v677
        %v1285 = vpop.permute.xlu0 %1284
        %1287 = vset.pattern.permute.xlu0 1
        %1288 = vperm.xlu0 %1287, %v678
        %v1289 = vpop.permute.xlu0 %1288
        %1291 = vset.pattern.permute.xlu0 1
        %1292 = vperm.xlu0 %1291, %v679
        %v1293 = vpop.permute.xlu0 %1292
        %1295 = vset.pattern.permute.xlu0 1
        %1296 = vperm.xlu0 %1295, %v680
        %v1297 = vpop.permute.xlu0 %1296
        %1299 = vset.pattern.permute.xlu0 1
        %1300 = vperm.xlu0 %1299, %v681
        %v1301 = vpop.permute.xlu0 %1300
        %1303 = vset.pattern.permute.xlu0 1
        %1304 = vperm.xlu0 %1303, %v682
        %v1305 = vpop.permute.xlu0 %1304
        %1307 = vset.pattern.permute.xlu0 1
        %1308 = vperm.xlu0 %1307, %v683
        %v1309 = vpop.permute.xlu0 %1308
        %1311 = vset.pattern.permute.xlu0 1
        %1312 = vperm.xlu0 %1311, %v684
        %v1313 = vpop.permute.xlu0 %1312
        %1315 = vset.pattern.permute.xlu0 1
        %1316 = vperm.xlu0 %1315, %v685
        %v1317 = vpop.permute.xlu0 %1316
        %1319 = vset.pattern.permute.xlu0 1
        %1320 = vperm.xlu0 %1319, %v686
        %v1321 = vpop.permute.xlu0 %1320
        %1323 = vset.pattern.permute.xlu0 1
        %1324 = vperm.xlu0 %1323, %v687
        %v1325 = vpop.permute.xlu0 %1324
        %1327 = vset.pattern.permute.xlu0 1
        %1328 = vperm.xlu0 %1327, %v688
        %v1329 = vpop.permute.xlu0 %1328
        %1331 = vset.pattern.permute.xlu0 1
        %1332 = vperm.xlu0 %1331, %v689
        %v1333 = vpop.permute.xlu0 %1332
        %v1335 = vmul.f32 %v1269, %v1273
        %v1336 = vmul.f32 %v1268, %v1277
        %v1337 = vmul.f32 %v1267, %v1281
        %v1338 = vmul.f32 %v1266, %v1285
        %v1339 = vmul.f32 %v1265, %v1289
        %v1340 = vmul.f32 %v1264, %v1293
        %v1341 = vmul.f32 %v1263, %v1297
        %v1342 = vmul.f32 %v1262, %v1301
        %v1343 = vmul.f32 %v1261, %v1305
        %v1344 = vmul.f32 %v1260, %v1309
        %v1345 = vmul.f32 %v1259, %v1313
        %v1346 = vmul.f32 %v1258, %v1317
        %v1347 = vmul.f32 %v1257, %v1321
        %v1348 = vmul.f32 %v1256, %v1325
        %v1349 = vmul.f32 %v1255, %v1329
        %v1350 = vmul.f32 %v1270, %v1333
        %1367 = vrot.lane.b32.xlu0 %v1079, 32
        %v1368 = vpop.permute.xlu0 %1367
        %1369 = vrot.lane.b32.xlu0 %v1080, 32
        %v1370 = vpop.permute.xlu0 %1369
        %1371 = vrot.lane.b32.xlu0 %v1081, 32
        %v1372 = vpop.permute.xlu0 %1371
        %1373 = vrot.lane.b32.xlu0 %v1082, 32
        %v1374 = vpop.permute.xlu0 %1373
        %1375 = vrot.lane.b32.xlu0 %v1083, 32
        %v1376 = vpop.permute.xlu0 %1375
        %1377 = vrot.lane.b32.xlu0 %v1084, 32
        %v1378 = vpop.permute.xlu0 %1377
        %1379 = vrot.lane.b32.xlu0 %v1085, 32
        %v1380 = vpop.permute.xlu0 %1379
        %1381 = vrot.lane.b32.xlu0 %v1086, 32
        %v1382 = vpop.permute.xlu0 %1381
        %1383 = vrot.lane.b32.xlu0 %v1087, 32
        %v1384 = vpop.permute.xlu0 %1383
        %1385 = vrot.lane.b32.xlu0 %v1088, 32
        %v1386 = vpop.permute.xlu0 %1385
        %1387 = vrot.lane.b32.xlu0 %v1089, 32
        %v1388 = vpop.permute.xlu0 %1387
        %1389 = vrot.lane.b32.xlu0 %v1090, 32
        %v1390 = vpop.permute.xlu0 %1389
        %1391 = vrot.lane.b32.xlu0 %v1091, 32
        %v1392 = vpop.permute.xlu0 %1391
        %1393 = vrot.lane.b32.xlu0 %v1092, 32
        %v1394 = vpop.permute.xlu0 %1393
        %1395 = vrot.lane.b32.xlu0 %v1093, 32
        %v1396 = vpop.permute.xlu0 %1395
        %1397 = vrot.lane.b32.xlu0 %v1094, 32
        %v1398 = vpop.permute.xlu0 %1397
        %1431 = vrot.lane.b32.xlu0 %v1335, 64
        %v1432 = vpop.permute.xlu0 %1431
        %1433 = vrot.lane.b32.xlu0 %v1336, 64
        %v1434 = vpop.permute.xlu0 %1433
        %1435 = vrot.lane.b32.xlu0 %v1337, 64
        %v1436 = vpop.permute.xlu0 %1435
        %1437 = vrot.lane.b32.xlu0 %v1338, 64
        %v1438 = vpop.permute.xlu0 %1437
        %1439 = vrot.lane.b32.xlu0 %v1339, 64
        %v1440 = vpop.permute.xlu0 %1439
        %1441 = vrot.lane.b32.xlu0 %v1340, 64
        %v1442 = vpop.permute.xlu0 %1441
        %1443 = vrot.lane.b32.xlu0 %v1341, 64
        %v1444 = vpop.permute.xlu0 %1443
        %1445 = vrot.lane.b32.xlu0 %v1342, 64
        %v1446 = vpop.permute.xlu0 %1445
        %1447 = vrot.lane.b32.xlu0 %v1343, 64
        %v1448 = vpop.permute.xlu0 %1447
        %1449 = vrot.lane.b32.xlu0 %v1344, 64
        %v1450 = vpop.permute.xlu0 %1449
        %1451 = vrot.lane.b32.xlu0 %v1345, 64
        %v1452 = vpop.permute.xlu0 %1451
        %1453 = vrot.lane.b32.xlu0 %v1346, 64
        %v1454 = vpop.permute.xlu0 %1453
        %1455 = vrot.lane.b32.xlu0 %v1347, 64
        %v1456 = vpop.permute.xlu0 %1455
        %1457 = vrot.lane.b32.xlu0 %v1348, 64
        %v1458 = vpop.permute.xlu0 %1457
        %1459 = vrot.lane.b32.xlu0 %v1349, 64
        %v1460 = vpop.permute.xlu0 %1459
        %1461 = vrot.lane.b32.xlu0 %v1350, 64
        %v1462 = vpop.permute.xlu0 %1461
        %vm1479 = vcmask 261120
        %v1480 = vsel %vm1479, %v1222, %v1368
        %v1481 = vsel %vm1479, %v1223, %v1370
        %v1482 = vsel %vm1479, %v1224, %v1372
        %v1483 = vsel %vm1479, %v1225, %v1374
        %v1484 = vsel %vm1479, %v1226, %v1376
        %v1485 = vsel %vm1479, %v1227, %v1378
        %v1486 = vsel %vm1479, %v1228, %v1380
        %v1487 = vsel %vm1479, %v1229, %v1382
        %v1488 = vsel %vm1479, %v1230, %v1384
        %v1489 = vsel %vm1479, %v1231, %v1386
        %v1490 = vsel %vm1479, %v1232, %v1388
        %v1491 = vsel %vm1479, %v1233, %v1390
        %v1492 = vsel %vm1479, %v1234, %v1392
        %v1493 = vsel %vm1479, %v1235, %v1394
        %v1494 = vsel %vm1479, %v1236, %v1396
        %v1495 = vsel %vm1479, %v1237, %v1398
        %v1496 = vsel %vm735, %v1480, %v1432
        %v1497 = vsel %vm735, %v1481, %v1434
        %v1498 = vsel %vm735, %v1482, %v1436
        %v1499 = vsel %vm735, %v1483, %v1438
        %v1500 = vsel %vm735, %v1484, %v1440
        %v1501 = vsel %vm735, %v1485, %v1442
        %v1502 = vsel %vm735, %v1486, %v1444
        %v1503 = vsel %vm735, %v1487, %v1446
        %v1504 = vsel %vm735, %v1488, %v1448
        %v1505 = vsel %vm735, %v1489, %v1450
        %v1506 = vsel %vm735, %v1490, %v1452
        %v1507 = vsel %vm735, %v1491, %v1454
        %v1508 = vsel %vm735, %v1492, %v1456
        %v1509 = vsel %vm735, %v1493, %v1458
        %v1510 = vsel %vm735, %v1494, %v1460
        %v1511 = vsel %vm735, %v1495, %v1462
        %v1512 = vpack.c.bf16 %v1497, %v1496
        %v1513 = vpack.c.bf16 %v1499, %v1498
        %v1514 = vpack.c.bf16 %v1501, %v1500
        %v1515 = vpack.c.bf16 %v1503, %v1502
        %v1516 = vpack.c.bf16 %v1505, %v1504
        %v1517 = vpack.c.bf16 %v1507, %v1506
        %v1518 = vpack.c.bf16 %v1509, %v1508
        %v1519 = vpack.c.bf16 %v1511, %v1510
        %v1520 = vlaneseq
        %v1521 = vshrl.u32 %v1520, 7
        %v1522 = vsub.s32 1, %v1521
        %v1523 = vrot.slane %v690, %v1522
        %v1536 = vunpack.c.l.b16 %v1095
        %v1537 = vunpack.c.l.b16 %v1096
        %v1538 = vunpack.c.l.b16 %v1097
        %v1539 = vunpack.c.l.b16 %v1098
        %v1540 = vunpack.c.l.b16 %v1099
        %v1541 = vunpack.c.l.b16 %v1100
        %v1542 = vunpack.c.l.b16 %v1101
        %v1543 = vunpack.c.l.b16 %v1102
        %v1544 = vunpack.c.l.b16 %v1103
        %v1545 = vunpack.c.l.b16 %v1104
        %v1546 = vunpack.c.l.b16 %v1105
        %v1547 = vunpack.c.l.b16 %v1106
        %v1548 = vpack.c.b16 %v1537, %v1536
        %v1549 = vpack.c.b16 %v1539, %v1538
        %v1550 = vpack.c.b16 %v1541, %v1540
        %v1551 = vpack.c.b16 %v1543, %v1542
        %v1552 = vpack.c.b16 %v1545, %v1544
        %v1553 = vpack.c.b16 %v1547, %v1546
        %vm1560 = vcmask 785408
        %v1562 = vsel %vm1560, %v1512, 0
        %v1565 = vsel %vm1560, %v1513, 0
        %v1568 = vsel %vm1560, %v1514, 0
        %v1571 = vsel %vm1560, %v1515, 0
        %v1574 = vsel %vm1560, %v1516, 0
        %v1577 = vsel %vm1560, %v1517, 0
        %v1580 = vsel %vm1560, %v1518, 0
        %v1583 = vsel %vm1560, %v1519, 0
        %1585 = vmatprep.subr.bf16.mxu0 0
        %1586 = vmatpush1.bf16.msra.mxu0 %v1548
        %1587 = vmatprep.subr.bf16.mxu0 0
        %1588 = vmatpush1.bf16.msra.mxu0 %v1549
        %1589 = vmatprep.subr.bf16.mxu0 0
        %1590 = vmatpush1.bf16.msra.mxu0 %v1550
        %1591 = vmatprep.subr.bf16.mxu0 0
        %1592 = vmatpush1.bf16.msra.mxu0 %v1551
        %1593 = vmatprep.subr.bf16.mxu0 0
        %1594 = vmatpush1.bf16.msra.mxu0 %v1552
        %1595 = vmatprep.subr.bf16.mxu0 0
        %1596 = vmatpush1.bf16.msra.mxu0 %v1553
        %1597 = vmatprep.subr.bf16.mxu0 0
        %1598 = vmatpush1.bf16.msra.mxu0 0
        %1599 = vmatprep.subr.bf16.mxu0 0
        %1600 = vmatpush1.bf16.msra.mxu0 0
        %1601 = vmatprep.subr.bf16.mxu0 0
        %1602 = vmatpush1.bf16.msra.mxu0 0
        %1603 = vmatprep.subr.bf16.mxu0 0
        %1604 = vmatpush1.bf16.msra.mxu0 0
        %1605 = vmatprep.subr.bf16.mxu0 0
        %1606 = vmatpush1.bf16.msra.mxu0 0
        %1607 = vmatprep.subr.bf16.mxu0 0
        %1608 = vmatpush1.bf16.msra.mxu0 0
        %1609 = vmatprep.subr.bf16.mxu0 0
        %1610 = vmatpush1.bf16.msra.mxu0 0
        %1611 = vmatprep.subr.bf16.mxu0 0
        %1612 = vmatpush1.bf16.msra.mxu0 0
        %1613 = vmatprep.subr.bf16.mxu0 0
        %1614 = vmatpush1.bf16.msra.mxu0 0
        %1615 = vmatprep.subr.bf16.mxu0 0
        %1616 = vmatpush1.bf16.msra.mxu0 0
        %1617 = vmatprep.mubr.bf16.mxu0 0
        %1618 = vmatmul.mubr.bf16.gmra.mrb[0].mxu0 %v1562
        %v1619 = vpop.f32.mrb[0].mxu0
        %v1620 = vadd.f32 %v1523, %v1619
        %v1621 = vpop.f32.mrb[0].mxu0
        %v1622 = vpop.f32.mrb[0].mxu0
        %v1623 = vadd.f32 %v1523, %v1622
        %v1624 = vpop.f32.mrb[0].mxu0
        %1625 = vmatprep.mubr.bf16.mxu0 0
        %1626 = vmatmul.mubr.bf16.gmra.mrb[0].mxu0 %v1565
        %v1627 = vpop.f32.mrb[0].mxu0
        %v1628 = vadd.f32 %v1523, %v1627
        %v1629 = vpop.f32.mrb[0].mxu0
        %v1630 = vpop.f32.mrb[0].mxu0
        %v1631 = vadd.f32 %v1523, %v1630
        %v1632 = vpop.f32.mrb[0].mxu0
        %1633 = vmatprep.mubr.bf16.mxu0 0
        %1634 = vmatmul.mubr.bf16.gmra.mrb[0].mxu0 %v1568
        %v1635 = vpop.f32.mrb[0].mxu0
        %v1636 = vadd.f32 %v1523, %v1635
        %v1637 = vpop.f32.mrb[0].mxu0
        %v1638 = vpop.f32.mrb[0].mxu0
        %v1639 = vadd.f32 %v1523, %v1638
        %v1640 = vpop.f32.mrb[0].mxu0
        %1641 = vmatprep.mubr.bf16.mxu0 0
        %1642 = vmatmul.mubr.bf16.gmra.mrb[0].mxu0 %v1571
        %v1643 = vpop.f32.mrb[0].mxu0
        %v1644 = vadd.f32 %v1523, %v1643
        %v1645 = vpop.f32.mrb[0].mxu0
        %v1646 = vpop.f32.mrb[0].mxu0
        %v1647 = vadd.f32 %v1523, %v1646
        %v1648 = vpop.f32.mrb[0].mxu0
        %1649 = vmatprep.mubr.bf16.mxu0 0
        %1650 = vmatmul.mubr.bf16.gmra.mrb[0].mxu0 %v1574
        %v1651 = vpop.f32.mrb[0].mxu0
        %v1652 = vadd.f32 %v1523, %v1651
        %v1653 = vpop.f32.mrb[0].mxu0
        %v1654 = vpop.f32.mrb[0].mxu0
        %v1655 = vadd.f32 %v1523, %v1654
        %v1656 = vpop.f32.mrb[0].mxu0
        %1657 = vmatprep.mubr.bf16.mxu0 0
        %1658 = vmatmul.mubr.bf16.gmra.mrb[0].mxu0 %v1577
        %v1659 = vpop.f32.mrb[0].mxu0
        %v1660 = vadd.f32 %v1523, %v1659
        %v1661 = vpop.f32.mrb[0].mxu0
        %v1662 = vpop.f32.mrb[0].mxu0
        %v1663 = vadd.f32 %v1523, %v1662
        %v1664 = vpop.f32.mrb[0].mxu0
        %1665 = vmatprep.mubr.bf16.mxu0 0
        %1666 = vmatmul.mubr.bf16.gmra.mrb[0].mxu0 %v1580
        %v1667 = vpop.f32.mrb[0].mxu0
        %v1668 = vadd.f32 %v1523, %v1667
        %v1669 = vpop.f32.mrb[0].mxu0
        %v1670 = vpop.f32.mrb[0].mxu0
        %v1671 = vadd.f32 %v1523, %v1670
        %v1672 = vpop.f32.mrb[0].mxu0
        %1673 = vmatprep.mubr.bf16.mxu0 0
        %1674 = vmatmul.mubr.bf16.gmra.mrb[0].mxu0 %v1583
        %v1675 = vpop.f32.mrb[0].mxu0
        %v1676 = vadd.f32 %v1523, %v1675
        %v1677 = vpop.f32.mrb[0].mxu0
        %v1678 = vpop.f32.mrb[0].mxu0
        %v1679 = vadd.f32 %v1523, %v1678
        %v1680 = vpop.f32.mrb[0].mxu0
        %1681 = vdwg.mxu0
        %vm1682 = vcmp.gt.f32.partialorder %v1620, 0.0
        %vm1683 = vcmp.gt.f32.partialorder %v1623, 0.0
        %vm1684 = vcmp.gt.f32.partialorder %v1628, 0.0
        %vm1685 = vcmp.gt.f32.partialorder %v1631, 0.0
        %vm1686 = vcmp.gt.f32.partialorder %v1636, 0.0
        %vm1687 = vcmp.gt.f32.partialorder %v1639, 0.0
        %vm1688 = vcmp.gt.f32.partialorder %v1644, 0.0
        %vm1689 = vcmp.gt.f32.partialorder %v1647, 0.0
        %vm1690 = vcmp.gt.f32.partialorder %v1652, 0.0
        %vm1691 = vcmp.gt.f32.partialorder %v1655, 0.0
        %vm1692 = vcmp.gt.f32.partialorder %v1660, 0.0
        %vm1693 = vcmp.gt.f32.partialorder %v1663, 0.0
        %vm1694 = vcmp.gt.f32.partialorder %v1668, 0.0
        %vm1695 = vcmp.gt.f32.partialorder %v1671, 0.0
        %vm1696 = vcmp.gt.f32.partialorder %v1676, 0.0
        %vm1697 = vcmp.gt.f32.partialorder %v1679, 0.0
        %v1698 = vlaneseq
        %v1699 = vshrl.u32 %v1698, 7
        %v1700 = vsub.s32 2, %v1699
        %v1701 = vrot.slane %v690, %v1700
        %v1702 = vmul.f32 %v1701, %v1620
        %v1703 = vmul.f32 %v1701, %v1623
        %v1704 = vmul.f32 %v1701, %v1628
        %v1705 = vmul.f32 %v1701, %v1631
        %v1706 = vmul.f32 %v1701, %v1636
        %v1707 = vmul.f32 %v1701, %v1639
        %v1708 = vmul.f32 %v1701, %v1644
        %v1709 = vmul.f32 %v1701, %v1647
        %v1710 = vmul.f32 %v1701, %v1652
        %v1711 = vmul.f32 %v1701, %v1655
        %v1712 = vmul.f32 %v1701, %v1660
        %v1713 = vmul.f32 %v1701, %v1663
        %v1714 = vmul.f32 %v1701, %v1668
        %v1715 = vmul.f32 %v1701, %v1671
        %v1716 = vmul.f32 %v1701, %v1676
        %v1717 = vmul.f32 %v1701, %v1679
        %v1718 = vsel %vm1682, %v1620, %v1702
        %v1719 = vsel %vm1683, %v1623, %v1703
        %v1720 = vsel %vm1684, %v1628, %v1704
        %v1721 = vsel %vm1685, %v1631, %v1705
        %v1722 = vsel %vm1686, %v1636, %v1706
        %v1723 = vsel %vm1687, %v1639, %v1707
        %v1724 = vsel %vm1688, %v1644, %v1708
        %v1725 = vsel %vm1689, %v1647, %v1709
        %v1726 = vsel %vm1690, %v1652, %v1710
        %v1727 = vsel %vm1691, %v1655, %v1711
        %v1728 = vsel %vm1692, %v1660, %v1712
        %v1729 = vsel %vm1693, %v1663, %v1713
        %v1730 = vsel %vm1694, %v1668, %v1714
        %v1731 = vsel %vm1695, %v1671, %v1715
        %v1732 = vsel %vm1696, %v1676, %v1716
        %v1733 = vsel %vm1697, %v1679, %v1717
        %v1734 = vld [vmem:[%s7] sm:$0xf]
        %v1735 = vld [vmem:[%s7 + $0x4] sm:$0xf]
        %v1736 = vld [vmem:[%s7 + $0x8] sm:$0xf]
        %v1737 = vld [vmem:[%s7 + $0xc] sm:$0xf]
        %v1738 = vld [vmem:[%s7 + $0x10] sm:$0xf]
        %v1739 = vld [vmem:[%s7 + $0x14] sm:$0xf]
        %v1740 = vld [vmem:[%s7 + $0x18] sm:$0xf]
        %v1741 = vld [vmem:[%s7 + $0x1c] sm:$0xf]
        %v1742 = vld [vmem:[%s7 + $0x20] sm:$0xf]
        %v1743 = vld [vmem:[%s7 + $0x24] sm:$0xf]
        %v1744 = vld [vmem:[%s7 + $0x28] sm:$0xf]
        %v1745 = vld [vmem:[%s7 + $0x2c] sm:$0xf]
        %v1746 = vrot.slane %v1718, 7
        %v1747 = vrot.slane %v1719, 7
        %v1748 = vrot.slane %v1720, 7
        %v1749 = vrot.slane %v1721, 7
        %v1750 = vrot.slane %v1722, 7
        %v1751 = vrot.slane %v1723, 7
        %v1752 = vrot.slane %v1724, 7
        %v1753 = vrot.slane %v1725, 7
        %v1754 = vrot.slane %v1726, 7
        %v1755 = vrot.slane %v1727, 7
        %v1756 = vrot.slane %v1728, 7
        %v1757 = vrot.slane %v1729, 7
        %v1758 = vrot.slane %v1730, 7
        %v1759 = vrot.slane %v1731, 7
        %v1760 = vrot.slane %v1732, 7
        %v1761 = vrot.slane %v1733, 7
        %v1762 = vsel %vm1125, %v1760, %v1761
        %v1763 = vsel %vm1125, %v1759, %v1760
        %v1764 = vsel %vm1125, %v1758, %v1759
        %v1765 = vsel %vm1125, %v1757, %v1758
        %v1766 = vsel %vm1125, %v1756, %v1757
        %v1767 = vsel %vm1125, %v1755, %v1756
        %v1768 = vsel %vm1125, %v1754, %v1755
        %v1769 = vsel %vm1125, %v1753, %v1754
        %v1770 = vsel %vm1125, %v1752, %v1753
        %v1771 = vsel %vm1125, %v1751, %v1752
        %v1772 = vsel %vm1125, %v1750, %v1751
        %v1773 = vsel %vm1125, %v1749, %v1750
        %v1774 = vsel %vm1125, %v1748, %v1749
        %v1775 = vsel %vm1125, %v1747, %v1748
        %v1776 = vsel %vm1125, %v1746, %v1747
        %v1777 = vsel %vm1125, %v1761, %v1746
        %v1778 = vmul.f32 %v1777, %v1145
        %v1779 = vmul.f32 %v1776, %v1150
        %v1780 = vmul.f32 %v1775, %v1155
        %v1781 = vmul.f32 %v1774, %v1160
        %v1782 = vmul.f32 %v1773, %v1165
        %v1783 = vmul.f32 %v1772, %v1170
        %v1784 = vmul.f32 %v1771, %v1175
        %v1785 = vmul.f32 %v1770, %v1180
        %v1786 = vmul.f32 %v1769, %v1185
        %v1787 = vmul.f32 %v1768, %v1190
        %v1788 = vmul.f32 %v1767, %v1195
        %v1789 = vmul.f32 %v1766, %v1200
        %v1790 = vmul.f32 %v1765, %v1205
        %v1791 = vmul.f32 %v1764, %v1210
        %v1792 = vmul.f32 %v1763, %v1215
        %v1793 = vmul.f32 %v1762, %v1220
        %v1794 = vrot.slane %v1718, 1
        %v1795 = vrot.slane %v1719, 1
        %v1796 = vrot.slane %v1720, 1
        %v1797 = vrot.slane %v1721, 1
        %v1798 = vrot.slane %v1722, 1
        %v1799 = vrot.slane %v1723, 1
        %v1800 = vrot.slane %v1724, 1
        %v1801 = vrot.slane %v1725, 1
        %v1802 = vrot.slane %v1726, 1
        %v1803 = vrot.slane %v1727, 1
        %v1804 = vrot.slane %v1728, 1
        %v1805 = vrot.slane %v1729, 1
        %v1806 = vrot.slane %v1730, 1
        %v1807 = vrot.slane %v1731, 1
        %v1808 = vrot.slane %v1732, 1
        %v1809 = vrot.slane %v1733, 1
        %v1810 = vsel %vm1254, %v1808, %v1809
        %v1811 = vsel %vm1254, %v1807, %v1808
        %v1812 = vsel %vm1254, %v1806, %v1807
        %v1813 = vsel %vm1254, %v1805, %v1806
        %v1814 = vsel %vm1254, %v1804, %v1805
        %v1815 = vsel %vm1254, %v1803, %v1804
        %v1816 = vsel %vm1254, %v1802, %v1803
        %v1817 = vsel %vm1254, %v1801, %v1802
        %v1818 = vsel %vm1254, %v1800, %v1801
        %v1819 = vsel %vm1254, %v1799, %v1800
        %v1820 = vsel %vm1254, %v1798, %v1799
        %v1821 = vsel %vm1254, %v1797, %v1798
        %v1822 = vsel %vm1254, %v1796, %v1797
        %v1823 = vsel %vm1254, %v1795, %v1796
        %v1824 = vsel %vm1254, %v1794, %v1795
        %v1825 = vsel %vm1254, %v1809, %v1794
        %v1826 = vmul.f32 %v1824, %v1273
        %v1827 = vmul.f32 %v1823, %v1277
        %v1828 = vmul.f32 %v1822, %v1281
        %v1829 = vmul.f32 %v1821, %v1285
        %v1830 = vmul.f32 %v1820, %v1289
        %v1831 = vmul.f32 %v1819, %v1293
        %v1832 = vmul.f32 %v1818, %v1297
        %v1833 = vmul.f32 %v1817, %v1301
        %v1834 = vmul.f32 %v1816, %v1305
        %v1835 = vmul.f32 %v1815, %v1309
        %v1836 = vmul.f32 %v1814, %v1313
        %v1837 = vmul.f32 %v1813, %v1317
        %v1838 = vmul.f32 %v1812, %v1321
        %v1839 = vmul.f32 %v1811, %v1325
        %v1840 = vmul.f32 %v1810, %v1329
        %v1841 = vmul.f32 %v1825, %v1333
        %1858 = vrot.lane.b32.xlu0 %v1718, 32
        %v1859 = vpop.permute.xlu0 %1858
        %1860 = vrot.lane.b32.xlu0 %v1719, 32
        %v1861 = vpop.permute.xlu0 %1860
        %1862 = vrot.lane.b32.xlu0 %v1720, 32
        %v1863 = vpop.permute.xlu0 %1862
        %1864 = vrot.lane.b32.xlu0 %v1721, 32
        %v1865 = vpop.permute.xlu0 %1864
        %1866 = vrot.lane.b32.xlu0 %v1722, 32
        %v1867 = vpop.permute.xlu0 %1866
        %1868 = vrot.lane.b32.xlu0 %v1723, 32
        %v1869 = vpop.permute.xlu0 %1868
        %1870 = vrot.lane.b32.xlu0 %v1724, 32
        %v1871 = vpop.permute.xlu0 %1870
        %1872 = vrot.lane.b32.xlu0 %v1725, 32
        %v1873 = vpop.permute.xlu0 %1872
        %1874 = vrot.lane.b32.xlu0 %v1726, 32
        %v1875 = vpop.permute.xlu0 %1874
        %1876 = vrot.lane.b32.xlu0 %v1727, 32
        %v1877 = vpop.permute.xlu0 %1876
        %1878 = vrot.lane.b32.xlu0 %v1728, 32
        %v1879 = vpop.permute.xlu0 %1878
        %1880 = vrot.lane.b32.xlu0 %v1729, 32
        %v1881 = vpop.permute.xlu0 %1880
        %1882 = vrot.lane.b32.xlu0 %v1730, 32
        %v1883 = vpop.permute.xlu0 %1882
        %1884 = vrot.lane.b32.xlu0 %v1731, 32
        %v1885 = vpop.permute.xlu0 %1884
        %1886 = vrot.lane.b32.xlu0 %v1732, 32
        %v1887 = vpop.permute.xlu0 %1886
        %1888 = vrot.lane.b32.xlu0 %v1733, 32
        %v1889 = vpop.permute.xlu0 %1888
        %1922 = vrot.lane.b32.xlu0 %v1826, 64
        %v1923 = vpop.permute.xlu0 %1922
        %1924 = vrot.lane.b32.xlu0 %v1827, 64
        %v1925 = vpop.permute.xlu0 %1924
        %1926 = vrot.lane.b32.xlu0 %v1828, 64
        %v1927 = vpop.permute.xlu0 %1926
        %1928 = vrot.lane.b32.xlu0 %v1829, 64
        %v1929 = vpop.permute.xlu0 %1928
        %1930 = vrot.lane.b32.xlu0 %v1830, 64
        %v1931 = vpop.permute.xlu0 %1930
        %1932 = vrot.lane.b32.xlu0 %v1831, 64
        %v1933 = vpop.permute.xlu0 %1932
        %1934 = vrot.lane.b32.xlu0 %v1832, 64
        %v1935 = vpop.permute.xlu0 %1934
        %1936 = vrot.lane.b32.xlu0 %v1833, 64
        %v1937 = vpop.permute.xlu0 %1936
        %1938 = vrot.lane.b32.xlu0 %v1834, 64
        %v1939 = vpop.permute.xlu0 %1938
        %1940 = vrot.lane.b32.xlu0 %v1835, 64
        %v1941 = vpop.permute.xlu0 %1940
        %1942 = vrot.lane.b32.xlu0 %v1836, 64
        %v1943 = vpop.permute.xlu0 %1942
        %1944 = vrot.lane.b32.xlu0 %v1837, 64
        %v1945 = vpop.permute.xlu0 %1944
        %1946 = vrot.lane.b32.xlu0 %v1838, 64
        %v1947 = vpop.permute.xlu0 %1946
        %1948 = vrot.lane.b32.xlu0 %v1839, 64
        %v1949 = vpop.permute.xlu0 %1948
        %1950 = vrot.lane.b32.xlu0 %v1840, 64
        %v1951 = vpop.permute.xlu0 %1950
        %1952 = vrot.lane.b32.xlu0 %v1841, 64
        %v1953 = vpop.permute.xlu0 %1952
        %v1970 = vsel %vm1479, %v1778, %v1859
        %v1971 = vsel %vm1479, %v1779, %v1861
        %v1972 = vsel %vm1479, %v1780, %v1863
        %v1973 = vsel %vm1479, %v1781, %v1865
        %v1974 = vsel %vm1479, %v1782, %v1867
        %v1975 = vsel %vm1479, %v1783, %v1869
        %v1976 = vsel %vm1479, %v1784, %v1871
        %v1977 = vsel %vm1479, %v1785, %v1873
        %v1978 = vsel %vm1479, %v1786, %v1875
        %v1979 = vsel %vm1479, %v1787, %v1877
        %v1980 = vsel %vm1479, %v1788, %v1879
        %v1981 = vsel %vm1479, %v1789, %v1881
        %v1982 = vsel %vm1479, %v1790, %v1883
        %v1983 = vsel %vm1479, %v1791, %v1885
        %v1984 = vsel %vm1479, %v1792, %v1887
        %v1985 = vsel %vm1479, %v1793, %v1889
        %v1986 = vsel %vm735, %v1970, %v1923
        %v1987 = vsel %vm735, %v1971, %v1925
        %v1988 = vsel %vm735, %v1972, %v1927
        %v1989 = vsel %vm735, %v1973, %v1929
        %v1990 = vsel %vm735, %v1974, %v1931
        %v1991 = vsel %vm735, %v1975, %v1933
        %v1992 = vsel %vm735, %v1976, %v1935
        %v1993 = vsel %vm735, %v1977, %v1937
        %v1994 = vsel %vm735, %v1978, %v1939
        %v1995 = vsel %vm735, %v1979, %v1941
        %v1996 = vsel %vm735, %v1980, %v1943
        %v1997 = vsel %vm735, %v1981, %v1945
        %v1998 = vsel %vm735, %v1982, %v1947
        %v1999 = vsel %vm735, %v1983, %v1949
        %v2000 = vsel %vm735, %v1984, %v1951
        %v2001 = vsel %vm735, %v1985, %v1953
        %v2002 = vpack.c.bf16 %v1987, %v1986
        %v2003 = vpack.c.bf16 %v1989, %v1988
        %v2004 = vpack.c.bf16 %v1991, %v1990
        %v2005 = vpack.c.bf16 %v1993, %v1992
        %v2006 = vpack.c.bf16 %v1995, %v1994
        %v2007 = vpack.c.bf16 %v1997, %v1996
        %v2008 = vpack.c.bf16 %v1999, %v1998
        %v2009 = vpack.c.bf16 %v2001, %v2000
        %v2010 = vlaneseq
        %v2011 = vshrl.u32 %v2010, 7
        %v2012 = vsub.s32 3, %v2011
        %v2013 = vrot.slane %v690, %v2012
        %v2026 = vunpack.c.l.b16 %v1734
        %v2027 = vunpack.c.l.b16 %v1735
        %v2028 = vunpack.c.l.b16 %v1736
        %v2029 = vunpack.c.l.b16 %v1737
        %v2030 = vunpack.c.l.b16 %v1738
        %v2031 = vunpack.c.l.b16 %v1739
        %v2032 = vunpack.c.l.b16 %v1740
        %v2033 = vunpack.c.l.b16 %v1741
        %v2034 = vunpack.c.l.b16 %v1742
        %v2035 = vunpack.c.l.b16 %v1743
        %v2036 = vunpack.c.l.b16 %v1744
        %v2037 = vunpack.c.l.b16 %v1745
        %v2038 = vpack.c.b16 %v2027, %v2026
        %v2039 = vpack.c.b16 %v2029, %v2028
        %v2040 = vpack.c.b16 %v2031, %v2030
        %v2041 = vpack.c.b16 %v2033, %v2032
        %v2042 = vpack.c.b16 %v2035, %v2034
        %v2043 = vpack.c.b16 %v2037, %v2036
        %v2051 = vsel %vm1560, %v2002, 0
        %v2054 = vsel %vm1560, %v2003, 0
        %v2057 = vsel %vm1560, %v2004, 0
        %v2060 = vsel %vm1560, %v2005, 0
        %v2063 = vsel %vm1560, %v2006, 0
        %v2066 = vsel %vm1560, %v2007, 0
        %v2069 = vsel %vm1560, %v2008, 0
        %v2072 = vsel %vm1560, %v2009, 0
        %2074 = vmatprep.subr.bf16.mxu0 0
        %2075 = vmatpush1.bf16.msra.mxu0 %v2038
        %2076 = vmatprep.subr.bf16.mxu0 0
        %2077 = vmatpush1.bf16.msra.mxu0 %v2039
        %2078 = vmatprep.subr.bf16.mxu0 0
        %2079 = vmatpush1.bf16.msra.mxu0 %v2040
        %2080 = vmatprep.subr.bf16.mxu0 0
        %2081 = vmatpush1.bf16.msra.mxu0 %v2041
        %2082 = vmatprep.subr.bf16.mxu0 0
        %2083 = vmatpush1.bf16.msra.mxu0 %v2042
        %2084 = vmatprep.subr.bf16.mxu0 0
        %2085 = vmatpush1.bf16.msra.mxu0 %v2043
        %2086 = vmatprep.subr.bf16.mxu0 0
        %2087 = vmatpush1.bf16.msra.mxu0 0
        %2088 = vmatprep.subr.bf16.mxu0 0
        %2089 = vmatpush1.bf16.msra.mxu0 0
        %2090 = vmatprep.subr.bf16.mxu0 0
        %2091 = vmatpush1.bf16.msra.mxu0 0
        %2092 = vmatprep.subr.bf16.mxu0 0
        %2093 = vmatpush1.bf16.msra.mxu0 0
        %2094 = vmatprep.subr.bf16.mxu0 0
        %2095 = vmatpush1.bf16.msra.mxu0 0
        %2096 = vmatprep.subr.bf16.mxu0 0
        %2097 = vmatpush1.bf16.msra.mxu0 0
        %2098 = vmatprep.subr.bf16.mxu0 0
        %2099 = vmatpush1.bf16.msra.mxu0 0
        %2100 = vmatprep.subr.bf16.mxu0 0
        %2101 = vmatpush1.bf16.msra.mxu0 0
        %2102 = vmatprep.subr.bf16.mxu0 0
        %2103 = vmatpush1.bf16.msra.mxu0 0
        %2104 = vmatprep.subr.bf16.mxu0 0
        %2105 = vmatpush1.bf16.msra.mxu0 0
        %2106 = vmatprep.mubr.bf16.mxu0 0
        %2107 = vmatmul.mubr.bf16.gmra.mrb[0].mxu0 %v2051
        %v2108 = vpop.f32.mrb[0].mxu0
        %v2109 = vadd.f32 %v2013, %v2108
        %v2110 = vpop.f32.mrb[0].mxu0
        %v2111 = vpop.f32.mrb[0].mxu0
        %v2112 = vadd.f32 %v2013, %v2111
        %v2113 = vpop.f32.mrb[0].mxu0
        %2114 = vmatprep.mubr.bf16.mxu0 0
        %2115 = vmatmul.mubr.bf16.gmra.mrb[0].mxu0 %v2054
        %v2116 = vpop.f32.mrb[0].mxu0
        %v2117 = vadd.f32 %v2013, %v2116
        %v2118 = vpop.f32.mrb[0].mxu0
        %v2119 = vpop.f32.mrb[0].mxu0
        %v2120 = vadd.f32 %v2013, %v2119
        %v2121 = vpop.f32.mrb[0].mxu0
        %2122 = vmatprep.mubr.bf16.mxu0 0
        %2123 = vmatmul.mubr.bf16.gmra.mrb[0].mxu0 %v2057
        %v2124 = vpop.f32.mrb[0].mxu0
        %v2125 = vadd.f32 %v2013, %v2124
        %v2126 = vpop.f32.mrb[0].mxu0
        %v2127 = vpop.f32.mrb[0].mxu0
        %v2128 = vadd.f32 %v2013, %v2127
        %v2129 = vpop.f32.mrb[0].mxu0
        %2130 = vmatprep.mubr.bf16.mxu0 0
        %2131 = vmatmul.mubr.bf16.gmra.mrb[0].mxu0 %v2060
        %v2132 = vpop.f32.mrb[0].mxu0
        %v2133 = vadd.f32 %v2013, %v2132
        %v2134 = vpop.f32.mrb[0].mxu0
        %v2135 = vpop.f32.mrb[0].mxu0
        %v2136 = vadd.f32 %v2013, %v2135
        %v2137 = vpop.f32.mrb[0].mxu0
        %2138 = vmatprep.mubr.bf16.mxu0 0
        %2139 = vmatmul.mubr.bf16.gmra.mrb[0].mxu0 %v2063
        %v2140 = vpop.f32.mrb[0].mxu0
        %v2141 = vadd.f32 %v2013, %v2140
        %v2142 = vpop.f32.mrb[0].mxu0
        %v2143 = vpop.f32.mrb[0].mxu0
        %v2144 = vadd.f32 %v2013, %v2143
        %v2145 = vpop.f32.mrb[0].mxu0
        %2146 = vmatprep.mubr.bf16.mxu0 0
        %2147 = vmatmul.mubr.bf16.gmra.mrb[0].mxu0 %v2066
        %v2148 = vpop.f32.mrb[0].mxu0
        %v2149 = vadd.f32 %v2013, %v2148
        %v2150 = vpop.f32.mrb[0].mxu0
        %v2151 = vpop.f32.mrb[0].mxu0
        %v2152 = vadd.f32 %v2013, %v2151
        %v2153 = vpop.f32.mrb[0].mxu0
        %2154 = vmatprep.mubr.bf16.mxu0 0
        %2155 = vmatmul.mubr.bf16.gmra.mrb[0].mxu0 %v2069
        %v2156 = vpop.f32.mrb[0].mxu0
        %v2157 = vadd.f32 %v2013, %v2156
        %v2158 = vpop.f32.mrb[0].mxu0
        %v2159 = vpop.f32.mrb[0].mxu0
        %v2160 = vadd.f32 %v2013, %v2159
        %v2161 = vpop.f32.mrb[0].mxu0
        %2162 = vmatprep.mubr.bf16.mxu0 0
        %2163 = vmatmul.mubr.bf16.gmra.mrb[0].mxu0 %v2072
        %v2164 = vpop.f32.mrb[0].mxu0
        %v2165 = vadd.f32 %v2013, %v2164
        %v2166 = vpop.f32.mrb[0].mxu0
        %v2167 = vpop.f32.mrb[0].mxu0
        %v2168 = vadd.f32 %v2013, %v2167
        %v2169 = vpop.f32.mrb[0].mxu0
        %2170 = vdwg.mxu0
        %v2171 = vadd.f32 %v2109, %v1079
        %v2172 = vadd.f32 %v2112, %v1080
        %v2173 = vadd.f32 %v2117, %v1081
        %v2174 = vadd.f32 %v2120, %v1082
        %v2175 = vadd.f32 %v2125, %v1083
        %v2176 = vadd.f32 %v2128, %v1084
        %v2177 = vadd.f32 %v2133, %v1085
        %v2178 = vadd.f32 %v2136, %v1086
        %v2179 = vadd.f32 %v2141, %v1087
        %v2180 = vadd.f32 %v2144, %v1088
        %v2181 = vadd.f32 %v2149, %v1089
        %v2182 = vadd.f32 %v2152, %v1090
        %v2183 = vadd.f32 %v2157, %v1091
        %v2184 = vadd.f32 %v2160, %v1092
        %v2185 = vadd.f32 %v2165, %v1093
        %v2186 = vadd.f32 %v2168, %v1094
        %vm2187 = vcmp.gt.f32.partialorder %v2171, 0.0
        %vm2188 = vcmp.gt.f32.partialorder %v2172, 0.0
        %vm2189 = vcmp.gt.f32.partialorder %v2173, 0.0
        %vm2190 = vcmp.gt.f32.partialorder %v2174, 0.0
        %vm2191 = vcmp.gt.f32.partialorder %v2175, 0.0
        %vm2192 = vcmp.gt.f32.partialorder %v2176, 0.0
        %vm2193 = vcmp.gt.f32.partialorder %v2177, 0.0
        %vm2194 = vcmp.gt.f32.partialorder %v2178, 0.0
        %vm2195 = vcmp.gt.f32.partialorder %v2179, 0.0
        %vm2196 = vcmp.gt.f32.partialorder %v2180, 0.0
        %vm2197 = vcmp.gt.f32.partialorder %v2181, 0.0
        %vm2198 = vcmp.gt.f32.partialorder %v2182, 0.0
        %vm2199 = vcmp.gt.f32.partialorder %v2183, 0.0
        %vm2200 = vcmp.gt.f32.partialorder %v2184, 0.0
        %vm2201 = vcmp.gt.f32.partialorder %v2185, 0.0
        %vm2202 = vcmp.gt.f32.partialorder %v2186, 0.0
        %v2203 = vlaneseq
        %v2204 = vshrl.u32 %v2203, 7
        %v2205 = vsub.s32 4, %v2204
        %v2206 = vrot.slane %v690, %v2205
        %v2207 = vmul.f32 %v2206, %v2171
        %v2208 = vmul.f32 %v2206, %v2172
        %v2209 = vmul.f32 %v2206, %v2173
        %v2210 = vmul.f32 %v2206, %v2174
        %v2211 = vmul.f32 %v2206, %v2175
        %v2212 = vmul.f32 %v2206, %v2176
        %v2213 = vmul.f32 %v2206, %v2177
        %v2214 = vmul.f32 %v2206, %v2178
        %v2215 = vmul.f32 %v2206, %v2179
        %v2216 = vmul.f32 %v2206, %v2180
        %v2217 = vmul.f32 %v2206, %v2181
        %v2218 = vmul.f32 %v2206, %v2182
        %v2219 = vmul.f32 %v2206, %v2183
        %v2220 = vmul.f32 %v2206, %v2184
        %v2221 = vmul.f32 %v2206, %v2185
        %v2222 = vmul.f32 %v2206, %v2186
        %v2223 = vsel %vm2187, %v2171, %v2207
        %v2224 = vsel %vm2188, %v2172, %v2208
        %v2225 = vsel %vm2189, %v2173, %v2209
        %v2226 = vsel %vm2190, %v2174, %v2210
        %v2227 = vsel %vm2191, %v2175, %v2211
        %v2228 = vsel %vm2192, %v2176, %v2212
        %v2229 = vsel %vm2193, %v2177, %v2213
        %v2230 = vsel %vm2194, %v2178, %v2214
        %v2231 = vsel %vm2195, %v2179, %v2215
        %v2232 = vsel %vm2196, %v2180, %v2216
        %v2233 = vsel %vm2197, %v2181, %v2217
        %v2234 = vsel %vm2198, %v2182, %v2218
        %v2235 = vsel %vm2199, %v2183, %v2219
        %v2236 = vsel %vm2200, %v2184, %v2220
        %v2237 = vsel %vm2201, %v2185, %v2221
        %v2238 = vsel %vm2202, %v2186, %v2222
        %v2239 = vld [vmem:[%s8] sm:$0xf]
        %v2240 = vld [vmem:[%s8 + $0x4] sm:$0xf]
        %v2241 = vld [vmem:[%s8 + $0x8] sm:$0xf]
        %v2242 = vld [vmem:[%s8 + $0xc] sm:$0xf]
        %v2243 = vld [vmem:[%s8 + $0x10] sm:$0xf]
        %v2244 = vld [vmem:[%s8 + $0x14] sm:$0xf]
        %v2245 = vld [vmem:[%s8 + $0x18] sm:$0xf]
        %v2246 = vld [vmem:[%s8 + $0x1c] sm:$0xf]
        %v2247 = vld [vmem:[%s8 + $0x20] sm:$0xf]
        %v2248 = vld [vmem:[%s8 + $0x24] sm:$0xf]
        %v2249 = vld [vmem:[%s8 + $0x28] sm:$0xf]
        %v2250 = vld [vmem:[%s8 + $0x2c] sm:$0xf]
        %v2251 = vrot.slane %v2223, 7
        %v2252 = vrot.slane %v2224, 7
        %v2253 = vrot.slane %v2225, 7
        %v2254 = vrot.slane %v2226, 7
        %v2255 = vrot.slane %v2227, 7
        %v2256 = vrot.slane %v2228, 7
        %v2257 = vrot.slane %v2229, 7
        %v2258 = vrot.slane %v2230, 7
        %v2259 = vrot.slane %v2231, 7
        %v2260 = vrot.slane %v2232, 7
        %v2261 = vrot.slane %v2233, 7
        %v2262 = vrot.slane %v2234, 7
        %v2263 = vrot.slane %v2235, 7
        %v2264 = vrot.slane %v2236, 7
        %v2265 = vrot.slane %v2237, 7
        %v2266 = vrot.slane %v2238, 7
        %v2267 = vsel %vm1125, %v2265, %v2266
        %v2268 = vsel %vm1125, %v2264, %v2265
        %v2269 = vsel %vm1125, %v2263, %v2264
        %v2270 = vsel %vm1125, %v2262, %v2263
        %v2271 = vsel %vm1125, %v2261, %v2262
        %v2272 = vsel %vm1125, %v2260, %v2261
        %v2273 = vsel %vm1125, %v2259, %v2260
        %v2274 = vsel %vm1125, %v2258, %v2259
        %v2275 = vsel %vm1125, %v2257, %v2258
        %v2276 = vsel %vm1125, %v2256, %v2257
        %v2277 = vsel %vm1125, %v2255, %v2256
        %v2278 = vsel %vm1125, %v2254, %v2255
        %v2279 = vsel %vm1125, %v2253, %v2254
        %v2280 = vsel %vm1125, %v2252, %v2253
        %v2281 = vsel %vm1125, %v2251, %v2252
        %v2282 = vsel %vm1125, %v2266, %v2251
        %v2283 = vmul.f32 %v2282, %v1145
        %v2284 = vmul.f32 %v2281, %v1150
        %v2285 = vmul.f32 %v2280, %v1155
        %v2286 = vmul.f32 %v2279, %v1160
        %v2287 = vmul.f32 %v2278, %v1165
        %v2288 = vmul.f32 %v2277, %v1170
        %v2289 = vmul.f32 %v2276, %v1175
        %v2290 = vmul.f32 %v2275, %v1180
        %v2291 = vmul.f32 %v2274, %v1185
        %v2292 = vmul.f32 %v2273, %v1190
        %v2293 = vmul.f32 %v2272, %v1195
        %v2294 = vmul.f32 %v2271, %v1200
        %v2295 = vmul.f32 %v2270, %v1205
        %v2296 = vmul.f32 %v2269, %v1210
        %v2297 = vmul.f32 %v2268, %v1215
        %v2298 = vmul.f32 %v2267, %v1220
        %v2299 = vrot.slane %v2223, 1
        %v2300 = vrot.slane %v2224, 1
        %v2301 = vrot.slane %v2225, 1
        %v2302 = vrot.slane %v2226, 1
        %v2303 = vrot.slane %v2227, 1
        %v2304 = vrot.slane %v2228, 1
        %v2305 = vrot.slane %v2229, 1
        %v2306 = vrot.slane %v2230, 1
        %v2307 = vrot.slane %v2231, 1
        %v2308 = vrot.slane %v2232, 1
        %v2309 = vrot.slane %v2233, 1
        %v2310 = vrot.slane %v2234, 1
        %v2311 = vrot.slane %v2235, 1
        %v2312 = vrot.slane %v2236, 1
        %v2313 = vrot.slane %v2237, 1
        %v2314 = vrot.slane %v2238, 1
        %v2315 = vsel %vm1254, %v2313, %v2314
        %v2316 = vsel %vm1254, %v2312, %v2313
        %v2317 = vsel %vm1254, %v2311, %v2312
        %v2318 = vsel %vm1254, %v2310, %v2311
        %v2319 = vsel %vm1254, %v2309, %v2310
        %v2320 = vsel %vm1254, %v2308, %v2309
        %v2321 = vsel %vm1254, %v2307, %v2308
        %v2322 = vsel %vm1254, %v2306, %v2307
        %v2323 = vsel %vm1254, %v2305, %v2306
        %v2324 = vsel %vm1254, %v2304, %v2305
        %v2325 = vsel %vm1254, %v2303, %v2304
        %v2326 = vsel %vm1254, %v2302, %v2303
        %v2327 = vsel %vm1254, %v2301, %v2302
        %v2328 = vsel %vm1254, %v2300, %v2301
        %v2329 = vsel %vm1254, %v2299, %v2300
        %v2330 = vsel %vm1254, %v2314, %v2299
        %v2331 = vmul.f32 %v2329, %v1273
        %v2332 = vmul.f32 %v2328, %v1277
        %v2333 = vmul.f32 %v2327, %v1281
        %v2334 = vmul.f32 %v2326, %v1285
        %v2335 = vmul.f32 %v2325, %v1289
        %v2336 = vmul.f32 %v2324, %v1293
        %v2337 = vmul.f32 %v2323, %v1297
        %v2338 = vmul.f32 %v2322, %v1301
        %v2339 = vmul.f32 %v2321, %v1305
        %v2340 = vmul.f32 %v2320, %v1309
        %v2341 = vmul.f32 %v2319, %v1313
        %v2342 = vmul.f32 %v2318, %v1317
        %v2343 = vmul.f32 %v2317, %v1321
        %v2344 = vmul.f32 %v2316, %v1325
        %v2345 = vmul.f32 %v2315, %v1329
        %v2346 = vmul.f32 %v2330, %v1333
        %2363 = vrot.lane.b32.xlu0 %v2223, 32
        %v2364 = vpop.permute.xlu0 %2363
        %2365 = vrot.lane.b32.xlu0 %v2224, 32
        %v2366 = vpop.permute.xlu0 %2365
        %2367 = vrot.lane.b32.xlu0 %v2225, 32
        %v2368 = vpop.permute.xlu0 %2367
        %2369 = vrot.lane.b32.xlu0 %v2226, 32
        %v2370 = vpop.permute.xlu0 %2369
        %2371 = vrot.lane.b32.xlu0 %v2227, 32
        %v2372 = vpop.permute.xlu0 %2371
        %2373 = vrot.lane.b32.xlu0 %v2228, 32
        %v2374 = vpop.permute.xlu0 %2373
        %2375 = vrot.lane.b32.xlu0 %v2229, 32
        %v2376 = vpop.permute.xlu0 %2375
        %2377 = vrot.lane.b32.xlu0 %v2230, 32
        %v2378 = vpop.permute.xlu0 %2377
        %2379 = vrot.lane.b32.xlu0 %v2231, 32
        %v2380 = vpop.permute.xlu0 %2379
        %2381 = vrot.lane.b32.xlu0 %v2232, 32
        %v2382 = vpop.permute.xlu0 %2381
        %2383 = vrot.lane.b32.xlu0 %v2233, 32
        %v2384 = vpop.permute.xlu0 %2383
        %2385 = vrot.lane.b32.xlu0 %v2234, 32
        %v2386 = vpop.permute.xlu0 %2385
        %2387 = vrot.lane.b32.xlu0 %v2235, 32
        %v2388 = vpop.permute.xlu0 %2387
        %2389 = vrot.lane.b32.xlu0 %v2236, 32
        %v2390 = vpop.permute.xlu0 %2389
        %2391 = vrot.lane.b32.xlu0 %v2237, 32
        %v2392 = vpop.permute.xlu0 %2391
        %2393 = vrot.lane.b32.xlu0 %v2238, 32
        %v2394 = vpop.permute.xlu0 %2393
        %2427 = vrot.lane.b32.xlu0 %v2331, 64
        %v2428 = vpop.permute.xlu0 %2427
        %2429 = vrot.lane.b32.xlu0 %v2332, 64
        %v2430 = vpop.permute.xlu0 %2429
        %2431 = vrot.lane.b32.xlu0 %v2333, 64
        %v2432 = vpop.permute.xlu0 %2431
        %2433 = vrot.lane.b32.xlu0 %v2334, 64
        %v2434 = vpop.permute.xlu0 %2433
        %2435 = vrot.lane.b32.xlu0 %v2335, 64
        %v2436 = vpop.permute.xlu0 %2435
        %2437 = vrot.lane.b32.xlu0 %v2336, 64
        %v2438 = vpop.permute.xlu0 %2437
        %2439 = vrot.lane.b32.xlu0 %v2337, 64
        %v2440 = vpop.permute.xlu0 %2439
        %2441 = vrot.lane.b32.xlu0 %v2338, 64
        %v2442 = vpop.permute.xlu0 %2441
        %2443 = vrot.lane.b32.xlu0 %v2339, 64
        %v2444 = vpop.permute.xlu0 %2443
        %2445 = vrot.lane.b32.xlu0 %v2340, 64
        %v2446 = vpop.permute.xlu0 %2445
        %2447 = vrot.lane.b32.xlu0 %v2341, 64
        %v2448 = vpop.permute.xlu0 %2447
        %2449 = vrot.lane.b32.xlu0 %v2342, 64
        %v2450 = vpop.permute.xlu0 %2449
        %2451 = vrot.lane.b32.xlu0 %v2343, 64
        %v2452 = vpop.permute.xlu0 %2451
        %2453 = vrot.lane.b32.xlu0 %v2344, 64
        %v2454 = vpop.permute.xlu0 %2453
        %2455 = vrot.lane.b32.xlu0 %v2345, 64
        %v2456 = vpop.permute.xlu0 %2455
        %2457 = vrot.lane.b32.xlu0 %v2346, 64
        %v2458 = vpop.permute.xlu0 %2457
        %v2475 = vsel %vm1479, %v2283, %v2364
        %v2476 = vsel %vm1479, %v2284, %v2366
        %v2477 = vsel %vm1479, %v2285, %v2368
        %v2478 = vsel %vm1479, %v2286, %v2370
        %v2479 = vsel %vm1479, %v2287, %v2372
        %v2480 = vsel %vm1479, %v2288, %v2374
        %v2481 = vsel %vm1479, %v2289, %v2376
        %v2482 = vsel %vm1479, %v2290, %v2378
        %v2483 = vsel %vm1479, %v2291, %v2380
        %v2484 = vsel %vm1479, %v2292, %v2382
        %v2485 = vsel %vm1479, %v2293, %v2384
        %v2486 = vsel %vm1479, %v2294, %v2386
        %v2487 = vsel %vm1479, %v2295, %v2388
        %v2488 = vsel %vm1479, %v2296, %v2390
        %v2489 = vsel %vm1479, %v2297, %v2392
        %v2490 = vsel %vm1479, %v2298, %v2394
        %v2491 = vsel %vm735, %v2475, %v2428
        %v2492 = vsel %vm735, %v2476, %v2430
        %v2493 = vsel %vm735, %v2477, %v2432
        %v2494 = vsel %vm735, %v2478, %v2434
        %v2495 = vsel %vm735, %v2479, %v2436
        %v2496 = vsel %vm735, %v2480, %v2438
        %v2497 = vsel %vm735, %v2481, %v2440
        %v2498 = vsel %vm735, %v2482, %v2442
        %v2499 = vsel %vm735, %v2483, %v2444
        %v2500 = vsel %vm735, %v2484, %v2446
        %v2501 = vsel %vm735, %v2485, %v2448
        %v2502 = vsel %vm735, %v2486, %v2450
        %v2503 = vsel %vm735, %v2487, %v2452
        %v2504 = vsel %vm735, %v2488, %v2454
        %v2505 = vsel %vm735, %v2489, %v2456
        %v2506 = vsel %vm735, %v2490, %v2458
        %v2507 = vpack.c.bf16 %v2492, %v2491
        %v2508 = vpack.c.bf16 %v2494, %v2493
        %v2509 = vpack.c.bf16 %v2496, %v2495
        %v2510 = vpack.c.bf16 %v2498, %v2497
        %v2511 = vpack.c.bf16 %v2500, %v2499
        %v2512 = vpack.c.bf16 %v2502, %v2501
        %v2513 = vpack.c.bf16 %v2504, %v2503
        %v2514 = vpack.c.bf16 %v2506, %v2505
        %v2515 = vlaneseq
        %v2516 = vshrl.u32 %v2515, 7
        %v2517 = vsub.s32 5, %v2516
        %v2518 = vrot.slane %v690, %v2517
        %v2531 = vunpack.c.l.b16 %v2239
        %v2532 = vunpack.c.l.b16 %v2240
        %v2533 = vunpack.c.l.b16 %v2241
        %v2534 = vunpack.c.l.b16 %v2242
        %v2535 = vunpack.c.l.b16 %v2243
        %v2536 = vunpack.c.l.b16 %v2244
        %v2537 = vunpack.c.l.b16 %v2245
        %v2538 = vunpack.c.l.b16 %v2246
        %v2539 = vunpack.c.l.b16 %v2247
        %v2540 = vunpack.c.l.b16 %v2248
        %v2541 = vunpack.c.l.b16 %v2249
        %v2542 = vunpack.c.l.b16 %v2250
        %v2543 = vpack.c.b16 %v2532, %v2531
        %v2544 = vpack.c.b16 %v2534, %v2533
        %v2545 = vpack.c.b16 %v2536, %v2535
        %v2546 = vpack.c.b16 %v2538, %v2537
        %v2547 = vpack.c.b16 %v2540, %v2539
        %v2548 = vpack.c.b16 %v2542, %v2541
        %v2556 = vsel %vm1560, %v2507, 0
        %v2559 = vsel %vm1560, %v2508, 0
        %v2562 = vsel %vm1560, %v2509, 0
        %v2565 = vsel %vm1560, %v2510, 0
        %v2568 = vsel %vm1560, %v2511, 0
        %v2571 = vsel %vm1560, %v2512, 0
        %v2574 = vsel %vm1560, %v2513, 0
        %v2577 = vsel %vm1560, %v2514, 0
        %2579 = vmatprep.subr.bf16.mxu0 0
        %2580 = vmatpush1.bf16.msra.mxu0 %v2543
        %2581 = vmatprep.subr.bf16.mxu0 0
        %2582 = vmatpush1.bf16.msra.mxu0 %v2544
        %2583 = vmatprep.subr.bf16.mxu0 0
        %2584 = vmatpush1.bf16.msra.mxu0 %v2545
        %2585 = vmatprep.subr.bf16.mxu0 0
        %2586 = vmatpush1.bf16.msra.mxu0 %v2546
        %2587 = vmatprep.subr.bf16.mxu0 0
        %2588 = vmatpush1.bf16.msra.mxu0 %v2547
        %2589 = vmatprep.subr.bf16.mxu0 0
        %2590 = vmatpush1.bf16.msra.mxu0 %v2548
        %2591 = vmatprep.subr.bf16.mxu0 0
        %2592 = vmatpush1.bf16.msra.mxu0 0
        %2593 = vmatprep.subr.bf16.mxu0 0
        %2594 = vmatpush1.bf16.msra.mxu0 0
        %2595 = vmatprep.subr.bf16.mxu0 0
        %2596 = vmatpush1.bf16.msra.mxu0 0
        %2597 = vmatprep.subr.bf16.mxu0 0
        %2598 = vmatpush1.bf16.msra.mxu0 0
        %2599 = vmatprep.subr.bf16.mxu0 0
        %2600 = vmatpush1.bf16.msra.mxu0 0
        %2601 = vmatprep.subr.bf16.mxu0 0
        %2602 = vmatpush1.bf16.msra.mxu0 0
        %2603 = vmatprep.subr.bf16.mxu0 0
        %2604 = vmatpush1.bf16.msra.mxu0 0
        %2605 = vmatprep.subr.bf16.mxu0 0
        %2606 = vmatpush1.bf16.msra.mxu0 0
        %2607 = vmatprep.subr.bf16.mxu0 0
        %2608 = vmatpush1.bf16.msra.mxu0 0
        %2609 = vmatprep.subr.bf16.mxu0 0
        %2610 = vmatpush1.bf16.msra.mxu0 0
        %2611 = vmatprep.mubr.bf16.mxu0 0
        %2612 = vmatmul.mubr.bf16.gmra.mrb[0].mxu0 %v2556
        %v2613 = vpop.f32.mrb[0].mxu0
        %v2614 = vadd.f32 %v2518, %v2613
        %v2615 = vpop.f32.mrb[0].mxu0
        %v2616 = vpop.f32.mrb[0].mxu0
        %v2617 = vadd.f32 %v2518, %v2616
        %v2618 = vpop.f32.mrb[0].mxu0
        %2619 = vmatprep.mubr.bf16.mxu0 0
        %2620 = vmatmul.mubr.bf16.gmra.mrb[0].mxu0 %v2559
        %v2621 = vpop.f32.mrb[0].mxu0
        %v2622 = vadd.f32 %v2518, %v2621
        %v2623 = vpop.f32.mrb[0].mxu0
        %v2624 = vpop.f32.mrb[0].mxu0
        %v2625 = vadd.f32 %v2518, %v2624
        %v2626 = vpop.f32.mrb[0].mxu0
        %2627 = vmatprep.mubr.bf16.mxu0 0
        %2628 = vmatmul.mubr.bf16.gmra.mrb[0].mxu0 %v2562
        %v2629 = vpop.f32.mrb[0].mxu0
        %v2630 = vadd.f32 %v2518, %v2629
        %v2631 = vpop.f32.mrb[0].mxu0
        %v2632 = vpop.f32.mrb[0].mxu0
        %v2633 = vadd.f32 %v2518, %v2632
        %v2634 = vpop.f32.mrb[0].mxu0
        %2635 = vmatprep.mubr.bf16.mxu0 0
        %2636 = vmatmul.mubr.bf16.gmra.mrb[0].mxu0 %v2565
        %v2637 = vpop.f32.mrb[0].mxu0
        %v2638 = vadd.f32 %v2518, %v2637
        %v2639 = vpop.f32.mrb[0].mxu0
        %v2640 = vpop.f32.mrb[0].mxu0
        %v2641 = vadd.f32 %v2518, %v2640
        %v2642 = vpop.f32.mrb[0].mxu0
        %2643 = vmatprep.mubr.bf16.mxu0 0
        %2644 = vmatmul.mubr.bf16.gmra.mrb[0].mxu0 %v2568
        %v2645 = vpop.f32.mrb[0].mxu0
        %v2646 = vadd.f32 %v2518, %v2645
        %v2647 = vpop.f32.mrb[0].mxu0
        %v2648 = vpop.f32.mrb[0].mxu0
        %v2649 = vadd.f32 %v2518, %v2648
        %v2650 = vpop.f32.mrb[0].mxu0
        %2651 = vmatprep.mubr.bf16.mxu0 0
        %2652 = vmatmul.mubr.bf16.gmra.mrb[0].mxu0 %v2571
        %v2653 = vpop.f32.mrb[0].mxu0
        %v2654 = vadd.f32 %v2518, %v2653
        %v2655 = vpop.f32.mrb[0].mxu0
        %v2656 = vpop.f32.mrb[0].mxu0
        %v2657 = vadd.f32 %v2518, %v2656
        %v2658 = vpop.f32.mrb[0].mxu0
        %2659 = vmatprep.mubr.bf16.mxu0 0
        %2660 = vmatmul.mubr.bf16.gmra.mrb[0].mxu0 %v2574
        %v2661 = vpop.f32.mrb[0].mxu0
        %v2662 = vadd.f32 %v2518, %v2661
        %v2663 = vpop.f32.mrb[0].mxu0
        %v2664 = vpop.f32.mrb[0].mxu0
        %v2665 = vadd.f32 %v2518, %v2664
        %v2666 = vpop.f32.mrb[0].mxu0
        %2667 = vmatprep.mubr.bf16.mxu0 0
        %2668 = vmatmul.mubr.bf16.gmra.mrb[0].mxu0 %v2577
        %v2669 = vpop.f32.mrb[0].mxu0
        %v2670 = vadd.f32 %v2518, %v2669
        %v2671 = vpop.f32.mrb[0].mxu0
        %v2672 = vpop.f32.mrb[0].mxu0
        %v2673 = vadd.f32 %v2518, %v2672
        %v2674 = vpop.f32.mrb[0].mxu0
        %2675 = vdwg.mxu0
        %vm2676 = vcmp.gt.f32.partialorder %v2614, 0.0
        %vm2677 = vcmp.gt.f32.partialorder %v2617, 0.0
        %vm2678 = vcmp.gt.f32.partialorder %v2622, 0.0
        %vm2679 = vcmp.gt.f32.partialorder %v2625, 0.0
        %vm2680 = vcmp.gt.f32.partialorder %v2630, 0.0
        %vm2681 = vcmp.gt.f32.partialorder %v2633, 0.0
        %vm2682 = vcmp.gt.f32.partialorder %v2638, 0.0
        %vm2683 = vcmp.gt.f32.partialorder %v2641, 0.0
        %vm2684 = vcmp.gt.f32.partialorder %v2646, 0.0
        %vm2685 = vcmp.gt.f32.partialorder %v2649, 0.0
        %vm2686 = vcmp.gt.f32.partialorder %v2654, 0.0
        %vm2687 = vcmp.gt.f32.partialorder %v2657, 0.0
        %vm2688 = vcmp.gt.f32.partialorder %v2662, 0.0
        %vm2689 = vcmp.gt.f32.partialorder %v2665, 0.0
        %vm2690 = vcmp.gt.f32.partialorder %v2670, 0.0
        %vm2691 = vcmp.gt.f32.partialorder %v2673, 0.0
        %v2692 = vlaneseq
        %v2693 = vshrl.u32 %v2692, 7
        %v2694 = vsub.s32 6, %v2693
        %v2695 = vrot.slane %v690, %v2694
        %v2696 = vmul.f32 %v2695, %v2614
        %v2697 = vmul.f32 %v2695, %v2617
        %v2698 = vmul.f32 %v2695, %v2622
        %v2699 = vmul.f32 %v2695, %v2625
        %v2700 = vmul.f32 %v2695, %v2630
        %v2701 = vmul.f32 %v2695, %v2633
        %v2702 = vmul.f32 %v2695, %v2638
        %v2703 = vmul.f32 %v2695, %v2641
        %v2704 = vmul.f32 %v2695, %v2646
        %v2705 = vmul.f32 %v2695, %v2649
        %v2706 = vmul.f32 %v2695, %v2654
        %v2707 = vmul.f32 %v2695, %v2657
        %v2708 = vmul.f32 %v2695, %v2662
        %v2709 = vmul.f32 %v2695, %v2665
        %v2710 = vmul.f32 %v2695, %v2670
        %v2711 = vmul.f32 %v2695, %v2673
        %v2712 = vsel %vm2676, %v2614, %v2696
        %v2713 = vsel %vm2677, %v2617, %v2697
        %v2714 = vsel %vm2678, %v2622, %v2698
        %v2715 = vsel %vm2679, %v2625, %v2699
        %v2716 = vsel %vm2680, %v2630, %v2700
        %v2717 = vsel %vm2681, %v2633, %v2701
        %v2718 = vsel %vm2682, %v2638, %v2702
        %v2719 = vsel %vm2683, %v2641, %v2703
        %v2720 = vsel %vm2684, %v2646, %v2704
        %v2721 = vsel %vm2685, %v2649, %v2705
        %v2722 = vsel %vm2686, %v2654, %v2706
        %v2723 = vsel %vm2687, %v2657, %v2707
        %v2724 = vsel %vm2688, %v2662, %v2708
        %v2725 = vsel %vm2689, %v2665, %v2709
        %v2726 = vsel %vm2690, %v2670, %v2710
        %v2727 = vsel %vm2691, %v2673, %v2711
        %v2728 = vld [vmem:[%s9] sm:$0xf]
        %v2729 = vld [vmem:[%s9 + $0x4] sm:$0xf]
        %v2730 = vld [vmem:[%s9 + $0x8] sm:$0xf]
        %v2731 = vld [vmem:[%s9 + $0xc] sm:$0xf]
        %v2732 = vld [vmem:[%s9 + $0x10] sm:$0xf]
        %v2733 = vld [vmem:[%s9 + $0x14] sm:$0xf]
        %v2734 = vld [vmem:[%s9 + $0x18] sm:$0xf]
        %v2735 = vld [vmem:[%s9 + $0x1c] sm:$0xf]
        %v2736 = vld [vmem:[%s9 + $0x20] sm:$0xf]
        %v2737 = vld [vmem:[%s9 + $0x24] sm:$0xf]
        %v2738 = vld [vmem:[%s9 + $0x28] sm:$0xf]
        %v2739 = vld [vmem:[%s9 + $0x2c] sm:$0xf]
        %v2740 = vrot.slane %v2712, 6
        %v2741 = vrot.slane %v2713, 6
        %v2742 = vrot.slane %v2714, 6
        %v2743 = vrot.slane %v2715, 6
        %v2744 = vrot.slane %v2716, 6
        %v2745 = vrot.slane %v2717, 6
        %v2746 = vrot.slane %v2718, 6
        %v2747 = vrot.slane %v2719, 6
        %v2748 = vrot.slane %v2720, 6
        %v2749 = vrot.slane %v2721, 6
        %v2750 = vrot.slane %v2722, 6
        %v2751 = vrot.slane %v2723, 6
        %v2752 = vrot.slane %v2724, 6
        %v2753 = vrot.slane %v2725, 6
        %v2754 = vrot.slane %v2726, 6
        %v2755 = vrot.slane %v2727, 6
        %vm2756 = vcmp.lt.s32.totalorder %v1124, 2
        %v2757 = vsel %vm2756, %v2754, %v2755
        %v2758 = vsel %vm2756, %v2753, %v2754
        %v2759 = vsel %vm2756, %v2752, %v2753
        %v2760 = vsel %vm2756, %v2751, %v2752
        %v2761 = vsel %vm2756, %v2750, %v2751
        %v2762 = vsel %vm2756, %v2749, %v2750
        %v2763 = vsel %vm2756, %v2748, %v2749
        %v2764 = vsel %vm2756, %v2747, %v2748
        %v2765 = vsel %vm2756, %v2746, %v2747
        %v2766 = vsel %vm2756, %v2745, %v2746
        %v2767 = vsel %vm2756, %v2744, %v2745
        %v2768 = vsel %vm2756, %v2743, %v2744
        %v2769 = vsel %vm2756, %v2742, %v2743
        %v2770 = vsel %vm2756, %v2741, %v2742
        %v2771 = vsel %vm2756, %v2740, %v2741
        %v2772 = vsel %vm2756, %v2755, %v2740
        %2773 = vset.pattern.permute.xlu0 2
        %2774 = vperm.xlu0 %2773, %v674
        %v2775 = vpop.permute.xlu0 %2774
        %2777 = vset.pattern.permute.xlu0 2
        %2778 = vperm.xlu0 %2777, %v675
        %v2779 = vpop.permute.xlu0 %2778
        %2781 = vset.pattern.permute.xlu0 2
        %2782 = vperm.xlu0 %2781, %v676
        %v2783 = vpop.permute.xlu0 %2782
        %2785 = vset.pattern.permute.xlu0 2
        %2786 = vperm.xlu0 %2785, %v677
        %v2787 = vpop.permute.xlu0 %2786
        %2789 = vset.pattern.permute.xlu0 2
        %2790 = vperm.xlu0 %2789, %v678
        %v2791 = vpop.permute.xlu0 %2790
        %2793 = vset.pattern.permute.xlu0 2
        %2794 = vperm.xlu0 %2793, %v679
        %v2795 = vpop.permute.xlu0 %2794
        %2797 = vset.pattern.permute.xlu0 2
        %2798 = vperm.xlu0 %2797, %v680
        %v2799 = vpop.permute.xlu0 %2798
        %2801 = vset.pattern.permute.xlu0 2
        %2802 = vperm.xlu0 %2801, %v681
        %v2803 = vpop.permute.xlu0 %2802
        %2805 = vset.pattern.permute.xlu0 2
        %2806 = vperm.xlu0 %2805, %v682
        %v2807 = vpop.permute.xlu0 %2806
        %2809 = vset.pattern.permute.xlu0 2
        %2810 = vperm.xlu0 %2809, %v683
        %v2811 = vpop.permute.xlu0 %2810
        %2813 = vset.pattern.permute.xlu0 2
        %2814 = vperm.xlu0 %2813, %v684
        %v2815 = vpop.permute.xlu0 %2814
        %2817 = vset.pattern.permute.xlu0 2
        %2818 = vperm.xlu0 %2817, %v685
        %v2819 = vpop.permute.xlu0 %2818
        %2821 = vset.pattern.permute.xlu0 2
        %2822 = vperm.xlu0 %2821, %v686
        %v2823 = vpop.permute.xlu0 %2822
        %2825 = vset.pattern.permute.xlu0 2
        %2826 = vperm.xlu0 %2825, %v687
        %v2827 = vpop.permute.xlu0 %2826
        %2829 = vset.pattern.permute.xlu0 2
        %2830 = vperm.xlu0 %2829, %v688
        %v2831 = vpop.permute.xlu0 %2830
        %2833 = vset.pattern.permute.xlu0 2
        %2834 = vperm.xlu0 %2833, %v689
        %v2835 = vpop.permute.xlu0 %2834
        %v2837 = vmul.f32 %v2772, %v2775
        %v2838 = vmul.f32 %v2771, %v2779
        %v2839 = vmul.f32 %v2770, %v2783
        %v2840 = vmul.f32 %v2769, %v2787
        %v2841 = vmul.f32 %v2768, %v2791
        %v2842 = vmul.f32 %v2767, %v2795
        %v2843 = vmul.f32 %v2766, %v2799
        %v2844 = vmul.f32 %v2765, %v2803
        %v2845 = vmul.f32 %v2764, %v2807
        %v2846 = vmul.f32 %v2763, %v2811
        %v2847 = vmul.f32 %v2762, %v2815
        %v2848 = vmul.f32 %v2761, %v2819
        %v2849 = vmul.f32 %v2760, %v2823
        %v2850 = vmul.f32 %v2759, %v2827
        %v2851 = vmul.f32 %v2758, %v2831
        %v2852 = vmul.f32 %v2757, %v2835
        %v2853 = vrot.slane %v2712, 2
        %v2854 = vrot.slane %v2713, 2
        %v2855 = vrot.slane %v2714, 2
        %v2856 = vrot.slane %v2715, 2
        %v2857 = vrot.slane %v2716, 2
        %v2858 = vrot.slane %v2717, 2
        %v2859 = vrot.slane %v2718, 2
        %v2860 = vrot.slane %v2719, 2
        %v2861 = vrot.slane %v2720, 2
        %v2862 = vrot.slane %v2721, 2
        %v2863 = vrot.slane %v2722, 2
        %v2864 = vrot.slane %v2723, 2
        %v2865 = vrot.slane %v2724, 2
        %v2866 = vrot.slane %v2725, 2
        %v2867 = vrot.slane %v2726, 2
        %v2868 = vrot.slane %v2727, 2
        %vm2869 = vcmp.lt.s32.totalorder %v1124, 6
        %v2870 = vsel %vm2869, %v2867, %v2868
        %v2871 = vsel %vm2869, %v2866, %v2867
        %v2872 = vsel %vm2869, %v2865, %v2866
        %v2873 = vsel %vm2869, %v2864, %v2865
        %v2874 = vsel %vm2869, %v2863, %v2864
        %v2875 = vsel %vm2869, %v2862, %v2863
        %v2876 = vsel %vm2869, %v2861, %v2862
        %v2877 = vsel %vm2869, %v2860, %v2861
        %v2878 = vsel %vm2869, %v2859, %v2860
        %v2879 = vsel %vm2869, %v2858, %v2859
        %v2880 = vsel %vm2869, %v2857, %v2858
        %v2881 = vsel %vm2869, %v2856, %v2857
        %v2882 = vsel %vm2869, %v2855, %v2856
        %v2883 = vsel %vm2869, %v2854, %v2855
        %v2884 = vsel %vm2869, %v2853, %v2854
        %v2885 = vsel %vm2869, %v2868, %v2853
        %2886 = vset.pattern.permute.xlu0 3
        %2887 = vperm.xlu0 %2886, %v674
        %v2888 = vpop.permute.xlu0 %2887
        %2890 = vset.pattern.permute.xlu0 3
        %2891 = vperm.xlu0 %2890, %v675
        %v2892 = vpop.permute.xlu0 %2891
        %2894 = vset.pattern.permute.xlu0 3
        %2895 = vperm.xlu0 %2894, %v676
        %v2896 = vpop.permute.xlu0 %2895
        %2898 = vset.pattern.permute.xlu0 3
        %2899 = vperm.xlu0 %2898, %v677
        %v2900 = vpop.permute.xlu0 %2899
        %2902 = vset.pattern.permute.xlu0 3
        %2903 = vperm.xlu0 %2902, %v678
        %v2904 = vpop.permute.xlu0 %2903
        %2906 = vset.pattern.permute.xlu0 3
        %2907 = vperm.xlu0 %2906, %v679
        %v2908 = vpop.permute.xlu0 %2907
        %2910 = vset.pattern.permute.xlu0 3
        %2911 = vperm.xlu0 %2910, %v680
        %v2912 = vpop.permute.xlu0 %2911
        %2914 = vset.pattern.permute.xlu0 3
        %2915 = vperm.xlu0 %2914, %v681
        %v2916 = vpop.permute.xlu0 %2915
        %2918 = vset.pattern.permute.xlu0 3
        %2919 = vperm.xlu0 %2918, %v682
        %v2920 = vpop.permute.xlu0 %2919
        %2922 = vset.pattern.permute.xlu0 3
        %2923 = vperm.xlu0 %2922, %v683
        %v2924 = vpop.permute.xlu0 %2923
        %2926 = vset.pattern.permute.xlu0 3
        %2927 = vperm.xlu0 %2926, %v684
        %v2928 = vpop.permute.xlu0 %2927
        %2930 = vset.pattern.permute.xlu0 3
        %2931 = vperm.xlu0 %2930, %v685
        %v2932 = vpop.permute.xlu0 %2931
        %2934 = vset.pattern.permute.xlu0 3
        %2935 = vperm.xlu0 %2934, %v686
        %v2936 = vpop.permute.xlu0 %2935
        %2938 = vset.pattern.permute.xlu0 3
        %2939 = vperm.xlu0 %2938, %v687
        %v2940 = vpop.permute.xlu0 %2939
        %2942 = vset.pattern.permute.xlu0 3
        %2943 = vperm.xlu0 %2942, %v688
        %v2944 = vpop.permute.xlu0 %2943
        %2946 = vset.pattern.permute.xlu0 3
        %2947 = vperm.xlu0 %2946, %v689
        %v2948 = vpop.permute.xlu0 %2947
        %v2950 = vmul.f32 %v2884, %v2888
        %v2951 = vmul.f32 %v2883, %v2892
        %v2952 = vmul.f32 %v2882, %v2896
        %v2953 = vmul.f32 %v2881, %v2900
        %v2954 = vmul.f32 %v2880, %v2904
        %v2955 = vmul.f32 %v2879, %v2908
        %v2956 = vmul.f32 %v2878, %v2912
        %v2957 = vmul.f32 %v2877, %v2916
        %v2958 = vmul.f32 %v2876, %v2920
        %v2959 = vmul.f32 %v2875, %v2924
        %v2960 = vmul.f32 %v2874, %v2928
        %v2961 = vmul.f32 %v2873, %v2932
        %v2962 = vmul.f32 %v2872, %v2936
        %v2963 = vmul.f32 %v2871, %v2940
        %v2964 = vmul.f32 %v2870, %v2944
        %v2965 = vmul.f32 %v2885, %v2948
        %2982 = vrot.lane.b32.xlu0 %v2712, 32
        %v2983 = vpop.permute.xlu0 %2982
        %2984 = vrot.lane.b32.xlu0 %v2713, 32
        %v2985 = vpop.permute.xlu0 %2984
        %2986 = vrot.lane.b32.xlu0 %v2714, 32
        %v2987 = vpop.permute.xlu0 %2986
        %2988 = vrot.lane.b32.xlu0 %v2715, 32
        %v2989 = vpop.permute.xlu0 %2988
        %2990 = vrot.lane.b32.xlu0 %v2716, 32
        %v2991 = vpop.permute.xlu0 %2990
        %2992 = vrot.lane.b32.xlu0 %v2717, 32
        %v2993 = vpop.permute.xlu0 %2992
        %2994 = vrot.lane.b32.xlu0 %v2718, 32
        %v2995 = vpop.permute.xlu0 %2994
        %2996 = vrot.lane.b32.xlu0 %v2719, 32
        %v2997 = vpop.permute.xlu0 %2996
        %2998 = vrot.lane.b32.xlu0 %v2720, 32
        %v2999 = vpop.permute.xlu0 %2998
        %3000 = vrot.lane.b32.xlu0 %v2721, 32
        %v3001 = vpop.permute.xlu0 %3000
        %3002 = vrot.lane.b32.xlu0 %v2722, 32
        %v3003 = vpop.permute.xlu0 %3002
        %3004 = vrot.lane.b32.xlu0 %v2723, 32
        %v3005 = vpop.permute.xlu0 %3004
        %3006 = vrot.lane.b32.xlu0 %v2724, 32
        %v3007 = vpop.permute.xlu0 %3006
        %3008 = vrot.lane.b32.xlu0 %v2725, 32
        %v3009 = vpop.permute.xlu0 %3008
        %3010 = vrot.lane.b32.xlu0 %v2726, 32
        %v3011 = vpop.permute.xlu0 %3010
        %3012 = vrot.lane.b32.xlu0 %v2727, 32
        %v3013 = vpop.permute.xlu0 %3012
        %3046 = vrot.lane.b32.xlu0 %v2950, 64
        %v3047 = vpop.permute.xlu0 %3046
        %3048 = vrot.lane.b32.xlu0 %v2951, 64
        %v3049 = vpop.permute.xlu0 %3048
        %3050 = vrot.lane.b32.xlu0 %v2952, 64
        %v3051 = vpop.permute.xlu0 %3050
        %3052 = vrot.lane.b32.xlu0 %v2953, 64
        %v3053 = vpop.permute.xlu0 %3052
        %3054 = vrot.lane.b32.xlu0 %v2954, 64
        %v3055 = vpop.permute.xlu0 %3054
        %3056 = vrot.lane.b32.xlu0 %v2955, 64
        %v3057 = vpop.permute.xlu0 %3056
        %3058 = vrot.lane.b32.xlu0 %v2956, 64
        %v3059 = vpop.permute.xlu0 %3058
        %3060 = vrot.lane.b32.xlu0 %v2957, 64
        %v3061 = vpop.permute.xlu0 %3060
        %3062 = vrot.lane.b32.xlu0 %v2958, 64
        %v3063 = vpop.permute.xlu0 %3062
        %3064 = vrot.lane.b32.xlu0 %v2959, 64
        %v3065 = vpop.permute.xlu0 %3064
        %3066 = vrot.lane.b32.xlu0 %v2960, 64
        %v3067 = vpop.permute.xlu0 %3066
        %3068 = vrot.lane.b32.xlu0 %v2961, 64
        %v3069 = vpop.permute.xlu0 %3068
        %3070 = vrot.lane.b32.xlu0 %v2962, 64
        %v3071 = vpop.permute.xlu0 %3070
        %3072 = vrot.lane.b32.xlu0 %v2963, 64
        %v3073 = vpop.permute.xlu0 %3072
        %3074 = vrot.lane.b32.xlu0 %v2964, 64
        %v3075 = vpop.permute.xlu0 %3074
        %3076 = vrot.lane.b32.xlu0 %v2965, 64
        %v3077 = vpop.permute.xlu0 %3076
        %v3094 = vsel %vm1479, %v2837, %v2983
        %v3095 = vsel %vm1479, %v2838, %v2985
        %v3096 = vsel %vm1479, %v2839, %v2987
        %v3097 = vsel %vm1479, %v2840, %v2989
        %v3098 = vsel %vm1479, %v2841, %v2991
        %v3099 = vsel %vm1479, %v2842, %v2993
        %v3100 = vsel %vm1479, %v2843, %v2995
        %v3101 = vsel %vm1479, %v2844, %v2997
        %v3102 = vsel %vm1479, %v2845, %v2999
        %v3103 = vsel %vm1479, %v2846, %v3001
        %v3104 = vsel %vm1479, %v2847, %v3003
        %v3105 = vsel %vm1479, %v2848, %v3005
        %v3106 = vsel %vm1479, %v2849, %v3007
        %v3107 = vsel %vm1479, %v2850, %v3009
        %v3108 = vsel %vm1479, %v2851, %v3011
        %v3109 = vsel %vm1479, %v2852, %v3013
        %v3110 = vsel %vm735, %v3094, %v3047
        %v3111 = vsel %vm735, %v3095, %v3049
        %v3112 = vsel %vm735, %v3096, %v3051
        %v3113 = vsel %vm735, %v3097, %v3053
        %v3114 = vsel %vm735, %v3098, %v3055
        %v3115 = vsel %vm735, %v3099, %v3057
        %v3116 = vsel %vm735, %v3100, %v3059
        %v3117 = vsel %vm735, %v3101, %v3061
        %v3118 = vsel %vm735, %v3102, %v3063
        %v3119 = vsel %vm735, %v3103, %v3065
        %v3120 = vsel %vm735, %v3104, %v3067
        %v3121 = vsel %vm735, %v3105, %v3069
        %v3122 = vsel %vm735, %v3106, %v3071
        %v3123 = vsel %vm735, %v3107, %v3073
        %v3124 = vsel %vm735, %v3108, %v3075
        %v3125 = vsel %vm735, %v3109, %v3077
        %v3126 = vpack.c.bf16 %v3111, %v3110
        %v3127 = vpack.c.bf16 %v3113, %v3112
        %v3128 = vpack.c.bf16 %v3115, %v3114
        %v3129 = vpack.c.bf16 %v3117, %v3116
        %v3130 = vpack.c.bf16 %v3119, %v3118
        %v3131 = vpack.c.bf16 %v3121, %v3120
        %v3132 = vpack.c.bf16 %v3123, %v3122
        %v3133 = vpack.c.bf16 %v3125, %v3124
        %v3134 = vlaneseq
        %v3135 = vshrl.u32 %v3134, 7
        %v3136 = vsub.s32 7, %v3135
        %v3137 = vrot.slane %v690, %v3136
        %v3150 = vunpack.c.l.b16 %v2728
        %v3151 = vunpack.c.l.b16 %v2729
        %v3152 = vunpack.c.l.b16 %v2730
        %v3153 = vunpack.c.l.b16 %v2731
        %v3154 = vunpack.c.l.b16 %v2732
        %v3155 = vunpack.c.l.b16 %v2733
        %v3156 = vunpack.c.l.b16 %v2734
        %v3157 = vunpack.c.l.b16 %v2735
        %v3158 = vunpack.c.l.b16 %v2736
        %v3159 = vunpack.c.l.b16 %v2737
        %v3160 = vunpack.c.l.b16 %v2738
        %v3161 = vunpack.c.l.b16 %v2739
        %v3162 = vpack.c.b16 %v3151, %v3150
        %v3163 = vpack.c.b16 %v3153, %v3152
        %v3164 = vpack.c.b16 %v3155, %v3154
        %v3165 = vpack.c.b16 %v3157, %v3156
        %v3166 = vpack.c.b16 %v3159, %v3158
        %v3167 = vpack.c.b16 %v3161, %v3160
        %v3175 = vsel %vm1560, %v3126, 0
        %v3178 = vsel %vm1560, %v3127, 0
        %v3181 = vsel %vm1560, %v3128, 0
        %v3184 = vsel %vm1560, %v3129, 0
        %v3187 = vsel %vm1560, %v3130, 0
        %v3190 = vsel %vm1560, %v3131, 0
        %v3193 = vsel %vm1560, %v3132, 0
        %v3196 = vsel %vm1560, %v3133, 0
        %3198 = vmatprep.subr.bf16.mxu0 0
        %3199 = vmatpush1.bf16.msra.mxu0 %v3162
        %3200 = vmatprep.subr.bf16.mxu0 0
        %3201 = vmatpush1.bf16.msra.mxu0 %v3163
        %3202 = vmatprep.subr.bf16.mxu0 0
        %3203 = vmatpush1.bf16.msra.mxu0 %v3164
        %3204 = vmatprep.subr.bf16.mxu0 0
        %3205 = vmatpush1.bf16.msra.mxu0 %v3165
        %3206 = vmatprep.subr.bf16.mxu0 0
        %3207 = vmatpush1.bf16.msra.mxu0 %v3166
        %3208 = vmatprep.subr.bf16.mxu0 0
        %3209 = vmatpush1.bf16.msra.mxu0 %v3167
        %3210 = vmatprep.subr.bf16.mxu0 0
        %3211 = vmatpush1.bf16.msra.mxu0 0
        %3212 = vmatprep.subr.bf16.mxu0 0
        %3213 = vmatpush1.bf16.msra.mxu0 0
        %3214 = vmatprep.subr.bf16.mxu0 0
        %3215 = vmatpush1.bf16.msra.mxu0 0
        %3216 = vmatprep.subr.bf16.mxu0 0
        %3217 = vmatpush1.bf16.msra.mxu0 0
        %3218 = vmatprep.subr.bf16.mxu0 0
        %3219 = vmatpush1.bf16.msra.mxu0 0
        %3220 = vmatprep.subr.bf16.mxu0 0
        %3221 = vmatpush1.bf16.msra.mxu0 0
        %3222 = vmatprep.subr.bf16.mxu0 0
        %3223 = vmatpush1.bf16.msra.mxu0 0
        %3224 = vmatprep.subr.bf16.mxu0 0
        %3225 = vmatpush1.bf16.msra.mxu0 0
        %3226 = vmatprep.subr.bf16.mxu0 0
        %3227 = vmatpush1.bf16.msra.mxu0 0
        %3228 = vmatprep.subr.bf16.mxu0 0
        %3229 = vmatpush1.bf16.msra.mxu0 0
        %3230 = vmatprep.mubr.bf16.mxu0 0
        %3231 = vmatmul.mubr.bf16.gmra.mrb[0].mxu0 %v3175
        %v3232 = vpop.f32.mrb[0].mxu0
        %v3233 = vadd.f32 %v3137, %v3232
        %v3234 = vpop.f32.mrb[0].mxu0
        %v3235 = vpop.f32.mrb[0].mxu0
        %v3236 = vadd.f32 %v3137, %v3235
        %v3237 = vpop.f32.mrb[0].mxu0
        %3238 = vmatprep.mubr.bf16.mxu0 0
        %3239 = vmatmul.mubr.bf16.gmra.mrb[0].mxu0 %v3178
        %v3240 = vpop.f32.mrb[0].mxu0
        %v3241 = vadd.f32 %v3137, %v3240
        %v3242 = vpop.f32.mrb[0].mxu0
        %v3243 = vpop.f32.mrb[0].mxu0
        %v3244 = vadd.f32 %v3137, %v3243
        %v3245 = vpop.f32.mrb[0].mxu0
        %3246 = vmatprep.mubr.bf16.mxu0 0
        %3247 = vmatmul.mubr.bf16.gmra.mrb[0].mxu0 %v3181
        %v3248 = vpop.f32.mrb[0].mxu0
        %v3249 = vadd.f32 %v3137, %v3248
        %v3250 = vpop.f32.mrb[0].mxu0
        %v3251 = vpop.f32.mrb[0].mxu0
        %v3252 = vadd.f32 %v3137, %v3251
        %v3253 = vpop.f32.mrb[0].mxu0
        %3254 = vmatprep.mubr.bf16.mxu0 0
        %3255 = vmatmul.mubr.bf16.gmra.mrb[0].mxu0 %v3184
        %v3256 = vpop.f32.mrb[0].mxu0
        %v3257 = vadd.f32 %v3137, %v3256
        %v3258 = vpop.f32.mrb[0].mxu0
        %v3259 = vpop.f32.mrb[0].mxu0
        %v3260 = vadd.f32 %v3137, %v3259
        %v3261 = vpop.f32.mrb[0].mxu0
        %3262 = vmatprep.mubr.bf16.mxu0 0
        %3263 = vmatmul.mubr.bf16.gmra.mrb[0].mxu0 %v3187
        %v3264 = vpop.f32.mrb[0].mxu0
        %v3265 = vadd.f32 %v3137, %v3264
        %v3266 = vpop.f32.mrb[0].mxu0
        %v3267 = vpop.f32.mrb[0].mxu0
        %v3268 = vadd.f32 %v3137, %v3267
        %v3269 = vpop.f32.mrb[0].mxu0
        %3270 = vmatprep.mubr.bf16.mxu0 0
        %3271 = vmatmul.mubr.bf16.gmra.mrb[0].mxu0 %v3190
        %v3272 = vpop.f32.mrb[0].mxu0
        %v3273 = vadd.f32 %v3137, %v3272
        %v3274 = vpop.f32.mrb[0].mxu0
        %v3275 = vpop.f32.mrb[0].mxu0
        %v3276 = vadd.f32 %v3137, %v3275
        %v3277 = vpop.f32.mrb[0].mxu0
        %3278 = vmatprep.mubr.bf16.mxu0 0
        %3279 = vmatmul.mubr.bf16.gmra.mrb[0].mxu0 %v3193
        %v3280 = vpop.f32.mrb[0].mxu0
        %v3281 = vadd.f32 %v3137, %v3280
        %v3282 = vpop.f32.mrb[0].mxu0
        %v3283 = vpop.f32.mrb[0].mxu0
        %v3284 = vadd.f32 %v3137, %v3283
        %v3285 = vpop.f32.mrb[0].mxu0
        %3286 = vmatprep.mubr.bf16.mxu0 0
        %3287 = vmatmul.mubr.bf16.gmra.mrb[0].mxu0 %v3196
        %v3288 = vpop.f32.mrb[0].mxu0
        %v3289 = vadd.f32 %v3137, %v3288
        %v3290 = vpop.f32.mrb[0].mxu0
        %v3291 = vpop.f32.mrb[0].mxu0
        %v3292 = vadd.f32 %v3137, %v3291
        %v3293 = vpop.f32.mrb[0].mxu0
        %3294 = vdwg.mxu0
        %v3295 = vld [vmem:[%s10] sm:$0xf]
        %v3296 = vld [vmem:[%s10 + $0x4] sm:$0xf]
        %v3297 = vld [vmem:[%s10 + $0x8] sm:$0xf]
        %v3298 = vld [vmem:[%s10 + $0xc] sm:$0xf]
        %v3299 = vpack.c.bf16 %v2224, %v2223
        %v3300 = vpack.c.bf16 %v2226, %v2225
        %v3301 = vpack.c.bf16 %v2228, %v2227
        %v3302 = vpack.c.bf16 %v2230, %v2229
        %v3303 = vpack.c.bf16 %v2232, %v2231
        %v3304 = vpack.c.bf16 %v2234, %v2233
        %v3305 = vpack.c.bf16 %v2236, %v2235
        %v3306 = vpack.c.bf16 %v2238, %v2237
        %v3307 = vlaneseq
        %v3308 = vshrl.u32 %v3307, 7
        %v3309 = vsub.s32 1, %v3308
        %v3310 = vrot.slane %v691, %v3309
        %v3315 = vunpack.c.l.b16 %v3295
        %v3316 = vunpack.c.l.b16 %v3296
        %v3317 = vunpack.c.l.b16 %v3297
        %v3318 = vunpack.c.l.b16 %v3298
        %v3319 = vpack.c.b16 %v3316, %v3315
        %v3320 = vpack.c.b16 %v3318, %v3317
        %v3324 = vsel %vm1479, %v3299, 0
        %v3327 = vsel %vm1479, %v3300, 0
        %v3330 = vsel %vm1479, %v3301, 0
        %v3333 = vsel %vm1479, %v3302, 0
        %v3336 = vsel %vm1479, %v3303, 0
        %v3339 = vsel %vm1479, %v3304, 0
        %v3342 = vsel %vm1479, %v3305, 0
        %v3345 = vsel %vm1479, %v3306, 0
        %3347 = vmatprep.subr.bf16.mxu0 0
        %3348 = vmatpush1.bf16.msra.mxu0 %v3319
        %3349 = vmatprep.subr.bf16.mxu0 0
        %3350 = vmatpush1.bf16.msra.mxu0 %v3320
        %3351 = vmatprep.subr.bf16.mxu0 0
        %3352 = vmatpush1.bf16.msra.mxu0 0
        %3353 = vmatprep.subr.bf16.mxu0 0
        %3354 = vmatpush1.bf16.msra.mxu0 0
        %3355 = vmatprep.subr.bf16.mxu0 0
        %3356 = vmatpush1.bf16.msra.mxu0 0
        %3357 = vmatprep.subr.bf16.mxu0 0
        %3358 = vmatpush1.bf16.msra.mxu0 0
        %3359 = vmatprep.subr.bf16.mxu0 0
        %3360 = vmatpush1.bf16.msra.mxu0 0
        %3361 = vmatprep.subr.bf16.mxu0 0
        %3362 = vmatpush1.bf16.msra.mxu0 0
        %3363 = vmatprep.subr.bf16.mxu0 0
        %3364 = vmatpush1.bf16.msra.mxu0 0
        %3365 = vmatprep.subr.bf16.mxu0 0
        %3366 = vmatpush1.bf16.msra.mxu0 0
        %3367 = vmatprep.subr.bf16.mxu0 0
        %3368 = vmatpush1.bf16.msra.mxu0 0
        %3369 = vmatprep.subr.bf16.mxu0 0
        %3370 = vmatpush1.bf16.msra.mxu0 0
        %3371 = vmatprep.subr.bf16.mxu0 0
        %3372 = vmatpush1.bf16.msra.mxu0 0
        %3373 = vmatprep.subr.bf16.mxu0 0
        %3374 = vmatpush1.bf16.msra.mxu0 0
        %3375 = vmatprep.subr.bf16.mxu0 0
        %3376 = vmatpush1.bf16.msra.mxu0 0
        %3377 = vmatprep.subr.bf16.mxu0 0
        %3378 = vmatpush1.bf16.msra.mxu0 0
        %3379 = vmatprep.mubr.bf16.mxu0 0
        %3380 = vmatmul.mubr.bf16.gmra.mrb[0].mxu0 %v3324
        %v3381 = vpop.f32.mrb[0].mxu0
        %v3382 = vadd.f32 %v3310, %v3381
        %v3383 = vpop.f32.mrb[0].mxu0
        %v3384 = vpop.f32.mrb[0].mxu0
        %v3385 = vadd.f32 %v3310, %v3384
        %v3386 = vpop.f32.mrb[0].mxu0
        %3387 = vmatprep.mubr.bf16.mxu0 0
        %3388 = vmatmul.mubr.bf16.gmra.mrb[0].mxu0 %v3327
        %v3389 = vpop.f32.mrb[0].mxu0
        %v3390 = vadd.f32 %v3310, %v3389
        %v3391 = vpop.f32.mrb[0].mxu0
        %v3392 = vpop.f32.mrb[0].mxu0
        %v3393 = vadd.f32 %v3310, %v3392
        %v3394 = vpop.f32.mrb[0].mxu0
        %3395 = vmatprep.mubr.bf16.mxu0 0
        %3396 = vmatmul.mubr.bf16.gmra.mrb[0].mxu0 %v3330
        %v3397 = vpop.f32.mrb[0].mxu0
        %v3398 = vadd.f32 %v3310, %v3397
        %v3399 = vpop.f32.mrb[0].mxu0
        %v3400 = vpop.f32.mrb[0].mxu0
        %v3401 = vadd.f32 %v3310, %v3400
        %v3402 = vpop.f32.mrb[0].mxu0
        %3403 = vmatprep.mubr.bf16.mxu0 0
        %3404 = vmatmul.mubr.bf16.gmra.mrb[0].mxu0 %v3333
        %v3405 = vpop.f32.mrb[0].mxu0
        %v3406 = vadd.f32 %v3310, %v3405
        %v3407 = vpop.f32.mrb[0].mxu0
        %v3408 = vpop.f32.mrb[0].mxu0
        %v3409 = vadd.f32 %v3310, %v3408
        %v3410 = vpop.f32.mrb[0].mxu0
        %3411 = vmatprep.mubr.bf16.mxu0 0
        %3412 = vmatmul.mubr.bf16.gmra.mrb[0].mxu0 %v3336
        %v3413 = vpop.f32.mrb[0].mxu0
        %v3414 = vadd.f32 %v3310, %v3413
        %v3415 = vpop.f32.mrb[0].mxu0
        %v3416 = vpop.f32.mrb[0].mxu0
        %v3417 = vadd.f32 %v3310, %v3416
        %v3418 = vpop.f32.mrb[0].mxu0
        %3419 = vmatprep.mubr.bf16.mxu0 0
        %3420 = vmatmul.mubr.bf16.gmra.mrb[0].mxu0 %v3339
        %v3421 = vpop.f32.mrb[0].mxu0
        %v3422 = vadd.f32 %v3310, %v3421
        %v3423 = vpop.f32.mrb[0].mxu0
        %v3424 = vpop.f32.mrb[0].mxu0
        %v3425 = vadd.f32 %v3310, %v3424
        %v3426 = vpop.f32.mrb[0].mxu0
        %3427 = vmatprep.mubr.bf16.mxu0 0
        %3428 = vmatmul.mubr.bf16.gmra.mrb[0].mxu0 %v3342
        %v3429 = vpop.f32.mrb[0].mxu0
        %v3430 = vadd.f32 %v3310, %v3429
        %v3431 = vpop.f32.mrb[0].mxu0
        %v3432 = vpop.f32.mrb[0].mxu0
        %v3433 = vadd.f32 %v3310, %v3432
        %v3434 = vpop.f32.mrb[0].mxu0
        %3435 = vmatprep.mubr.bf16.mxu0 0
        %3436 = vmatmul.mubr.bf16.gmra.mrb[0].mxu0 %v3345
        %v3437 = vpop.f32.mrb[0].mxu0
        %v3438 = vadd.f32 %v3310, %v3437
        %v3439 = vpop.f32.mrb[0].mxu0
        %v3440 = vpop.f32.mrb[0].mxu0
        %v3441 = vadd.f32 %v3310, %v3440
        %v3442 = vpop.f32.mrb[0].mxu0
        %3443 = vdwg.mxu0
        %v3444 = vadd.f32 %v3233, %v3382
        %v3445 = vadd.f32 %v3236, %v3385
        %v3446 = vadd.f32 %v3241, %v3390
        %v3447 = vadd.f32 %v3244, %v3393
        %v3448 = vadd.f32 %v3249, %v3398
        %v3449 = vadd.f32 %v3252, %v3401
        %v3450 = vadd.f32 %v3257, %v3406
        %v3451 = vadd.f32 %v3260, %v3409
        %v3452 = vadd.f32 %v3265, %v3414
        %v3453 = vadd.f32 %v3268, %v3417
        %v3454 = vadd.f32 %v3273, %v3422
        %v3455 = vadd.f32 %v3276, %v3425
        %v3456 = vadd.f32 %v3281, %v3430
        %v3457 = vadd.f32 %v3284, %v3433
        %v3458 = vadd.f32 %v3289, %v3438
        %v3459 = vadd.f32 %v3292, %v3441
        %vm3460 = vcmp.gt.f32.partialorder %v3444, 0.0
        %vm3461 = vcmp.gt.f32.partialorder %v3445, 0.0
        %vm3462 = vcmp.gt.f32.partialorder %v3446, 0.0
        %vm3463 = vcmp.gt.f32.partialorder %v3447, 0.0
        %vm3464 = vcmp.gt.f32.partialorder %v3448, 0.0
        %vm3465 = vcmp.gt.f32.partialorder %v3449, 0.0
        %vm3466 = vcmp.gt.f32.partialorder %v3450, 0.0
        %vm3467 = vcmp.gt.f32.partialorder %v3451, 0.0
        %vm3468 = vcmp.gt.f32.partialorder %v3452, 0.0
        %vm3469 = vcmp.gt.f32.partialorder %v3453, 0.0
        %vm3470 = vcmp.gt.f32.partialorder %v3454, 0.0
        %vm3471 = vcmp.gt.f32.partialorder %v3455, 0.0
        %vm3472 = vcmp.gt.f32.partialorder %v3456, 0.0
        %vm3473 = vcmp.gt.f32.partialorder %v3457, 0.0
        %vm3474 = vcmp.gt.f32.partialorder %v3458, 0.0
        %vm3475 = vcmp.gt.f32.partialorder %v3459, 0.0
        %v3476 = vlaneseq
        %v3477 = vshrl.u32 %v3476, 7
        %v3478 = vsub.s32 0, %v3477
        %v3479 = vrot.slane %v691, %v3478
        %v3480 = vmul.f32 %v3479, %v3444
        %v3481 = vmul.f32 %v3479, %v3445
        %v3482 = vmul.f32 %v3479, %v3446
        %v3483 = vmul.f32 %v3479, %v3447
        %v3484 = vmul.f32 %v3479, %v3448
        %v3485 = vmul.f32 %v3479, %v3449
        %v3486 = vmul.f32 %v3479, %v3450
        %v3487 = vmul.f32 %v3479, %v3451
        %v3488 = vmul.f32 %v3479, %v3452
        %v3489 = vmul.f32 %v3479, %v3453
        %v3490 = vmul.f32 %v3479, %v3454
        %v3491 = vmul.f32 %v3479, %v3455
        %v3492 = vmul.f32 %v3479, %v3456
        %v3493 = vmul.f32 %v3479, %v3457
        %v3494 = vmul.f32 %v3479, %v3458
        %v3495 = vmul.f32 %v3479, %v3459
        %v3496 = vsel %vm3460, %v3444, %v3480
        %v3497 = vsel %vm3461, %v3445, %v3481
        %v3498 = vsel %vm3462, %v3446, %v3482
        %v3499 = vsel %vm3463, %v3447, %v3483
        %v3500 = vsel %vm3464, %v3448, %v3484
        %v3501 = vsel %vm3465, %v3449, %v3485
        %v3502 = vsel %vm3466, %v3450, %v3486
        %v3503 = vsel %vm3467, %v3451, %v3487
        %v3504 = vsel %vm3468, %v3452, %v3488
        %v3505 = vsel %vm3469, %v3453, %v3489
        %v3506 = vsel %vm3470, %v3454, %v3490
        %v3507 = vsel %vm3471, %v3455, %v3491
        %v3508 = vsel %vm3472, %v3456, %v3492
        %v3509 = vsel %vm3473, %v3457, %v3493
        %v3510 = vsel %vm3474, %v3458, %v3494
        %v3511 = vsel %vm3475, %v3459, %v3495
        %v3512 = vld [vmem:[%s11] sm:$0xf]
        %v3513 = vld [vmem:[%s11 + $0x4] sm:$0xf]
        %v3514 = vld [vmem:[%s11 + $0x8] sm:$0xf]
        %v3515 = vld [vmem:[%s11 + $0xc] sm:$0xf]
        %v3516 = vld [vmem:[%s11 + $0x10] sm:$0xf]
        %v3517 = vld [vmem:[%s11 + $0x14] sm:$0xf]
        %v3518 = vld [vmem:[%s11 + $0x18] sm:$0xf]
        %v3519 = vld [vmem:[%s11 + $0x1c] sm:$0xf]
        %v3520 = vld [vmem:[%s11 + $0x20] sm:$0xf]
        %v3521 = vld [vmem:[%s11 + $0x24] sm:$0xf]
        %v3522 = vld [vmem:[%s11 + $0x28] sm:$0xf]
        %v3523 = vld [vmem:[%s11 + $0x2c] sm:$0xf]
        %v3524 = vrot.slane %v3496, 6
        %v3525 = vrot.slane %v3497, 6
        %v3526 = vrot.slane %v3498, 6
        %v3527 = vrot.slane %v3499, 6
        %v3528 = vrot.slane %v3500, 6
        %v3529 = vrot.slane %v3501, 6
        %v3530 = vrot.slane %v3502, 6
        %v3531 = vrot.slane %v3503, 6
        %v3532 = vrot.slane %v3504, 6
        %v3533 = vrot.slane %v3505, 6
        %v3534 = vrot.slane %v3506, 6
        %v3535 = vrot.slane %v3507, 6
        %v3536 = vrot.slane %v3508, 6
        %v3537 = vrot.slane %v3509, 6
        %v3538 = vrot.slane %v3510, 6
        %v3539 = vrot.slane %v3511, 6
        %v3540 = vsel %vm2756, %v3538, %v3539
        %v3541 = vsel %vm2756, %v3537, %v3538
        %v3542 = vsel %vm2756, %v3536, %v3537
        %v3543 = vsel %vm2756, %v3535, %v3536
        %v3544 = vsel %vm2756, %v3534, %v3535
        %v3545 = vsel %vm2756, %v3533, %v3534
        %v3546 = vsel %vm2756, %v3532, %v3533
        %v3547 = vsel %vm2756, %v3531, %v3532
        %v3548 = vsel %vm2756, %v3530, %v3531
        %v3549 = vsel %vm2756, %v3529, %v3530
        %v3550 = vsel %vm2756, %v3528, %v3529
        %v3551 = vsel %vm2756, %v3527, %v3528
        %v3552 = vsel %vm2756, %v3526, %v3527
        %v3553 = vsel %vm2756, %v3525, %v3526
        %v3554 = vsel %vm2756, %v3524, %v3525
        %v3555 = vsel %vm2756, %v3539, %v3524
        %v3556 = vmul.f32 %v3555, %v2775
        %v3557 = vmul.f32 %v3554, %v2779
        %v3558 = vmul.f32 %v3553, %v2783
        %v3559 = vmul.f32 %v3552, %v2787
        %v3560 = vmul.f32 %v3551, %v2791
        %v3561 = vmul.f32 %v3550, %v2795
        %v3562 = vmul.f32 %v3549, %v2799
        %v3563 = vmul.f32 %v3548, %v2803
        %v3564 = vmul.f32 %v3547, %v2807
        %v3565 = vmul.f32 %v3546, %v2811
        %v3566 = vmul.f32 %v3545, %v2815
        %v3567 = vmul.f32 %v3544, %v2819
        %v3568 = vmul.f32 %v3543, %v2823
        %v3569 = vmul.f32 %v3542, %v2827
        %v3570 = vmul.f32 %v3541, %v2831
        %v3571 = vmul.f32 %v3540, %v2835
        %v3572 = vrot.slane %v3496, 2
        %v3573 = vrot.slane %v3497, 2
        %v3574 = vrot.slane %v3498, 2
        %v3575 = vrot.slane %v3499, 2
        %v3576 = vrot.slane %v3500, 2
        %v3577 = vrot.slane %v3501, 2
        %v3578 = vrot.slane %v3502, 2
        %v3579 = vrot.slane %v3503, 2
        %v3580 = vrot.slane %v3504, 2
        %v3581 = vrot.slane %v3505, 2
        %v3582 = vrot.slane %v3506, 2
        %v3583 = vrot.slane %v3507, 2
        %v3584 = vrot.slane %v3508, 2
        %v3585 = vrot.slane %v3509, 2
        %v3586 = vrot.slane %v3510, 2
        %v3587 = vrot.slane %v3511, 2
        %v3588 = vsel %vm2869, %v3586, %v3587
        %v3589 = vsel %vm2869, %v3585, %v3586
        %v3590 = vsel %vm2869, %v3584, %v3585
        %v3591 = vsel %vm2869, %v3583, %v3584
        %v3592 = vsel %vm2869, %v3582, %v3583
        %v3593 = vsel %vm2869, %v3581, %v3582
        %v3594 = vsel %vm2869, %v3580, %v3581
        %v3595 = vsel %vm2869, %v3579, %v3580
        %v3596 = vsel %vm2869, %v3578, %v3579
        %v3597 = vsel %vm2869, %v3577, %v3578
        %v3598 = vsel %vm2869, %v3576, %v3577
        %v3599 = vsel %vm2869, %v3575, %v3576
        %v3600 = vsel %vm2869, %v3574, %v3575
        %v3601 = vsel %vm2869, %v3573, %v3574
        %v3602 = vsel %vm2869, %v3572, %v3573
        %v3603 = vsel %vm2869, %v3587, %v3572
        %v3604 = vmul.f32 %v3602, %v2888
        %v3605 = vmul.f32 %v3601, %v2892
        %v3606 = vmul.f32 %v3600, %v2896
        %v3607 = vmul.f32 %v3599, %v2900
        %v3608 = vmul.f32 %v3598, %v2904
        %v3609 = vmul.f32 %v3597, %v2908
        %v3610 = vmul.f32 %v3596, %v2912
        %v3611 = vmul.f32 %v3595, %v2916
        %v3612 = vmul.f32 %v3594, %v2920
        %v3613 = vmul.f32 %v3593, %v2924
        %v3614 = vmul.f32 %v3592, %v2928
        %v3615 = vmul.f32 %v3591, %v2932
        %v3616 = vmul.f32 %v3590, %v2936
        %v3617 = vmul.f32 %v3589, %v2940
        %v3618 = vmul.f32 %v3588, %v2944
        %v3619 = vmul.f32 %v3603, %v2948
        %3636 = vrot.lane.b32.xlu0 %v3496, 32
        %v3637 = vpop.permute.xlu0 %3636
        %3638 = vrot.lane.b32.xlu0 %v3497, 32
        %v3639 = vpop.permute.xlu0 %3638
        %3640 = vrot.lane.b32.xlu0 %v3498, 32
        %v3641 = vpop.permute.xlu0 %3640
        %3642 = vrot.lane.b32.xlu0 %v3499, 32
        %v3643 = vpop.permute.xlu0 %3642
        %3644 = vrot.lane.b32.xlu0 %v3500, 32
        %v3645 = vpop.permute.xlu0 %3644
        %3646 = vrot.lane.b32.xlu0 %v3501, 32
        %v3647 = vpop.permute.xlu0 %3646
        %3648 = vrot.lane.b32.xlu0 %v3502, 32
        %v3649 = vpop.permute.xlu0 %3648
        %3650 = vrot.lane.b32.xlu0 %v3503, 32
        %v3651 = vpop.permute.xlu0 %3650
        %3652 = vrot.lane.b32.xlu0 %v3504, 32
        %v3653 = vpop.permute.xlu0 %3652
        %3654 = vrot.lane.b32.xlu0 %v3505, 32
        %v3655 = vpop.permute.xlu0 %3654
        %3656 = vrot.lane.b32.xlu0 %v3506, 32
        %v3657 = vpop.permute.xlu0 %3656
        %3658 = vrot.lane.b32.xlu0 %v3507, 32
        %v3659 = vpop.permute.xlu0 %3658
        %3660 = vrot.lane.b32.xlu0 %v3508, 32
        %v3661 = vpop.permute.xlu0 %3660
        %3662 = vrot.lane.b32.xlu0 %v3509, 32
        %v3663 = vpop.permute.xlu0 %3662
        %3664 = vrot.lane.b32.xlu0 %v3510, 32
        %v3665 = vpop.permute.xlu0 %3664
        %3666 = vrot.lane.b32.xlu0 %v3511, 32
        %v3667 = vpop.permute.xlu0 %3666
        %3700 = vrot.lane.b32.xlu0 %v3604, 64
        %v3701 = vpop.permute.xlu0 %3700
        %3702 = vrot.lane.b32.xlu0 %v3605, 64
        %v3703 = vpop.permute.xlu0 %3702
        %3704 = vrot.lane.b32.xlu0 %v3606, 64
        %v3705 = vpop.permute.xlu0 %3704
        %3706 = vrot.lane.b32.xlu0 %v3607, 64
        %v3707 = vpop.permute.xlu0 %3706
        %3708 = vrot.lane.b32.xlu0 %v3608, 64
        %v3709 = vpop.permute.xlu0 %3708
        %3710 = vrot.lane.b32.xlu0 %v3609, 64
        %v3711 = vpop.permute.xlu0 %3710
        %3712 = vrot.lane.b32.xlu0 %v3610, 64
        %v3713 = vpop.permute.xlu0 %3712
        %3714 = vrot.lane.b32.xlu0 %v3611, 64
        %v3715 = vpop.permute.xlu0 %3714
        %3716 = vrot.lane.b32.xlu0 %v3612, 64
        %v3717 = vpop.permute.xlu0 %3716
        %3718 = vrot.lane.b32.xlu0 %v3613, 64
        %v3719 = vpop.permute.xlu0 %3718
        %3720 = vrot.lane.b32.xlu0 %v3614, 64
        %v3721 = vpop.permute.xlu0 %3720
        %3722 = vrot.lane.b32.xlu0 %v3615, 64
        %v3723 = vpop.permute.xlu0 %3722
        %3724 = vrot.lane.b32.xlu0 %v3616, 64
        %v3725 = vpop.permute.xlu0 %3724
        %3726 = vrot.lane.b32.xlu0 %v3617, 64
        %v3727 = vpop.permute.xlu0 %3726
        %3728 = vrot.lane.b32.xlu0 %v3618, 64
        %v3729 = vpop.permute.xlu0 %3728
        %3730 = vrot.lane.b32.xlu0 %v3619, 64
        %v3731 = vpop.permute.xlu0 %3730
        %v3748 = vsel %vm1479, %v3556, %v3637
        %v3749 = vsel %vm1479, %v3557, %v3639
        %v3750 = vsel %vm1479, %v3558, %v3641
        %v3751 = vsel %vm1479, %v3559, %v3643
        %v3752 = vsel %vm1479, %v3560, %v3645
        %v3753 = vsel %vm1479, %v3561, %v3647
        %v3754 = vsel %vm1479, %v3562, %v3649
        %v3755 = vsel %vm1479, %v3563, %v3651
        %v3756 = vsel %vm1479, %v3564, %v3653
        %v3757 = vsel %vm1479, %v3565, %v3655
        %v3758 = vsel %vm1479, %v3566, %v3657
        %v3759 = vsel %vm1479, %v3567, %v3659
        %v3760 = vsel %vm1479, %v3568, %v3661
        %v3761 = vsel %vm1479, %v3569, %v3663
        %v3762 = vsel %vm1479, %v3570, %v3665
        %v3763 = vsel %vm1479, %v3571, %v3667
        %v3764 = vsel %vm735, %v3748, %v3701
        %v3765 = vsel %vm735, %v3749, %v3703
        %v3766 = vsel %vm735, %v3750, %v3705
        %v3767 = vsel %vm735, %v3751, %v3707
        %v3768 = vsel %vm735, %v3752, %v3709
        %v3769 = vsel %vm735, %v3753, %v3711
        %v3770 = vsel %vm735, %v3754, %v3713
        %v3771 = vsel %vm735, %v3755, %v3715
        %v3772 = vsel %vm735, %v3756, %v3717
        %v3773 = vsel %vm735, %v3757, %v3719
        %v3774 = vsel %vm735, %v3758, %v3721
        %v3775 = vsel %vm735, %v3759, %v3723
        %v3776 = vsel %vm735, %v3760, %v3725
        %v3777 = vsel %vm735, %v3761, %v3727
        %v3778 = vsel %vm735, %v3762, %v3729
        %v3779 = vsel %vm735, %v3763, %v3731
        %v3780 = vpack.c.bf16 %v3765, %v3764
        %v3781 = vpack.c.bf16 %v3767, %v3766
        %v3782 = vpack.c.bf16 %v3769, %v3768
        %v3783 = vpack.c.bf16 %v3771, %v3770
        %v3784 = vpack.c.bf16 %v3773, %v3772
        %v3785 = vpack.c.bf16 %v3775, %v3774
        %v3786 = vpack.c.bf16 %v3777, %v3776
        %v3787 = vpack.c.bf16 %v3779, %v3778
        %v3788 = vlaneseq
        %v3789 = vshrl.u32 %v3788, 7
        %v3790 = vsub.s32 2, %v3789
        %v3791 = vrot.slane %v691, %v3790
        %v3804 = vunpack.c.l.b16 %v3512
        %v3805 = vunpack.c.l.b16 %v3513
        %v3806 = vunpack.c.l.b16 %v3514
        %v3807 = vunpack.c.l.b16 %v3515
        %v3808 = vunpack.c.l.b16 %v3516
        %v3809 = vunpack.c.l.b16 %v3517
        %v3810 = vunpack.c.l.b16 %v3518
        %v3811 = vunpack.c.l.b16 %v3519
        %v3812 = vunpack.c.l.b16 %v3520
        %v3813 = vunpack.c.l.b16 %v3521
        %v3814 = vunpack.c.l.b16 %v3522
        %v3815 = vunpack.c.l.b16 %v3523
        %v3816 = vpack.c.b16 %v3805, %v3804
        %v3817 = vpack.c.b16 %v3807, %v3806
        %v3818 = vpack.c.b16 %v3809, %v3808
        %v3819 = vpack.c.b16 %v3811, %v3810
        %v3820 = vpack.c.b16 %v3813, %v3812
        %v3821 = vpack.c.b16 %v3815, %v3814
        %v3829 = vsel %vm1560, %v3780, 0
        %v3832 = vsel %vm1560, %v3781, 0
        %v3835 = vsel %vm1560, %v3782, 0
        %v3838 = vsel %vm1560, %v3783, 0
        %v3841 = vsel %vm1560, %v3784, 0
        %v3844 = vsel %vm1560, %v3785, 0
        %v3847 = vsel %vm1560, %v3786, 0
        %v3850 = vsel %vm1560, %v3787, 0
        %3852 = vmatprep.subr.bf16.mxu0 0
        %3853 = vmatpush1.bf16.msra.mxu0 %v3816
        %3854 = vmatprep.subr.bf16.mxu0 0
        %3855 = vmatpush1.bf16.msra.mxu0 %v3817
        %3856 = vmatprep.subr.bf16.mxu0 0
        %3857 = vmatpush1.bf16.msra.mxu0 %v3818
        %3858 = vmatprep.subr.bf16.mxu0 0
        %3859 = vmatpush1.bf16.msra.mxu0 %v3819
        %3860 = vmatprep.subr.bf16.mxu0 0
        %3861 = vmatpush1.bf16.msra.mxu0 %v3820
        %3862 = vmatprep.subr.bf16.mxu0 0
        %3863 = vmatpush1.bf16.msra.mxu0 %v3821
        %3864 = vmatprep.subr.bf16.mxu0 0
        %3865 = vmatpush1.bf16.msra.mxu0 0
        %3866 = vmatprep.subr.bf16.mxu0 0
        %3867 = vmatpush1.bf16.msra.mxu0 0
        %3868 = vmatprep.subr.bf16.mxu0 0
        %3869 = vmatpush1.bf16.msra.mxu0 0
        %3870 = vmatprep.subr.bf16.mxu0 0
        %3871 = vmatpush1.bf16.msra.mxu0 0
        %3872 = vmatprep.subr.bf16.mxu0 0
        %3873 = vmatpush1.bf16.msra.mxu0 0
        %3874 = vmatprep.subr.bf16.mxu0 0
        %3875 = vmatpush1.bf16.msra.mxu0 0
        %3876 = vmatprep.subr.bf16.mxu0 0
        %3877 = vmatpush1.bf16.msra.mxu0 0
        %3878 = vmatprep.subr.bf16.mxu0 0
        %3879 = vmatpush1.bf16.msra.mxu0 0
        %3880 = vmatprep.subr.bf16.mxu0 0
        %3881 = vmatpush1.bf16.msra.mxu0 0
        %3882 = vmatprep.subr.bf16.mxu0 0
        %3883 = vmatpush1.bf16.msra.mxu0 0
        %3884 = vmatprep.mubr.bf16.mxu0 0
        %3885 = vmatmul.mubr.bf16.gmra.mrb[0].mxu0 %v3829
        %v3886 = vpop.f32.mrb[0].mxu0
        %v3887 = vadd.f32 %v3791, %v3886
        %v3888 = vpop.f32.mrb[0].mxu0
        %v3889 = vpop.f32.mrb[0].mxu0
        %v3890 = vadd.f32 %v3791, %v3889
        %v3891 = vpop.f32.mrb[0].mxu0
        %3892 = vmatprep.mubr.bf16.mxu0 0
        %3893 = vmatmul.mubr.bf16.gmra.mrb[0].mxu0 %v3832
        %v3894 = vpop.f32.mrb[0].mxu0
        %v3895 = vadd.f32 %v3791, %v3894
        %v3896 = vpop.f32.mrb[0].mxu0
        %v3897 = vpop.f32.mrb[0].mxu0
        %v3898 = vadd.f32 %v3791, %v3897
        %v3899 = vpop.f32.mrb[0].mxu0
        %3900 = vmatprep.mubr.bf16.mxu0 0
        %3901 = vmatmul.mubr.bf16.gmra.mrb[0].mxu0 %v3835
        %v3902 = vpop.f32.mrb[0].mxu0
        %v3903 = vadd.f32 %v3791, %v3902
        %v3904 = vpop.f32.mrb[0].mxu0
        %v3905 = vpop.f32.mrb[0].mxu0
        %v3906 = vadd.f32 %v3791, %v3905
        %v3907 = vpop.f32.mrb[0].mxu0
        %3908 = vmatprep.mubr.bf16.mxu0 0
        %3909 = vmatmul.mubr.bf16.gmra.mrb[0].mxu0 %v3838
        %v3910 = vpop.f32.mrb[0].mxu0
        %v3911 = vadd.f32 %v3791, %v3910
        %v3912 = vpop.f32.mrb[0].mxu0
        %v3913 = vpop.f32.mrb[0].mxu0
        %v3914 = vadd.f32 %v3791, %v3913
        %v3915 = vpop.f32.mrb[0].mxu0
        %3916 = vmatprep.mubr.bf16.mxu0 0
        %3917 = vmatmul.mubr.bf16.gmra.mrb[0].mxu0 %v3841
        %v3918 = vpop.f32.mrb[0].mxu0
        %v3919 = vadd.f32 %v3791, %v3918
        %v3920 = vpop.f32.mrb[0].mxu0
        %v3921 = vpop.f32.mrb[0].mxu0
        %v3922 = vadd.f32 %v3791, %v3921
        %v3923 = vpop.f32.mrb[0].mxu0
        %3924 = vmatprep.mubr.bf16.mxu0 0
        %3925 = vmatmul.mubr.bf16.gmra.mrb[0].mxu0 %v3844
        %v3926 = vpop.f32.mrb[0].mxu0
        %v3927 = vadd.f32 %v3791, %v3926
        %v3928 = vpop.f32.mrb[0].mxu0
        %v3929 = vpop.f32.mrb[0].mxu0
        %v3930 = vadd.f32 %v3791, %v3929
        %v3931 = vpop.f32.mrb[0].mxu0
        %3932 = vmatprep.mubr.bf16.mxu0 0
        %3933 = vmatmul.mubr.bf16.gmra.mrb[0].mxu0 %v3847
        %v3934 = vpop.f32.mrb[0].mxu0
        %v3935 = vadd.f32 %v3791, %v3934
        %v3936 = vpop.f32.mrb[0].mxu0
        %v3937 = vpop.f32.mrb[0].mxu0
        %v3938 = vadd.f32 %v3791, %v3937
        %v3939 = vpop.f32.mrb[0].mxu0
        %3940 = vmatprep.mubr.bf16.mxu0 0
        %3941 = vmatmul.mubr.bf16.gmra.mrb[0].mxu0 %v3850
        %v3942 = vpop.f32.mrb[0].mxu0
        %v3943 = vadd.f32 %v3791, %v3942
        %v3944 = vpop.f32.mrb[0].mxu0
        %v3945 = vpop.f32.mrb[0].mxu0
        %v3946 = vadd.f32 %v3791, %v3945
        %v3947 = vpop.f32.mrb[0].mxu0
        %3948 = vdwg.mxu0
        %vm3949 = vcmp.gt.f32.partialorder %v3887, 0.0
        %vm3950 = vcmp.gt.f32.partialorder %v3890, 0.0
        %vm3951 = vcmp.gt.f32.partialorder %v3895, 0.0
        %vm3952 = vcmp.gt.f32.partialorder %v3898, 0.0
        %vm3953 = vcmp.gt.f32.partialorder %v3903, 0.0
        %vm3954 = vcmp.gt.f32.partialorder %v3906, 0.0
        %vm3955 = vcmp.gt.f32.partialorder %v3911, 0.0
        %vm3956 = vcmp.gt.f32.partialorder %v3914, 0.0
        %vm3957 = vcmp.gt.f32.partialorder %v3919, 0.0
        %vm3958 = vcmp.gt.f32.partialorder %v3922, 0.0
        %vm3959 = vcmp.gt.f32.partialorder %v3927, 0.0
        %vm3960 = vcmp.gt.f32.partialorder %v3930, 0.0
        %vm3961 = vcmp.gt.f32.partialorder %v3935, 0.0
        %vm3962 = vcmp.gt.f32.partialorder %v3938, 0.0
        %vm3963 = vcmp.gt.f32.partialorder %v3943, 0.0
        %vm3964 = vcmp.gt.f32.partialorder %v3946, 0.0
        %v3965 = vlaneseq
        %v3966 = vshrl.u32 %v3965, 7
        %v3967 = vsub.s32 3, %v3966
        %v3968 = vrot.slane %v691, %v3967
        %v3969 = vmul.f32 %v3968, %v3887
        %v3970 = vmul.f32 %v3968, %v3890
        %v3971 = vmul.f32 %v3968, %v3895
        %v3972 = vmul.f32 %v3968, %v3898
        %v3973 = vmul.f32 %v3968, %v3903
        %v3974 = vmul.f32 %v3968, %v3906
        %v3975 = vmul.f32 %v3968, %v3911
        %v3976 = vmul.f32 %v3968, %v3914
        %v3977 = vmul.f32 %v3968, %v3919
        %v3978 = vmul.f32 %v3968, %v3922
        %v3979 = vmul.f32 %v3968, %v3927
        %v3980 = vmul.f32 %v3968, %v3930
        %v3981 = vmul.f32 %v3968, %v3935
        %v3982 = vmul.f32 %v3968, %v3938
        %v3983 = vmul.f32 %v3968, %v3943
        %v3984 = vmul.f32 %v3968, %v3946
        %v3985 = vsel %vm3949, %v3887, %v3969
        %v3986 = vsel %vm3950, %v3890, %v3970
        %v3987 = vsel %vm3951, %v3895, %v3971
        %v3988 = vsel %vm3952, %v3898, %v3972
        %v3989 = vsel %vm3953, %v3903, %v3973
        %v3990 = vsel %vm3954, %v3906, %v3974
        %v3991 = vsel %vm3955, %v3911, %v3975
        %v3992 = vsel %vm3956, %v3914, %v3976
        %v3993 = vsel %vm3957, %v3919, %v3977
        %v3994 = vsel %vm3958, %v3922, %v3978
        %v3995 = vsel %vm3959, %v3927, %v3979
        %v3996 = vsel %vm3960, %v3930, %v3980
        %v3997 = vsel %vm3961, %v3935, %v3981
        %v3998 = vsel %vm3962, %v3938, %v3982
        %v3999 = vsel %vm3963, %v3943, %v3983
        %v4000 = vsel %vm3964, %v3946, %v3984
        %v4001 = vld [vmem:[%s12] sm:$0xf]
        %v4002 = vld [vmem:[%s12 + $0x4] sm:$0xf]
        %v4003 = vld [vmem:[%s12 + $0x8] sm:$0xf]
        %v4004 = vld [vmem:[%s12 + $0xc] sm:$0xf]
        %v4005 = vld [vmem:[%s12 + $0x10] sm:$0xf]
        %v4006 = vld [vmem:[%s12 + $0x14] sm:$0xf]
        %v4007 = vld [vmem:[%s12 + $0x18] sm:$0xf]
        %v4008 = vld [vmem:[%s12 + $0x1c] sm:$0xf]
        %v4009 = vld [vmem:[%s12 + $0x20] sm:$0xf]
        %v4010 = vld [vmem:[%s12 + $0x24] sm:$0xf]
        %v4011 = vld [vmem:[%s12 + $0x28] sm:$0xf]
        %v4012 = vld [vmem:[%s12 + $0x2c] sm:$0xf]
        %v4013 = vld [vmem:[%s12 + $0x30] sm:$0xf]
        %v4014 = vld [vmem:[%s12 + $0x34] sm:$0xf]
        %v4015 = vld [vmem:[%s12 + $0x38] sm:$0xf]
        %v4016 = vld [vmem:[%s12 + $0x3c] sm:$0xf]
        %v4017 = vld [vmem:[%s12 + $0x40] sm:$0xf]
        %v4018 = vld [vmem:[%s12 + $0x44] sm:$0xf]
        %v4019 = vld [vmem:[%s12 + $0x48] sm:$0xf]
        %v4020 = vld [vmem:[%s12 + $0x4c] sm:$0xf]
        %v4021 = vld [vmem:[%s12 + $0x50] sm:$0xf]
        %v4022 = vld [vmem:[%s12 + $0x54] sm:$0xf]
        %v4023 = vld [vmem:[%s12 + $0x58] sm:$0xf]
        %v4024 = vld [vmem:[%s12 + $0x5c] sm:$0xf]
        %v4025 = vrot.slane %v3985, 4
        %v4026 = vrot.slane %v3986, 4
        %v4027 = vrot.slane %v3987, 4
        %v4028 = vrot.slane %v3988, 4
        %v4029 = vrot.slane %v3989, 4
        %v4030 = vrot.slane %v3990, 4
        %v4031 = vrot.slane %v3991, 4
        %v4032 = vrot.slane %v3992, 4
        %v4033 = vrot.slane %v3993, 4
        %v4034 = vrot.slane %v3994, 4
        %v4035 = vrot.slane %v3995, 4
        %v4036 = vrot.slane %v3996, 4
        %v4037 = vrot.slane %v3997, 4
        %v4038 = vrot.slane %v3998, 4
        %v4039 = vrot.slane %v3999, 4
        %v4040 = vrot.slane %v4000, 4
        %vm4041 = vcmp.lt.s32.totalorder %v1124, 4
        %v4042 = vsel %vm4041, %v4039, %v4040
        %v4043 = vsel %vm4041, %v4038, %v4039
        %v4044 = vsel %vm4041, %v4037, %v4038
        %v4045 = vsel %vm4041, %v4036, %v4037
        %v4046 = vsel %vm4041, %v4035, %v4036
        %v4047 = vsel %vm4041, %v4034, %v4035
        %v4048 = vsel %vm4041, %v4033, %v4034
        %v4049 = vsel %vm4041, %v4032, %v4033
        %v4050 = vsel %vm4041, %v4031, %v4032
        %v4051 = vsel %vm4041, %v4030, %v4031
        %v4052 = vsel %vm4041, %v4029, %v4030
        %v4053 = vsel %vm4041, %v4028, %v4029
        %v4054 = vsel %vm4041, %v4027, %v4028
        %v4055 = vsel %vm4041, %v4026, %v4027
        %v4056 = vsel %vm4041, %v4025, %v4026
        %v4057 = vsel %vm4041, %v4040, %v4025
        %4058 = vset.pattern.permute.xlu0 4
        %4059 = vperm.xlu0 %4058, %v674
        %v4060 = vpop.permute.xlu0 %4059
        %4062 = vset.pattern.permute.xlu0 4
        %4063 = vperm.xlu0 %4062, %v675
        %v4064 = vpop.permute.xlu0 %4063
        %4066 = vset.pattern.permute.xlu0 4
        %4067 = vperm.xlu0 %4066, %v676
        %v4068 = vpop.permute.xlu0 %4067
        %4070 = vset.pattern.permute.xlu0 4
        %4071 = vperm.xlu0 %4070, %v677
        %v4072 = vpop.permute.xlu0 %4071
        %4074 = vset.pattern.permute.xlu0 4
        %4075 = vperm.xlu0 %4074, %v678
        %v4076 = vpop.permute.xlu0 %4075
        %4078 = vset.pattern.permute.xlu0 4
        %4079 = vperm.xlu0 %4078, %v679
        %v4080 = vpop.permute.xlu0 %4079
        %4082 = vset.pattern.permute.xlu0 4
        %4083 = vperm.xlu0 %4082, %v680
        %v4084 = vpop.permute.xlu0 %4083
        %4086 = vset.pattern.permute.xlu0 4
        %4087 = vperm.xlu0 %4086, %v681
        %v4088 = vpop.permute.xlu0 %4087
        %4090 = vset.pattern.permute.xlu0 4
        %4091 = vperm.xlu0 %4090, %v682
        %v4092 = vpop.permute.xlu0 %4091
        %4094 = vset.pattern.permute.xlu0 4
        %4095 = vperm.xlu0 %4094, %v683
        %v4096 = vpop.permute.xlu0 %4095
        %4098 = vset.pattern.permute.xlu0 4
        %4099 = vperm.xlu0 %4098, %v684
        %v4100 = vpop.permute.xlu0 %4099
        %4102 = vset.pattern.permute.xlu0 4
        %4103 = vperm.xlu0 %4102, %v685
        %v4104 = vpop.permute.xlu0 %4103
        %4106 = vset.pattern.permute.xlu0 4
        %4107 = vperm.xlu0 %4106, %v686
        %v4108 = vpop.permute.xlu0 %4107
        %4110 = vset.pattern.permute.xlu0 4
        %4111 = vperm.xlu0 %4110, %v687
        %v4112 = vpop.permute.xlu0 %4111
        %4114 = vset.pattern.permute.xlu0 4
        %4115 = vperm.xlu0 %4114, %v688
        %v4116 = vpop.permute.xlu0 %4115
        %4118 = vset.pattern.permute.xlu0 4
        %4119 = vperm.xlu0 %4118, %v689
        %v4120 = vpop.permute.xlu0 %4119
        %v4122 = vmul.f32 %v4057, %v4060
        %v4123 = vmul.f32 %v4056, %v4064
        %v4124 = vmul.f32 %v4055, %v4068
        %v4125 = vmul.f32 %v4054, %v4072
        %v4126 = vmul.f32 %v4053, %v4076
        %v4127 = vmul.f32 %v4052, %v4080
        %v4128 = vmul.f32 %v4051, %v4084
        %v4129 = vmul.f32 %v4050, %v4088
        %v4130 = vmul.f32 %v4049, %v4092
        %v4131 = vmul.f32 %v4048, %v4096
        %v4132 = vmul.f32 %v4047, %v4100
        %v4133 = vmul.f32 %v4046, %v4104
        %v4134 = vmul.f32 %v4045, %v4108
        %v4135 = vmul.f32 %v4044, %v4112
        %v4136 = vmul.f32 %v4043, %v4116
        %v4137 = vmul.f32 %v4042, %v4120
        %4138 = vset.pattern.permute.xlu0 5
        %4139 = vperm.xlu0 %4138, %v674
        %v4140 = vpop.permute.xlu0 %4139
        %4142 = vset.pattern.permute.xlu0 5
        %4143 = vperm.xlu0 %4142, %v675
        %v4144 = vpop.permute.xlu0 %4143
        %4146 = vset.pattern.permute.xlu0 5
        %4147 = vperm.xlu0 %4146, %v676
        %v4148 = vpop.permute.xlu0 %4147
        %4150 = vset.pattern.permute.xlu0 5
        %4151 = vperm.xlu0 %4150, %v677
        %v4152 = vpop.permute.xlu0 %4151
        %4154 = vset.pattern.permute.xlu0 5
        %4155 = vperm.xlu0 %4154, %v678
        %v4156 = vpop.permute.xlu0 %4155
        %4158 = vset.pattern.permute.xlu0 5
        %4159 = vperm.xlu0 %4158, %v679
        %v4160 = vpop.permute.xlu0 %4159
        %4162 = vset.pattern.permute.xlu0 5
        %4163 = vperm.xlu0 %4162, %v680
        %v4164 = vpop.permute.xlu0 %4163
        %4166 = vset.pattern.permute.xlu0 5
        %4167 = vperm.xlu0 %4166, %v681
        %v4168 = vpop.permute.xlu0 %4167
        %4170 = vset.pattern.permute.xlu0 5
        %4171 = vperm.xlu0 %4170, %v682
        %v4172 = vpop.permute.xlu0 %4171
        %4174 = vset.pattern.permute.xlu0 5
        %4175 = vperm.xlu0 %4174, %v683
        %v4176 = vpop.permute.xlu0 %4175
        %4178 = vset.pattern.permute.xlu0 5
        %4179 = vperm.xlu0 %4178, %v684
        %v4180 = vpop.permute.xlu0 %4179
        %4182 = vset.pattern.permute.xlu0 5
        %4183 = vperm.xlu0 %4182, %v685
        %v4184 = vpop.permute.xlu0 %4183
        %4186 = vset.pattern.permute.xlu0 5
        %4187 = vperm.xlu0 %4186, %v686
        %v4188 = vpop.permute.xlu0 %4187
        %4190 = vset.pattern.permute.xlu0 5
        %4191 = vperm.xlu0 %4190, %v687
        %v4192 = vpop.permute.xlu0 %4191
        %4194 = vset.pattern.permute.xlu0 5
        %4195 = vperm.xlu0 %4194, %v688
        %v4196 = vpop.permute.xlu0 %4195
        %4198 = vset.pattern.permute.xlu0 5
        %4199 = vperm.xlu0 %4198, %v689
        %v4200 = vpop.permute.xlu0 %4199
        %v4202 = vmul.f32 %v4056, %v4140
        %v4203 = vmul.f32 %v4055, %v4144
        %v4204 = vmul.f32 %v4054, %v4148
        %v4205 = vmul.f32 %v4053, %v4152
        %v4206 = vmul.f32 %v4052, %v4156
        %v4207 = vmul.f32 %v4051, %v4160
        %v4208 = vmul.f32 %v4050, %v4164
        %v4209 = vmul.f32 %v4049, %v4168
        %v4210 = vmul.f32 %v4048, %v4172
        %v4211 = vmul.f32 %v4047, %v4176
        %v4212 = vmul.f32 %v4046, %v4180
        %v4213 = vmul.f32 %v4045, %v4184
        %v4214 = vmul.f32 %v4044, %v4188
        %v4215 = vmul.f32 %v4043, %v4192
        %v4216 = vmul.f32 %v4042, %v4196
        %v4217 = vmul.f32 %v4057, %v4200
        %4234 = vrot.lane.b32.xlu0 %v3985, 64
        %v4235 = vpop.permute.xlu0 %4234
        %4236 = vrot.lane.b32.xlu0 %v3986, 64
        %v4237 = vpop.permute.xlu0 %4236
        %4238 = vrot.lane.b32.xlu0 %v3987, 64
        %v4239 = vpop.permute.xlu0 %4238
        %4240 = vrot.lane.b32.xlu0 %v3988, 64
        %v4241 = vpop.permute.xlu0 %4240
        %4242 = vrot.lane.b32.xlu0 %v3989, 64
        %v4243 = vpop.permute.xlu0 %4242
        %4244 = vrot.lane.b32.xlu0 %v3990, 64
        %v4245 = vpop.permute.xlu0 %4244
        %4246 = vrot.lane.b32.xlu0 %v3991, 64
        %v4247 = vpop.permute.xlu0 %4246
        %4248 = vrot.lane.b32.xlu0 %v3992, 64
        %v4249 = vpop.permute.xlu0 %4248
        %4250 = vrot.lane.b32.xlu0 %v3993, 64
        %v4251 = vpop.permute.xlu0 %4250
        %4252 = vrot.lane.b32.xlu0 %v3994, 64
        %v4253 = vpop.permute.xlu0 %4252
        %4254 = vrot.lane.b32.xlu0 %v3995, 64
        %v4255 = vpop.permute.xlu0 %4254
        %4256 = vrot.lane.b32.xlu0 %v3996, 64
        %v4257 = vpop.permute.xlu0 %4256
        %4258 = vrot.lane.b32.xlu0 %v3997, 64
        %v4259 = vpop.permute.xlu0 %4258
        %4260 = vrot.lane.b32.xlu0 %v3998, 64
        %v4261 = vpop.permute.xlu0 %4260
        %4262 = vrot.lane.b32.xlu0 %v3999, 64
        %v4263 = vpop.permute.xlu0 %4262
        %4264 = vrot.lane.b32.xlu0 %v4000, 64
        %v4265 = vpop.permute.xlu0 %4264
        %v4282 = vsel %vm735, %v4122, %v4235
        %v4283 = vsel %vm735, %v4123, %v4237
        %v4284 = vsel %vm735, %v4124, %v4239
        %v4285 = vsel %vm735, %v4125, %v4241
        %v4286 = vsel %vm735, %v4126, %v4243
        %v4287 = vsel %vm735, %v4127, %v4245
        %v4288 = vsel %vm735, %v4128, %v4247
        %v4289 = vsel %vm735, %v4129, %v4249
        %v4290 = vsel %vm735, %v4130, %v4251
        %v4291 = vsel %vm735, %v4131, %v4253
        %v4292 = vsel %vm735, %v4132, %v4255
        %v4293 = vsel %vm735, %v4133, %v4257
        %v4294 = vsel %vm735, %v4134, %v4259
        %v4295 = vsel %vm735, %v4135, %v4261
        %v4296 = vsel %vm735, %v4136, %v4263
        %v4297 = vsel %vm735, %v4137, %v4265
        %v4298 = vpack.c.bf16 %v4283, %v4282
        %v4299 = vpack.c.bf16 %v4203, %v4202
        %v4300 = vpack.c.bf16 %v4285, %v4284
        %v4301 = vpack.c.bf16 %v4205, %v4204
        %v4302 = vpack.c.bf16 %v4287, %v4286
        %v4303 = vpack.c.bf16 %v4207, %v4206
        %v4304 = vpack.c.bf16 %v4289, %v4288
        %v4305 = vpack.c.bf16 %v4209, %v4208
        %v4306 = vpack.c.bf16 %v4291, %v4290
        %v4307 = vpack.c.bf16 %v4211, %v4210
        %v4308 = vpack.c.bf16 %v4293, %v4292
        %v4309 = vpack.c.bf16 %v4213, %v4212
        %v4310 = vpack.c.bf16 %v4295, %v4294
        %v4311 = vpack.c.bf16 %v4215, %v4214
        %v4312 = vpack.c.bf16 %v4297, %v4296
        %v4313 = vpack.c.bf16 %v4217, %v4216
        %v4314 = vlaneseq
        %v4315 = vshrl.u32 %v4314, 7
        %v4316 = vsub.s32 4, %v4315
        %v4317 = vrot.slane %v691, %v4316
        %v4342 = vunpack.c.l.b16 %v4001
        %v4343 = vunpack.c.l.b16 %v4002
        %v4344 = vunpack.c.l.b16 %v4003
        %v4345 = vunpack.c.l.b16 %v4004
        %v4346 = vunpack.c.l.b16 %v4005
        %v4347 = vunpack.c.l.b16 %v4006
        %v4348 = vunpack.c.l.b16 %v4007
        %v4349 = vunpack.c.l.b16 %v4008
        %v4350 = vunpack.c.l.b16 %v4009
        %v4351 = vunpack.c.l.b16 %v4010
        %v4352 = vunpack.c.l.b16 %v4011
        %v4353 = vunpack.c.l.b16 %v4012
        %v4354 = vunpack.c.l.b16 %v4013
        %v4355 = vunpack.c.l.b16 %v4014
        %v4356 = vunpack.c.l.b16 %v4015
        %v4357 = vunpack.c.l.b16 %v4016
        %v4358 = vunpack.c.l.b16 %v4017
        %v4359 = vunpack.c.l.b16 %v4018
        %v4360 = vunpack.c.l.b16 %v4019
        %v4361 = vunpack.c.l.b16 %v4020
        %v4362 = vunpack.c.l.b16 %v4021
        %v4363 = vunpack.c.l.b16 %v4022
        %v4364 = vunpack.c.l.b16 %v4023
        %v4365 = vunpack.c.l.b16 %v4024
        %v4366 = vpack.c.b16 %v4343, %v4342
        %v4367 = vpack.c.b16 %v4345, %v4344
        %v4368 = vpack.c.b16 %v4347, %v4346
        %v4369 = vpack.c.b16 %v4349, %v4348
        %v4370 = vpack.c.b16 %v4351, %v4350
        %v4371 = vpack.c.b16 %v4353, %v4352
        %v4372 = vpack.c.b16 %v4355, %v4354
        %v4373 = vpack.c.b16 %v4357, %v4356
        %v4374 = vpack.c.b16 %v4359, %v4358
        %v4375 = vpack.c.b16 %v4361, %v4360
        %v4376 = vpack.c.b16 %v4363, %v4362
        %v4377 = vpack.c.b16 %v4365, %v4364
        %v4391 = vsel %vm735, %v4299, 0
        %v4394 = vsel %vm735, %v4301, 0
        %v4397 = vsel %vm735, %v4303, 0
        %v4400 = vsel %vm735, %v4305, 0
        %v4403 = vsel %vm735, %v4307, 0
        %v4406 = vsel %vm735, %v4309, 0
        %v4409 = vsel %vm735, %v4311, 0
        %v4412 = vsel %vm735, %v4313, 0
        %4414 = vmatprep.subr.bf16.mxu0 0
        %4415 = vmatpush1.bf16.msra.mxu0 %v4366
        %4416 = vmatprep.subr.bf16.mxu0 0
        %4417 = vmatpush1.bf16.msra.mxu0 %v4367
        %4418 = vmatprep.subr.bf16.mxu0 0
        %4419 = vmatpush1.bf16.msra.mxu0 %v4368
        %4420 = vmatprep.subr.bf16.mxu0 0
        %4421 = vmatpush1.bf16.msra.mxu0 %v4369
        %4422 = vmatprep.subr.bf16.mxu0 0
        %4423 = vmatpush1.bf16.msra.mxu0 %v4370
        %4424 = vmatprep.subr.bf16.mxu0 0
        %4425 = vmatpush1.bf16.msra.mxu0 %v4371
        %4426 = vmatprep.subr.bf16.mxu0 0
        %4427 = vmatpush1.bf16.msra.mxu0 %v4372
        %4428 = vmatprep.subr.bf16.mxu0 0
        %4429 = vmatpush1.bf16.msra.mxu0 %v4373
        %4430 = vmatprep.subr.bf16.mxu0 0
        %4431 = vmatpush1.bf16.msra.mxu0 %v4374
        %4432 = vmatprep.subr.bf16.mxu0 0
        %4433 = vmatpush1.bf16.msra.mxu0 %v4375
        %4434 = vmatprep.subr.bf16.mxu0 0
        %4435 = vmatpush1.bf16.msra.mxu0 %v4376
        %4436 = vmatprep.subr.bf16.mxu0 0
        %4437 = vmatpush1.bf16.msra.mxu0 %v4377
        %4438 = vmatprep.subr.bf16.mxu0 0
        %4439 = vmatpush1.bf16.msra.mxu0 0
        %4440 = vmatprep.subr.bf16.mxu0 0
        %4441 = vmatpush1.bf16.msra.mxu0 0
        %4442 = vmatprep.subr.bf16.mxu0 0
        %4443 = vmatpush1.bf16.msra.mxu0 0
        %4444 = vmatprep.subr.bf16.mxu0 0
        %4445 = vmatpush1.bf16.msra.mxu0 0
        %4446 = vmatprep.mubr.bf16.mxu0 %v4391
        %4447 = vmatmul.mubr.bf16.gmra.mrb[0].mxu0 %v4298
        %v4448 = vpop.f32.mrb[0].mxu0
        %v4449 = vadd.f32 %v4317, %v4448
        %v4450 = vpop.f32.mrb[0].mxu0
        %v4451 = vpop.f32.mrb[0].mxu0
        %v4452 = vadd.f32 %v4317, %v4451
        %v4453 = vpop.f32.mrb[0].mxu0
        %4454 = vmatprep.mubr.bf16.mxu0 %v4394
        %4455 = vmatmul.mubr.bf16.gmra.mrb[0].mxu0 %v4300
        %v4456 = vpop.f32.mrb[0].mxu0
        %v4457 = vadd.f32 %v4317, %v4456
        %v4458 = vpop.f32.mrb[0].mxu0
        %v4459 = vpop.f32.mrb[0].mxu0
        %v4460 = vadd.f32 %v4317, %v4459
        %v4461 = vpop.f32.mrb[0].mxu0
        %4462 = vmatprep.mubr.bf16.mxu0 %v4397
        %4463 = vmatmul.mubr.bf16.gmra.mrb[0].mxu0 %v4302
        %v4464 = vpop.f32.mrb[0].mxu0
        %v4465 = vadd.f32 %v4317, %v4464
        %v4466 = vpop.f32.mrb[0].mxu0
        %v4467 = vpop.f32.mrb[0].mxu0
        %v4468 = vadd.f32 %v4317, %v4467
        %v4469 = vpop.f32.mrb[0].mxu0
        %4470 = vmatprep.mubr.bf16.mxu0 %v4400
        %4471 = vmatmul.mubr.bf16.gmra.mrb[0].mxu0 %v4304
        %v4472 = vpop.f32.mrb[0].mxu0
        %v4473 = vadd.f32 %v4317, %v4472
        %v4474 = vpop.f32.mrb[0].mxu0
        %v4475 = vpop.f32.mrb[0].mxu0
        %v4476 = vadd.f32 %v4317, %v4475
        %v4477 = vpop.f32.mrb[0].mxu0
        %4478 = vmatprep.mubr.bf16.mxu0 %v4403
        %4479 = vmatmul.mubr.bf16.gmra.mrb[0].mxu0 %v4306
        %v4480 = vpop.f32.mrb[0].mxu0
        %v4481 = vadd.f32 %v4317, %v4480
        %v4482 = vpop.f32.mrb[0].mxu0
        %v4483 = vpop.f32.mrb[0].mxu0
        %v4484 = vadd.f32 %v4317, %v4483
        %v4485 = vpop.f32.mrb[0].mxu0
        %4486 = vmatprep.mubr.bf16.mxu0 %v4406
        %4487 = vmatmul.mubr.bf16.gmra.mrb[0].mxu0 %v4308
        %v4488 = vpop.f32.mrb[0].mxu0
        %v4489 = vadd.f32 %v4317, %v4488
        %v4490 = vpop.f32.mrb[0].mxu0
        %v4491 = vpop.f32.mrb[0].mxu0
        %v4492 = vadd.f32 %v4317, %v4491
        %v4493 = vpop.f32.mrb[0].mxu0
        %4494 = vmatprep.mubr.bf16.mxu0 %v4409
        %4495 = vmatmul.mubr.bf16.gmra.mrb[0].mxu0 %v4310
        %v4496 = vpop.f32.mrb[0].mxu0
        %v4497 = vadd.f32 %v4317, %v4496
        %v4498 = vpop.f32.mrb[0].mxu0
        %v4499 = vpop.f32.mrb[0].mxu0
        %v4500 = vadd.f32 %v4317, %v4499
        %v4501 = vpop.f32.mrb[0].mxu0
        %4502 = vmatprep.mubr.bf16.mxu0 %v4412
        %4503 = vmatmul.mubr.bf16.gmra.mrb[0].mxu0 %v4312
        %v4504 = vpop.f32.mrb[0].mxu0
        %v4505 = vadd.f32 %v4317, %v4504
        %v4506 = vpop.f32.mrb[0].mxu0
        %v4507 = vpop.f32.mrb[0].mxu0
        %v4508 = vadd.f32 %v4317, %v4507
        %v4509 = vpop.f32.mrb[0].mxu0
        %4510 = vdwg.mxu0
        %v4511 = vld [vmem:[%s13] sm:$0xf]
        %v4512 = vld [vmem:[%s13 + $0x4] sm:$0xf]
        %v4513 = vld [vmem:[%s13 + $0x8] sm:$0xf]
        %v4514 = vld [vmem:[%s13 + $0xc] sm:$0xf]
        %v4515 = vpack.c.bf16 %v3497, %v3496
        %v4516 = vpack.c.bf16 %v3499, %v3498
        %v4517 = vpack.c.bf16 %v3501, %v3500
        %v4518 = vpack.c.bf16 %v3503, %v3502
        %v4519 = vpack.c.bf16 %v3505, %v3504
        %v4520 = vpack.c.bf16 %v3507, %v3506
        %v4521 = vpack.c.bf16 %v3509, %v3508
        %v4522 = vpack.c.bf16 %v3511, %v3510
        %v4523 = vlaneseq
        %v4524 = vshrl.u32 %v4523, 7
        %v4525 = vsub.s32 6, %v4524
        %v4526 = vrot.slane %v691, %v4525
        %v4531 = vunpack.c.l.b16 %v4511
        %v4532 = vunpack.c.l.b16 %v4512
        %v4533 = vunpack.c.l.b16 %v4513
        %v4534 = vunpack.c.l.b16 %v4514
        %v4535 = vpack.c.b16 %v4532, %v4531
        %v4536 = vpack.c.b16 %v4534, %v4533
        %v4540 = vsel %vm1479, %v4515, 0
        %v4543 = vsel %vm1479, %v4516, 0
        %v4546 = vsel %vm1479, %v4517, 0
        %v4549 = vsel %vm1479, %v4518, 0
        %v4552 = vsel %vm1479, %v4519, 0
        %v4555 = vsel %vm1479, %v4520, 0
        %v4558 = vsel %vm1479, %v4521, 0
        %v4561 = vsel %vm1479, %v4522, 0
        %4563 = vmatprep.subr.bf16.mxu0 0
        %4564 = vmatpush1.bf16.msra.mxu0 %v4535
        %4565 = vmatprep.subr.bf16.mxu0 0
        %4566 = vmatpush1.bf16.msra.mxu0 %v4536
        %4567 = vmatprep.subr.bf16.mxu0 0
        %4568 = vmatpush1.bf16.msra.mxu0 0
        %4569 = vmatprep.subr.bf16.mxu0 0
        %4570 = vmatpush1.bf16.msra.mxu0 0
        %4571 = vmatprep.subr.bf16.mxu0 0
        %4572 = vmatpush1.bf16.msra.mxu0 0
        %4573 = vmatprep.subr.bf16.mxu0 0
        %4574 = vmatpush1.bf16.msra.mxu0 0
        %4575 = vmatprep.subr.bf16.mxu0 0
        %4576 = vmatpush1.bf16.msra.mxu0 0
        %4577 = vmatprep.subr.bf16.mxu0 0
        %4578 = vmatpush1.bf16.msra.mxu0 0
        %4579 = vmatprep.subr.bf16.mxu0 0
        %4580 = vmatpush1.bf16.msra.mxu0 0
        %4581 = vmatprep.subr.bf16.mxu0 0
        %4582 = vmatpush1.bf16.msra.mxu0 0
        %4583 = vmatprep.subr.bf16.mxu0 0
        %4584 = vmatpush1.bf16.msra.mxu0 0
        %4585 = vmatprep.subr.bf16.mxu0 0
        %4586 = vmatpush1.bf16.msra.mxu0 0
        %4587 = vmatprep.subr.bf16.mxu0 0
        %4588 = vmatpush1.bf16.msra.mxu0 0
        %4589 = vmatprep.subr.bf16.mxu0 0
        %4590 = vmatpush1.bf16.msra.mxu0 0
        %4591 = vmatprep.subr.bf16.mxu0 0
        %4592 = vmatpush1.bf16.msra.mxu0 0
        %4593 = vmatprep.subr.bf16.mxu0 0
        %4594 = vmatpush1.bf16.msra.mxu0 0
        %4595 = vmatprep.mubr.bf16.mxu0 0
        %4596 = vmatmul.mubr.bf16.gmra.mrb[0].mxu0 %v4540
        %v4597 = vpop.f32.mrb[0].mxu0
        %v4598 = vadd.f32 %v4526, %v4597
        %v4599 = vpop.f32.mrb[0].mxu0
        %v4600 = vpop.f32.mrb[0].mxu0
        %v4601 = vadd.f32 %v4526, %v4600
        %v4602 = vpop.f32.mrb[0].mxu0
        %4603 = vmatprep.mubr.bf16.mxu0 0
        %4604 = vmatmul.mubr.bf16.gmra.mrb[0].mxu0 %v4543
        %v4605 = vpop.f32.mrb[0].mxu0
        %v4606 = vadd.f32 %v4526, %v4605
        %v4607 = vpop.f32.mrb[0].mxu0
        %v4608 = vpop.f32.mrb[0].mxu0
        %v4609 = vadd.f32 %v4526, %v4608
        %v4610 = vpop.f32.mrb[0].mxu0
        %4611 = vmatprep.mubr.bf16.mxu0 0
        %4612 = vmatmul.mubr.bf16.gmra.mrb[0].mxu0 %v4546
        %v4613 = vpop.f32.mrb[0].mxu0
        %v4614 = vadd.f32 %v4526, %v4613
        %v4615 = vpop.f32.mrb[0].mxu0
        %v4616 = vpop.f32.mrb[0].mxu0
        %v4617 = vadd.f32 %v4526, %v4616
        %v4618 = vpop.f32.mrb[0].mxu0
        %4619 = vmatprep.mubr.bf16.mxu0 0
        %4620 = vmatmul.mubr.bf16.gmra.mrb[0].mxu0 %v4549
        %v4621 = vpop.f32.mrb[0].mxu0
        %v4622 = vadd.f32 %v4526, %v4621
        %v4623 = vpop.f32.mrb[0].mxu0
        %v4624 = vpop.f32.mrb[0].mxu0
        %v4625 = vadd.f32 %v4526, %v4624
        %v4626 = vpop.f32.mrb[0].mxu0
        %4627 = vmatprep.mubr.bf16.mxu0 0
        %4628 = vmatmul.mubr.bf16.gmra.mrb[0].mxu0 %v4552
        %v4629 = vpop.f32.mrb[0].mxu0
        %v4630 = vadd.f32 %v4526, %v4629
        %v4631 = vpop.f32.mrb[0].mxu0
        %v4632 = vpop.f32.mrb[0].mxu0
        %v4633 = vadd.f32 %v4526, %v4632
        %v4634 = vpop.f32.mrb[0].mxu0
        %4635 = vmatprep.mubr.bf16.mxu0 0
        %4636 = vmatmul.mubr.bf16.gmra.mrb[0].mxu0 %v4555
        %v4637 = vpop.f32.mrb[0].mxu0
        %v4638 = vadd.f32 %v4526, %v4637
        %v4639 = vpop.f32.mrb[0].mxu0
        %v4640 = vpop.f32.mrb[0].mxu0
        %v4641 = vadd.f32 %v4526, %v4640
        %v4642 = vpop.f32.mrb[0].mxu0
        %4643 = vmatprep.mubr.bf16.mxu0 0
        %4644 = vmatmul.mubr.bf16.gmra.mrb[0].mxu0 %v4558
        %v4645 = vpop.f32.mrb[0].mxu0
        %v4646 = vadd.f32 %v4526, %v4645
        %v4647 = vpop.f32.mrb[0].mxu0
        %v4648 = vpop.f32.mrb[0].mxu0
        %v4649 = vadd.f32 %v4526, %v4648
        %v4650 = vpop.f32.mrb[0].mxu0
        %4651 = vmatprep.mubr.bf16.mxu0 0
        %4652 = vmatmul.mubr.bf16.gmra.mrb[0].mxu0 %v4561
        %v4653 = vpop.f32.mrb[0].mxu0
        %v4654 = vadd.f32 %v4526, %v4653
        %v4655 = vpop.f32.mrb[0].mxu0
        %v4656 = vpop.f32.mrb[0].mxu0
        %v4657 = vadd.f32 %v4526, %v4656
        %v4658 = vpop.f32.mrb[0].mxu0
        %4659 = vdwg.mxu0
        %v4660 = vadd.f32 %v4449, %v4598
        %v4661 = vadd.f32 %v4452, %v4601
        %v4662 = vadd.f32 %v4457, %v4606
        %v4663 = vadd.f32 %v4460, %v4609
        %v4664 = vadd.f32 %v4465, %v4614
        %v4665 = vadd.f32 %v4468, %v4617
        %v4666 = vadd.f32 %v4473, %v4622
        %v4667 = vadd.f32 %v4476, %v4625
        %v4668 = vadd.f32 %v4481, %v4630
        %v4669 = vadd.f32 %v4484, %v4633
        %v4670 = vadd.f32 %v4489, %v4638
        %v4671 = vadd.f32 %v4492, %v4641
        %v4672 = vadd.f32 %v4497, %v4646
        %v4673 = vadd.f32 %v4500, %v4649
        %v4674 = vadd.f32 %v4505, %v4654
        %v4675 = vadd.f32 %v4508, %v4657
        %vm4676 = vcmp.gt.f32.partialorder %v4660, 0.0
        %vm4677 = vcmp.gt.f32.partialorder %v4661, 0.0
        %vm4678 = vcmp.gt.f32.partialorder %v4662, 0.0
        %vm4679 = vcmp.gt.f32.partialorder %v4663, 0.0
        %vm4680 = vcmp.gt.f32.partialorder %v4664, 0.0
        %vm4681 = vcmp.gt.f32.partialorder %v4665, 0.0
        %vm4682 = vcmp.gt.f32.partialorder %v4666, 0.0
        %vm4683 = vcmp.gt.f32.partialorder %v4667, 0.0
        %vm4684 = vcmp.gt.f32.partialorder %v4668, 0.0
        %vm4685 = vcmp.gt.f32.partialorder %v4669, 0.0
        %vm4686 = vcmp.gt.f32.partialorder %v4670, 0.0
        %vm4687 = vcmp.gt.f32.partialorder %v4671, 0.0
        %vm4688 = vcmp.gt.f32.partialorder %v4672, 0.0
        %vm4689 = vcmp.gt.f32.partialorder %v4673, 0.0
        %vm4690 = vcmp.gt.f32.partialorder %v4674, 0.0
        %vm4691 = vcmp.gt.f32.partialorder %v4675, 0.0
        %v4692 = vlaneseq
        %v4693 = vshrl.u32 %v4692, 7
        %v4694 = vsub.s32 5, %v4693
        %v4695 = vrot.slane %v691, %v4694
        %v4696 = vmul.f32 %v4695, %v4660
        %v4697 = vmul.f32 %v4695, %v4661
        %v4698 = vmul.f32 %v4695, %v4662
        %v4699 = vmul.f32 %v4695, %v4663
        %v4700 = vmul.f32 %v4695, %v4664
        %v4701 = vmul.f32 %v4695, %v4665
        %v4702 = vmul.f32 %v4695, %v4666
        %v4703 = vmul.f32 %v4695, %v4667
        %v4704 = vmul.f32 %v4695, %v4668
        %v4705 = vmul.f32 %v4695, %v4669
        %v4706 = vmul.f32 %v4695, %v4670
        %v4707 = vmul.f32 %v4695, %v4671
        %v4708 = vmul.f32 %v4695, %v4672
        %v4709 = vmul.f32 %v4695, %v4673
        %v4710 = vmul.f32 %v4695, %v4674
        %v4711 = vmul.f32 %v4695, %v4675
        %v4712 = vsel %vm4676, %v4660, %v4696
        %v4713 = vsel %vm4677, %v4661, %v4697
        %v4714 = vsel %vm4678, %v4662, %v4698
        %v4715 = vsel %vm4679, %v4663, %v4699
        %v4716 = vsel %vm4680, %v4664, %v4700
        %v4717 = vsel %vm4681, %v4665, %v4701
        %v4718 = vsel %vm4682, %v4666, %v4702
        %v4719 = vsel %vm4683, %v4667, %v4703
        %v4720 = vsel %vm4684, %v4668, %v4704
        %v4721 = vsel %vm4685, %v4669, %v4705
        %v4722 = vsel %vm4686, %v4670, %v4706
        %v4723 = vsel %vm4687, %v4671, %v4707
        %v4724 = vsel %vm4688, %v4672, %v4708
        %v4725 = vsel %vm4689, %v4673, %v4709
        %v4726 = vsel %vm4690, %v4674, %v4710
        %v4727 = vsel %vm4691, %v4675, %v4711
        %v4728 = vld [vmem:[%s14] sm:$0xf]
        %v4729 = vld [vmem:[%s14 + $0x4] sm:$0xf]
        %v4730 = vld [vmem:[%s14 + $0x8] sm:$0xf]
        %v4731 = vld [vmem:[%s14 + $0xc] sm:$0xf]
        %v4732 = vld [vmem:[%s14 + $0x10] sm:$0xf]
        %v4733 = vld [vmem:[%s14 + $0x14] sm:$0xf]
        %v4734 = vld [vmem:[%s14 + $0x18] sm:$0xf]
        %v4735 = vld [vmem:[%s14 + $0x1c] sm:$0xf]
        %v4736 = vld [vmem:[%s14 + $0x20] sm:$0xf]
        %v4737 = vld [vmem:[%s14 + $0x24] sm:$0xf]
        %v4738 = vld [vmem:[%s14 + $0x28] sm:$0xf]
        %v4739 = vld [vmem:[%s14 + $0x2c] sm:$0xf]
        %v4740 = vld [vmem:[%s14 + $0x30] sm:$0xf]
        %v4741 = vld [vmem:[%s14 + $0x34] sm:$0xf]
        %v4742 = vld [vmem:[%s14 + $0x38] sm:$0xf]
        %v4743 = vld [vmem:[%s14 + $0x3c] sm:$0xf]
        %v4744 = vld [vmem:[%s14 + $0x40] sm:$0xf]
        %v4745 = vld [vmem:[%s14 + $0x44] sm:$0xf]
        %v4746 = vld [vmem:[%s14 + $0x48] sm:$0xf]
        %v4747 = vld [vmem:[%s14 + $0x4c] sm:$0xf]
        %v4748 = vld [vmem:[%s14 + $0x50] sm:$0xf]
        %v4749 = vld [vmem:[%s14 + $0x54] sm:$0xf]
        %v4750 = vld [vmem:[%s14 + $0x58] sm:$0xf]
        %v4751 = vld [vmem:[%s14 + $0x5c] sm:$0xf]
        %v4752 = vrot.slane %v4712, 4
        %v4753 = vrot.slane %v4713, 4
        %v4754 = vrot.slane %v4714, 4
        %v4755 = vrot.slane %v4715, 4
        %v4756 = vrot.slane %v4716, 4
        %v4757 = vrot.slane %v4717, 4
        %v4758 = vrot.slane %v4718, 4
        %v4759 = vrot.slane %v4719, 4
        %v4760 = vrot.slane %v4720, 4
        %v4761 = vrot.slane %v4721, 4
        %v4762 = vrot.slane %v4722, 4
        %v4763 = vrot.slane %v4723, 4
        %v4764 = vrot.slane %v4724, 4
        %v4765 = vrot.slane %v4725, 4
        %v4766 = vrot.slane %v4726, 4
        %v4767 = vrot.slane %v4727, 4
        %v4768 = vsel %vm4041, %v4766, %v4767
        %v4769 = vsel %vm4041, %v4765, %v4766
        %v4770 = vsel %vm4041, %v4764, %v4765
        %v4771 = vsel %vm4041, %v4763, %v4764
        %v4772 = vsel %vm4041, %v4762, %v4763
        %v4773 = vsel %vm4041, %v4761, %v4762
        %v4774 = vsel %vm4041, %v4760, %v4761
        %v4775 = vsel %vm4041, %v4759, %v4760
        %v4776 = vsel %vm4041, %v4758, %v4759
        %v4777 = vsel %vm4041, %v4757, %v4758
        %v4778 = vsel %vm4041, %v4756, %v4757
        %v4779 = vsel %vm4041, %v4755, %v4756
        %v4780 = vsel %vm4041, %v4754, %v4755
        %v4781 = vsel %vm4041, %v4753, %v4754
        %v4782 = vsel %vm4041, %v4752, %v4753
        %v4783 = vsel %vm4041, %v4767, %v4752
        %v4784 = vmul.f32 %v4783, %v4060
        %v4785 = vmul.f32 %v4782, %v4064
        %v4786 = vmul.f32 %v4781, %v4068
        %v4787 = vmul.f32 %v4780, %v4072
        %v4788 = vmul.f32 %v4779, %v4076
        %v4789 = vmul.f32 %v4778, %v4080
        %v4790 = vmul.f32 %v4777, %v4084
        %v4791 = vmul.f32 %v4776, %v4088
        %v4792 = vmul.f32 %v4775, %v4092
        %v4793 = vmul.f32 %v4774, %v4096
        %v4794 = vmul.f32 %v4773, %v4100
        %v4795 = vmul.f32 %v4772, %v4104
        %v4796 = vmul.f32 %v4771, %v4108
        %v4797 = vmul.f32 %v4770, %v4112
        %v4798 = vmul.f32 %v4769, %v4116
        %v4799 = vmul.f32 %v4768, %v4120
        %v4800 = vmul.f32 %v4782, %v4140
        %v4801 = vmul.f32 %v4781, %v4144
        %v4802 = vmul.f32 %v4780, %v4148
        %v4803 = vmul.f32 %v4779, %v4152
        %v4804 = vmul.f32 %v4778, %v4156
        %v4805 = vmul.f32 %v4777, %v4160
        %v4806 = vmul.f32 %v4776, %v4164
        %v4807 = vmul.f32 %v4775, %v4168
        %v4808 = vmul.f32 %v4774, %v4172
        %v4809 = vmul.f32 %v4773, %v4176
        %v4810 = vmul.f32 %v4772, %v4180
        %v4811 = vmul.f32 %v4771, %v4184
        %v4812 = vmul.f32 %v4770, %v4188
        %v4813 = vmul.f32 %v4769, %v4192
        %v4814 = vmul.f32 %v4768, %v4196
        %v4815 = vmul.f32 %v4783, %v4200
        %4832 = vrot.lane.b32.xlu0 %v4712, 64
        %v4833 = vpop.permute.xlu0 %4832
        %4834 = vrot.lane.b32.xlu0 %v4713, 64
        %v4835 = vpop.permute.xlu0 %4834
        %4836 = vrot.lane.b32.xlu0 %v4714, 64
        %v4837 = vpop.permute.xlu0 %4836
        %4838 = vrot.lane.b32.xlu0 %v4715, 64
        %v4839 = vpop.permute.xlu0 %4838
        %4840 = vrot.lane.b32.xlu0 %v4716, 64
        %v4841 = vpop.permute.xlu0 %4840
        %4842 = vrot.lane.b32.xlu0 %v4717, 64
        %v4843 = vpop.permute.xlu0 %4842
        %4844 = vrot.lane.b32.xlu0 %v4718, 64
        %v4845 = vpop.permute.xlu0 %4844
        %4846 = vrot.lane.b32.xlu0 %v4719, 64
        %v4847 = vpop.permute.xlu0 %4846
        %4848 = vrot.lane.b32.xlu0 %v4720, 64
        %v4849 = vpop.permute.xlu0 %4848
        %4850 = vrot.lane.b32.xlu0 %v4721, 64
        %v4851 = vpop.permute.xlu0 %4850
        %4852 = vrot.lane.b32.xlu0 %v4722, 64
        %v4853 = vpop.permute.xlu0 %4852
        %4854 = vrot.lane.b32.xlu0 %v4723, 64
        %v4855 = vpop.permute.xlu0 %4854
        %4856 = vrot.lane.b32.xlu0 %v4724, 64
        %v4857 = vpop.permute.xlu0 %4856
        %4858 = vrot.lane.b32.xlu0 %v4725, 64
        %v4859 = vpop.permute.xlu0 %4858
        %4860 = vrot.lane.b32.xlu0 %v4726, 64
        %v4861 = vpop.permute.xlu0 %4860
        %4862 = vrot.lane.b32.xlu0 %v4727, 64
        %v4863 = vpop.permute.xlu0 %4862
        %v4880 = vsel %vm735, %v4784, %v4833
        %v4881 = vsel %vm735, %v4785, %v4835
        %v4882 = vsel %vm735, %v4786, %v4837
        %v4883 = vsel %vm735, %v4787, %v4839
        %v4884 = vsel %vm735, %v4788, %v4841
        %v4885 = vsel %vm735, %v4789, %v4843
        %v4886 = vsel %vm735, %v4790, %v4845
        %v4887 = vsel %vm735, %v4791, %v4847
        %v4888 = vsel %vm735, %v4792, %v4849
        %v4889 = vsel %vm735, %v4793, %v4851
        %v4890 = vsel %vm735, %v4794, %v4853
        %v4891 = vsel %vm735, %v4795, %v4855
        %v4892 = vsel %vm735, %v4796, %v4857
        %v4893 = vsel %vm735, %v4797, %v4859
        %v4894 = vsel %vm735, %v4798, %v4861
        %v4895 = vsel %vm735, %v4799, %v4863
        %v4896 = vpack.c.bf16 %v4881, %v4880
        %v4897 = vpack.c.bf16 %v4801, %v4800
        %v4898 = vpack.c.bf16 %v4883, %v4882
        %v4899 = vpack.c.bf16 %v4803, %v4802
        %v4900 = vpack.c.bf16 %v4885, %v4884
        %v4901 = vpack.c.bf16 %v4805, %v4804
        %v4902 = vpack.c.bf16 %v4887, %v4886
        %v4903 = vpack.c.bf16 %v4807, %v4806
        %v4904 = vpack.c.bf16 %v4889, %v4888
        %v4905 = vpack.c.bf16 %v4809, %v4808
        %v4906 = vpack.c.bf16 %v4891, %v4890
        %v4907 = vpack.c.bf16 %v4811, %v4810
        %v4908 = vpack.c.bf16 %v4893, %v4892
        %v4909 = vpack.c.bf16 %v4813, %v4812
        %v4910 = vpack.c.bf16 %v4895, %v4894
        %v4911 = vpack.c.bf16 %v4815, %v4814
        %v4912 = vlaneseq
        %v4913 = vshrl.u32 %v4912, 7
        %v4914 = vsub.s32 7, %v4913
        %v4915 = vrot.slane %v691, %v4914
        %v4940 = vunpack.c.l.b16 %v4728
        %v4941 = vunpack.c.l.b16 %v4729
        %v4942 = vunpack.c.l.b16 %v4730
        %v4943 = vunpack.c.l.b16 %v4731
        %v4944 = vunpack.c.l.b16 %v4732
        %v4945 = vunpack.c.l.b16 %v4733
        %v4946 = vunpack.c.l.b16 %v4734
        %v4947 = vunpack.c.l.b16 %v4735
        %v4948 = vunpack.c.l.b16 %v4736
        %v4949 = vunpack.c.l.b16 %v4737
        %v4950 = vunpack.c.l.b16 %v4738
        %v4951 = vunpack.c.l.b16 %v4739
        %v4952 = vunpack.c.l.b16 %v4740
        %v4953 = vunpack.c.l.b16 %v4741
        %v4954 = vunpack.c.l.b16 %v4742
        %v4955 = vunpack.c.l.b16 %v4743
        %v4956 = vunpack.c.l.b16 %v4744
        %v4957 = vunpack.c.l.b16 %v4745
        %v4958 = vunpack.c.l.b16 %v4746
        %v4959 = vunpack.c.l.b16 %v4747
        %v4960 = vunpack.c.l.b16 %v4748
        %v4961 = vunpack.c.l.b16 %v4749
        %v4962 = vunpack.c.l.b16 %v4750
        %v4963 = vunpack.c.l.b16 %v4751
        %v4964 = vpack.c.b16 %v4941, %v4940
        %v4965 = vpack.c.b16 %v4943, %v4942
        %v4966 = vpack.c.b16 %v4945, %v4944
        %v4967 = vpack.c.b16 %v4947, %v4946
        %v4968 = vpack.c.b16 %v4949, %v4948
        %v4969 = vpack.c.b16 %v4951, %v4950
        %v4970 = vpack.c.b16 %v4953, %v4952
        %v4971 = vpack.c.b16 %v4955, %v4954
        %v4972 = vpack.c.b16 %v4957, %v4956
        %v4973 = vpack.c.b16 %v4959, %v4958
        %v4974 = vpack.c.b16 %v4961, %v4960
        %v4975 = vpack.c.b16 %v4963, %v4962
        %v4989 = vsel %vm735, %v4897, 0
        %v4992 = vsel %vm735, %v4899, 0
        %v4995 = vsel %vm735, %v4901, 0
        %v4998 = vsel %vm735, %v4903, 0
        %v5001 = vsel %vm735, %v4905, 0
        %v5004 = vsel %vm735, %v4907, 0
        %v5007 = vsel %vm735, %v4909, 0
        %v5010 = vsel %vm735, %v4911, 0
        %5012 = vmatprep.subr.bf16.mxu0 0
        %5013 = vmatpush1.bf16.msra.mxu0 %v4964
        %5014 = vmatprep.subr.bf16.mxu0 0
        %5015 = vmatpush1.bf16.msra.mxu0 %v4965
        %5016 = vmatprep.subr.bf16.mxu0 0
        %5017 = vmatpush1.bf16.msra.mxu0 %v4966
        %5018 = vmatprep.subr.bf16.mxu0 0
        %5019 = vmatpush1.bf16.msra.mxu0 %v4967
        %5020 = vmatprep.subr.bf16.mxu0 0
        %5021 = vmatpush1.bf16.msra.mxu0 %v4968
        %5022 = vmatprep.subr.bf16.mxu0 0
        %5023 = vmatpush1.bf16.msra.mxu0 %v4969
        %5024 = vmatprep.subr.bf16.mxu0 0
        %5025 = vmatpush1.bf16.msra.mxu0 %v4970
        %5026 = vmatprep.subr.bf16.mxu0 0
        %5027 = vmatpush1.bf16.msra.mxu0 %v4971
        %5028 = vmatprep.subr.bf16.mxu0 0
        %5029 = vmatpush1.bf16.msra.mxu0 %v4972
        %5030 = vmatprep.subr.bf16.mxu0 0
        %5031 = vmatpush1.bf16.msra.mxu0 %v4973
        %5032 = vmatprep.subr.bf16.mxu0 0
        %5033 = vmatpush1.bf16.msra.mxu0 %v4974
        %5034 = vmatprep.subr.bf16.mxu0 0
        %5035 = vmatpush1.bf16.msra.mxu0 %v4975
        %5036 = vmatprep.subr.bf16.mxu0 0
        %5037 = vmatpush1.bf16.msra.mxu0 0
        %5038 = vmatprep.subr.bf16.mxu0 0
        %5039 = vmatpush1.bf16.msra.mxu0 0
        %5040 = vmatprep.subr.bf16.mxu0 0
        %5041 = vmatpush1.bf16.msra.mxu0 0
        %5042 = vmatprep.subr.bf16.mxu0 0
        %5043 = vmatpush1.bf16.msra.mxu0 0
        %5044 = vmatprep.mubr.bf16.mxu0 %v4989
        %5045 = vmatmul.mubr.bf16.gmra.mrb[0].mxu0 %v4896
        %v5046 = vpop.f32.mrb[0].mxu0
        %v5047 = vadd.f32 %v4915, %v5046
        %v5048 = vpop.f32.mrb[0].mxu0
        %v5049 = vpop.f32.mrb[0].mxu0
        %v5050 = vadd.f32 %v4915, %v5049
        %v5051 = vpop.f32.mrb[0].mxu0
        %5052 = vmatprep.mubr.bf16.mxu0 %v4992
        %5053 = vmatmul.mubr.bf16.gmra.mrb[0].mxu0 %v4898
        %v5054 = vpop.f32.mrb[0].mxu0
        %v5055 = vadd.f32 %v4915, %v5054
        %v5056 = vpop.f32.mrb[0].mxu0
        %v5057 = vpop.f32.mrb[0].mxu0
        %v5058 = vadd.f32 %v4915, %v5057
        %v5059 = vpop.f32.mrb[0].mxu0
        %5060 = vmatprep.mubr.bf16.mxu0 %v4995
        %5061 = vmatmul.mubr.bf16.gmra.mrb[0].mxu0 %v4900
        %v5062 = vpop.f32.mrb[0].mxu0
        %v5063 = vadd.f32 %v4915, %v5062
        %v5064 = vpop.f32.mrb[0].mxu0
        %v5065 = vpop.f32.mrb[0].mxu0
        %v5066 = vadd.f32 %v4915, %v5065
        %v5067 = vpop.f32.mrb[0].mxu0
        %5068 = vmatprep.mubr.bf16.mxu0 %v4998
        %5069 = vmatmul.mubr.bf16.gmra.mrb[0].mxu0 %v4902
        %v5070 = vpop.f32.mrb[0].mxu0
        %v5071 = vadd.f32 %v4915, %v5070
        %v5072 = vpop.f32.mrb[0].mxu0
        %v5073 = vpop.f32.mrb[0].mxu0
        %v5074 = vadd.f32 %v4915, %v5073
        %v5075 = vpop.f32.mrb[0].mxu0
        %5076 = vmatprep.mubr.bf16.mxu0 %v5001
        %5077 = vmatmul.mubr.bf16.gmra.mrb[0].mxu0 %v4904
        %v5078 = vpop.f32.mrb[0].mxu0
        %v5079 = vadd.f32 %v4915, %v5078
        %v5080 = vpop.f32.mrb[0].mxu0
        %v5081 = vpop.f32.mrb[0].mxu0
        %v5082 = vadd.f32 %v4915, %v5081
        %v5083 = vpop.f32.mrb[0].mxu0
        %5084 = vmatprep.mubr.bf16.mxu0 %v5004
        %5085 = vmatmul.mubr.bf16.gmra.mrb[0].mxu0 %v4906
        %v5086 = vpop.f32.mrb[0].mxu0
        %v5087 = vadd.f32 %v4915, %v5086
        %v5088 = vpop.f32.mrb[0].mxu0
        %v5089 = vpop.f32.mrb[0].mxu0
        %v5090 = vadd.f32 %v4915, %v5089
        %v5091 = vpop.f32.mrb[0].mxu0
        %5092 = vmatprep.mubr.bf16.mxu0 %v5007
        %5093 = vmatmul.mubr.bf16.gmra.mrb[0].mxu0 %v4908
        %v5094 = vpop.f32.mrb[0].mxu0
        %v5095 = vadd.f32 %v4915, %v5094
        %v5096 = vpop.f32.mrb[0].mxu0
        %v5097 = vpop.f32.mrb[0].mxu0
        %v5098 = vadd.f32 %v4915, %v5097
        %v5099 = vpop.f32.mrb[0].mxu0
        %5100 = vmatprep.mubr.bf16.mxu0 %v5010
        %5101 = vmatmul.mubr.bf16.gmra.mrb[0].mxu0 %v4910
        %v5102 = vpop.f32.mrb[0].mxu0
        %v5103 = vadd.f32 %v4915, %v5102
        %v5104 = vpop.f32.mrb[0].mxu0
        %v5105 = vpop.f32.mrb[0].mxu0
        %v5106 = vadd.f32 %v4915, %v5105
        %v5107 = vpop.f32.mrb[0].mxu0
        %5108 = vdwg.mxu0
        %vm5109 = vcmp.gt.f32.partialorder %v5047, 0.0
        %vm5110 = vcmp.gt.f32.partialorder %v5050, 0.0
        %vm5111 = vcmp.gt.f32.partialorder %v5055, 0.0
        %vm5112 = vcmp.gt.f32.partialorder %v5058, 0.0
        %vm5113 = vcmp.gt.f32.partialorder %v5063, 0.0
        %vm5114 = vcmp.gt.f32.partialorder %v5066, 0.0
        %vm5115 = vcmp.gt.f32.partialorder %v5071, 0.0
        %vm5116 = vcmp.gt.f32.partialorder %v5074, 0.0
        %vm5117 = vcmp.gt.f32.partialorder %v5079, 0.0
        %vm5118 = vcmp.gt.f32.partialorder %v5082, 0.0
        %vm5119 = vcmp.gt.f32.partialorder %v5087, 0.0
        %vm5120 = vcmp.gt.f32.partialorder %v5090, 0.0
        %vm5121 = vcmp.gt.f32.partialorder %v5095, 0.0
        %vm5122 = vcmp.gt.f32.partialorder %v5098, 0.0
        %vm5123 = vcmp.gt.f32.partialorder %v5103, 0.0
        %vm5124 = vcmp.gt.f32.partialorder %v5106, 0.0
        %v5125 = vlaneseq
        %v5126 = vshrl.u32 %v5125, 7
        %v5127 = vsub.s32 0, %v5126
        %v5128 = vrot.slane %v692, %v5127
        %v5129 = vmul.f32 %v5128, %v5047
        %v5130 = vmul.f32 %v5128, %v5050
        %v5131 = vmul.f32 %v5128, %v5055
        %v5132 = vmul.f32 %v5128, %v5058
        %v5133 = vmul.f32 %v5128, %v5063
        %v5134 = vmul.f32 %v5128, %v5066
        %v5135 = vmul.f32 %v5128, %v5071
        %v5136 = vmul.f32 %v5128, %v5074
        %v5137 = vmul.f32 %v5128, %v5079
        %v5138 = vmul.f32 %v5128, %v5082
        %v5139 = vmul.f32 %v5128, %v5087
        %v5140 = vmul.f32 %v5128, %v5090
        %v5141 = vmul.f32 %v5128, %v5095
        %v5142 = vmul.f32 %v5128, %v5098
        %v5143 = vmul.f32 %v5128, %v5103
        %v5144 = vmul.f32 %v5128, %v5106
        %v5145 = vsel %vm5109, %v5047, %v5129
        %v5146 = vsel %vm5110, %v5050, %v5130
        %v5147 = vsel %vm5111, %v5055, %v5131
        %v5148 = vsel %vm5112, %v5058, %v5132
        %v5149 = vsel %vm5113, %v5063, %v5133
        %v5150 = vsel %vm5114, %v5066, %v5134
        %v5151 = vsel %vm5115, %v5071, %v5135
        %v5152 = vsel %vm5116, %v5074, %v5136
        %v5153 = vsel %vm5117, %v5079, %v5137
        %v5154 = vsel %vm5118, %v5082, %v5138
        %v5155 = vsel %vm5119, %v5087, %v5139
        %v5156 = vsel %vm5120, %v5090, %v5140
        %v5157 = vsel %vm5121, %v5095, %v5141
        %v5158 = vsel %vm5122, %v5098, %v5142
        %v5159 = vsel %vm5123, %v5103, %v5143
        %v5160 = vsel %vm5124, %v5106, %v5144
        %v5161 = vld [vmem:[%s15] sm:$0xf]
        %v5162 = vld [vmem:[%s15 + $0x4] sm:$0xf]
        %v5163 = vld [vmem:[%s15 + $0x8] sm:$0xf]
        %v5164 = vld [vmem:[%s15 + $0xc] sm:$0xf]
        %v5165 = vld [vmem:[%s15 + $0x10] sm:$0xf]
        %v5166 = vld [vmem:[%s15 + $0x14] sm:$0xf]
        %v5167 = vld [vmem:[%s15 + $0x18] sm:$0xf]
        %v5168 = vld [vmem:[%s15 + $0x1c] sm:$0xf]
        %v5169 = vld [vmem:[%s15 + $0x20] sm:$0xf]
        %v5170 = vld [vmem:[%s15 + $0x24] sm:$0xf]
        %v5171 = vld [vmem:[%s15 + $0x28] sm:$0xf]
        %v5172 = vld [vmem:[%s15 + $0x2c] sm:$0xf]
        %v5173 = vld [vmem:[%s15 + $0x30] sm:$0xf]
        %v5174 = vld [vmem:[%s15 + $0x34] sm:$0xf]
        %v5175 = vld [vmem:[%s15 + $0x38] sm:$0xf]
        %v5176 = vld [vmem:[%s15 + $0x3c] sm:$0xf]
        %v5177 = vld [vmem:[%s15 + $0x40] sm:$0xf]
        %v5178 = vld [vmem:[%s15 + $0x44] sm:$0xf]
        %v5179 = vld [vmem:[%s15 + $0x48] sm:$0xf]
        %v5180 = vld [vmem:[%s15 + $0x4c] sm:$0xf]
        %v5181 = vld [vmem:[%s15 + $0x50] sm:$0xf]
        %v5182 = vld [vmem:[%s15 + $0x54] sm:$0xf]
        %v5183 = vld [vmem:[%s15 + $0x58] sm:$0xf]
        %v5184 = vld [vmem:[%s15 + $0x5c] sm:$0xf]
        %5185 = vset.pattern.permute.xlu0 6
        %5186 = vperm.xlu0 %5185, %v674
        %v5187 = vpop.permute.xlu0 %5186
        %5189 = vset.pattern.permute.xlu0 6
        %5190 = vperm.xlu0 %5189, %v675
        %v5191 = vpop.permute.xlu0 %5190
        %5193 = vset.pattern.permute.xlu0 6
        %5194 = vperm.xlu0 %5193, %v676
        %v5195 = vpop.permute.xlu0 %5194
        %5197 = vset.pattern.permute.xlu0 6
        %5198 = vperm.xlu0 %5197, %v677
        %v5199 = vpop.permute.xlu0 %5198
        %5201 = vset.pattern.permute.xlu0 6
        %5202 = vperm.xlu0 %5201, %v678
        %v5203 = vpop.permute.xlu0 %5202
        %5205 = vset.pattern.permute.xlu0 6
        %5206 = vperm.xlu0 %5205, %v679
        %v5207 = vpop.permute.xlu0 %5206
        %5209 = vset.pattern.permute.xlu0 6
        %5210 = vperm.xlu0 %5209, %v680
        %v5211 = vpop.permute.xlu0 %5210
        %5213 = vset.pattern.permute.xlu0 6
        %5214 = vperm.xlu0 %5213, %v681
        %v5215 = vpop.permute.xlu0 %5214
        %5217 = vset.pattern.permute.xlu0 6
        %5218 = vperm.xlu0 %5217, %v682
        %v5219 = vpop.permute.xlu0 %5218
        %5221 = vset.pattern.permute.xlu0 6
        %5222 = vperm.xlu0 %5221, %v683
        %v5223 = vpop.permute.xlu0 %5222
        %5225 = vset.pattern.permute.xlu0 6
        %5226 = vperm.xlu0 %5225, %v684
        %v5227 = vpop.permute.xlu0 %5226
        %5229 = vset.pattern.permute.xlu0 6
        %5230 = vperm.xlu0 %5229, %v685
        %v5231 = vpop.permute.xlu0 %5230
        %5233 = vset.pattern.permute.xlu0 6
        %5234 = vperm.xlu0 %5233, %v686
        %v5235 = vpop.permute.xlu0 %5234
        %5237 = vset.pattern.permute.xlu0 6
        %5238 = vperm.xlu0 %5237, %v687
        %v5239 = vpop.permute.xlu0 %5238
        %5241 = vset.pattern.permute.xlu0 6
        %5242 = vperm.xlu0 %5241, %v688
        %v5243 = vpop.permute.xlu0 %5242
        %5245 = vset.pattern.permute.xlu0 6
        %5246 = vperm.xlu0 %5245, %v689
        %v5247 = vpop.permute.xlu0 %5246
        %v5249 = vmul.f32 %v5160, %v5187
        %v5250 = vmul.f32 %v5145, %v5191
        %v5251 = vmul.f32 %v5146, %v5195
        %v5252 = vmul.f32 %v5147, %v5199
        %v5253 = vmul.f32 %v5148, %v5203
        %v5254 = vmul.f32 %v5149, %v5207
        %v5255 = vmul.f32 %v5150, %v5211
        %v5256 = vmul.f32 %v5151, %v5215
        %v5257 = vmul.f32 %v5152, %v5219
        %v5258 = vmul.f32 %v5153, %v5223
        %v5259 = vmul.f32 %v5154, %v5227
        %v5260 = vmul.f32 %v5155, %v5231
        %v5261 = vmul.f32 %v5156, %v5235
        %v5262 = vmul.f32 %v5157, %v5239
        %v5263 = vmul.f32 %v5158, %v5243
        %v5264 = vmul.f32 %v5159, %v5247
        %5265 = vset.pattern.permute.xlu0 7
        %5266 = vperm.xlu0 %5265, %v674
        %v5267 = vpop.permute.xlu0 %5266
        %5269 = vset.pattern.permute.xlu0 7
        %5270 = vperm.xlu0 %5269, %v675
        %v5271 = vpop.permute.xlu0 %5270
        %5273 = vset.pattern.permute.xlu0 7
        %5274 = vperm.xlu0 %5273, %v676
        %v5275 = vpop.permute.xlu0 %5274
        %5277 = vset.pattern.permute.xlu0 7
        %5278 = vperm.xlu0 %5277, %v677
        %v5279 = vpop.permute.xlu0 %5278
        %5281 = vset.pattern.permute.xlu0 7
        %5282 = vperm.xlu0 %5281, %v678
        %v5283 = vpop.permute.xlu0 %5282
        %5285 = vset.pattern.permute.xlu0 7
        %5286 = vperm.xlu0 %5285, %v679
        %v5287 = vpop.permute.xlu0 %5286
        %5289 = vset.pattern.permute.xlu0 7
        %5290 = vperm.xlu0 %5289, %v680
        %v5291 = vpop.permute.xlu0 %5290
        %5293 = vset.pattern.permute.xlu0 7
        %5294 = vperm.xlu0 %5293, %v681
        %v5295 = vpop.permute.xlu0 %5294
        %5297 = vset.pattern.permute.xlu0 7
        %5298 = vperm.xlu0 %5297, %v682
        %v5299 = vpop.permute.xlu0 %5298
        %5301 = vset.pattern.permute.xlu0 7
        %5302 = vperm.xlu0 %5301, %v683
        %v5303 = vpop.permute.xlu0 %5302
        %5305 = vset.pattern.permute.xlu0 7
        %5306 = vperm.xlu0 %5305, %v684
        %v5307 = vpop.permute.xlu0 %5306
        %5309 = vset.pattern.permute.xlu0 7
        %5310 = vperm.xlu0 %5309, %v685
        %v5311 = vpop.permute.xlu0 %5310
        %5313 = vset.pattern.permute.xlu0 7
        %5314 = vperm.xlu0 %5313, %v686
        %v5315 = vpop.permute.xlu0 %5314
        %5317 = vset.pattern.permute.xlu0 7
        %5318 = vperm.xlu0 %5317, %v687
        %v5319 = vpop.permute.xlu0 %5318
        %5321 = vset.pattern.permute.xlu0 7
        %5322 = vperm.xlu0 %5321, %v688
        %v5323 = vpop.permute.xlu0 %5322
        %5325 = vset.pattern.permute.xlu0 7
        %5326 = vperm.xlu0 %5325, %v689
        %v5327 = vpop.permute.xlu0 %5326
        %v5329 = vmul.f32 %v5146, %v5267
        %v5330 = vmul.f32 %v5147, %v5271
        %v5331 = vmul.f32 %v5148, %v5275
        %v5332 = vmul.f32 %v5149, %v5279
        %v5333 = vmul.f32 %v5150, %v5283
        %v5334 = vmul.f32 %v5151, %v5287
        %v5335 = vmul.f32 %v5152, %v5291
        %v5336 = vmul.f32 %v5153, %v5295
        %v5337 = vmul.f32 %v5154, %v5299
        %v5338 = vmul.f32 %v5155, %v5303
        %v5339 = vmul.f32 %v5156, %v5307
        %v5340 = vmul.f32 %v5157, %v5311
        %v5341 = vmul.f32 %v5158, %v5315
        %v5342 = vmul.f32 %v5159, %v5319
        %v5343 = vmul.f32 %v5160, %v5323
        %v5344 = vmul.f32 %v5145, %v5327
        %5361 = vrot.lane.b32.xlu0 %v5145, 64
        %v5362 = vpop.permute.xlu0 %5361
        %5363 = vrot.lane.b32.xlu0 %v5146, 64
        %v5364 = vpop.permute.xlu0 %5363
        %5365 = vrot.lane.b32.xlu0 %v5147, 64
        %v5366 = vpop.permute.xlu0 %5365
        %5367 = vrot.lane.b32.xlu0 %v5148, 64
        %v5368 = vpop.permute.xlu0 %5367
        %5369 = vrot.lane.b32.xlu0 %v5149, 64
        %v5370 = vpop.permute.xlu0 %5369
        %5371 = vrot.lane.b32.xlu0 %v5150, 64
        %v5372 = vpop.permute.xlu0 %5371
        %5373 = vrot.lane.b32.xlu0 %v5151, 64
        %v5374 = vpop.permute.xlu0 %5373
        %5375 = vrot.lane.b32.xlu0 %v5152, 64
        %v5376 = vpop.permute.xlu0 %5375
        %5377 = vrot.lane.b32.xlu0 %v5153, 64
        %v5378 = vpop.permute.xlu0 %5377
        %5379 = vrot.lane.b32.xlu0 %v5154, 64
        %v5380 = vpop.permute.xlu0 %5379
        %5381 = vrot.lane.b32.xlu0 %v5155, 64
        %v5382 = vpop.permute.xlu0 %5381
        %5383 = vrot.lane.b32.xlu0 %v5156, 64
        %v5384 = vpop.permute.xlu0 %5383
        %5385 = vrot.lane.b32.xlu0 %v5157, 64
        %v5386 = vpop.permute.xlu0 %5385
        %5387 = vrot.lane.b32.xlu0 %v5158, 64
        %v5388 = vpop.permute.xlu0 %5387
        %5389 = vrot.lane.b32.xlu0 %v5159, 64
        %v5390 = vpop.permute.xlu0 %5389
        %5391 = vrot.lane.b32.xlu0 %v5160, 64
        %v5392 = vpop.permute.xlu0 %5391
        %v5409 = vsel %vm735, %v5249, %v5362
        %v5410 = vsel %vm735, %v5250, %v5364
        %v5411 = vsel %vm735, %v5251, %v5366
        %v5412 = vsel %vm735, %v5252, %v5368
        %v5413 = vsel %vm735, %v5253, %v5370
        %v5414 = vsel %vm735, %v5254, %v5372
        %v5415 = vsel %vm735, %v5255, %v5374
        %v5416 = vsel %vm735, %v5256, %v5376
        %v5417 = vsel %vm735, %v5257, %v5378
        %v5418 = vsel %vm735, %v5258, %v5380
        %v5419 = vsel %vm735, %v5259, %v5382
        %v5420 = vsel %vm735, %v5260, %v5384
        %v5421 = vsel %vm735, %v5261, %v5386
        %v5422 = vsel %vm735, %v5262, %v5388
        %v5423 = vsel %vm735, %v5263, %v5390
        %v5424 = vsel %vm735, %v5264, %v5392
        %v5425 = vpack.c.bf16 %v5410, %v5409
        %v5426 = vpack.c.bf16 %v5330, %v5329
        %v5427 = vpack.c.bf16 %v5412, %v5411
        %v5428 = vpack.c.bf16 %v5332, %v5331
        %v5429 = vpack.c.bf16 %v5414, %v5413
        %v5430 = vpack.c.bf16 %v5334, %v5333
        %v5431 = vpack.c.bf16 %v5416, %v5415
        %v5432 = vpack.c.bf16 %v5336, %v5335
        %v5433 = vpack.c.bf16 %v5418, %v5417
        %v5434 = vpack.c.bf16 %v5338, %v5337
        %v5435 = vpack.c.bf16 %v5420, %v5419
        %v5436 = vpack.c.bf16 %v5340, %v5339
        %v5437 = vpack.c.bf16 %v5422, %v5421
        %v5438 = vpack.c.bf16 %v5342, %v5341
        %v5439 = vpack.c.bf16 %v5424, %v5423
        %v5440 = vpack.c.bf16 %v5344, %v5343
        %v5441 = vlaneseq
        %v5442 = vshrl.u32 %v5441, 7
        %v5443 = vsub.s32 1, %v5442
        %v5444 = vrot.slane %v692, %v5443
        %v5469 = vunpack.c.l.b16 %v5161
        %v5470 = vunpack.c.l.b16 %v5162
        %v5471 = vunpack.c.l.b16 %v5163
        %v5472 = vunpack.c.l.b16 %v5164
        %v5473 = vunpack.c.l.b16 %v5165
        %v5474 = vunpack.c.l.b16 %v5166
        %v5475 = vunpack.c.l.b16 %v5167
        %v5476 = vunpack.c.l.b16 %v5168
        %v5477 = vunpack.c.l.b16 %v5169
        %v5478 = vunpack.c.l.b16 %v5170
        %v5479 = vunpack.c.l.b16 %v5171
        %v5480 = vunpack.c.l.b16 %v5172
        %v5481 = vunpack.c.l.b16 %v5173
        %v5482 = vunpack.c.l.b16 %v5174
        %v5483 = vunpack.c.l.b16 %v5175
        %v5484 = vunpack.c.l.b16 %v5176
        %v5485 = vunpack.c.l.b16 %v5177
        %v5486 = vunpack.c.l.b16 %v5178
        %v5487 = vunpack.c.l.b16 %v5179
        %v5488 = vunpack.c.l.b16 %v5180
        %v5489 = vunpack.c.l.b16 %v5181
        %v5490 = vunpack.c.l.b16 %v5182
        %v5491 = vunpack.c.l.b16 %v5183
        %v5492 = vunpack.c.l.b16 %v5184
        %v5493 = vpack.c.b16 %v5470, %v5469
        %v5494 = vpack.c.b16 %v5472, %v5471
        %v5495 = vpack.c.b16 %v5474, %v5473
        %v5496 = vpack.c.b16 %v5476, %v5475
        %v5497 = vpack.c.b16 %v5478, %v5477
        %v5498 = vpack.c.b16 %v5480, %v5479
        %v5499 = vpack.c.b16 %v5482, %v5481
        %v5500 = vpack.c.b16 %v5484, %v5483
        %v5501 = vpack.c.b16 %v5486, %v5485
        %v5502 = vpack.c.b16 %v5488, %v5487
        %v5503 = vpack.c.b16 %v5490, %v5489
        %v5504 = vpack.c.b16 %v5492, %v5491
        %v5518 = vsel %vm735, %v5426, 0
        %v5521 = vsel %vm735, %v5428, 0
        %v5524 = vsel %vm735, %v5430, 0
        %v5527 = vsel %vm735, %v5432, 0
        %v5530 = vsel %vm735, %v5434, 0
        %v5533 = vsel %vm735, %v5436, 0
        %v5536 = vsel %vm735, %v5438, 0
        %v5539 = vsel %vm735, %v5440, 0
        %5541 = vmatprep.subr.bf16.mxu0 0
        %5542 = vmatpush1.bf16.msra.mxu0 %v5493
        %5543 = vmatprep.subr.bf16.mxu0 0
        %5544 = vmatpush1.bf16.msra.mxu0 %v5494
        %5545 = vmatprep.subr.bf16.mxu0 0
        %5546 = vmatpush1.bf16.msra.mxu0 %v5495
        %5547 = vmatprep.subr.bf16.mxu0 0
        %5548 = vmatpush1.bf16.msra.mxu0 %v5496
        %5549 = vmatprep.subr.bf16.mxu0 0
        %5550 = vmatpush1.bf16.msra.mxu0 %v5497
        %5551 = vmatprep.subr.bf16.mxu0 0
        %5552 = vmatpush1.bf16.msra.mxu0 %v5498
        %5553 = vmatprep.subr.bf16.mxu0 0
        %5554 = vmatpush1.bf16.msra.mxu0 %v5499
        %5555 = vmatprep.subr.bf16.mxu0 0
        %5556 = vmatpush1.bf16.msra.mxu0 %v5500
        %5557 = vmatprep.subr.bf16.mxu0 0
        %5558 = vmatpush1.bf16.msra.mxu0 %v5501
        %5559 = vmatprep.subr.bf16.mxu0 0
        %5560 = vmatpush1.bf16.msra.mxu0 %v5502
        %5561 = vmatprep.subr.bf16.mxu0 0
        %5562 = vmatpush1.bf16.msra.mxu0 %v5503
        %5563 = vmatprep.subr.bf16.mxu0 0
        %5564 = vmatpush1.bf16.msra.mxu0 %v5504
        %5565 = vmatprep.subr.bf16.mxu0 0
        %5566 = vmatpush1.bf16.msra.mxu0 0
        %5567 = vmatprep.subr.bf16.mxu0 0
        %5568 = vmatpush1.bf16.msra.mxu0 0
        %5569 = vmatprep.subr.bf16.mxu0 0
        %5570 = vmatpush1.bf16.msra.mxu0 0
        %5571 = vmatprep.subr.bf16.mxu0 0
        %5572 = vmatpush1.bf16.msra.mxu0 0
        %5573 = vmatprep.mubr.bf16.mxu0 %v5518
        %5574 = vmatmul.mubr.bf16.gmra.mrb[0].mxu0 %v5425
        %v5575 = vpop.f32.mrb[0].mxu0
        %v5576 = vadd.f32 %v5444, %v5575
        %v5577 = vpop.f32.mrb[0].mxu0
        %v5578 = vpop.f32.mrb[0].mxu0
        %v5579 = vadd.f32 %v5444, %v5578
        %v5580 = vpop.f32.mrb[0].mxu0
        %5581 = vmatprep.mubr.bf16.mxu0 %v5521
        %5582 = vmatmul.mubr.bf16.gmra.mrb[0].mxu0 %v5427
        %v5583 = vpop.f32.mrb[0].mxu0
        %v5584 = vadd.f32 %v5444, %v5583
        %v5585 = vpop.f32.mrb[0].mxu0
        %v5586 = vpop.f32.mrb[0].mxu0
        %v5587 = vadd.f32 %v5444, %v5586
        %v5588 = vpop.f32.mrb[0].mxu0
        %5589 = vmatprep.mubr.bf16.mxu0 %v5524
        %5590 = vmatmul.mubr.bf16.gmra.mrb[0].mxu0 %v5429
        %v5591 = vpop.f32.mrb[0].mxu0
        %v5592 = vadd.f32 %v5444, %v5591
        %v5593 = vpop.f32.mrb[0].mxu0
        %v5594 = vpop.f32.mrb[0].mxu0
        %v5595 = vadd.f32 %v5444, %v5594
        %v5596 = vpop.f32.mrb[0].mxu0
        %5597 = vmatprep.mubr.bf16.mxu0 %v5527
        %5598 = vmatmul.mubr.bf16.gmra.mrb[0].mxu0 %v5431
        %v5599 = vpop.f32.mrb[0].mxu0
        %v5600 = vadd.f32 %v5444, %v5599
        %v5601 = vpop.f32.mrb[0].mxu0
        %v5602 = vpop.f32.mrb[0].mxu0
        %v5603 = vadd.f32 %v5444, %v5602
        %v5604 = vpop.f32.mrb[0].mxu0
        %5605 = vmatprep.mubr.bf16.mxu0 %v5530
        %5606 = vmatmul.mubr.bf16.gmra.mrb[0].mxu0 %v5433
        %v5607 = vpop.f32.mrb[0].mxu0
        %v5608 = vadd.f32 %v5444, %v5607
        %v5609 = vpop.f32.mrb[0].mxu0
        %v5610 = vpop.f32.mrb[0].mxu0
        %v5611 = vadd.f32 %v5444, %v5610
        %v5612 = vpop.f32.mrb[0].mxu0
        %5613 = vmatprep.mubr.bf16.mxu0 %v5533
        %5614 = vmatmul.mubr.bf16.gmra.mrb[0].mxu0 %v5435
        %v5615 = vpop.f32.mrb[0].mxu0
        %v5616 = vadd.f32 %v5444, %v5615
        %v5617 = vpop.f32.mrb[0].mxu0
        %v5618 = vpop.f32.mrb[0].mxu0
        %v5619 = vadd.f32 %v5444, %v5618
        %v5620 = vpop.f32.mrb[0].mxu0
        %5621 = vmatprep.mubr.bf16.mxu0 %v5536
        %5622 = vmatmul.mubr.bf16.gmra.mrb[0].mxu0 %v5437
        %v5623 = vpop.f32.mrb[0].mxu0
        %v5624 = vadd.f32 %v5444, %v5623
        %v5625 = vpop.f32.mrb[0].mxu0
        %v5626 = vpop.f32.mrb[0].mxu0
        %v5627 = vadd.f32 %v5444, %v5626
        %v5628 = vpop.f32.mrb[0].mxu0
        %5629 = vmatprep.mubr.bf16.mxu0 %v5539
        %5630 = vmatmul.mubr.bf16.gmra.mrb[0].mxu0 %v5439
        %v5631 = vpop.f32.mrb[0].mxu0
        %v5632 = vadd.f32 %v5444, %v5631
        %v5633 = vpop.f32.mrb[0].mxu0
        %v5634 = vpop.f32.mrb[0].mxu0
        %v5635 = vadd.f32 %v5444, %v5634
        %v5636 = vpop.f32.mrb[0].mxu0
        %5637 = vdwg.mxu0
        %v5638 = vld [vmem:[%s16] sm:$0xf]
        %v5639 = vld [vmem:[%s16 + $0x4] sm:$0xf]
        %v5640 = vld [vmem:[%s16 + $0x8] sm:$0xf]
        %v5641 = vld [vmem:[%s16 + $0xc] sm:$0xf]
        %v5642 = vld [vmem:[%s16 + $0x10] sm:$0xf]
        %v5643 = vld [vmem:[%s16 + $0x14] sm:$0xf]
        %v5644 = vld [vmem:[%s16 + $0x18] sm:$0xf]
        %v5645 = vld [vmem:[%s16 + $0x1c] sm:$0xf]
        %v5646 = vpack.c.bf16 %v4713, %v4712
        %v5647 = vpack.c.bf16 %v4715, %v4714
        %v5648 = vpack.c.bf16 %v4717, %v4716
        %v5649 = vpack.c.bf16 %v4719, %v4718
        %v5650 = vpack.c.bf16 %v4721, %v4720
        %v5651 = vpack.c.bf16 %v4723, %v4722
        %v5652 = vpack.c.bf16 %v4725, %v4724
        %v5653 = vpack.c.bf16 %v4727, %v4726
        %v5654 = vlaneseq
        %v5655 = vshrl.u32 %v5654, 7
        %v5656 = vsub.s32 3, %v5655
        %v5657 = vrot.slane %v692, %v5656
        %v5666 = vunpack.c.l.b16 %v5638
        %v5667 = vunpack.c.l.b16 %v5639
        %v5668 = vunpack.c.l.b16 %v5640
        %v5669 = vunpack.c.l.b16 %v5641
        %v5670 = vunpack.c.l.b16 %v5642
        %v5671 = vunpack.c.l.b16 %v5643
        %v5672 = vunpack.c.l.b16 %v5644
        %v5673 = vunpack.c.l.b16 %v5645
        %v5674 = vpack.c.b16 %v5667, %v5666
        %v5675 = vpack.c.b16 %v5669, %v5668
        %v5676 = vpack.c.b16 %v5671, %v5670
        %v5677 = vpack.c.b16 %v5673, %v5672
        %v5683 = vsel %vm735, %v5646, 0
        %v5686 = vsel %vm735, %v5647, 0
        %v5689 = vsel %vm735, %v5648, 0
        %v5692 = vsel %vm735, %v5649, 0
        %v5695 = vsel %vm735, %v5650, 0
        %v5698 = vsel %vm735, %v5651, 0
        %v5701 = vsel %vm735, %v5652, 0
        %v5704 = vsel %vm735, %v5653, 0
        %5706 = vmatprep.subr.bf16.mxu0 0
        %5707 = vmatpush1.bf16.msra.mxu0 %v5674
        %5708 = vmatprep.subr.bf16.mxu0 0
        %5709 = vmatpush1.bf16.msra.mxu0 %v5675
        %5710 = vmatprep.subr.bf16.mxu0 0
        %5711 = vmatpush1.bf16.msra.mxu0 %v5676
        %5712 = vmatprep.subr.bf16.mxu0 0
        %5713 = vmatpush1.bf16.msra.mxu0 %v5677
        %5714 = vmatprep.subr.bf16.mxu0 0
        %5715 = vmatpush1.bf16.msra.mxu0 0
        %5716 = vmatprep.subr.bf16.mxu0 0
        %5717 = vmatpush1.bf16.msra.mxu0 0
        %5718 = vmatprep.subr.bf16.mxu0 0
        %5719 = vmatpush1.bf16.msra.mxu0 0
        %5720 = vmatprep.subr.bf16.mxu0 0
        %5721 = vmatpush1.bf16.msra.mxu0 0
        %5722 = vmatprep.subr.bf16.mxu0 0
        %5723 = vmatpush1.bf16.msra.mxu0 0
        %5724 = vmatprep.subr.bf16.mxu0 0
        %5725 = vmatpush1.bf16.msra.mxu0 0
        %5726 = vmatprep.subr.bf16.mxu0 0
        %5727 = vmatpush1.bf16.msra.mxu0 0
        %5728 = vmatprep.subr.bf16.mxu0 0
        %5729 = vmatpush1.bf16.msra.mxu0 0
        %5730 = vmatprep.subr.bf16.mxu0 0
        %5731 = vmatpush1.bf16.msra.mxu0 0
        %5732 = vmatprep.subr.bf16.mxu0 0
        %5733 = vmatpush1.bf16.msra.mxu0 0
        %5734 = vmatprep.subr.bf16.mxu0 0
        %5735 = vmatpush1.bf16.msra.mxu0 0
        %5736 = vmatprep.subr.bf16.mxu0 0
        %5737 = vmatpush1.bf16.msra.mxu0 0
        %5738 = vmatprep.mubr.bf16.mxu0 0
        %5739 = vmatmul.mubr.bf16.gmra.mrb[0].mxu0 %v5683
        %v5740 = vpop.f32.mrb[0].mxu0
        %v5741 = vadd.f32 %v5657, %v5740
        %v5742 = vpop.f32.mrb[0].mxu0
        %v5743 = vpop.f32.mrb[0].mxu0
        %v5744 = vadd.f32 %v5657, %v5743
        %v5745 = vpop.f32.mrb[0].mxu0
        %5746 = vmatprep.mubr.bf16.mxu0 0
        %5747 = vmatmul.mubr.bf16.gmra.mrb[0].mxu0 %v5686
        %v5748 = vpop.f32.mrb[0].mxu0
        %v5749 = vadd.f32 %v5657, %v5748
        %v5750 = vpop.f32.mrb[0].mxu0
        %v5751 = vpop.f32.mrb[0].mxu0
        %v5752 = vadd.f32 %v5657, %v5751
        %v5753 = vpop.f32.mrb[0].mxu0
        %5754 = vmatprep.mubr.bf16.mxu0 0
        %5755 = vmatmul.mubr.bf16.gmra.mrb[0].mxu0 %v5689
        %v5756 = vpop.f32.mrb[0].mxu0
        %v5757 = vadd.f32 %v5657, %v5756
        %v5758 = vpop.f32.mrb[0].mxu0
        %v5759 = vpop.f32.mrb[0].mxu0
        %v5760 = vadd.f32 %v5657, %v5759
        %v5761 = vpop.f32.mrb[0].mxu0
        %5762 = vmatprep.mubr.bf16.mxu0 0
        %5763 = vmatmul.mubr.bf16.gmra.mrb[0].mxu0 %v5692
        %v5764 = vpop.f32.mrb[0].mxu0
        %v5765 = vadd.f32 %v5657, %v5764
        %v5766 = vpop.f32.mrb[0].mxu0
        %v5767 = vpop.f32.mrb[0].mxu0
        %v5768 = vadd.f32 %v5657, %v5767
        %v5769 = vpop.f32.mrb[0].mxu0
        %5770 = vmatprep.mubr.bf16.mxu0 0
        %5771 = vmatmul.mubr.bf16.gmra.mrb[0].mxu0 %v5695
        %v5772 = vpop.f32.mrb[0].mxu0
        %v5773 = vadd.f32 %v5657, %v5772
        %v5774 = vpop.f32.mrb[0].mxu0
        %v5775 = vpop.f32.mrb[0].mxu0
        %v5776 = vadd.f32 %v5657, %v5775
        %v5777 = vpop.f32.mrb[0].mxu0
        %5778 = vmatprep.mubr.bf16.mxu0 0
        %5779 = vmatmul.mubr.bf16.gmra.mrb[0].mxu0 %v5698
        %v5780 = vpop.f32.mrb[0].mxu0
        %v5781 = vadd.f32 %v5657, %v5780
        %v5782 = vpop.f32.mrb[0].mxu0
        %v5783 = vpop.f32.mrb[0].mxu0
        %v5784 = vadd.f32 %v5657, %v5783
        %v5785 = vpop.f32.mrb[0].mxu0
        %5786 = vmatprep.mubr.bf16.mxu0 0
        %5787 = vmatmul.mubr.bf16.gmra.mrb[0].mxu0 %v5701
        %v5788 = vpop.f32.mrb[0].mxu0
        %v5789 = vadd.f32 %v5657, %v5788
        %v5790 = vpop.f32.mrb[0].mxu0
        %v5791 = vpop.f32.mrb[0].mxu0
        %v5792 = vadd.f32 %v5657, %v5791
        %v5793 = vpop.f32.mrb[0].mxu0
        %5794 = vmatprep.mubr.bf16.mxu0 0
        %5795 = vmatmul.mubr.bf16.gmra.mrb[0].mxu0 %v5704
        %v5796 = vpop.f32.mrb[0].mxu0
        %v5797 = vadd.f32 %v5657, %v5796
        %v5798 = vpop.f32.mrb[0].mxu0
        %v5799 = vpop.f32.mrb[0].mxu0
        %v5800 = vadd.f32 %v5657, %v5799
        %v5801 = vpop.f32.mrb[0].mxu0
        %5802 = vdwg.mxu0
        %v5803 = vadd.f32 %v5576, %v5741
        %v5804 = vadd.f32 %v5579, %v5744
        %v5805 = vadd.f32 %v5584, %v5749
        %v5806 = vadd.f32 %v5587, %v5752
        %v5807 = vadd.f32 %v5592, %v5757
        %v5808 = vadd.f32 %v5595, %v5760
        %v5809 = vadd.f32 %v5600, %v5765
        %v5810 = vadd.f32 %v5603, %v5768
        %v5811 = vadd.f32 %v5608, %v5773
        %v5812 = vadd.f32 %v5611, %v5776
        %v5813 = vadd.f32 %v5616, %v5781
        %v5814 = vadd.f32 %v5619, %v5784
        %v5815 = vadd.f32 %v5624, %v5789
        %v5816 = vadd.f32 %v5627, %v5792
        %v5817 = vadd.f32 %v5632, %v5797
        %v5818 = vadd.f32 %v5635, %v5800
        %vm5819 = vcmp.gt.f32.partialorder %v5803, 0.0
        %vm5820 = vcmp.gt.f32.partialorder %v5804, 0.0
        %vm5821 = vcmp.gt.f32.partialorder %v5805, 0.0
        %vm5822 = vcmp.gt.f32.partialorder %v5806, 0.0
        %vm5823 = vcmp.gt.f32.partialorder %v5807, 0.0
        %vm5824 = vcmp.gt.f32.partialorder %v5808, 0.0
        %vm5825 = vcmp.gt.f32.partialorder %v5809, 0.0
        %vm5826 = vcmp.gt.f32.partialorder %v5810, 0.0
        %vm5827 = vcmp.gt.f32.partialorder %v5811, 0.0
        %vm5828 = vcmp.gt.f32.partialorder %v5812, 0.0
        %vm5829 = vcmp.gt.f32.partialorder %v5813, 0.0
        %vm5830 = vcmp.gt.f32.partialorder %v5814, 0.0
        %vm5831 = vcmp.gt.f32.partialorder %v5815, 0.0
        %vm5832 = vcmp.gt.f32.partialorder %v5816, 0.0
        %vm5833 = vcmp.gt.f32.partialorder %v5817, 0.0
        %vm5834 = vcmp.gt.f32.partialorder %v5818, 0.0
        %v5835 = vlaneseq
        %v5836 = vshrl.u32 %v5835, 7
        %v5837 = vsub.s32 2, %v5836
        %v5838 = vrot.slane %v692, %v5837
        %v5839 = vmul.f32 %v5838, %v5803
        %v5840 = vmul.f32 %v5838, %v5804
        %v5841 = vmul.f32 %v5838, %v5805
        %v5842 = vmul.f32 %v5838, %v5806
        %v5843 = vmul.f32 %v5838, %v5807
        %v5844 = vmul.f32 %v5838, %v5808
        %v5845 = vmul.f32 %v5838, %v5809
        %v5846 = vmul.f32 %v5838, %v5810
        %v5847 = vmul.f32 %v5838, %v5811
        %v5848 = vmul.f32 %v5838, %v5812
        %v5849 = vmul.f32 %v5838, %v5813
        %v5850 = vmul.f32 %v5838, %v5814
        %v5851 = vmul.f32 %v5838, %v5815
        %v5852 = vmul.f32 %v5838, %v5816
        %v5853 = vmul.f32 %v5838, %v5817
        %v5854 = vmul.f32 %v5838, %v5818
        %v5855 = vsel %vm5819, %v5803, %v5839
        %v5856 = vsel %vm5820, %v5804, %v5840
        %v5857 = vsel %vm5821, %v5805, %v5841
        %v5858 = vsel %vm5822, %v5806, %v5842
        %v5859 = vsel %vm5823, %v5807, %v5843
        %v5860 = vsel %vm5824, %v5808, %v5844
        %v5861 = vsel %vm5825, %v5809, %v5845
        %v5862 = vsel %vm5826, %v5810, %v5846
        %v5863 = vsel %vm5827, %v5811, %v5847
        %v5864 = vsel %vm5828, %v5812, %v5848
        %v5865 = vsel %vm5829, %v5813, %v5849
        %v5866 = vsel %vm5830, %v5814, %v5850
        %v5867 = vsel %vm5831, %v5815, %v5851
        %v5868 = vsel %vm5832, %v5816, %v5852
        %v5869 = vsel %vm5833, %v5817, %v5853
        %v5870 = vsel %vm5834, %v5818, %v5854
        %v5871 = vld [vmem:[%s17] sm:$0xf]
        %v5872 = vld [vmem:[%s17 + $0x4] sm:$0xf]
        %v5873 = vld [vmem:[%s17 + $0x8] sm:$0xf]
        %v5874 = vld [vmem:[%s17 + $0xc] sm:$0xf]
        %v5875 = vld [vmem:[%s17 + $0x10] sm:$0xf]
        %v5876 = vld [vmem:[%s17 + $0x14] sm:$0xf]
        %v5877 = vld [vmem:[%s17 + $0x18] sm:$0xf]
        %v5878 = vld [vmem:[%s17 + $0x1c] sm:$0xf]
        %v5879 = vld [vmem:[%s17 + $0x20] sm:$0xf]
        %v5880 = vld [vmem:[%s17 + $0x24] sm:$0xf]
        %v5881 = vld [vmem:[%s17 + $0x28] sm:$0xf]
        %v5882 = vld [vmem:[%s17 + $0x2c] sm:$0xf]
        %v5883 = vld [vmem:[%s17 + $0x30] sm:$0xf]
        %v5884 = vld [vmem:[%s17 + $0x34] sm:$0xf]
        %v5885 = vld [vmem:[%s17 + $0x38] sm:$0xf]
        %v5886 = vld [vmem:[%s17 + $0x3c] sm:$0xf]
        %v5887 = vld [vmem:[%s17 + $0x40] sm:$0xf]
        %v5888 = vld [vmem:[%s17 + $0x44] sm:$0xf]
        %v5889 = vld [vmem:[%s17 + $0x48] sm:$0xf]
        %v5890 = vld [vmem:[%s17 + $0x4c] sm:$0xf]
        %v5891 = vld [vmem:[%s17 + $0x50] sm:$0xf]
        %v5892 = vld [vmem:[%s17 + $0x54] sm:$0xf]
        %v5893 = vld [vmem:[%s17 + $0x58] sm:$0xf]
        %v5894 = vld [vmem:[%s17 + $0x5c] sm:$0xf]
        %v5895 = vmul.f32 %v5870, %v5187
        %v5896 = vmul.f32 %v5855, %v5191
        %v5897 = vmul.f32 %v5856, %v5195
        %v5898 = vmul.f32 %v5857, %v5199
        %v5899 = vmul.f32 %v5858, %v5203
        %v5900 = vmul.f32 %v5859, %v5207
        %v5901 = vmul.f32 %v5860, %v5211
        %v5902 = vmul.f32 %v5861, %v5215
        %v5903 = vmul.f32 %v5862, %v5219
        %v5904 = vmul.f32 %v5863, %v5223
        %v5905 = vmul.f32 %v5864, %v5227
        %v5906 = vmul.f32 %v5865, %v5231
        %v5907 = vmul.f32 %v5866, %v5235
        %v5908 = vmul.f32 %v5867, %v5239
        %v5909 = vmul.f32 %v5868, %v5243
        %v5910 = vmul.f32 %v5869, %v5247
        %v5911 = vmul.f32 %v5856, %v5267
        %v5912 = vmul.f32 %v5857, %v5271
        %v5913 = vmul.f32 %v5858, %v5275
        %v5914 = vmul.f32 %v5859, %v5279
        %v5915 = vmul.f32 %v5860, %v5283
        %v5916 = vmul.f32 %v5861, %v5287
        %v5917 = vmul.f32 %v5862, %v5291
        %v5918 = vmul.f32 %v5863, %v5295
        %v5919 = vmul.f32 %v5864, %v5299
        %v5920 = vmul.f32 %v5865, %v5303
        %v5921 = vmul.f32 %v5866, %v5307
        %v5922 = vmul.f32 %v5867, %v5311
        %v5923 = vmul.f32 %v5868, %v5315
        %v5924 = vmul.f32 %v5869, %v5319
        %v5925 = vmul.f32 %v5870, %v5323
        %v5926 = vmul.f32 %v5855, %v5327
        %5943 = vrot.lane.b32.xlu0 %v5855, 64
        %v5944 = vpop.permute.xlu0 %5943
        %5945 = vrot.lane.b32.xlu0 %v5856, 64
        %v5946 = vpop.permute.xlu0 %5945
        %5947 = vrot.lane.b32.xlu0 %v5857, 64
        %v5948 = vpop.permute.xlu0 %5947
        %5949 = vrot.lane.b32.xlu0 %v5858, 64
        %v5950 = vpop.permute.xlu0 %5949
        %5951 = vrot.lane.b32.xlu0 %v5859, 64
        %v5952 = vpop.permute.xlu0 %5951
        %5953 = vrot.lane.b32.xlu0 %v5860, 64
        %v5954 = vpop.permute.xlu0 %5953
        %5955 = vrot.lane.b32.xlu0 %v5861, 64
        %v5956 = vpop.permute.xlu0 %5955
        %5957 = vrot.lane.b32.xlu0 %v5862, 64
        %v5958 = vpop.permute.xlu0 %5957
        %5959 = vrot.lane.b32.xlu0 %v5863, 64
        %v5960 = vpop.permute.xlu0 %5959
        %5961 = vrot.lane.b32.xlu0 %v5864, 64
        %v5962 = vpop.permute.xlu0 %5961
        %5963 = vrot.lane.b32.xlu0 %v5865, 64
        %v5964 = vpop.permute.xlu0 %5963
        %5965 = vrot.lane.b32.xlu0 %v5866, 64
        %v5966 = vpop.permute.xlu0 %5965
        %5967 = vrot.lane.b32.xlu0 %v5867, 64
        %v5968 = vpop.permute.xlu0 %5967
        %5969 = vrot.lane.b32.xlu0 %v5868, 64
        %v5970 = vpop.permute.xlu0 %5969
        %5971 = vrot.lane.b32.xlu0 %v5869, 64
        %v5972 = vpop.permute.xlu0 %5971
        %5973 = vrot.lane.b32.xlu0 %v5870, 64
        %v5974 = vpop.permute.xlu0 %5973
        %v5991 = vsel %vm735, %v5895, %v5944
        %v5992 = vsel %vm735, %v5896, %v5946
        %v5993 = vsel %vm735, %v5897, %v5948
        %v5994 = vsel %vm735, %v5898, %v5950
        %v5995 = vsel %vm735, %v5899, %v5952
        %v5996 = vsel %vm735, %v5900, %v5954
        %v5997 = vsel %vm735, %v5901, %v5956
        %v5998 = vsel %vm735, %v5902, %v5958
        %v5999 = vsel %vm735, %v5903, %v5960
        %v6000 = vsel %vm735, %v5904, %v5962
        %v6001 = vsel %vm735, %v5905, %v5964
        %v6002 = vsel %vm735, %v5906, %v5966
        %v6003 = vsel %vm735, %v5907, %v5968
        %v6004 = vsel %vm735, %v5908, %v5970
        %v6005 = vsel %vm735, %v5909, %v5972
        %v6006 = vsel %vm735, %v5910, %v5974
        %v6007 = vpack.c.bf16 %v5992, %v5991
        %v6008 = vpack.c.bf16 %v5912, %v5911
        %v6009 = vpack.c.bf16 %v5994, %v5993
        %v6010 = vpack.c.bf16 %v5914, %v5913
        %v6011 = vpack.c.bf16 %v5996, %v5995
        %v6012 = vpack.c.bf16 %v5916, %v5915
        %v6013 = vpack.c.bf16 %v5998, %v5997
        %v6014 = vpack.c.bf16 %v5918, %v5917
        %v6015 = vpack.c.bf16 %v6000, %v5999
        %v6016 = vpack.c.bf16 %v5920, %v5919
        %v6017 = vpack.c.bf16 %v6002, %v6001
        %v6018 = vpack.c.bf16 %v5922, %v5921
        %v6019 = vpack.c.bf16 %v6004, %v6003
        %v6020 = vpack.c.bf16 %v5924, %v5923
        %v6021 = vpack.c.bf16 %v6006, %v6005
        %v6022 = vpack.c.bf16 %v5926, %v5925
        %v6023 = vlaneseq
        %v6024 = vshrl.u32 %v6023, 7
        %v6025 = vsub.s32 4, %v6024
        %v6026 = vrot.slane %v692, %v6025
        %v6051 = vunpack.c.l.b16 %v5871
        %v6052 = vunpack.c.l.b16 %v5872
        %v6053 = vunpack.c.l.b16 %v5873
        %v6054 = vunpack.c.l.b16 %v5874
        %v6055 = vunpack.c.l.b16 %v5875
        %v6056 = vunpack.c.l.b16 %v5876
        %v6057 = vunpack.c.l.b16 %v5877
        %v6058 = vunpack.c.l.b16 %v5878
        %v6059 = vunpack.c.l.b16 %v5879
        %v6060 = vunpack.c.l.b16 %v5880
        %v6061 = vunpack.c.l.b16 %v5881
        %v6062 = vunpack.c.l.b16 %v5882
        %v6063 = vunpack.c.l.b16 %v5883
        %v6064 = vunpack.c.l.b16 %v5884
        %v6065 = vunpack.c.l.b16 %v5885
        %v6066 = vunpack.c.l.b16 %v5886
        %v6067 = vunpack.c.l.b16 %v5887
        %v6068 = vunpack.c.l.b16 %v5888
        %v6069 = vunpack.c.l.b16 %v5889
        %v6070 = vunpack.c.l.b16 %v5890
        %v6071 = vunpack.c.l.b16 %v5891
        %v6072 = vunpack.c.l.b16 %v5892
        %v6073 = vunpack.c.l.b16 %v5893
        %v6074 = vunpack.c.l.b16 %v5894
        %v6075 = vpack.c.b16 %v6052, %v6051
        %v6076 = vpack.c.b16 %v6054, %v6053
        %v6077 = vpack.c.b16 %v6056, %v6055
        %v6078 = vpack.c.b16 %v6058, %v6057
        %v6079 = vpack.c.b16 %v6060, %v6059
        %v6080 = vpack.c.b16 %v6062, %v6061
        %v6081 = vpack.c.b16 %v6064, %v6063
        %v6082 = vpack.c.b16 %v6066, %v6065
        %v6083 = vpack.c.b16 %v6068, %v6067
        %v6084 = vpack.c.b16 %v6070, %v6069
        %v6085 = vpack.c.b16 %v6072, %v6071
        %v6086 = vpack.c.b16 %v6074, %v6073
        %v6100 = vsel %vm735, %v6008, 0
        %v6103 = vsel %vm735, %v6010, 0
        %v6106 = vsel %vm735, %v6012, 0
        %v6109 = vsel %vm735, %v6014, 0
        %v6112 = vsel %vm735, %v6016, 0
        %v6115 = vsel %vm735, %v6018, 0
        %v6118 = vsel %vm735, %v6020, 0
        %v6121 = vsel %vm735, %v6022, 0
        %6123 = vmatprep.subr.bf16.mxu0 0
        %6124 = vmatpush1.bf16.msra.mxu0 %v6075
        %6125 = vmatprep.subr.bf16.mxu0 0
        %6126 = vmatpush1.bf16.msra.mxu0 %v6076
        %6127 = vmatprep.subr.bf16.mxu0 0
        %6128 = vmatpush1.bf16.msra.mxu0 %v6077
        %6129 = vmatprep.subr.bf16.mxu0 0
        %6130 = vmatpush1.bf16.msra.mxu0 %v6078
        %6131 = vmatprep.subr.bf16.mxu0 0
        %6132 = vmatpush1.bf16.msra.mxu0 %v6079
        %6133 = vmatprep.subr.bf16.mxu0 0
        %6134 = vmatpush1.bf16.msra.mxu0 %v6080
        %6135 = vmatprep.subr.bf16.mxu0 0
        %6136 = vmatpush1.bf16.msra.mxu0 %v6081
        %6137 = vmatprep.subr.bf16.mxu0 0
        %6138 = vmatpush1.bf16.msra.mxu0 %v6082
        %6139 = vmatprep.subr.bf16.mxu0 0
        %6140 = vmatpush1.bf16.msra.mxu0 %v6083
        %6141 = vmatprep.subr.bf16.mxu0 0
        %6142 = vmatpush1.bf16.msra.mxu0 %v6084
        %6143 = vmatprep.subr.bf16.mxu0 0
        %6144 = vmatpush1.bf16.msra.mxu0 %v6085
        %6145 = vmatprep.subr.bf16.mxu0 0
        %6146 = vmatpush1.bf16.msra.mxu0 %v6086
        %6147 = vmatprep.subr.bf16.mxu0 0
        %6148 = vmatpush1.bf16.msra.mxu0 0
        %6149 = vmatprep.subr.bf16.mxu0 0
        %6150 = vmatpush1.bf16.msra.mxu0 0
        %6151 = vmatprep.subr.bf16.mxu0 0
        %6152 = vmatpush1.bf16.msra.mxu0 0
        %6153 = vmatprep.subr.bf16.mxu0 0
        %6154 = vmatpush1.bf16.msra.mxu0 0
        %6155 = vmatprep.mubr.bf16.mxu0 %v6100
        %6156 = vmatmul.mubr.bf16.gmra.mrb[0].mxu0 %v6007
        %v6157 = vpop.f32.mrb[0].mxu0
        %v6158 = vadd.f32 %v6026, %v6157
        %v6159 = vpop.f32.mrb[0].mxu0
        %v6160 = vpop.f32.mrb[0].mxu0
        %v6161 = vadd.f32 %v6026, %v6160
        %v6162 = vpop.f32.mrb[0].mxu0
        %6163 = vmatprep.mubr.bf16.mxu0 %v6103
        %6164 = vmatmul.mubr.bf16.gmra.mrb[0].mxu0 %v6009
        %v6165 = vpop.f32.mrb[0].mxu0
        %v6166 = vadd.f32 %v6026, %v6165
        %v6167 = vpop.f32.mrb[0].mxu0
        %v6168 = vpop.f32.mrb[0].mxu0
        %v6169 = vadd.f32 %v6026, %v6168
        %v6170 = vpop.f32.mrb[0].mxu0
        %6171 = vmatprep.mubr.bf16.mxu0 %v6106
        %6172 = vmatmul.mubr.bf16.gmra.mrb[0].mxu0 %v6011
        %v6173 = vpop.f32.mrb[0].mxu0
        %v6174 = vadd.f32 %v6026, %v6173
        %v6175 = vpop.f32.mrb[0].mxu0
        %v6176 = vpop.f32.mrb[0].mxu0
        %v6177 = vadd.f32 %v6026, %v6176
        %v6178 = vpop.f32.mrb[0].mxu0
        %6179 = vmatprep.mubr.bf16.mxu0 %v6109
        %6180 = vmatmul.mubr.bf16.gmra.mrb[0].mxu0 %v6013
        %v6181 = vpop.f32.mrb[0].mxu0
        %v6182 = vadd.f32 %v6026, %v6181
        %v6183 = vpop.f32.mrb[0].mxu0
        %v6184 = vpop.f32.mrb[0].mxu0
        %v6185 = vadd.f32 %v6026, %v6184
        %v6186 = vpop.f32.mrb[0].mxu0
        %6187 = vmatprep.mubr.bf16.mxu0 %v6112
        %6188 = vmatmul.mubr.bf16.gmra.mrb[0].mxu0 %v6015
        %v6189 = vpop.f32.mrb[0].mxu0
        %v6190 = vadd.f32 %v6026, %v6189
        %v6191 = vpop.f32.mrb[0].mxu0
        %v6192 = vpop.f32.mrb[0].mxu0
        %v6193 = vadd.f32 %v6026, %v6192
        %v6194 = vpop.f32.mrb[0].mxu0
        %6195 = vmatprep.mubr.bf16.mxu0 %v6115
        %6196 = vmatmul.mubr.bf16.gmra.mrb[0].mxu0 %v6017
        %v6197 = vpop.f32.mrb[0].mxu0
        %v6198 = vadd.f32 %v6026, %v6197
        %v6199 = vpop.f32.mrb[0].mxu0
        %v6200 = vpop.f32.mrb[0].mxu0
        %v6201 = vadd.f32 %v6026, %v6200
        %v6202 = vpop.f32.mrb[0].mxu0
        %6203 = vmatprep.mubr.bf16.mxu0 %v6118
        %6204 = vmatmul.mubr.bf16.gmra.mrb[0].mxu0 %v6019
        %v6205 = vpop.f32.mrb[0].mxu0
        %v6206 = vadd.f32 %v6026, %v6205
        %v6207 = vpop.f32.mrb[0].mxu0
        %v6208 = vpop.f32.mrb[0].mxu0
        %v6209 = vadd.f32 %v6026, %v6208
        %v6210 = vpop.f32.mrb[0].mxu0
        %6211 = vmatprep.mubr.bf16.mxu0 %v6121
        %6212 = vmatmul.mubr.bf16.gmra.mrb[0].mxu0 %v6021
        %v6213 = vpop.f32.mrb[0].mxu0
        %v6214 = vadd.f32 %v6026, %v6213
        %v6215 = vpop.f32.mrb[0].mxu0
        %v6216 = vpop.f32.mrb[0].mxu0
        %v6217 = vadd.f32 %v6026, %v6216
        %v6218 = vpop.f32.mrb[0].mxu0
        %6219 = vdwg.mxu0
        %vm6220 = vcmp.gt.f32.partialorder %v6158, 0.0
        %vm6221 = vcmp.gt.f32.partialorder %v6161, 0.0
        %vm6222 = vcmp.gt.f32.partialorder %v6166, 0.0
        %vm6223 = vcmp.gt.f32.partialorder %v6169, 0.0
        %vm6224 = vcmp.gt.f32.partialorder %v6174, 0.0
        %vm6225 = vcmp.gt.f32.partialorder %v6177, 0.0
        %vm6226 = vcmp.gt.f32.partialorder %v6182, 0.0
        %vm6227 = vcmp.gt.f32.partialorder %v6185, 0.0
        %vm6228 = vcmp.gt.f32.partialorder %v6190, 0.0
        %vm6229 = vcmp.gt.f32.partialorder %v6193, 0.0
        %vm6230 = vcmp.gt.f32.partialorder %v6198, 0.0
        %vm6231 = vcmp.gt.f32.partialorder %v6201, 0.0
        %vm6232 = vcmp.gt.f32.partialorder %v6206, 0.0
        %vm6233 = vcmp.gt.f32.partialorder %v6209, 0.0
        %vm6234 = vcmp.gt.f32.partialorder %v6214, 0.0
        %vm6235 = vcmp.gt.f32.partialorder %v6217, 0.0
        %v6236 = vlaneseq
        %v6237 = vshrl.u32 %v6236, 7
        %v6238 = vsub.s32 5, %v6237
        %v6239 = vrot.slane %v692, %v6238
        %v6240 = vmul.f32 %v6239, %v6158
        %v6241 = vmul.f32 %v6239, %v6161
        %v6242 = vmul.f32 %v6239, %v6166
        %v6243 = vmul.f32 %v6239, %v6169
        %v6244 = vmul.f32 %v6239, %v6174
        %v6245 = vmul.f32 %v6239, %v6177
        %v6246 = vmul.f32 %v6239, %v6182
        %v6247 = vmul.f32 %v6239, %v6185
        %v6248 = vmul.f32 %v6239, %v6190
        %v6249 = vmul.f32 %v6239, %v6193
        %v6250 = vmul.f32 %v6239, %v6198
        %v6251 = vmul.f32 %v6239, %v6201
        %v6252 = vmul.f32 %v6239, %v6206
        %v6253 = vmul.f32 %v6239, %v6209
        %v6254 = vmul.f32 %v6239, %v6214
        %v6255 = vmul.f32 %v6239, %v6217
        %v6256 = vsel %vm6220, %v6158, %v6240
        %v6257 = vsel %vm6221, %v6161, %v6241
        %v6258 = vsel %vm6222, %v6166, %v6242
        %v6259 = vsel %vm6223, %v6169, %v6243
        %v6260 = vsel %vm6224, %v6174, %v6244
        %v6261 = vsel %vm6225, %v6177, %v6245
        %v6262 = vsel %vm6226, %v6182, %v6246
        %v6263 = vsel %vm6227, %v6185, %v6247
        %v6264 = vsel %vm6228, %v6190, %v6248
        %v6265 = vsel %vm6229, %v6193, %v6249
        %v6266 = vsel %vm6230, %v6198, %v6250
        %v6267 = vsel %vm6231, %v6201, %v6251
        %v6268 = vsel %vm6232, %v6206, %v6252
        %v6269 = vsel %vm6233, %v6209, %v6253
        %v6270 = vsel %vm6234, %v6214, %v6254
        %v6271 = vsel %vm6235, %v6217, %v6255
        %v6272 = vld [vmem:[%s18] sm:$0xf]
        %v6273 = vld [vmem:[%s18 + $0x4] sm:$0xf]
        %v6274 = vld [vmem:[%s18 + $0x8] sm:$0xf]
        %v6275 = vld [vmem:[%s18 + $0xc] sm:$0xf]
        %v6276 = vld [vmem:[%s18 + $0x10] sm:$0xf]
        %v6277 = vld [vmem:[%s18 + $0x14] sm:$0xf]
        %v6278 = vld [vmem:[%s18 + $0x18] sm:$0xf]
        %v6279 = vld [vmem:[%s18 + $0x1c] sm:$0xf]
        %v6280 = vld [vmem:[%s18 + $0x20] sm:$0xf]
        %v6281 = vld [vmem:[%s18 + $0x24] sm:$0xf]
        %v6282 = vld [vmem:[%s18 + $0x28] sm:$0xf]
        %v6283 = vld [vmem:[%s18 + $0x2c] sm:$0xf]
        %v6284 = vld [vmem:[%s18 + $0x30] sm:$0xf]
        %v6285 = vld [vmem:[%s18 + $0x34] sm:$0xf]
        %v6286 = vld [vmem:[%s18 + $0x38] sm:$0xf]
        %v6287 = vld [vmem:[%s18 + $0x3c] sm:$0xf]
        %v6288 = vld [vmem:[%s18 + $0x40] sm:$0xf]
        %v6289 = vld [vmem:[%s18 + $0x44] sm:$0xf]
        %v6290 = vmul.f32 %v6271, %v5187
        %v6291 = vmul.f32 %v6256, %v5191
        %v6292 = vmul.f32 %v6257, %v5195
        %v6293 = vmul.f32 %v6258, %v5199
        %v6294 = vmul.f32 %v6259, %v5203
        %v6295 = vmul.f32 %v6260, %v5207
        %v6296 = vmul.f32 %v6261, %v5211
        %v6297 = vmul.f32 %v6262, %v5215
        %v6298 = vmul.f32 %v6263, %v5219
        %v6299 = vmul.f32 %v6264, %v5223
        %v6300 = vmul.f32 %v6265, %v5227
        %v6301 = vmul.f32 %v6266, %v5231
        %v6302 = vmul.f32 %v6267, %v5235
        %v6303 = vmul.f32 %v6268, %v5239
        %v6304 = vmul.f32 %v6269, %v5243
        %v6305 = vmul.f32 %v6270, %v5247
        %v6306 = vmul.f32 %v6257, %v5267
        %v6307 = vmul.f32 %v6258, %v5271
        %v6308 = vmul.f32 %v6259, %v5275
        %v6309 = vmul.f32 %v6260, %v5279
        %v6310 = vmul.f32 %v6261, %v5283
        %v6311 = vmul.f32 %v6262, %v5287
        %v6312 = vmul.f32 %v6263, %v5291
        %v6313 = vmul.f32 %v6264, %v5295
        %v6314 = vmul.f32 %v6265, %v5299
        %v6315 = vmul.f32 %v6266, %v5303
        %v6316 = vmul.f32 %v6267, %v5307
        %v6317 = vmul.f32 %v6268, %v5311
        %v6318 = vmul.f32 %v6269, %v5315
        %v6319 = vmul.f32 %v6270, %v5319
        %v6320 = vmul.f32 %v6271, %v5323
        %v6321 = vmul.f32 %v6256, %v5327
        %6338 = vrot.lane.b32.xlu0 %v6256, 48
        %v6339 = vpop.permute.xlu0 %6338
        %6340 = vrot.lane.b32.xlu0 %v6257, 48
        %v6341 = vpop.permute.xlu0 %6340
        %6342 = vrot.lane.b32.xlu0 %v6258, 48
        %v6343 = vpop.permute.xlu0 %6342
        %6344 = vrot.lane.b32.xlu0 %v6259, 48
        %v6345 = vpop.permute.xlu0 %6344
        %6346 = vrot.lane.b32.xlu0 %v6260, 48
        %v6347 = vpop.permute.xlu0 %6346
        %6348 = vrot.lane.b32.xlu0 %v6261, 48
        %v6349 = vpop.permute.xlu0 %6348
        %6350 = vrot.lane.b32.xlu0 %v6262, 48
        %v6351 = vpop.permute.xlu0 %6350
        %6352 = vrot.lane.b32.xlu0 %v6263, 48
        %v6353 = vpop.permute.xlu0 %6352
        %6354 = vrot.lane.b32.xlu0 %v6264, 48
        %v6355 = vpop.permute.xlu0 %6354
        %6356 = vrot.lane.b32.xlu0 %v6265, 48
        %v6357 = vpop.permute.xlu0 %6356
        %6358 = vrot.lane.b32.xlu0 %v6266, 48
        %v6359 = vpop.permute.xlu0 %6358
        %6360 = vrot.lane.b32.xlu0 %v6267, 48
        %v6361 = vpop.permute.xlu0 %6360
        %6362 = vrot.lane.b32.xlu0 %v6268, 48
        %v6363 = vpop.permute.xlu0 %6362
        %6364 = vrot.lane.b32.xlu0 %v6269, 48
        %v6365 = vpop.permute.xlu0 %6364
        %6366 = vrot.lane.b32.xlu0 %v6270, 48
        %v6367 = vpop.permute.xlu0 %6366
        %6368 = vrot.lane.b32.xlu0 %v6271, 48
        %v6369 = vpop.permute.xlu0 %6368
        %6402 = vrot.lane.b32.xlu0 %v6306, 96
        %v6403 = vpop.permute.xlu0 %6402
        %6404 = vrot.lane.b32.xlu0 %v6307, 96
        %v6405 = vpop.permute.xlu0 %6404
        %6406 = vrot.lane.b32.xlu0 %v6308, 96
        %v6407 = vpop.permute.xlu0 %6406
        %6408 = vrot.lane.b32.xlu0 %v6309, 96
        %v6409 = vpop.permute.xlu0 %6408
        %6410 = vrot.lane.b32.xlu0 %v6310, 96
        %v6411 = vpop.permute.xlu0 %6410
        %6412 = vrot.lane.b32.xlu0 %v6311, 96
        %v6413 = vpop.permute.xlu0 %6412
        %6414 = vrot.lane.b32.xlu0 %v6312, 96
        %v6415 = vpop.permute.xlu0 %6414
        %6416 = vrot.lane.b32.xlu0 %v6313, 96
        %v6417 = vpop.permute.xlu0 %6416
        %6418 = vrot.lane.b32.xlu0 %v6314, 96
        %v6419 = vpop.permute.xlu0 %6418
        %6420 = vrot.lane.b32.xlu0 %v6315, 96
        %v6421 = vpop.permute.xlu0 %6420
        %6422 = vrot.lane.b32.xlu0 %v6316, 96
        %v6423 = vpop.permute.xlu0 %6422
        %6424 = vrot.lane.b32.xlu0 %v6317, 96
        %v6425 = vpop.permute.xlu0 %6424
        %6426 = vrot.lane.b32.xlu0 %v6318, 96
        %v6427 = vpop.permute.xlu0 %6426
        %6428 = vrot.lane.b32.xlu0 %v6319, 96
        %v6429 = vpop.permute.xlu0 %6428
        %6430 = vrot.lane.b32.xlu0 %v6320, 96
        %v6431 = vpop.permute.xlu0 %6430
        %6432 = vrot.lane.b32.xlu0 %v6321, 96
        %v6433 = vpop.permute.xlu0 %6432
        %vm6450 = vcmask 392192
        %v6451 = vsel %vm6450, %v6290, %v6339
        %v6452 = vsel %vm6450, %v6291, %v6341
        %v6453 = vsel %vm6450, %v6292, %v6343
        %v6454 = vsel %vm6450, %v6293, %v6345
        %v6455 = vsel %vm6450, %v6294, %v6347
        %v6456 = vsel %vm6450, %v6295, %v6349
        %v6457 = vsel %vm6450, %v6296, %v6351
        %v6458 = vsel %vm6450, %v6297, %v6353
        %v6459 = vsel %vm6450, %v6298, %v6355
        %v6460 = vsel %vm6450, %v6299, %v6357
        %v6461 = vsel %vm6450, %v6300, %v6359
        %v6462 = vsel %vm6450, %v6301, %v6361
        %v6463 = vsel %vm6450, %v6302, %v6363
        %v6464 = vsel %vm6450, %v6303, %v6365
        %v6465 = vsel %vm6450, %v6304, %v6367
        %v6466 = vsel %vm6450, %v6305, %v6369
        %v6467 = vsel %vm1560, %v6451, %v6403
        %v6468 = vsel %vm1560, %v6452, %v6405
        %v6469 = vsel %vm1560, %v6453, %v6407
        %v6470 = vsel %vm1560, %v6454, %v6409
        %v6471 = vsel %vm1560, %v6455, %v6411
        %v6472 = vsel %vm1560, %v6456, %v6413
        %v6473 = vsel %vm1560, %v6457, %v6415
        %v6474 = vsel %vm1560, %v6458, %v6417
        %v6475 = vsel %vm1560, %v6459, %v6419
        %v6476 = vsel %vm1560, %v6460, %v6421
        %v6477 = vsel %vm1560, %v6461, %v6423
        %v6478 = vsel %vm1560, %v6462, %v6425
        %v6479 = vsel %vm1560, %v6463, %v6427
        %v6480 = vsel %vm1560, %v6464, %v6429
        %v6481 = vsel %vm1560, %v6465, %v6431
        %v6482 = vsel %vm1560, %v6466, %v6433
        %v6483 = vpack.c.bf16 %v6468, %v6467
        %v6484 = vpack.c.bf16 %v6405, %v6403
        %v6485 = vpack.c.bf16 %v6470, %v6469
        %v6486 = vpack.c.bf16 %v6409, %v6407
        %v6487 = vpack.c.bf16 %v6472, %v6471
        %v6488 = vpack.c.bf16 %v6413, %v6411
        %v6489 = vpack.c.bf16 %v6474, %v6473
        %v6490 = vpack.c.bf16 %v6417, %v6415
        %v6491 = vpack.c.bf16 %v6476, %v6475
        %v6492 = vpack.c.bf16 %v6421, %v6419
        %v6493 = vpack.c.bf16 %v6478, %v6477
        %v6494 = vpack.c.bf16 %v6425, %v6423
        %v6495 = vpack.c.bf16 %v6480, %v6479
        %v6496 = vpack.c.bf16 %v6429, %v6427
        %v6497 = vpack.c.bf16 %v6482, %v6481
        %v6498 = vpack.c.bf16 %v6433, %v6431
        %v6499 = vlaneseq
        %v6500 = vshrl.u32 %v6499, 7
        %v6501 = vsub.s32 6, %v6500
        %v6502 = vrot.slane %v692, %v6501
        %v6521 = vunpack.c.l.b16 %v6272
        %v6522 = vunpack.c.l.b16 %v6273
        %v6523 = vunpack.c.l.b16 %v6274
        %v6524 = vunpack.c.l.b16 %v6275
        %v6525 = vunpack.c.l.b16 %v6276
        %v6526 = vunpack.c.l.b16 %v6277
        %v6527 = vunpack.c.l.b16 %v6278
        %v6528 = vunpack.c.l.b16 %v6279
        %v6529 = vunpack.c.l.b16 %v6280
        %v6530 = vunpack.c.l.b16 %v6281
        %v6531 = vunpack.c.l.b16 %v6282
        %v6532 = vunpack.c.l.b16 %v6283
        %v6533 = vunpack.c.l.b16 %v6284
        %v6534 = vunpack.c.l.b16 %v6285
        %v6535 = vunpack.c.l.b16 %v6286
        %v6536 = vunpack.c.l.b16 %v6287
        %v6537 = vunpack.c.l.b16 %v6288
        %v6538 = vunpack.c.l.b16 %v6289
        %v6539 = vpack.c.b16 %v6522, %v6521
        %v6540 = vpack.c.b16 %v6524, %v6523
        %v6541 = vpack.c.b16 %v6526, %v6525
        %v6542 = vpack.c.b16 %v6528, %v6527
        %v6543 = vpack.c.b16 %v6530, %v6529
        %v6544 = vpack.c.b16 %v6532, %v6531
        %v6545 = vpack.c.b16 %v6534, %v6533
        %v6546 = vpack.c.b16 %v6536, %v6535
        %v6547 = vpack.c.b16 %v6538, %v6537
        %vm6557 = vcmask 130048
        %v6559 = vsel %vm6557, %v6484, 0
        %v6562 = vsel %vm6557, %v6486, 0
        %v6565 = vsel %vm6557, %v6488, 0
        %v6568 = vsel %vm6557, %v6490, 0
        %v6571 = vsel %vm6557, %v6492, 0
        %v6574 = vsel %vm6557, %v6494, 0
        %v6577 = vsel %vm6557, %v6496, 0
        %v6580 = vsel %vm6557, %v6498, 0
        %6582 = vmatprep.subr.bf16.mxu0 0
        %6583 = vmatpush1.bf16.msra.mxu0 %v6539
        %6584 = vmatprep.subr.bf16.mxu0 0
        %6585 = vmatpush1.bf16.msra.mxu0 %v6540
        %6586 = vmatprep.subr.bf16.mxu0 0
        %6587 = vmatpush1.bf16.msra.mxu0 %v6541
        %6588 = vmatprep.subr.bf16.mxu0 0
        %6589 = vmatpush1.bf16.msra.mxu0 %v6542
        %6590 = vmatprep.subr.bf16.mxu0 0
        %6591 = vmatpush1.bf16.msra.mxu0 %v6543
        %6592 = vmatprep.subr.bf16.mxu0 0
        %6593 = vmatpush1.bf16.msra.mxu0 %v6544
        %6594 = vmatprep.subr.bf16.mxu0 0
        %6595 = vmatpush1.bf16.msra.mxu0 %v6545
        %6596 = vmatprep.subr.bf16.mxu0 0
        %6597 = vmatpush1.bf16.msra.mxu0 %v6546
        %6598 = vmatprep.subr.bf16.mxu0 0
        %6599 = vmatpush1.bf16.msra.mxu0 %v6547
        %6600 = vmatprep.subr.bf16.mxu0 0
        %6601 = vmatpush1.bf16.msra.mxu0 0
        %6602 = vmatprep.subr.bf16.mxu0 0
        %6603 = vmatpush1.bf16.msra.mxu0 0
        %6604 = vmatprep.subr.bf16.mxu0 0
        %6605 = vmatpush1.bf16.msra.mxu0 0
        %6606 = vmatprep.subr.bf16.mxu0 0
        %6607 = vmatpush1.bf16.msra.mxu0 0
        %6608 = vmatprep.subr.bf16.mxu0 0
        %6609 = vmatpush1.bf16.msra.mxu0 0
        %6610 = vmatprep.subr.bf16.mxu0 0
        %6611 = vmatpush1.bf16.msra.mxu0 0
        %6612 = vmatprep.subr.bf16.mxu0 0
        %6613 = vmatpush1.bf16.msra.mxu0 0
        %6614 = vmatprep.mubr.bf16.mxu0 %v6559
        %6615 = vmatmul.mubr.bf16.gmra.mrb[0].mxu0 %v6483
        %v6616 = vpop.f32.mrb[0].mxu0
        %v6617 = vadd.f32 %v6502, %v6616
        %v6618 = vpop.f32.mrb[0].mxu0
        %v6619 = vpop.f32.mrb[0].mxu0
        %v6620 = vadd.f32 %v6502, %v6619
        %v6621 = vpop.f32.mrb[0].mxu0
        %6622 = vmatprep.mubr.bf16.mxu0 %v6562
        %6623 = vmatmul.mubr.bf16.gmra.mrb[0].mxu0 %v6485
        %v6624 = vpop.f32.mrb[0].mxu0
        %v6625 = vadd.f32 %v6502, %v6624
        %v6626 = vpop.f32.mrb[0].mxu0
        %v6627 = vpop.f32.mrb[0].mxu0
        %v6628 = vadd.f32 %v6502, %v6627
        %v6629 = vpop.f32.mrb[0].mxu0
        %6630 = vmatprep.mubr.bf16.mxu0 %v6565
        %6631 = vmatmul.mubr.bf16.gmra.mrb[0].mxu0 %v6487
        %v6632 = vpop.f32.mrb[0].mxu0
        %v6633 = vadd.f32 %v6502, %v6632
        %v6634 = vpop.f32.mrb[0].mxu0
        %v6635 = vpop.f32.mrb[0].mxu0
        %v6636 = vadd.f32 %v6502, %v6635
        %v6637 = vpop.f32.mrb[0].mxu0
        %6638 = vmatprep.mubr.bf16.mxu0 %v6568
        %6639 = vmatmul.mubr.bf16.gmra.mrb[0].mxu0 %v6489
        %v6640 = vpop.f32.mrb[0].mxu0
        %v6641 = vadd.f32 %v6502, %v6640
        %v6642 = vpop.f32.mrb[0].mxu0
        %v6643 = vpop.f32.mrb[0].mxu0
        %v6644 = vadd.f32 %v6502, %v6643
        %v6645 = vpop.f32.mrb[0].mxu0
        %6646 = vmatprep.mubr.bf16.mxu0 %v6571
        %6647 = vmatmul.mubr.bf16.gmra.mrb[0].mxu0 %v6491
        %v6648 = vpop.f32.mrb[0].mxu0
        %v6649 = vadd.f32 %v6502, %v6648
        %v6650 = vpop.f32.mrb[0].mxu0
        %v6651 = vpop.f32.mrb[0].mxu0
        %v6652 = vadd.f32 %v6502, %v6651
        %v6653 = vpop.f32.mrb[0].mxu0
        %6654 = vmatprep.mubr.bf16.mxu0 %v6574
        %6655 = vmatmul.mubr.bf16.gmra.mrb[0].mxu0 %v6493
        %v6656 = vpop.f32.mrb[0].mxu0
        %v6657 = vadd.f32 %v6502, %v6656
        %v6658 = vpop.f32.mrb[0].mxu0
        %v6659 = vpop.f32.mrb[0].mxu0
        %v6660 = vadd.f32 %v6502, %v6659
        %v6661 = vpop.f32.mrb[0].mxu0
        %6662 = vmatprep.mubr.bf16.mxu0 %v6577
        %6663 = vmatmul.mubr.bf16.gmra.mrb[0].mxu0 %v6495
        %v6664 = vpop.f32.mrb[0].mxu0
        %v6665 = vadd.f32 %v6502, %v6664
        %v6666 = vpop.f32.mrb[0].mxu0
        %v6667 = vpop.f32.mrb[0].mxu0
        %v6668 = vadd.f32 %v6502, %v6667
        %v6669 = vpop.f32.mrb[0].mxu0
        %6670 = vmatprep.mubr.bf16.mxu0 %v6580
        %6671 = vmatmul.mubr.bf16.gmra.mrb[0].mxu0 %v6497
        %v6672 = vpop.f32.mrb[0].mxu0
        %v6673 = vadd.f32 %v6502, %v6672
        %v6674 = vpop.f32.mrb[0].mxu0
        %v6675 = vpop.f32.mrb[0].mxu0
        %v6676 = vadd.f32 %v6502, %v6675
        %v6677 = vpop.f32.mrb[0].mxu0
        %6678 = vdwg.mxu0
        %vm6679 = vcmp.gt.f32.partialorder %v6617, 0.0
        %vm6680 = vcmp.gt.f32.partialorder %v6620, 0.0
        %vm6681 = vcmp.gt.f32.partialorder %v6625, 0.0
        %vm6682 = vcmp.gt.f32.partialorder %v6628, 0.0
        %vm6683 = vcmp.gt.f32.partialorder %v6633, 0.0
        %vm6684 = vcmp.gt.f32.partialorder %v6636, 0.0
        %vm6685 = vcmp.gt.f32.partialorder %v6641, 0.0
        %vm6686 = vcmp.gt.f32.partialorder %v6644, 0.0
        %vm6687 = vcmp.gt.f32.partialorder %v6649, 0.0
        %vm6688 = vcmp.gt.f32.partialorder %v6652, 0.0
        %vm6689 = vcmp.gt.f32.partialorder %v6657, 0.0
        %vm6690 = vcmp.gt.f32.partialorder %v6660, 0.0
        %vm6691 = vcmp.gt.f32.partialorder %v6665, 0.0
        %vm6692 = vcmp.gt.f32.partialorder %v6668, 0.0
        %vm6693 = vcmp.gt.f32.partialorder %v6673, 0.0
        %vm6694 = vcmp.gt.f32.partialorder %v6676, 0.0
        %v6695 = vlaneseq
        %v6696 = vshrl.u32 %v6695, 7
        %v6697 = vsub.s32 7, %v6696
        %v6698 = vrot.slane %v692, %v6697
        %v6699 = vmul.f32 %v6698, %v6617
        %v6700 = vmul.f32 %v6698, %v6620
        %v6701 = vmul.f32 %v6698, %v6625
        %v6702 = vmul.f32 %v6698, %v6628
        %v6703 = vmul.f32 %v6698, %v6633
        %v6704 = vmul.f32 %v6698, %v6636
        %v6705 = vmul.f32 %v6698, %v6641
        %v6706 = vmul.f32 %v6698, %v6644
        %v6707 = vmul.f32 %v6698, %v6649
        %v6708 = vmul.f32 %v6698, %v6652
        %v6709 = vmul.f32 %v6698, %v6657
        %v6710 = vmul.f32 %v6698, %v6660
        %v6711 = vmul.f32 %v6698, %v6665
        %v6712 = vmul.f32 %v6698, %v6668
        %v6713 = vmul.f32 %v6698, %v6673
        %v6714 = vmul.f32 %v6698, %v6676
        %v6715 = vsel %vm6679, %v6617, %v6699
        %v6716 = vsel %vm6680, %v6620, %v6700
        %v6717 = vsel %vm6681, %v6625, %v6701
        %v6718 = vsel %vm6682, %v6628, %v6702
        %v6719 = vsel %vm6683, %v6633, %v6703
        %v6720 = vsel %vm6684, %v6636, %v6704
        %v6721 = vsel %vm6685, %v6641, %v6705
        %v6722 = vsel %vm6686, %v6644, %v6706
        %v6723 = vsel %vm6687, %v6649, %v6707
        %v6724 = vsel %vm6688, %v6652, %v6708
        %v6725 = vsel %vm6689, %v6657, %v6709
        %v6726 = vsel %vm6690, %v6660, %v6710
        %v6727 = vsel %vm6691, %v6665, %v6711
        %v6728 = vsel %vm6692, %v6668, %v6712
        %v6729 = vsel %vm6693, %v6673, %v6713
        %v6730 = vsel %vm6694, %v6676, %v6714
        %v6731 = vadd.f32 %v6715, %v6256
        %v6732 = vadd.f32 %v6716, %v6257
        %v6733 = vadd.f32 %v6717, %v6258
        %v6734 = vadd.f32 %v6718, %v6259
        %v6735 = vadd.f32 %v6719, %v6260
        %v6736 = vadd.f32 %v6720, %v6261
        %v6737 = vadd.f32 %v6721, %v6262
        %v6738 = vadd.f32 %v6722, %v6263
        %v6739 = vadd.f32 %v6723, %v6264
        %v6740 = vadd.f32 %v6724, %v6265
        %v6741 = vadd.f32 %v6725, %v6266
        %v6742 = vadd.f32 %v6726, %v6267
        %v6743 = vadd.f32 %v6727, %v6268
        %v6744 = vadd.f32 %v6728, %v6269
        %v6745 = vadd.f32 %v6729, %v6270
        %v6746 = vadd.f32 %v6730, %v6271
        %vm6747 = vcmp.gt.f32.partialorder %v6731, 0.0
        %vm6748 = vcmp.gt.f32.partialorder %v6732, 0.0
        %vm6749 = vcmp.gt.f32.partialorder %v6733, 0.0
        %vm6750 = vcmp.gt.f32.partialorder %v6734, 0.0
        %vm6751 = vcmp.gt.f32.partialorder %v6735, 0.0
        %vm6752 = vcmp.gt.f32.partialorder %v6736, 0.0
        %vm6753 = vcmp.gt.f32.partialorder %v6737, 0.0
        %vm6754 = vcmp.gt.f32.partialorder %v6738, 0.0
        %vm6755 = vcmp.gt.f32.partialorder %v6739, 0.0
        %vm6756 = vcmp.gt.f32.partialorder %v6740, 0.0
        %vm6757 = vcmp.gt.f32.partialorder %v6741, 0.0
        %vm6758 = vcmp.gt.f32.partialorder %v6742, 0.0
        %vm6759 = vcmp.gt.f32.partialorder %v6743, 0.0
        %vm6760 = vcmp.gt.f32.partialorder %v6744, 0.0
        %vm6761 = vcmp.gt.f32.partialorder %v6745, 0.0
        %vm6762 = vcmp.gt.f32.partialorder %v6746, 0.0
        %v6763 = vlaneseq
        %v6764 = vshrl.u32 %v6763, 7
        %v6765 = vsub.s32 0, %v6764
        %v6766 = vrot.slane %v693, %v6765
        %v6767 = vmul.f32 %v6766, %v6731
        %v6768 = vmul.f32 %v6766, %v6732
        %v6769 = vmul.f32 %v6766, %v6733
        %v6770 = vmul.f32 %v6766, %v6734
        %v6771 = vmul.f32 %v6766, %v6735
        %v6772 = vmul.f32 %v6766, %v6736
        %v6773 = vmul.f32 %v6766, %v6737
        %v6774 = vmul.f32 %v6766, %v6738
        %v6775 = vmul.f32 %v6766, %v6739
        %v6776 = vmul.f32 %v6766, %v6740
        %v6777 = vmul.f32 %v6766, %v6741
        %v6778 = vmul.f32 %v6766, %v6742
        %v6779 = vmul.f32 %v6766, %v6743
        %v6780 = vmul.f32 %v6766, %v6744
        %v6781 = vmul.f32 %v6766, %v6745
        %v6782 = vmul.f32 %v6766, %v6746
        %v6783 = vsel %vm6747, %v6731, %v6767
        %v6784 = vsel %vm6748, %v6732, %v6768
        %v6785 = vsel %vm6749, %v6733, %v6769
        %v6786 = vsel %vm6750, %v6734, %v6770
        %v6787 = vsel %vm6751, %v6735, %v6771
        %v6788 = vsel %vm6752, %v6736, %v6772
        %v6789 = vsel %vm6753, %v6737, %v6773
        %v6790 = vsel %vm6754, %v6738, %v6774
        %v6791 = vsel %vm6755, %v6739, %v6775
        %v6792 = vsel %vm6756, %v6740, %v6776
        %v6793 = vsel %vm6757, %v6741, %v6777
        %v6794 = vsel %vm6758, %v6742, %v6778
        %v6795 = vsel %vm6759, %v6743, %v6779
        %v6796 = vsel %vm6760, %v6744, %v6780
        %v6797 = vsel %vm6761, %v6745, %v6781
        %v6798 = vsel %vm6762, %v6746, %v6782
        %v6799 = vld [vmem:[%s19] sm:$0xf]
        %v6800 = vld [vmem:[%s19 + $0x4] sm:$0xf]
        %v6801 = vld [vmem:[%s19 + $0x8] sm:$0xf]
        %v6802 = vld [vmem:[%s19 + $0xc] sm:$0xf]
        %v6803 = vld [vmem:[%s19 + $0x10] sm:$0xf]
        %v6804 = vld [vmem:[%s19 + $0x14] sm:$0xf]
        %v6805 = vld [vmem:[%s19 + $0x18] sm:$0xf]
        %v6806 = vld [vmem:[%s19 + $0x1c] sm:$0xf]
        %v6807 = vld [vmem:[%s19 + $0x20] sm:$0xf]
        %v6808 = vld [vmem:[%s19 + $0x24] sm:$0xf]
        %v6809 = vld [vmem:[%s19 + $0x28] sm:$0xf]
        %v6810 = vld [vmem:[%s19 + $0x2c] sm:$0xf]
        %v6811 = vld [vmem:[%s19 + $0x30] sm:$0xf]
        %v6812 = vld [vmem:[%s19 + $0x34] sm:$0xf]
        %v6813 = vld [vmem:[%s19 + $0x38] sm:$0xf]
        %v6814 = vld [vmem:[%s19 + $0x3c] sm:$0xf]
        %v6815 = vld [vmem:[%s19 + $0x40] sm:$0xf]
        %v6816 = vld [vmem:[%s19 + $0x44] sm:$0xf]
        %v6817 = vmul.f32 %v6798, %v5187
        %v6818 = vmul.f32 %v6783, %v5191
        %v6819 = vmul.f32 %v6784, %v5195
        %v6820 = vmul.f32 %v6785, %v5199
        %v6821 = vmul.f32 %v6786, %v5203
        %v6822 = vmul.f32 %v6787, %v5207
        %v6823 = vmul.f32 %v6788, %v5211
        %v6824 = vmul.f32 %v6789, %v5215
        %v6825 = vmul.f32 %v6790, %v5219
        %v6826 = vmul.f32 %v6791, %v5223
        %v6827 = vmul.f32 %v6792, %v5227
        %v6828 = vmul.f32 %v6793, %v5231
        %v6829 = vmul.f32 %v6794, %v5235
        %v6830 = vmul.f32 %v6795, %v5239
        %v6831 = vmul.f32 %v6796, %v5243
        %v6832 = vmul.f32 %v6797, %v5247
        %v6833 = vmul.f32 %v6784, %v5267
        %v6834 = vmul.f32 %v6785, %v5271
        %v6835 = vmul.f32 %v6786, %v5275
        %v6836 = vmul.f32 %v6787, %v5279
        %v6837 = vmul.f32 %v6788, %v5283
        %v6838 = vmul.f32 %v6789, %v5287
        %v6839 = vmul.f32 %v6790, %v5291
        %v6840 = vmul.f32 %v6791, %v5295
        %v6841 = vmul.f32 %v6792, %v5299
        %v6842 = vmul.f32 %v6793, %v5303
        %v6843 = vmul.f32 %v6794, %v5307
        %v6844 = vmul.f32 %v6795, %v5311
        %v6845 = vmul.f32 %v6796, %v5315
        %v6846 = vmul.f32 %v6797, %v5319
        %v6847 = vmul.f32 %v6798, %v5323
        %v6848 = vmul.f32 %v6783, %v5327
        %6865 = vrot.lane.b32.xlu0 %v6783, 48
        %v6866 = vpop.permute.xlu0 %6865
        %6867 = vrot.lane.b32.xlu0 %v6784, 48
        %v6868 = vpop.permute.xlu0 %6867
        %6869 = vrot.lane.b32.xlu0 %v6785, 48
        %v6870 = vpop.permute.xlu0 %6869
        %6871 = vrot.lane.b32.xlu0 %v6786, 48
        %v6872 = vpop.permute.xlu0 %6871
        %6873 = vrot.lane.b32.xlu0 %v6787, 48
        %v6874 = vpop.permute.xlu0 %6873
        %6875 = vrot.lane.b32.xlu0 %v6788, 48
        %v6876 = vpop.permute.xlu0 %6875
        %6877 = vrot.lane.b32.xlu0 %v6789, 48
        %v6878 = vpop.permute.xlu0 %6877
        %6879 = vrot.lane.b32.xlu0 %v6790, 48
        %v6880 = vpop.permute.xlu0 %6879
        %6881 = vrot.lane.b32.xlu0 %v6791, 48
        %v6882 = vpop.permute.xlu0 %6881
        %6883 = vrot.lane.b32.xlu0 %v6792, 48
        %v6884 = vpop.permute.xlu0 %6883
        %6885 = vrot.lane.b32.xlu0 %v6793, 48
        %v6886 = vpop.permute.xlu0 %6885
        %6887 = vrot.lane.b32.xlu0 %v6794, 48
        %v6888 = vpop.permute.xlu0 %6887
        %6889 = vrot.lane.b32.xlu0 %v6795, 48
        %v6890 = vpop.permute.xlu0 %6889
        %6891 = vrot.lane.b32.xlu0 %v6796, 48
        %v6892 = vpop.permute.xlu0 %6891
        %6893 = vrot.lane.b32.xlu0 %v6797, 48
        %v6894 = vpop.permute.xlu0 %6893
        %6895 = vrot.lane.b32.xlu0 %v6798, 48
        %v6896 = vpop.permute.xlu0 %6895
        %6929 = vrot.lane.b32.xlu0 %v6833, 96
        %v6930 = vpop.permute.xlu0 %6929
        %6931 = vrot.lane.b32.xlu0 %v6834, 96
        %v6932 = vpop.permute.xlu0 %6931
        %6933 = vrot.lane.b32.xlu0 %v6835, 96
        %v6934 = vpop.permute.xlu0 %6933
        %6935 = vrot.lane.b32.xlu0 %v6836, 96
        %v6936 = vpop.permute.xlu0 %6935
        %6937 = vrot.lane.b32.xlu0 %v6837, 96
        %v6938 = vpop.permute.xlu0 %6937
        %6939 = vrot.lane.b32.xlu0 %v6838, 96
        %v6940 = vpop.permute.xlu0 %6939
        %6941 = vrot.lane.b32.xlu0 %v6839, 96
        %v6942 = vpop.permute.xlu0 %6941
        %6943 = vrot.lane.b32.xlu0 %v6840, 96
        %v6944 = vpop.permute.xlu0 %6943
        %6945 = vrot.lane.b32.xlu0 %v6841, 96
        %v6946 = vpop.permute.xlu0 %6945
        %6947 = vrot.lane.b32.xlu0 %v6842, 96
        %v6948 = vpop.permute.xlu0 %6947
        %6949 = vrot.lane.b32.xlu0 %v6843, 96
        %v6950 = vpop.permute.xlu0 %6949
        %6951 = vrot.lane.b32.xlu0 %v6844, 96
        %v6952 = vpop.permute.xlu0 %6951
        %6953 = vrot.lane.b32.xlu0 %v6845, 96
        %v6954 = vpop.permute.xlu0 %6953
        %6955 = vrot.lane.b32.xlu0 %v6846, 96
        %v6956 = vpop.permute.xlu0 %6955
        %6957 = vrot.lane.b32.xlu0 %v6847, 96
        %v6958 = vpop.permute.xlu0 %6957
        %6959 = vrot.lane.b32.xlu0 %v6848, 96
        %v6960 = vpop.permute.xlu0 %6959
        %v6977 = vsel %vm6450, %v6817, %v6866
        %v6978 = vsel %vm6450, %v6818, %v6868
        %v6979 = vsel %vm6450, %v6819, %v6870
        %v6980 = vsel %vm6450, %v6820, %v6872
        %v6981 = vsel %vm6450, %v6821, %v6874
        %v6982 = vsel %vm6450, %v6822, %v6876
        %v6983 = vsel %vm6450, %v6823, %v6878
        %v6984 = vsel %vm6450, %v6824, %v6880
        %v6985 = vsel %vm6450, %v6825, %v6882
        %v6986 = vsel %vm6450, %v6826, %v6884
        %v6987 = vsel %vm6450, %v6827, %v6886
        %v6988 = vsel %vm6450, %v6828, %v6888
        %v6989 = vsel %vm6450, %v6829, %v6890
        %v6990 = vsel %vm6450, %v6830, %v6892
        %v6991 = vsel %vm6450, %v6831, %v6894
        %v6992 = vsel %vm6450, %v6832, %v6896
        %v6993 = vsel %vm1560, %v6977, %v6930
        %v6994 = vsel %vm1560, %v6978, %v6932
        %v6995 = vsel %vm1560, %v6979, %v6934
        %v6996 = vsel %vm1560, %v6980, %v6936
        %v6997 = vsel %vm1560, %v6981, %v6938
        %v6998 = vsel %vm1560, %v6982, %v6940
        %v6999 = vsel %vm1560, %v6983, %v6942
        %v7000 = vsel %vm1560, %v6984, %v6944
        %v7001 = vsel %vm1560, %v6985, %v6946
        %v7002 = vsel %vm1560, %v6986, %v6948
        %v7003 = vsel %vm1560, %v6987, %v6950
        %v7004 = vsel %vm1560, %v6988, %v6952
        %v7005 = vsel %vm1560, %v6989, %v6954
        %v7006 = vsel %vm1560, %v6990, %v6956
        %v7007 = vsel %vm1560, %v6991, %v6958
        %v7008 = vsel %vm1560, %v6992, %v6960
        %v7009 = vpack.c.bf16 %v6994, %v6993
        %v7010 = vpack.c.bf16 %v6932, %v6930
        %v7011 = vpack.c.bf16 %v6996, %v6995
        %v7012 = vpack.c.bf16 %v6936, %v6934
        %v7013 = vpack.c.bf16 %v6998, %v6997
        %v7014 = vpack.c.bf16 %v6940, %v6938
        %v7015 = vpack.c.bf16 %v7000, %v6999
        %v7016 = vpack.c.bf16 %v6944, %v6942
        %v7017 = vpack.c.bf16 %v7002, %v7001
        %v7018 = vpack.c.bf16 %v6948, %v6946
        %v7019 = vpack.c.bf16 %v7004, %v7003
        %v7020 = vpack.c.bf16 %v6952, %v6950
        %v7021 = vpack.c.bf16 %v7006, %v7005
        %v7022 = vpack.c.bf16 %v6956, %v6954
        %v7023 = vpack.c.bf16 %v7008, %v7007
        %v7024 = vpack.c.bf16 %v6960, %v6958
        %v7025 = vlaneseq
        %v7026 = vshrl.u32 %v7025, 7
        %v7027 = vsub.s32 1, %v7026
        %v7028 = vrot.slane %v693, %v7027
        %v7047 = vunpack.c.l.b16 %v6799
        %v7048 = vunpack.c.l.b16 %v6800
        %v7049 = vunpack.c.l.b16 %v6801
        %v7050 = vunpack.c.l.b16 %v6802
        %v7051 = vunpack.c.l.b16 %v6803
        %v7052 = vunpack.c.l.b16 %v6804
        %v7053 = vunpack.c.l.b16 %v6805
        %v7054 = vunpack.c.l.b16 %v6806
        %v7055 = vunpack.c.l.b16 %v6807
        %v7056 = vunpack.c.l.b16 %v6808
        %v7057 = vunpack.c.l.b16 %v6809
        %v7058 = vunpack.c.l.b16 %v6810
        %v7059 = vunpack.c.l.b16 %v6811
        %v7060 = vunpack.c.l.b16 %v6812
        %v7061 = vunpack.c.l.b16 %v6813
        %v7062 = vunpack.c.l.b16 %v6814
        %v7063 = vunpack.c.l.b16 %v6815
        %v7064 = vunpack.c.l.b16 %v6816
        %v7065 = vpack.c.b16 %v7048, %v7047
        %v7066 = vpack.c.b16 %v7050, %v7049
        %v7067 = vpack.c.b16 %v7052, %v7051
        %v7068 = vpack.c.b16 %v7054, %v7053
        %v7069 = vpack.c.b16 %v7056, %v7055
        %v7070 = vpack.c.b16 %v7058, %v7057
        %v7071 = vpack.c.b16 %v7060, %v7059
        %v7072 = vpack.c.b16 %v7062, %v7061
        %v7073 = vpack.c.b16 %v7064, %v7063
        %v7084 = vsel %vm6557, %v7010, 0
        %v7087 = vsel %vm6557, %v7012, 0
        %v7090 = vsel %vm6557, %v7014, 0
        %v7093 = vsel %vm6557, %v7016, 0
        %v7096 = vsel %vm6557, %v7018, 0
        %v7099 = vsel %vm6557, %v7020, 0
        %v7102 = vsel %vm6557, %v7022, 0
        %v7105 = vsel %vm6557, %v7024, 0
        %7107 = vmatprep.subr.bf16.mxu0 0
        %7108 = vmatpush1.bf16.msra.mxu0 %v7065
        %7109 = vmatprep.subr.bf16.mxu0 0
        %7110 = vmatpush1.bf16.msra.mxu0 %v7066
        %7111 = vmatprep.subr.bf16.mxu0 0
        %7112 = vmatpush1.bf16.msra.mxu0 %v7067
        %7113 = vmatprep.subr.bf16.mxu0 0
        %7114 = vmatpush1.bf16.msra.mxu0 %v7068
        %7115 = vmatprep.subr.bf16.mxu0 0
        %7116 = vmatpush1.bf16.msra.mxu0 %v7069
        %7117 = vmatprep.subr.bf16.mxu0 0
        %7118 = vmatpush1.bf16.msra.mxu0 %v7070
        %7119 = vmatprep.subr.bf16.mxu0 0
        %7120 = vmatpush1.bf16.msra.mxu0 %v7071
        %7121 = vmatprep.subr.bf16.mxu0 0
        %7122 = vmatpush1.bf16.msra.mxu0 %v7072
        %7123 = vmatprep.subr.bf16.mxu0 0
        %7124 = vmatpush1.bf16.msra.mxu0 %v7073
        %7125 = vmatprep.subr.bf16.mxu0 0
        %7126 = vmatpush1.bf16.msra.mxu0 0
        %7127 = vmatprep.subr.bf16.mxu0 0
        %7128 = vmatpush1.bf16.msra.mxu0 0
        %7129 = vmatprep.subr.bf16.mxu0 0
        %7130 = vmatpush1.bf16.msra.mxu0 0
        %7131 = vmatprep.subr.bf16.mxu0 0
        %7132 = vmatpush1.bf16.msra.mxu0 0
        %7133 = vmatprep.subr.bf16.mxu0 0
        %7134 = vmatpush1.bf16.msra.mxu0 0
        %7135 = vmatprep.subr.bf16.mxu0 0
        %7136 = vmatpush1.bf16.msra.mxu0 0
        %7137 = vmatprep.subr.bf16.mxu0 0
        %7138 = vmatpush1.bf16.msra.mxu0 0
        %7139 = vmatprep.mubr.bf16.mxu0 %v7084
        %7140 = vmatmul.mubr.bf16.gmra.mrb[0].mxu0 %v7009
        %v7141 = vpop.f32.mrb[0].mxu0
        %v7142 = vadd.f32 %v7028, %v7141
        %v7143 = vpop.f32.mrb[0].mxu0
        %v7144 = vpop.f32.mrb[0].mxu0
        %v7145 = vadd.f32 %v7028, %v7144
        %v7146 = vpop.f32.mrb[0].mxu0
        %7147 = vmatprep.mubr.bf16.mxu0 %v7087
        %7148 = vmatmul.mubr.bf16.gmra.mrb[0].mxu0 %v7011
        %v7149 = vpop.f32.mrb[0].mxu0
        %v7150 = vadd.f32 %v7028, %v7149
        %v7151 = vpop.f32.mrb[0].mxu0
        %v7152 = vpop.f32.mrb[0].mxu0
        %v7153 = vadd.f32 %v7028, %v7152
        %v7154 = vpop.f32.mrb[0].mxu0
        %7155 = vmatprep.mubr.bf16.mxu0 %v7090
        %7156 = vmatmul.mubr.bf16.gmra.mrb[0].mxu0 %v7013
        %v7157 = vpop.f32.mrb[0].mxu0
        %v7158 = vadd.f32 %v7028, %v7157
        %v7159 = vpop.f32.mrb[0].mxu0
        %v7160 = vpop.f32.mrb[0].mxu0
        %v7161 = vadd.f32 %v7028, %v7160
        %v7162 = vpop.f32.mrb[0].mxu0
        %7163 = vmatprep.mubr.bf16.mxu0 %v7093
        %7164 = vmatmul.mubr.bf16.gmra.mrb[0].mxu0 %v7015
        %v7165 = vpop.f32.mrb[0].mxu0
        %v7166 = vadd.f32 %v7028, %v7165
        %v7167 = vpop.f32.mrb[0].mxu0
        %v7168 = vpop.f32.mrb[0].mxu0
        %v7169 = vadd.f32 %v7028, %v7168
        %v7170 = vpop.f32.mrb[0].mxu0
        %7171 = vmatprep.mubr.bf16.mxu0 %v7096
        %7172 = vmatmul.mubr.bf16.gmra.mrb[0].mxu0 %v7017
        %v7173 = vpop.f32.mrb[0].mxu0
        %v7174 = vadd.f32 %v7028, %v7173
        %v7175 = vpop.f32.mrb[0].mxu0
        %v7176 = vpop.f32.mrb[0].mxu0
        %v7177 = vadd.f32 %v7028, %v7176
        %v7178 = vpop.f32.mrb[0].mxu0
        %7179 = vmatprep.mubr.bf16.mxu0 %v7099
        %7180 = vmatmul.mubr.bf16.gmra.mrb[0].mxu0 %v7019
        %v7181 = vpop.f32.mrb[0].mxu0
        %v7182 = vadd.f32 %v7028, %v7181
        %v7183 = vpop.f32.mrb[0].mxu0
        %v7184 = vpop.f32.mrb[0].mxu0
        %v7185 = vadd.f32 %v7028, %v7184
        %v7186 = vpop.f32.mrb[0].mxu0
        %7187 = vmatprep.mubr.bf16.mxu0 %v7102
        %7188 = vmatmul.mubr.bf16.gmra.mrb[0].mxu0 %v7021
        %v7189 = vpop.f32.mrb[0].mxu0
        %v7190 = vadd.f32 %v7028, %v7189
        %v7191 = vpop.f32.mrb[0].mxu0
        %v7192 = vpop.f32.mrb[0].mxu0
        %v7193 = vadd.f32 %v7028, %v7192
        %v7194 = vpop.f32.mrb[0].mxu0
        %7195 = vmatprep.mubr.bf16.mxu0 %v7105
        %7196 = vmatmul.mubr.bf16.gmra.mrb[0].mxu0 %v7023
        %v7197 = vpop.f32.mrb[0].mxu0
        %v7198 = vadd.f32 %v7028, %v7197
        %v7199 = vpop.f32.mrb[0].mxu0
        %v7200 = vpop.f32.mrb[0].mxu0
        %v7201 = vadd.f32 %v7028, %v7200
        %v7202 = vpop.f32.mrb[0].mxu0
        %7203 = vdwg.mxu0
        %vm7204 = vcmp.gt.f32.partialorder %v7142, 0.0
        %vm7205 = vcmp.gt.f32.partialorder %v7145, 0.0
        %vm7206 = vcmp.gt.f32.partialorder %v7150, 0.0
        %vm7207 = vcmp.gt.f32.partialorder %v7153, 0.0
        %vm7208 = vcmp.gt.f32.partialorder %v7158, 0.0
        %vm7209 = vcmp.gt.f32.partialorder %v7161, 0.0
        %vm7210 = vcmp.gt.f32.partialorder %v7166, 0.0
        %vm7211 = vcmp.gt.f32.partialorder %v7169, 0.0
        %vm7212 = vcmp.gt.f32.partialorder %v7174, 0.0
        %vm7213 = vcmp.gt.f32.partialorder %v7177, 0.0
        %vm7214 = vcmp.gt.f32.partialorder %v7182, 0.0
        %vm7215 = vcmp.gt.f32.partialorder %v7185, 0.0
        %vm7216 = vcmp.gt.f32.partialorder %v7190, 0.0
        %vm7217 = vcmp.gt.f32.partialorder %v7193, 0.0
        %vm7218 = vcmp.gt.f32.partialorder %v7198, 0.0
        %vm7219 = vcmp.gt.f32.partialorder %v7201, 0.0
        %v7220 = vlaneseq
        %v7221 = vshrl.u32 %v7220, 7
        %v7222 = vsub.s32 2, %v7221
        %v7223 = vrot.slane %v693, %v7222
        %v7224 = vmul.f32 %v7223, %v7142
        %v7225 = vmul.f32 %v7223, %v7145
        %v7226 = vmul.f32 %v7223, %v7150
        %v7227 = vmul.f32 %v7223, %v7153
        %v7228 = vmul.f32 %v7223, %v7158
        %v7229 = vmul.f32 %v7223, %v7161
        %v7230 = vmul.f32 %v7223, %v7166
        %v7231 = vmul.f32 %v7223, %v7169
        %v7232 = vmul.f32 %v7223, %v7174
        %v7233 = vmul.f32 %v7223, %v7177
        %v7234 = vmul.f32 %v7223, %v7182
        %v7235 = vmul.f32 %v7223, %v7185
        %v7236 = vmul.f32 %v7223, %v7190
        %v7237 = vmul.f32 %v7223, %v7193
        %v7238 = vmul.f32 %v7223, %v7198
        %v7239 = vmul.f32 %v7223, %v7201
        %v7240 = vsel %vm7204, %v7142, %v7224
        %v7241 = vsel %vm7205, %v7145, %v7225
        %v7242 = vsel %vm7206, %v7150, %v7226
        %v7243 = vsel %vm7207, %v7153, %v7227
        %v7244 = vsel %vm7208, %v7158, %v7228
        %v7245 = vsel %vm7209, %v7161, %v7229
        %v7246 = vsel %vm7210, %v7166, %v7230
        %v7247 = vsel %vm7211, %v7169, %v7231
        %v7248 = vsel %vm7212, %v7174, %v7232
        %v7249 = vsel %vm7213, %v7177, %v7233
        %v7250 = vsel %vm7214, %v7182, %v7234
        %v7251 = vsel %vm7215, %v7185, %v7235
        %v7252 = vsel %vm7216, %v7190, %v7236
        %v7253 = vsel %vm7217, %v7193, %v7237
        %v7254 = vsel %vm7218, %v7198, %v7238
        %v7255 = vsel %vm7219, %v7201, %v7239
        %v7256 = vadd.f32 %v7240, %v6783
        %v7257 = vadd.f32 %v7241, %v6784
        %v7258 = vadd.f32 %v7242, %v6785
        %v7259 = vadd.f32 %v7243, %v6786
        %v7260 = vadd.f32 %v7244, %v6787
        %v7261 = vadd.f32 %v7245, %v6788
        %v7262 = vadd.f32 %v7246, %v6789
        %v7263 = vadd.f32 %v7247, %v6790
        %v7264 = vadd.f32 %v7248, %v6791
        %v7265 = vadd.f32 %v7249, %v6792
        %v7266 = vadd.f32 %v7250, %v6793
        %v7267 = vadd.f32 %v7251, %v6794
        %v7268 = vadd.f32 %v7252, %v6795
        %v7269 = vadd.f32 %v7253, %v6796
        %v7270 = vadd.f32 %v7254, %v6797
        %v7271 = vadd.f32 %v7255, %v6798
        %vm7272 = vcmp.gt.f32.partialorder %v7256, 0.0
        %vm7273 = vcmp.gt.f32.partialorder %v7257, 0.0
        %vm7274 = vcmp.gt.f32.partialorder %v7258, 0.0
        %vm7275 = vcmp.gt.f32.partialorder %v7259, 0.0
        %vm7276 = vcmp.gt.f32.partialorder %v7260, 0.0
        %vm7277 = vcmp.gt.f32.partialorder %v7261, 0.0
        %vm7278 = vcmp.gt.f32.partialorder %v7262, 0.0
        %vm7279 = vcmp.gt.f32.partialorder %v7263, 0.0
        %vm7280 = vcmp.gt.f32.partialorder %v7264, 0.0
        %vm7281 = vcmp.gt.f32.partialorder %v7265, 0.0
        %vm7282 = vcmp.gt.f32.partialorder %v7266, 0.0
        %vm7283 = vcmp.gt.f32.partialorder %v7267, 0.0
        %vm7284 = vcmp.gt.f32.partialorder %v7268, 0.0
        %vm7285 = vcmp.gt.f32.partialorder %v7269, 0.0
        %vm7286 = vcmp.gt.f32.partialorder %v7270, 0.0
        %vm7287 = vcmp.gt.f32.partialorder %v7271, 0.0
        %v7288 = vlaneseq
        %v7289 = vshrl.u32 %v7288, 7
        %v7290 = vsub.s32 3, %v7289
        %v7291 = vrot.slane %v693, %v7290
        %v7292 = vmul.f32 %v7291, %v7256
        %v7293 = vmul.f32 %v7291, %v7257
        %v7294 = vmul.f32 %v7291, %v7258
        %v7295 = vmul.f32 %v7291, %v7259
        %v7296 = vmul.f32 %v7291, %v7260
        %v7297 = vmul.f32 %v7291, %v7261
        %v7298 = vmul.f32 %v7291, %v7262
        %v7299 = vmul.f32 %v7291, %v7263
        %v7300 = vmul.f32 %v7291, %v7264
        %v7301 = vmul.f32 %v7291, %v7265
        %v7302 = vmul.f32 %v7291, %v7266
        %v7303 = vmul.f32 %v7291, %v7267
        %v7304 = vmul.f32 %v7291, %v7268
        %v7305 = vmul.f32 %v7291, %v7269
        %v7306 = vmul.f32 %v7291, %v7270
        %v7307 = vmul.f32 %v7291, %v7271
        %v7308 = vsel %vm7272, %v7256, %v7292
        %v7309 = vsel %vm7273, %v7257, %v7293
        %v7310 = vsel %vm7274, %v7258, %v7294
        %v7311 = vsel %vm7275, %v7259, %v7295
        %v7312 = vsel %vm7276, %v7260, %v7296
        %v7313 = vsel %vm7277, %v7261, %v7297
        %v7314 = vsel %vm7278, %v7262, %v7298
        %v7315 = vsel %vm7279, %v7263, %v7299
        %v7316 = vsel %vm7280, %v7264, %v7300
        %v7317 = vsel %vm7281, %v7265, %v7301
        %v7318 = vsel %vm7282, %v7266, %v7302
        %v7319 = vsel %vm7283, %v7267, %v7303
        %v7320 = vsel %vm7284, %v7268, %v7304
        %v7321 = vsel %vm7285, %v7269, %v7305
        %v7322 = vsel %vm7286, %v7270, %v7306
        %v7323 = vsel %vm7287, %v7271, %v7307
        %v7324 = vpack.c.bf16 %v694, %v694
        %v7325 = vpack.c.bf16 %v7309, %v7308
        %v7326 = vpack.c.bf16 %v7311, %v7310
        %v7327 = vpack.c.bf16 %v7313, %v7312
        %v7328 = vpack.c.bf16 %v7315, %v7314
        %v7329 = vpack.c.bf16 %v7317, %v7316
        %v7330 = vpack.c.bf16 %v7319, %v7318
        %v7331 = vpack.c.bf16 %v7321, %v7320
        %v7332 = vpack.c.bf16 %v7323, %v7322
        %7333 = vmatprep.subr.bf16.mxu0 0
        %7334 = vmatpush1.bf16.msra.mxu0 %v7325
        %7335 = vmatprep.subr.bf16.mxu0 0
        %7336 = vmatpush1.bf16.msra.mxu0 %v7326
        %7337 = vmatprep.subr.bf16.mxu0 0
        %7338 = vmatpush1.bf16.msra.mxu0 %v7327
        %7339 = vmatprep.subr.bf16.mxu0 0
        %7340 = vmatpush1.bf16.msra.mxu0 %v7328
        %7341 = vmatprep.subr.bf16.mxu0 0
        %7342 = vmatpush1.bf16.msra.mxu0 %v7329
        %7343 = vmatprep.subr.bf16.mxu0 0
        %7344 = vmatpush1.bf16.msra.mxu0 %v7330
        %7345 = vmatprep.subr.bf16.mxu0 0
        %7346 = vmatpush1.bf16.msra.mxu0 %v7331
        %7347 = vmatprep.subr.bf16.mxu0 0
        %7348 = vmatpush1.bf16.msra.mxu0 %v7332
        %7349 = vmatprep.subr.bf16.mxu0 0
        %7350 = vmatpush1.bf16.msra.mxu0 0
        %7351 = vmatprep.subr.bf16.mxu0 0
        %7352 = vmatpush1.bf16.msra.mxu0 0
        %7353 = vmatprep.subr.bf16.mxu0 0
        %7354 = vmatpush1.bf16.msra.mxu0 0
        %7355 = vmatprep.subr.bf16.mxu0 0
        %7356 = vmatpush1.bf16.msra.mxu0 0
        %7357 = vmatprep.subr.bf16.mxu0 0
        %7358 = vmatpush1.bf16.msra.mxu0 0
        %7359 = vmatprep.subr.bf16.mxu0 0
        %7360 = vmatpush1.bf16.msra.mxu0 0
        %7361 = vmatprep.subr.bf16.mxu0 0
        %7362 = vmatpush1.bf16.msra.mxu0 0
        %7363 = vmatprep.subr.bf16.mxu0 0
        %7364 = vmatpush1.bf16.msra.mxu0 0
        %7365 = vmatprep.mubr.bf16.mxu0 0
        %7366 = vmatmul.mubr.bf16.gmra.mrb[0].mxu0 %v7324
        %v7367 = vpop.f32.mrb[0].mxu0
        %v7368 = vadd.f32 0.0, %v7367
        %v7369 = vpop.f32.mrb[0].mxu0
        %v7370 = vpop.f32.mrb[0].mxu0
        %v7371 = vpop.f32.mrb[0].mxu0
        %7372 = vdwg.mxu0
        %v7373 = vpack.c.bf16 %v7368, %v7368
        %v7374 = vld [vmem:[%s20] sm:$0xf]
        %v7375 = vld [vmem:[%s20 + $0x4] sm:$0xf]
        %v7376 = vld [vmem:[%s20 + $0x8] sm:$0xf]
        %v7377 = vld [vmem:[%s20 + $0xc] sm:$0xf]
        %v7378 = vld [vmem:[%s20 + $0x10] sm:$0xf]
        %v7379 = vld [vmem:[%s20 + $0x14] sm:$0xf]
        %v7380 = vlaneseq
        %v7381 = vshrl.u32 %v7380, 7
        %v7382 = vsub.s32 4, %v7381
        %v7383 = vrot.slane %v693, %v7382
        %v7390 = vunpack.c.l.b16 %v7374
        %v7391 = vunpack.c.l.b16 %v7375
        %v7392 = vunpack.c.l.b16 %v7376
        %v7393 = vunpack.c.l.b16 %v7377
        %v7394 = vunpack.c.l.b16 %v7378
        %v7395 = vunpack.c.l.b16 %v7379
        %v7396 = vpack.c.b16 %v7391, %v7390
        %v7397 = vpack.c.b16 %v7393, %v7392
        %v7398 = vpack.c.b16 %v7395, %v7394
        %v7403 = vsel %vm6450, %v7373, 0
        %7405 = vmatprep.subr.bf16.mxu0 0
        %7406 = vmatpush1.bf16.msra.mxu0 %v7396
        %7407 = vmatprep.subr.bf16.mxu0 0
        %7408 = vmatpush1.bf16.msra.mxu0 %v7397
        %7409 = vmatprep.subr.bf16.mxu0 0
        %7410 = vmatpush1.bf16.msra.mxu0 %v7398
        %7411 = vmatprep.subr.bf16.mxu0 0
        %7412 = vmatpush1.bf16.msra.mxu0 0
        %7413 = vmatprep.subr.bf16.mxu0 0
        %7414 = vmatpush1.bf16.msra.mxu0 0
        %7415 = vmatprep.subr.bf16.mxu0 0
        %7416 = vmatpush1.bf16.msra.mxu0 0
        %7417 = vmatprep.subr.bf16.mxu0 0
        %7418 = vmatpush1.bf16.msra.mxu0 0
        %7419 = vmatprep.subr.bf16.mxu0 0
        %7420 = vmatpush1.bf16.msra.mxu0 0
        %7421 = vmatprep.subr.bf16.mxu0 0
        %7422 = vmatpush1.bf16.msra.mxu0 0
        %7423 = vmatprep.subr.bf16.mxu0 0
        %7424 = vmatpush1.bf16.msra.mxu0 0
        %7425 = vmatprep.subr.bf16.mxu0 0
        %7426 = vmatpush1.bf16.msra.mxu0 0
        %7427 = vmatprep.subr.bf16.mxu0 0
        %7428 = vmatpush1.bf16.msra.mxu0 0
        %7429 = vmatprep.subr.bf16.mxu0 0
        %7430 = vmatpush1.bf16.msra.mxu0 0
        %7431 = vmatprep.subr.bf16.mxu0 0
        %7432 = vmatpush1.bf16.msra.mxu0 0
        %7433 = vmatprep.subr.bf16.mxu0 0
        %7434 = vmatpush1.bf16.msra.mxu0 0
        %7435 = vmatprep.subr.bf16.mxu0 0
        %7436 = vmatpush1.bf16.msra.mxu0 0
        %7437 = vmatprep.mubr.bf16.mxu0 0
        %7438 = vmatmul.mubr.bf16.gmra.mrb[0].mxu0 %v7403
        %v7439 = vpop.f32.mrb[0].mxu0
        %v7440 = vadd.f32 %v7383, %v7439
        %v7441 = vpop.f32.mrb[0].mxu0
        %v7442 = vpop.f32.mrb[0].mxu0
        %v7443 = vpop.f32.mrb[0].mxu0
        %7444 = vdwg.mxu0
        %7445 = vst.msk [vmem:[%s650] sm:$0xff] %vm6557, %v7440
        %s7446 = sand.u32 %s489, 1
        %s7447 = scalar_lea.sflag [#allocation3], %s7446
        %s7448 = sand.u32 %s489, 1
        %s7449 = smul.addr %s7448, 8
        %s7450 = scalar_lea.vmem [#allocation2], %s7449
        // Predicated region
        $region105: #{forward.1} parent=103 // pred_check
          %p7451 = pneg %p499
        $region106: #{forward.1} parent=103 // pred_check_branch
          %7453 = sbr.rel (%p7451) target = $region108
        $region107: #{forward.1} parent=103 // pred_region
          %s7455 = ssub.s32 128, 128
          %7456 = vsyncadd %s7447, %s7455
          %s7457 = smul.addr %s35, 128
          %s7458 = scalar_lea.hbm %s21, %s7457
          %s7460 = sshll.u32 %s7450, 4
          %s7461 = int_to_ptr.vmem [resolvable:$true] %s7460
          %7463 = dma.vmem_to_hbm [thread:$0]  %s7461, 128, %s7458, %s7447
        $region108: #{forward.1} parent=103 // pred_fallthru
          _
      $region104: #{forward.1} parent=5 // pred_fallthru
        _
      %p7464 = scmp.le.s32.totalorder 2, %s30
      // Predicated region
      $region109: #{forward.1} parent=5 // pred_check
        %p7465 = pneg %p7464
      $region110: #{forward.1} parent=5 // pred_check_branch
        %7467 = sbr.rel (%p7465) target = $region112
      $region111: #{forward.1} parent=5 // pred_region
        %s7468 = ssub.s32 %s30, 2
        // Predicated region
        $region113: #{forward.1} parent=111 // pred_check
          %p7469 = pneg %p505
        $region114: #{forward.1} parent=111 // pred_check_branch
          %7471 = sbr.rel (%p7469) target = $region116
        $region115: #{forward.1} parent=111 // pred_region
          %s7472 = sand.u32 %s490, 1
          %s7473 = scalar_lea.sflag [#allocation3], %s7472
          %s7474 = sand.u32 %s490, 1
          %s7475 = smul.addr %s7474, 8
          %s7476 = scalar_lea.vmem [#allocation2], %s7475
          %7477 = dma.done %s7473, 128
        $region116: #{forward.1} parent=111 // pred_fallthru
          _
      $region112: #{forward.1} parent=5 // pred_fallthru
        _
    $region6: #{forward.1} parent=1 // loop_footer
      %s34 = sadd.s32 1, %s30
    $region7: #{forward.1} parent=1 // loop_footer_branch
      %29 = sbr.rel target = $region3
    $region8: #{forward.1} parent=1 // loop_exit
      _
    %7478 = vsyncpa [#allocation3], 1
    %s7479 = scalar_lea.sflag [#allocation3], 1
    %7480 = vsyncpa %s7479, 1

</llo_original>
